<compile_context>
chip_gen: v5e
topology: v5e:2x2
jax: 0.10.0
libtpu: 0.0.40
codegen_flags: <defaults>
</compile_context>

<pallas_src>
import functools

import jax
import jax.numpy as jnp
from jax.experimental import pallas as pl
from jax.experimental.pallas import tpu as pltpu


def _round_up(x, m):
    return (x + m - 1) // m * m


# --------------------------------------------------------------------------- fused matmul

def _fused_matmul_kernel(*refs, silu_in, has_ln, has_res, k_true, ln_eps):
    x_ref, w_ref, b_ref = refs[0], refs[1], refs[2]
    idx = 3
    if has_ln:
        g_ref, beta_ref = refs[idx], refs[idx + 1]
        idx += 2
    if has_res:
        r_ref = refs[idx]
        idx += 1
    o_ref = refs[idx]
    acc_ref = refs[idx + 1]

    k = pl.program_id(2)

    @pl.when(k == 0)
    def _():
        acc_ref[...] = jnp.zeros_like(acc_ref)

    x = x_ref[...].astype(jnp.float32)
    if silu_in:                                   # fused SiLU prologue (time MLP)
        x = x * jax.nn.sigmoid(x)
    if has_ln:                                    # fused LayerNorm prologue (single K block)
        inv_k = 1.0 / k_true
        mean = jnp.sum(x, axis=-1, keepdims=True) * inv_k
        ex2 = jnp.sum(x * x, axis=-1, keepdims=True) * inv_k
        var = ex2 - mean * mean
        x = (x - mean) * jax.lax.rsqrt(var + ln_eps)
        x = x * g_ref[...] + beta_ref[...]

    acc_ref[...] += jnp.dot(x.astype(jnp.bfloat16), w_ref[...],
                            preferred_element_type=jnp.float32)

    @pl.when(k == pl.num_programs(2) - 1)
    def _():
        y = acc_ref[...] + b_ref[...]
        if has_res:                               # fused residual-add epilogue
            y = y + r_ref[...]
        o_ref[...] = y.astype(o_ref.dtype)


def fused_matmul(x, w, b=None, *, silu_in=False, ln=None, ln_eps=1e-5,
                 residual=None, tm=256, tn=256, tk=512):
    """x: (M, K), w: (K, N), b: (N,) -> (M, N) f32.  bf16 MXU operands, f32 accumulate."""
    M, K = x.shape
    N = w.shape[1]
    has_ln = ln is not None
    has_res = residual is not None

    tm_ = min(tm, _round_up(M, 8))
    tn_ = min(tn, _round_up(N, 128))
    # LayerNorm prologue needs the full (true) K inside one block.
    tk_ = _round_up(K, 128) if has_ln else min(tk, _round_up(K, 128))
    Mp, Np, Kp = _round_up(M, tm_), _round_up(N, tn_), _round_up(K, tk_)

    xp = jnp.pad(x.astype(jnp.float32), ((0, Mp - M), (0, Kp - K)))
    wp = jnp.pad(w.astype(jnp.bfloat16), ((0, Kp - K), (0, Np - N)))
    if b is None:
        bp = jnp.zeros((1, Np), jnp.float32)
    else:
        bp = jnp.pad(b.reshape(1, N).astype(jnp.float32), ((0, 0), (0, Np - N)))

    in_specs = [
        pl.BlockSpec((tm_, tk_), lambda i, j, k: (i, k)),
        pl.BlockSpec((tk_, tn_), lambda i, j, k: (k, j)),
        pl.BlockSpec((1, tn_), lambda i, j, k: (0, j)),
    ]
    args = [xp, wp, bp]
    if has_ln:
        g, bt = ln
        args.append(jnp.pad(g.reshape(1, K).astype(jnp.float32), ((0, 0), (0, Kp - K))))
        args.append(jnp.pad(bt.reshape(1, K).astype(jnp.float32), ((0, 0), (0, Kp - K))))
        in_specs.append(pl.BlockSpec((1, tk_), lambda i, j, k: (0, k)))
        in_specs.append(pl.BlockSpec((1, tk_), lambda i, j, k: (0, k)))
    if has_res:
        args.append(jnp.pad(residual.astype(jnp.float32), ((0, Mp - M), (0, Np - N))))
        in_specs.append(pl.BlockSpec((tm_, tn_), lambda i, j, k: (i, j)))

    kernel = functools.partial(_fused_matmul_kernel, silu_in=silu_in, has_ln=has_ln,
                               has_res=has_res, k_true=float(K), ln_eps=ln_eps)
    out = pl.pallas_call(
        kernel,
        out_shape=jax.ShapeDtypeStruct((Mp, Np), jnp.float32),
        grid=(Mp // tm_, Np // tn_, Kp // tk_),
        in_specs=in_specs,
        out_specs=pl.BlockSpec((tm_, tn_), lambda i, j, k: (i, j)),
        scratch_shapes=[pltpu.VMEM((tm_, tn_), jnp.float32)],
        compiler_params=pltpu.CompilerParams(
            dimension_semantics=("parallel", "parallel", "arbitrary"),
            vmem_limit_bytes=64 * 1024 * 1024),
    )(*args)
    return out[:M, :N]


# --------------------------------------------------------------------------- groupnorm

def _groupnorm_kernel(x_ref, m_ref, mt_ref, g_ref, b_ref, o_ref, *, eps, silu, inv_cnt):
    x = x_ref[0]                                          # (L, C) f32, C on lane axis
    m = m_ref[...]                                        # (C, G) group indicator
    mt = mt_ref[...]                                      # (G, C)
    s = jnp.sum(x, axis=0, keepdims=True)                 # (1, C)
    ss = jnp.sum(x * x, axis=0, keepdims=True)
    gsum = jnp.dot(s, m, preferred_element_type=jnp.float32)    # (1, G)
    gsq = jnp.dot(ss, m, preferred_element_type=jnp.float32)
    mean_g = gsum * inv_cnt
    var_g = gsq * inv_cnt - mean_g * mean_g
    rstd_g = jax.lax.rsqrt(var_g + eps)
    mean_c = jnp.dot(mean_g, mt, preferred_element_type=jnp.float32)  # broadcast back (1, C)
    rstd_c = jnp.dot(rstd_g, mt, preferred_element_type=jnp.float32)
    y = (x - mean_c) * rstd_c * g_ref[0] + b_ref[0]
    if silu:
        y = y * jax.nn.sigmoid(y)
    o_ref[...] = y[None]


def groupnorm(x, gamma, beta, *, groups=32, eps=1e-5, silu=False):
    """x: (B, L, C) channels-last; per-(batch, group) normalization (torch GroupNorm)."""
    B, L, C = x.shape
    G = groups
    Cg = C // G
    m = jnp.repeat(jnp.eye(G, dtype=jnp.float32), Cg, axis=0)   # (C, G)
    mt = jnp.transpose(m)                                       # (G, C)
    kernel = functools.partial(_groupnorm_kernel, eps=eps, silu=silu,
                               inv_cnt=1.0 / float(L * Cg))
    return pl.pallas_call(
        kernel,
        out_shape=jax.ShapeDtypeStruct((B, L, C), jnp.float32),
        grid=(B,),
        in_specs=[
            pl.BlockSpec((1, L, C), lambda b: (b, 0, 0)),
            pl.BlockSpec((C, G), lambda b: (0, 0)),
            pl.BlockSpec((G, C), lambda b: (0, 0)),
            pl.BlockSpec((1, 1, C), lambda b: (0, 0, 0)),
            pl.BlockSpec((1, 1, C), lambda b: (0, 0, 0)),
        ],
        out_specs=pl.BlockSpec((1, L, C), lambda b: (b, 0, 0)),
        compiler_params=pltpu.CompilerParams(dimension_semantics=("parallel",)),
    )(x.astype(jnp.float32), m, mt,
      gamma.reshape(1, 1, C).astype(jnp.float32),
      beta.reshape(1, 1, C).astype(jnp.float32))


# --------------------------------------------------------------------------- conv1d (k=3)

def _conv3_kernel(*refs, has_time, has_res, L):
    x_ref, w_ref, b_ref = refs[0], refs[1], refs[2]
    idx = 3
    if has_time:
        t_ref = refs[idx]
        idx += 1
    if has_res:
        r_ref = refs[idx]
        idx += 1
    o_ref = refs[idx]

    w = w_ref[...]                                        # (3, Cin, Cout) bf16
    x0 = x_ref[0, 0:L, :].astype(jnp.bfloat16)            # three shifted views of the
    x1 = x_ref[0, 1:L + 1, :].astype(jnp.bfloat16)        # padded (L+2, Cin) tile
    x2 = x_ref[0, 2:L + 2, :].astype(jnp.bfloat16)
    acc = jnp.dot(x0, w[0], preferred_element_type=jnp.float32)
    acc = acc + jnp.dot(x1, w[1], preferred_element_type=jnp.float32)
    acc = acc + jnp.dot(x2, w[2], preferred_element_type=jnp.float32)
    y = acc + b_ref[...]
    if has_time:                                          # fused time-embedding add
        y = y + t_ref[0]
    if has_res:                                           # fused residual add
        y = y + r_ref[0]
    o_ref[...] = y[None].astype(o_ref.dtype)


def conv1d_k3(x, w, b, *, time_add=None, residual=None):
    """Channels-last Conv1d(kernel=3, pad=1). x: (B, L, Cin), w: (Cout, Cin, 3)."""
    # TODO(synk): tile over L / Cout for very long sequences; per-batch blocks are
    # sufficient (and parallel over the grid) at these sizes.
    B, L, Cin = x.shape
    Cout = w.shape[0]
    xp = jnp.pad(x.astype(jnp.float32), ((0, 0), (1, 1), (0, 0)))     # (B, L+2, Cin)
    wk = jnp.transpose(w, (2, 1, 0)).astype(jnp.bfloat16)             # (3, Cin, Cout)
    bb = b.reshape(1, Cout).astype(jnp.float32)

    in_specs = [
        pl.BlockSpec((1, L + 2, Cin), lambda bi: (bi, 0, 0)),
        pl.BlockSpec((3, Cin, Cout), lambda bi: (0, 0, 0)),
        pl.BlockSpec((1, Cout), lambda bi: (0, 0)),
    ]
    args = [xp, wk, bb]
    if time_add is not None:
        args.append(time_add.reshape(B, 1, Cout).astype(jnp.float32))
        in_specs.append(pl.BlockSpec((1, 1, Cout), lambda bi: (bi, 0, 0)))
    if residual is not None:
        args.append(residual.astype(jnp.float32))
        in_specs.append(pl.BlockSpec((1, L, Cout), lambda bi: (bi, 0, 0)))

    kernel = functools.partial(_conv3_kernel, has_time=time_add is not None,
                               has_res=residual is not None, L=L)
    return pl.pallas_call(
        kernel,
        out_shape=jax.ShapeDtypeStruct((B, L, Cout), jnp.float32),
        grid=(B,),
        in_specs=in_specs,
        out_specs=pl.BlockSpec((1, L, Cout), lambda bi: (bi, 0, 0)),
        compiler_params=pltpu.CompilerParams(
            dimension_semantics=("parallel",),
            vmem_limit_bytes=64 * 1024 * 1024),
    )(*args)


# --------------------------------------------------------------------------- attention

def _attention_kernel(q_ref, k_ref, v_ref, o_ref, *, scale):
    q = q_ref[...].astype(jnp.bfloat16)                   # (1, Lq, Dh)
    k = k_ref[...].astype(jnp.bfloat16)                   # (1, Lk, Dh)
    v = v_ref[...].astype(jnp.bfloat16)
    s = jnp.einsum('bqd,bkd->bqk', q, k, preferred_element_type=jnp.float32) * scale
    s = s - jnp.max(s, axis=-1, keepdims=True)            # softmax kept in f32
    p = jnp.exp(s)
    p = p * pl.reciprocal(jnp.sum(p, axis=-1, keepdims=True), approx=True)
    o = jnp.einsum('bqk,bkd->bqd', p.astype(jnp.bfloat16), v,
                   preferred_element_type=jnp.float32)
    o_ref[...] = o.astype(o_ref.dtype)


def mha(q, k, v, scale):
    """q: (BH, Lq, Dh), k/v: (BH, Lk, Dh) -> (BH, Lq, Dh); grid parallel over heads."""
    # TODO(synk): flash-style Lk tiling with an online-softmax accumulator for long Lk.
    BH, Lq, Dh = q.shape
    Lk = k.shape[1]
    return pl.pallas_call(
        functools.partial(_attention_kernel, scale=scale),
        out_shape=jax.ShapeDtypeStruct((BH, Lq, Dh), jnp.float32),
        grid=(BH,),
        in_specs=[pl.BlockSpec((1, Lq, Dh), lambda h: (h, 0, 0)),
                  pl.BlockSpec((1, Lk, Dh), lambda h: (h, 0, 0)),
                  pl.BlockSpec((1, Lk, Dh), lambda h: (h, 0, 0))],
        out_specs=pl.BlockSpec((1, Lq, Dh), lambda h: (h, 0, 0)),
        compiler_params=pltpu.CompilerParams(dimension_semantics=("parallel",)),
    )(q, k, v)


# --------------------------------------------------------------------------- glue

def _split_heads(x, B, Lx, H, Dh):
    return x.reshape(B, Lx, H, Dh).transpose(0, 2, 1, 3).reshape(B * H, Lx, Dh)


def _merge_heads(x, B, Lq, H, Dh):
    return x.reshape(B, H, Lq, Dh).transpose(0, 2, 1, 3).reshape(B, Lq, H * Dh)


def self_attention_block(p, h, ln_g, ln_b):
    """h: (B, L, dim) -> atten(LN(h), LN(h)) + h, LN and residual fused into matmuls."""
    B, L, dim = h.shape
    H, Dh = 8, dim // 8
    hf = h.reshape(B * L, dim)
    wqkv = jnp.concatenate([p['q_w'].T, p['k_w'].T, p['v_w'].T], axis=1)  # (dim, 3*dim)
    qkv = fused_matmul(hf, wqkv, None, ln=(ln_g, ln_b)).reshape(B, L, 3 * dim)
    q, k, v = qkv[..., :dim], qkv[..., dim:2 * dim], qkv[..., 2 * dim:]
    o = mha(_split_heads(q, B, L, H, Dh), _split_heads(k, B, L, H, Dh),
            _split_heads(v, B, L, H, Dh), scale=float(Dh) ** -0.5)
    o = _merge_heads(o, B, L, H, Dh)
    out = fused_matmul(o.reshape(B * L, dim), p['out_w'].T, p['out_b'], residual=hf)
    return out.reshape(B, L, dim)


def cross_attention_block(p, h, kv, ln_g, ln_b):
    """h: (B, L, dim) queries, kv: (B, Lk, dim_kv) -> atten(LN(h), kv) + h."""
    B, L, dim = h.shape
    Lk, dim_kv = kv.shape[1], kv.shape[2]
    H, Dh = 8, dim // 8
    hf = h.reshape(B * L, dim)
    q = fused_matmul(hf, p['q_w'].T, None, ln=(ln_g, ln_b)).reshape(B, L, dim)
    wkv = jnp.concatenate([p['k_w'].T, p['v_w'].T], axis=1)               # (dim_kv, 2*dim)
    kvp = fused_matmul(kv.reshape(B * Lk, dim_kv), wkv, None).reshape(B, Lk, 2 * dim)
    k, v = kvp[..., :dim], kvp[..., dim:]
    o = mha(_split_heads(q, B, L, H, Dh), _split_heads(k, B, Lk, H, Dh),
            _split_heads(v, B, Lk, H, Dh), scale=float(Dh) ** -0.5)
    o = _merge_heads(o, B, L, H, Dh)
    out = fused_matmul(o.reshape(B * L, dim), p['out_w'].T, p['out_b'], residual=hf)
    return out.reshape(B, L, dim)


def transformer_forward(p, x, kv):
    """x: (B, L, dim) channels-last, kv: (B, Lk, 1024)."""
    B, L, dim = x.shape
    res1 = x
    h = groupnorm(x, p['gn_g'], p['gn_b'], eps=1e-6, silu=False)
    h = fused_matmul(h.reshape(B * L, dim), p['cnn_in_w'][:, :, 0].T,
                     p['cnn_in_b']).reshape(B, L, dim)

    h = self_attention_block(p['atten1'], h, p['ln0_g'], p['ln0_b'])
    h = cross_attention_block(p['atten2'], h, kv, p['ln1_g'], p['ln1_b'])

    hf = h.reshape(B * L, dim)
    z = fused_matmul(hf, p['fc0_w'].T, p['fc0_b'], ln=(p['ln2_g'], p['ln2_b']))
    d = z.shape[-1] // 2
    # TODO(synk): exact (erf) GELU gate stays as one fused XLA elementwise op; Mosaic erf
    # lowering is not guaranteed, so it is not folded into the matmul epilogue.
    z = z[:, :d] * jax.nn.gelu(z[:, d:], approximate=False)
    h = fused_matmul(z, p['fc1_w'].T, p['fc1_b'], residual=hf).reshape(B, L, dim)

    out = fused_matmul(h.reshape(B * L, dim), p['cnn_out_w'][:, :, 0].T,
                       p['cnn_out_b'], residual=res1.reshape(B * L, dim))
    return out.reshape(B, L, dim)


def resnet_forward(p, x, time):
    """x: (B, L, Cin) channels-last, time: (B, 1280) -> (B, L, Cout)."""
    B, L, Cin = x.shape
    Cout = p['conv0_b'].shape[0]
    t = fused_matmul(time, p['time_w'].T, p['time_b'], silu_in=True)      # SiLU -> Linear
    h = groupnorm(x, p['gn0_g'], p['gn0_b'], eps=1e-5, silu=True)
    h = conv1d_k3(h, p['conv0_w'], p['conv0_b'], time_add=t)              # conv + time add
    h = groupnorm(h, p['gn1_g'], p['gn1_b'], eps=1e-5, silu=True)
    if 'res_w' in p:
        res = fused_matmul(x.reshape(B * L, Cin), p['res_w'][:, :, 0].T,
                           p['res_b']).reshape(B, L, Cout)
    else:
        res = x
    return conv1d_k3(h, p['conv1_w'], p['conv1_b'], residual=res)         # conv + skip add


def upblock_forward(params, out_vae, out_encoder, time, out_down):
    """out_vae: (B, C, L) NCL, out_encoder: (B, Lk, 1024), time: (B, 1280)."""
    # Single NCL -> channels-last transpose at the boundary; everything inside is NLC.
    skips = [jnp.transpose(s, (0, 2, 1)) for s in out_down]
    x = jnp.transpose(out_vae, (0, 2, 1))
    x = resnet_forward(params['res0'], jnp.concatenate([x, skips.pop()], -1), time)
    x = transformer_forward(params['tf0'], x, out_encoder)
    x = resnet_forward(params['res1'], jnp.concatenate([x, skips.pop()], -1), time)
    x = transformer_forward(params['tf1'], x, out_encoder)
    x = resnet_forward(params['res2'], jnp.concatenate([x, skips.pop()], -1), time)
    x = transformer_forward(params['tf2'], x, out_encoder)
    x = conv1d_k3(x, params['out_w'], params['out_b'])
    return jnp.transpose(x, (0, 2, 1))                                    # back to NCL


# --------------------------------------------------------------------------- params

def init_upblock_params(key, dim_in, dim_out):
    counter = [0]

    def rnd(shape, scale=0.05):
        counter[0] += 1
        k = jax.random.fold_in(key, counter[0])
        return (scale * jax.random.normal(k, shape)).astype(jnp.float32)

    def resnet_p(cin, cout):
        p = dict(
            time_w=rnd((cout, 1280)), time_b=rnd((cout,)),
            gn0_g=1.0 + rnd((cin,)), gn0_b=rnd((cin,)),
            conv0_w=rnd((cout, cin, 3)), conv0_b=rnd((cout,)),
            gn1_g=1.0 + rnd((cout,)), gn1_b=rnd((cout,)),
            conv1_w=rnd((cout, cout, 3)), conv1_b=rnd((cout,)),
        )
        if cin != cout:
            p['res_w'] = rnd((cout, cin, 1))
            p['res_b'] = rnd((cout,))
        return p

    def attn_p(dq, dkv):
        return dict(q_w=rnd((dq, dq)), k_w=rnd((dq, dkv)), v_w=rnd((dq, dkv)),
                    out_w=rnd((dq, dq)), out_b=rnd((dq,)))

    def transformer_p(dim):
        return dict(
            gn_g=1.0 + rnd((dim,)), gn_b=rnd((dim,)),
            cnn_in_w=rnd((dim, dim, 1)), cnn_in_b=rnd((dim,)),
            ln0_g=1.0 + rnd((dim,)), ln0_b=rnd((dim,)),
            atten1=attn_p(dim, dim),
            ln1_g=1.0 + rnd((dim,)), ln1_b=rnd((dim,)),
            atten2=attn_p(dim, 1024),
            ln2_g=1.0 + rnd((dim,)), ln2_b=rnd((dim,)),
            fc0_w=rnd((dim * 8, dim)), fc0_b=rnd((dim * 8,)),
            fc1_w=rnd((dim, dim * 4)), fc1_b=rnd((dim,)),
            cnn_out_w=rnd((dim, dim, 1)), cnn_out_b=rnd((dim,)),
        )

    return dict(
        res0=resnet_p(dim_in + dim_in, dim_out),
        res1=resnet_p(dim_out + dim_in, dim_out),
        res2=resnet_p(dim_out + dim_in, dim_out),
        tf0=transformer_p(dim_out),
        tf1=transformer_p(dim_out),
        tf2=transformer_p(dim_out),
        out_w=rnd((dim_out, dim_out, 3)), out_b=rnd((dim_out,)),
    )


# --------------------------------------------------------------------------- main

if __name__ == "__main__":
    B, DIM_IN, DIM_OUT, L, L_ENC = 2, 32, 64, 16, 8

    key = jax.random.PRNGKey(0)
    params = init_upblock_params(jax.random.fold_in(key, 1), DIM_IN, DIM_OUT)

    out_vae = jax.random.normal(jax.random.fold_in(key, 2), (B, DIM_IN, L), jnp.float32)
    out_encoder = jax.random.normal(jax.random.fold_in(key, 3), (B, L_ENC, 1024), jnp.float32)
    time = jax.random.normal(jax.random.fold_in(key, 4), (B, 1280), jnp.float32)
    out_down = [
        jax.random.normal(jax.random.fold_in(key, 5 + i), (B, DIM_IN, L), jnp.float32)
        for i in range(3)
    ]

    fwd = jax.jit(upblock_forward)
    y = fwd(params, out_vae, out_encoder, time, out_down)
    jax.block_until_ready(y)
    assert y.shape == (B, DIM_OUT, L) and y.dtype == jnp.float32
    assert bool(jnp.all(jnp.isfinite(y)))
    print("KERNEL_OK")
</pallas_src>

<mosaic_0001>
module attributes {stable_mosaic.version = 11 : i64} {
  func.func @_groupnorm_kernel(%arg0: i32, %arg1: memref<1x16x64xf32, #tpu.memory_space<vmem>>, %arg2: memref<64x32xf32, #tpu.memory_space<vmem>>, %arg3: memref<32x64xf32, #tpu.memory_space<vmem>>, %arg4: memref<1x1x64xf32, #tpu.memory_space<vmem>>, %arg5: memref<1x1x64xf32, #tpu.memory_space<vmem>>, %arg6: memref<1x16x64xf32, #tpu.memory_space<vmem>>) attributes {dimension_semantics = [#tpu.dimension_semantics<parallel>], iteration_bounds = array<i64: 2>, scalar_prefetch = 0 : i64, scratch_operands = 0 : i64, tpu.core_type = #tpu.core_type<tc>, window_params = [{transform_indices = @transform_0, window_bounds = array<i64: 1, 16, 64>}, {pipeline_mode = #tpu.pipeline_mode<synchronous>, transform_indices = @transform_1, window_bounds = array<i64: 64, 32>}, {pipeline_mode = #tpu.pipeline_mode<synchronous>, transform_indices = @transform_2, window_bounds = array<i64: 32, 64>}, {pipeline_mode = #tpu.pipeline_mode<synchronous>, transform_indices = @transform_3, window_bounds = array<i64: 1, 1, 64>}, {pipeline_mode = #tpu.pipeline_mode<synchronous>, transform_indices = @transform_4, window_bounds = array<i64: 1, 1, 64>}, {transform_indices = @transform_5, window_bounds = array<i64: 1, 16, 64>}]} {
    %c0 = arith.constant 0 : index
    %c0_0 = arith.constant 0 : index
    %c0_1 = arith.constant 0 : index
    %0 = vector.load %arg1[%c0, %c0_0, %c0_1] : memref<1x16x64xf32, #tpu.memory_space<vmem>>, vector<1x16x64xf32>
    %1 = vector.shape_cast %0 : vector<1x16x64xf32> to vector<16x64xf32>
    %c0_2 = arith.constant 0 : index
    %c0_3 = arith.constant 0 : index
    %2 = vector.load %arg2[%c0_2, %c0_3] : memref<64x32xf32, #tpu.memory_space<vmem>>, vector<64x32xf32>
    %c0_4 = arith.constant 0 : index
    %c0_5 = arith.constant 0 : index
    %3 = vector.load %arg3[%c0_4, %c0_5] : memref<32x64xf32, #tpu.memory_space<vmem>>, vector<32x64xf32>
    %cst = arith.constant dense<0.000000e+00> : vector<64xf32>
    %4 = vector.multi_reduction <add>, %1, %cst [0] : vector<16x64xf32> to vector<64xf32>
    %5 = vector.shape_cast %4 : vector<64xf32> to vector<1x64xf32>
    %6 = arith.mulf %1, %1 : vector<16x64xf32>
    %cst_6 = arith.constant dense<0.000000e+00> : vector<64xf32>
    %7 = vector.multi_reduction <add>, %6, %cst_6 [0] : vector<16x64xf32> to vector<64xf32>
    %8 = vector.shape_cast %7 : vector<64xf32> to vector<1x64xf32>
    %cst_7 = arith.constant dense<0.000000e+00> : vector<1x32xf32>
    %9 = tpu.matmul %5, %2, %cst_7 {dimension_numbers = #tpu.dot_dimension_numbers<[1], [0], [0], [1], [0, 0, 1, 1], [], []>} : vector<1x64xf32>, vector<64x32xf32>, vector<1x32xf32> -> vector<1x32xf32>
    %cst_8 = arith.constant dense<0.000000e+00> : vector<1x32xf32>
    %10 = tpu.matmul %8, %2, %cst_8 {dimension_numbers = #tpu.dot_dimension_numbers<[1], [0], [0], [1], [0, 0, 1, 1], [], []>} : vector<1x64xf32>, vector<64x32xf32>, vector<1x32xf32> -> vector<1x32xf32>
    %cst_9 = arith.constant 3.125000e-02 : f32
    %11 = vector.broadcast %cst_9 : f32 to vector<1x32xf32>
    %12 = arith.mulf %9, %11 : vector<1x32xf32>
    %cst_10 = arith.constant 3.125000e-02 : f32
    %13 = vector.broadcast %cst_10 : f32 to vector<1x32xf32>
    %14 = arith.mulf %10, %13 : vector<1x32xf32>
    %15 = arith.mulf %12, %12 : vector<1x32xf32>
    %16 = arith.subf %14, %15 : vector<1x32xf32>
    %cst_11 = arith.constant 9.99999974E-6 : f32
    %17 = vector.broadcast %cst_11 : f32 to vector<1x32xf32>
    %18 = arith.addf %16, %17 : vector<1x32xf32>
    %19 = math.rsqrt %18 : vector<1x32xf32>
    %cst_12 = arith.constant dense<0.000000e+00> : vector<1x64xf32>
    %20 = tpu.matmul %12, %3, %cst_12 {dimension_numbers = #tpu.dot_dimension_numbers<[1], [0], [0], [1], [0, 0, 1, 1], [], []>} : vector<1x32xf32>, vector<32x64xf32>, vector<1x64xf32> -> vector<1x64xf32>
    %cst_13 = arith.constant dense<0.000000e+00> : vector<1x64xf32>
    %21 = tpu.matmul %19, %3, %cst_13 {dimension_numbers = #tpu.dot_dimension_numbers<[1], [0], [0], [1], [0, 0, 1, 1], [], []>} : vector<1x32xf32>, vector<32x64xf32>, vector<1x64xf32> -> vector<1x64xf32>
    %22 = vector.broadcast %20 : vector<1x64xf32> to vector<16x64xf32>
    %23 = arith.subf %1, %22 : vector<16x64xf32>
    %24 = vector.broadcast %21 : vector<1x64xf32> to vector<16x64xf32>
    %25 = arith.mulf %23, %24 : vector<16x64xf32>
    %c0_14 = arith.constant 0 : index
    %c0_15 = arith.constant 0 : index
    %c0_16 = arith.constant 0 : index
    %26 = vector.load %arg4[%c0_14, %c0_15, %c0_16] : memref<1x1x64xf32, #tpu.memory_space<vmem>>, vector<1x1x64xf32>
    %27 = vector.shape_cast %26 : vector<1x1x64xf32> to vector<1x64xf32>
    %28 = vector.broadcast %27 : vector<1x64xf32> to vector<16x64xf32>
    %29 = arith.mulf %25, %28 : vector<16x64xf32>
    %c0_17 = arith.constant 0 : index
    %c0_18 = arith.constant 0 : index
    %c0_19 = arith.constant 0 : index
    %30 = vector.load %arg5[%c0_17, %c0_18, %c0_19] : memref<1x1x64xf32, #tpu.memory_space<vmem>>, vector<1x1x64xf32>
    %31 = vector.shape_cast %30 : vector<1x1x64xf32> to vector<1x64xf32>
    %32 = vector.broadcast %31 : vector<1x64xf32> to vector<16x64xf32>
    %33 = arith.addf %29, %32 : vector<16x64xf32>
    %34 = arith.negf %33 : vector<16x64xf32>
    %35 = math.exp %34 : vector<16x64xf32>
    %cst_20 = arith.constant 1.000000e+00 : f32
    %36 = vector.broadcast %cst_20 : f32 to vector<16x64xf32>
    %37 = arith.addf %36, %35 : vector<16x64xf32>
    %38 = arith.divf %36, %37 : vector<16x64xf32>
    %39 = arith.mulf %33, %38 : vector<16x64xf32>
    %40 = vector.shape_cast %39 : vector<16x64xf32> to vector<1x16x64xf32>
    %c0_21 = arith.constant 0 : index
    %c0_22 = arith.constant 0 : index
    %c0_23 = arith.constant 0 : index
    %41 = vector.load %arg6[%c0_21, %c0_22, %c0_23] : memref<1x16x64xf32, #tpu.memory_space<vmem>>, vector<1x16x64xf32>
    tpu.vector_store %arg6[%c0_21, %c0_22, %c0_23], %40 {strides = array<i32>} : memref<1x16x64xf32, #tpu.memory_space<vmem>>, vector<1x16x64xf32>,
    return
  }
  func.func @transform_0(%arg0: i32) -> (i32, i32, i32) {
    %c0_i32 = arith.constant 0 : i32
    %c0_i32_0 = arith.constant 0 : i32
    %c0_i32_1 = arith.constant 0 : i32
    return %arg0, %c0_i32, %c0_i32_0 : i32, i32, i32
  }
  func.func @transform_1(%arg0: i32) -> (i32, i32) {
    %c0_i32 = arith.constant 0 : i32
    %c0_i32_0 = arith.constant 0 : i32
    %c0_i32_1 = arith.constant 0 : i32
    return %c0_i32, %c0_i32_0 : i32, i32
  }
  func.func @transform_2(%arg0: i32) -> (i32, i32) {
    %c0_i32 = arith.constant 0 : i32
    %c0_i32_0 = arith.constant 0 : i32
    %c0_i32_1 = arith.constant 0 : i32
    return %c0_i32, %c0_i32_0 : i32, i32
  }
  func.func @transform_3(%arg0: i32) -> (i32, i32, i32) {
    %c0_i32 = arith.constant 0 : i32
    %c0_i32_0 = arith.constant 0 : i32
    %c0_i32_1 = arith.constant 0 : i32
    %c0_i32_2 = arith.constant 0 : i32
    return %c0_i32, %c0_i32_0, %c0_i32_1 : i32, i32, i32
  }
  func.func @transform_4(%arg0: i32) -> (i32, i32, i32) {
    %c0_i32 = arith.constant 0 : i32
    %c0_i32_0 = arith.constant 0 : i32
    %c0_i32_1 = arith.constant 0 : i32
    %c0_i32_2 = arith.constant 0 : i32
    return %c0_i32, %c0_i32_0, %c0_i32_1 : i32, i32, i32
  }
  func.func @transform_5(%arg0: i32) -> (i32, i32, i32) {
    %c0_i32 = arith.constant 0 : i32
    %c0_i32_0 = arith.constant 0 : i32
    %c0_i32_1 = arith.constant 0 : i32
    return %arg0, %c0_i32, %c0_i32_0 : i32, i32, i32
  }
}

module attributes {stable_mosaic.version = 11 : i64} {
  func.func @_fused_matmul_kernel(%arg0: i32, %arg1: i32, %arg2: i32, %arg3: memref<8x512xf32, #tpu.memory_space<vmem>>, %arg4: memref<512x128xbf16, #tpu.memory_space<vmem>>, %arg5: memref<1x128xf32, #tpu.memory_space<vmem>>, %arg6: memref<8x128xf32, #tpu.memory_space<vmem>>, %arg7: memref<8x128xf32, #tpu.memory_space<vmem>>) attributes {dimension_semantics = [#tpu.dimension_semantics<parallel>, #tpu.dimension_semantics<parallel>, #tpu.dimension_semantics<arbitrary>], iteration_bounds = array<i64: 1, 1, 3>, scalar_prefetch = 0 : i64, scratch_operands = 1 : i64, tpu.core_type = #tpu.core_type<tc>, window_params = [{transform_indices = @transform_0, window_bounds = array<i64: 8, 512>}, {transform_indices = @transform_1, window_bounds = array<i64: 512, 128>}, {transform_indices = @transform_2, window_bounds = array<i64: 1, 128>}, {transform_indices = @transform_3, window_bounds = array<i64: 8, 128>}]} {
    %c0_i32 = arith.constant 0 : i32
    %0 = arith.cmpi eq, %arg2, %c0_i32 : i32
    %1 = arith.extui %0 : i1 to i32
    %c0_i32_0 = arith.constant 0 : i32
    %2 = arith.cmpi ne, %1, %c0_i32_0 : i32
    scf.if %2 {
      %cst_10 = arith.constant 0.000000e+00 : f32
      %19 = vector.broadcast %cst_10 : f32 to vector<8x128xf32>
      %c0_11 = arith.constant 0 : index
      %c0_12 = arith.constant 0 : index
      %20 = vector.load %arg7[%c0_11, %c0_12] : memref<8x128xf32, #tpu.memory_space<vmem>>, vector<8x128xf32>
      tpu.vector_store %arg7[%c0_11, %c0_12], %19 {strides = array<i32>} : memref<8x128xf32, #tpu.memory_space<vmem>>, vector<8x128xf32>,
    } else {
    }
    %c0 = arith.constant 0 : index
    %c0_1 = arith.constant 0 : index
    %3 = vector.load %arg3[%c0, %c0_1] : memref<8x512xf32, #tpu.memory_space<vmem>>, vector<8x512xf32>
    %4 = arith.negf %3 : vector<8x512xf32>
    %5 = math.exp %4 : vector<8x512xf32>
    %cst = arith.constant 1.000000e+00 : f32
    %6 = vector.broadcast %cst : f32 to vector<8x512xf32>
    %7 = arith.addf %6, %5 : vector<8x512xf32>
    %8 = arith.divf %6, %7 : vector<8x512xf32>
    %9 = arith.mulf %3, %8 : vector<8x512xf32>
    %c0_2 = arith.constant 0 : index
    %c0_3 = arith.constant 0 : index
    %10 = vector.load %arg7[%c0_2, %c0_3] : memref<8x128xf32, #tpu.memory_space<vmem>>, vector<8x128xf32>
    %11 = arith.truncf %9 : vector<8x512xf32> to vector<8x512xbf16>
    %c0_4 = arith.constant 0 : index
    %c0_5 = arith.constant 0 : index
    %12 = vector.load %arg4[%c0_4, %c0_5] : memref<512x128xbf16, #tpu.memory_space<vmem>>, vector<512x128xbf16>
    %cst_6 = arith.constant dense<0.000000e+00> : vector<8x128xf32>
    %13 = tpu.matmul %11, %12, %cst_6 {dimension_numbers = #tpu.dot_dimension_numbers<[1], [0], [0], [1], [0, 0, 1, 1], [], []>} : vector<8x512xbf16>, vector<512x128xbf16>, vector<8x128xf32> -> vector<8x128xf32>
    %14 = arith.addf %10, %13 : vector<8x128xf32>
    %c0_7 = arith.constant 0 : index
    %c0_8 = arith.constant 0 : index
    %15 = vector.load %arg7[%c0_7, %c0_8] : memref<8x128xf32, #tpu.memory_space<vmem>>, vector<8x128xf32>
    tpu.vector_store %arg7[%c0_7, %c0_8], %14 {strides = array<i32>} : memref<8x128xf32, #tpu.memory_space<vmem>>, vector<8x128xf32>,
    %c2_i32 = arith.constant 2 : i32
    %16 = arith.cmpi eq, %arg2, %c2_i32 : i32
    %17 = arith.extui %16 : i1 to i32
    %c0_i32_9 = arith.constant 0 : i32
    %18 = arith.cmpi ne, %17, %c0_i32_9 : i32
    scf.if %18 {
      %c0_10 = arith.constant 0 : index
      %c0_11 = arith.constant 0 : index
      %19 = vector.load %arg7[%c0_10, %c0_11] : memref<8x128xf32, #tpu.memory_space<vmem>>, vector<8x128xf32>
      %c0_12 = arith.constant 0 : index
      %c0_13 = arith.constant 0 : index
      %20 = vector.load %arg5[%c0_12, %c0_13] : memref<1x128xf32, #tpu.memory_space<vmem>>, vector<1x128xf32>
      %21 = vector.broadcast %20 : vector<1x128xf32> to vector<8x128xf32>
      %22 = arith.addf %19, %21 : vector<8x128xf32>
      %c0_14 = arith.constant 0 : index
      %c0_15 = arith.constant 0 : index
      %23 = vector.load %arg6[%c0_14, %c0_15] : memref<8x128xf32, #tpu.memory_space<vmem>>, vector<8x128xf32>
      tpu.vector_store %arg6[%c0_14, %c0_15], %22 {strides = array<i32>} : memref<8x128xf32, #tpu.memory_space<vmem>>, vector<8x128xf32>,
    } else {
    }
    return
  }
  func.func @transform_0(%arg0: i32, %arg1: i32, %arg2: i32) -> (i32, i32) {
    %c0_i32 = arith.constant 0 : i32
    return %arg0, %arg2 : i32, i32
  }
  func.func @transform_1(%arg0: i32, %arg1: i32, %arg2: i32) -> (i32, i32) {
    %c0_i32 = arith.constant 0 : i32
    return %arg2, %arg1 : i32, i32
  }
  func.func @transform_2(%arg0: i32, %arg1: i32, %arg2: i32) -> (i32, i32) {
    %c0_i32 = arith.constant 0 : i32
    %c0_i32_0 = arith.constant 0 : i32
    return %c0_i32, %arg1 : i32, i32
  }
  func.func @transform_3(%arg0: i32, %arg1: i32, %arg2: i32) -> (i32, i32) {
    %c0_i32 = arith.constant 0 : i32
    return %arg0, %arg1 : i32, i32
  }
}

module attributes {stable_mosaic.version = 11 : i64} {
  func.func @_conv3_kernel(%arg0: i32, %arg1: memref<1x18x64xf32, #tpu.memory_space<vmem>>, %arg2: memref<3x64x64xbf16, #tpu.memory_space<vmem>>, %arg3: memref<1x64xf32, #tpu.memory_space<vmem>>, %arg4: memref<1x1x64xf32, #tpu.memory_space<vmem>>, %arg5: memref<1x16x64xf32, #tpu.memory_space<vmem>>) attributes {dimension_semantics = [#tpu.dimension_semantics<parallel>], iteration_bounds = array<i64: 2>, scalar_prefetch = 0 : i64, scratch_operands = 0 : i64, tpu.core_type = #tpu.core_type<tc>, window_params = [{transform_indices = @transform_0, window_bounds = array<i64: 1, 18, 64>}, {pipeline_mode = #tpu.pipeline_mode<synchronous>, transform_indices = @transform_1, window_bounds = array<i64: 3, 64, 64>}, {pipeline_mode = #tpu.pipeline_mode<synchronous>, transform_indices = @transform_2, window_bounds = array<i64: 1, 64>}, {transform_indices = @transform_3, window_bounds = array<i64: 1, 1, 64>}, {transform_indices = @transform_4, window_bounds = array<i64: 1, 16, 64>}]} {
    %c0 = arith.constant 0 : index
    %c0_0 = arith.constant 0 : index
    %c0_1 = arith.constant 0 : index
    %0 = vector.load %arg2[%c0, %c0_0, %c0_1] : memref<3x64x64xbf16, #tpu.memory_space<vmem>>, vector<3x64x64xbf16>
    %c0_2 = arith.constant 0 : index
    %c0_3 = arith.constant 0 : index
    %c0_4 = arith.constant 0 : index
    %1 = vector.load %arg1[%c0_2, %c0_3, %c0_4] : memref<1x18x64xf32, #tpu.memory_space<vmem>>, vector<1x16x64xf32>
    %2 = vector.shape_cast %1 : vector<1x16x64xf32> to vector<16x64xf32>
    %3 = arith.truncf %2 : vector<16x64xf32> to vector<16x64xbf16>
    %c0_5 = arith.constant 0 : index
    %c1 = arith.constant 1 : index
    %c0_6 = arith.constant 0 : index
    %4 = vector.load %arg1[%c0_5, %c1, %c0_6] : memref<1x18x64xf32, #tpu.memory_space<vmem>>, vector<1x16x64xf32>
    %5 = vector.shape_cast %4 : vector<1x16x64xf32> to vector<16x64xf32>
    %6 = arith.truncf %5 : vector<16x64xf32> to vector<16x64xbf16>
    %c0_7 = arith.constant 0 : index
    %c2 = arith.constant 2 : index
    %c0_8 = arith.constant 0 : index
    %7 = vector.load %arg1[%c0_7, %c2, %c0_8] : memref<1x18x64xf32, #tpu.memory_space<vmem>>, vector<1x16x64xf32>
    %8 = vector.shape_cast %7 : vector<1x16x64xf32> to vector<16x64xf32>
    %9 = arith.truncf %8 : vector<16x64xf32> to vector<16x64xbf16>
    %10 = vector.extract_strided_slice %0 {offsets = [0, 0, 0], sizes = [1, 64, 64], strides = [1, 1, 1]} : vector<3x64x64xbf16> to vector<1x64x64xbf16>
    %11 = vector.shape_cast %10 : vector<1x64x64xbf16> to vector<64x64xbf16>
    %cst = arith.constant dense<0.000000e+00> : vector<16x64xf32>
    %12 = tpu.matmul %3, %11, %cst {dimension_numbers = #tpu.dot_dimension_numbers<[1], [0], [0], [1], [0, 0, 1, 1], [], []>} : vector<16x64xbf16>, vector<64x64xbf16>, vector<16x64xf32> -> vector<16x64xf32>
    %13 = vector.extract_strided_slice %0 {offsets = [1, 0, 0], sizes = [1, 64, 64], strides = [1, 1, 1]} : vector<3x64x64xbf16> to vector<1x64x64xbf16>
    %14 = vector.shape_cast %13 : vector<1x64x64xbf16> to vector<64x64xbf16>
    %cst_9 = arith.constant dense<0.000000e+00> : vector<16x64xf32>
    %15 = tpu.matmul %6, %14, %cst_9 {dimension_numbers = #tpu.dot_dimension_numbers<[1], [0], [0], [1], [0, 0, 1, 1], [], []>} : vector<16x64xbf16>, vector<64x64xbf16>, vector<16x64xf32> -> vector<16x64xf32>
    %16 = arith.addf %12, %15 : vector<16x64xf32>
    %17 = vector.extract_strided_slice %0 {offsets = [2, 0, 0], sizes = [1, 64, 64], strides = [1, 1, 1]} : vector<3x64x64xbf16> to vector<1x64x64xbf16>
    %18 = vector.shape_cast %17 : vector<1x64x64xbf16> to vector<64x64xbf16>
    %cst_10 = arith.constant dense<0.000000e+00> : vector<16x64xf32>
    %19 = tpu.matmul %9, %18, %cst_10 {dimension_numbers = #tpu.dot_dimension_numbers<[1], [0], [0], [1], [0, 0, 1, 1], [], []>} : vector<16x64xbf16>, vector<64x64xbf16>, vector<16x64xf32> -> vector<16x64xf32>
    %20 = arith.addf %16, %19 : vector<16x64xf32>
    %c0_11 = arith.constant 0 : index
    %c0_12 = arith.constant 0 : index
    %21 = vector.load %arg3[%c0_11, %c0_12] : memref<1x64xf32, #tpu.memory_space<vmem>>, vector<1x64xf32>
    %22 = vector.broadcast %21 : vector<1x64xf32> to vector<16x64xf32>
    %23 = arith.addf %20, %22 : vector<16x64xf32>
    %c0_13 = arith.constant 0 : index
    %c0_14 = arith.constant 0 : index
    %c0_15 = arith.constant 0 : index
    %24 = vector.load %arg4[%c0_13, %c0_14, %c0_15] : memref<1x1x64xf32, #tpu.memory_space<vmem>>, vector<1x1x64xf32>
    %25 = vector.shape_cast %24 : vector<1x1x64xf32> to vector<1x64xf32>
    %26 = vector.broadcast %25 : vector<1x64xf32> to vector<16x64xf32>
    %27 = arith.addf %23, %26 : vector<16x64xf32>
    %28 = vector.shape_cast %27 : vector<16x64xf32> to vector<1x16x64xf32>
    %c0_16 = arith.constant 0 : index
    %c0_17 = arith.constant 0 : index
    %c0_18 = arith.constant 0 : index
    %29 = vector.load %arg5[%c0_16, %c0_17, %c0_18] : memref<1x16x64xf32, #tpu.memory_space<vmem>>, vector<1x16x64xf32>
    tpu.vector_store %arg5[%c0_16, %c0_17, %c0_18], %28 {strides = array<i32>} : memref<1x16x64xf32, #tpu.memory_space<vmem>>, vector<1x16x64xf32>,
    return
  }
  func.func @transform_0(%arg0: i32) -> (i32, i32, i32) {
    %c0_i32 = arith.constant 0 : i32
    %c0_i32_0 = arith.constant 0 : i32
    %c0_i32_1 = arith.constant 0 : i32
    return %arg0, %c0_i32, %c0_i32_0 : i32, i32, i32
  }
  func.func @transform_1(%arg0: i32) -> (i32, i32, i32) {
    %c0_i32 = arith.constant 0 : i32
    %c0_i32_0 = arith.constant 0 : i32
    %c0_i32_1 = arith.constant 0 : i32
    %c0_i32_2 = arith.constant 0 : i32
    return %c0_i32, %c0_i32_0, %c0_i32_1 : i32, i32, i32
  }
  func.func @transform_2(%arg0: i32) -> (i32, i32) {
    %c0_i32 = arith.constant 0 : i32
    %c0_i32_0 = arith.constant 0 : i32
    %c0_i32_1 = arith.constant 0 : i32
    return %c0_i32, %c0_i32_0 : i32, i32
  }
  func.func @transform_3(%arg0: i32) -> (i32, i32, i32) {
    %c0_i32 = arith.constant 0 : i32
    %c0_i32_0 = arith.constant 0 : i32
    %c0_i32_1 = arith.constant 0 : i32
    return %arg0, %c0_i32, %c0_i32_0 : i32, i32, i32
  }
  func.func @transform_4(%arg0: i32) -> (i32, i32, i32) {
    %c0_i32 = arith.constant 0 : i32
    %c0_i32_0 = arith.constant 0 : i32
    %c0_i32_1 = arith.constant 0 : i32
    return %arg0, %c0_i32, %c0_i32_0 : i32, i32, i32
  }
}

module attributes {stable_mosaic.version = 11 : i64} {
  func.func @_conv3_kernel(%arg0: i32, %arg1: memref<1x18x64xf32, #tpu.memory_space<vmem>>, %arg2: memref<3x64x64xbf16, #tpu.memory_space<vmem>>, %arg3: memref<1x64xf32, #tpu.memory_space<vmem>>, %arg4: memref<1x16x64xf32, #tpu.memory_space<vmem>>, %arg5: memref<1x16x64xf32, #tpu.memory_space<vmem>>) attributes {dimension_semantics = [#tpu.dimension_semantics<parallel>], iteration_bounds = array<i64: 2>, scalar_prefetch = 0 : i64, scratch_operands = 0 : i64, tpu.core_type = #tpu.core_type<tc>, window_params = [{transform_indices = @transform_0, window_bounds = array<i64: 1, 18, 64>}, {pipeline_mode = #tpu.pipeline_mode<synchronous>, transform_indices = @transform_1, window_bounds = array<i64: 3, 64, 64>}, {pipeline_mode = #tpu.pipeline_mode<synchronous>, transform_indices = @transform_2, window_bounds = array<i64: 1, 64>}, {transform_indices = @transform_3, window_bounds = array<i64: 1, 16, 64>}, {transform_indices = @transform_4, window_bounds = array<i64: 1, 16, 64>}]} {
    %c0 = arith.constant 0 : index
    %c0_0 = arith.constant 0 : index
    %c0_1 = arith.constant 0 : index
    %0 = vector.load %arg2[%c0, %c0_0, %c0_1] : memref<3x64x64xbf16, #tpu.memory_space<vmem>>, vector<3x64x64xbf16>
    %c0_2 = arith.constant 0 : index
    %c0_3 = arith.constant 0 : index
    %c0_4 = arith.constant 0 : index
    %1 = vector.load %arg1[%c0_2, %c0_3, %c0_4] : memref<1x18x64xf32, #tpu.memory_space<vmem>>, vector<1x16x64xf32>
    %2 = vector.shape_cast %1 : vector<1x16x64xf32> to vector<16x64xf32>
    %3 = arith.truncf %2 : vector<16x64xf32> to vector<16x64xbf16>
    %c0_5 = arith.constant 0 : index
    %c1 = arith.constant 1 : index
    %c0_6 = arith.constant 0 : index
    %4 = vector.load %arg1[%c0_5, %c1, %c0_6] : memref<1x18x64xf32, #tpu.memory_space<vmem>>, vector<1x16x64xf32>
    %5 = vector.shape_cast %4 : vector<1x16x64xf32> to vector<16x64xf32>
    %6 = arith.truncf %5 : vector<16x64xf32> to vector<16x64xbf16>
    %c0_7 = arith.constant 0 : index
    %c2 = arith.constant 2 : index
    %c0_8 = arith.constant 0 : index
    %7 = vector.load %arg1[%c0_7, %c2, %c0_8] : memref<1x18x64xf32, #tpu.memory_space<vmem>>, vector<1x16x64xf32>
    %8 = vector.shape_cast %7 : vector<1x16x64xf32> to vector<16x64xf32>
    %9 = arith.truncf %8 : vector<16x64xf32> to vector<16x64xbf16>
    %10 = vector.extract_strided_slice %0 {offsets = [0, 0, 0], sizes = [1, 64, 64], strides = [1, 1, 1]} : vector<3x64x64xbf16> to vector<1x64x64xbf16>
    %11 = vector.shape_cast %10 : vector<1x64x64xbf16> to vector<64x64xbf16>
    %cst = arith.constant dense<0.000000e+00> : vector<16x64xf32>
    %12 = tpu.matmul %3, %11, %cst {dimension_numbers = #tpu.dot_dimension_numbers<[1], [0], [0], [1], [0, 0, 1, 1], [], []>} : vector<16x64xbf16>, vector<64x64xbf16>, vector<16x64xf32> -> vector<16x64xf32>
    %13 = vector.extract_strided_slice %0 {offsets = [1, 0, 0], sizes = [1, 64, 64], strides = [1, 1, 1]} : vector<3x64x64xbf16> to vector<1x64x64xbf16>
    %14 = vector.shape_cast %13 : vector<1x64x64xbf16> to vector<64x64xbf16>
    %cst_9 = arith.constant dense<0.000000e+00> : vector<16x64xf32>
    %15 = tpu.matmul %6, %14, %cst_9 {dimension_numbers = #tpu.dot_dimension_numbers<[1], [0], [0], [1], [0, 0, 1, 1], [], []>} : vector<16x64xbf16>, vector<64x64xbf16>, vector<16x64xf32> -> vector<16x64xf32>
    %16 = arith.addf %12, %15 : vector<16x64xf32>
    %17 = vector.extract_strided_slice %0 {offsets = [2, 0, 0], sizes = [1, 64, 64], strides = [1, 1, 1]} : vector<3x64x64xbf16> to vector<1x64x64xbf16>
    %18 = vector.shape_cast %17 : vector<1x64x64xbf16> to vector<64x64xbf16>
    %cst_10 = arith.constant dense<0.000000e+00> : vector<16x64xf32>
    %19 = tpu.matmul %9, %18, %cst_10 {dimension_numbers = #tpu.dot_dimension_numbers<[1], [0], [0], [1], [0, 0, 1, 1], [], []>} : vector<16x64xbf16>, vector<64x64xbf16>, vector<16x64xf32> -> vector<16x64xf32>
    %20 = arith.addf %16, %19 : vector<16x64xf32>
    %c0_11 = arith.constant 0 : index
    %c0_12 = arith.constant 0 : index
    %21 = vector.load %arg3[%c0_11, %c0_12] : memref<1x64xf32, #tpu.memory_space<vmem>>, vector<1x64xf32>
    %22 = vector.broadcast %21 : vector<1x64xf32> to vector<16x64xf32>
    %23 = arith.addf %20, %22 : vector<16x64xf32>
    %c0_13 = arith.constant 0 : index
    %c0_14 = arith.constant 0 : index
    %c0_15 = arith.constant 0 : index
    %24 = vector.load %arg4[%c0_13, %c0_14, %c0_15] : memref<1x16x64xf32, #tpu.memory_space<vmem>>, vector<1x16x64xf32>
    %25 = vector.shape_cast %24 : vector<1x16x64xf32> to vector<16x64xf32>
    %26 = arith.addf %23, %25 : vector<16x64xf32>
    %27 = vector.shape_cast %26 : vector<16x64xf32> to vector<1x16x64xf32>
    %c0_16 = arith.constant 0 : index
    %c0_17 = arith.constant 0 : index
    %c0_18 = arith.constant 0 : index
    %28 = vector.load %arg5[%c0_16, %c0_17, %c0_18] : memref<1x16x64xf32, #tpu.memory_space<vmem>>, vector<1x16x64xf32>
    tpu.vector_store %arg5[%c0_16, %c0_17, %c0_18], %27 {strides = array<i32>} : memref<1x16x64xf32, #tpu.memory_space<vmem>>, vector<1x16x64xf32>,
    return
  }
  func.func @transform_0(%arg0: i32) -> (i32, i32, i32) {
    %c0_i32 = arith.constant 0 : i32
    %c0_i32_0 = arith.constant 0 : i32
    %c0_i32_1 = arith.constant 0 : i32
    return %arg0, %c0_i32, %c0_i32_0 : i32, i32, i32
  }
  func.func @transform_1(%arg0: i32) -> (i32, i32, i32) {
    %c0_i32 = arith.constant 0 : i32
    %c0_i32_0 = arith.constant 0 : i32
    %c0_i32_1 = arith.constant 0 : i32
    %c0_i32_2 = arith.constant 0 : i32
    return %c0_i32, %c0_i32_0, %c0_i32_1 : i32, i32, i32
  }
  func.func @transform_2(%arg0: i32) -> (i32, i32) {
    %c0_i32 = arith.constant 0 : i32
    %c0_i32_0 = arith.constant 0 : i32
    %c0_i32_1 = arith.constant 0 : i32
    return %c0_i32, %c0_i32_0 : i32, i32
  }
  func.func @transform_3(%arg0: i32) -> (i32, i32, i32) {
    %c0_i32 = arith.constant 0 : i32
    %c0_i32_0 = arith.constant 0 : i32
    %c0_i32_1 = arith.constant 0 : i32
    return %arg0, %c0_i32, %c0_i32_0 : i32, i32, i32
  }
  func.func @transform_4(%arg0: i32) -> (i32, i32, i32) {
    %c0_i32 = arith.constant 0 : i32
    %c0_i32_0 = arith.constant 0 : i32
    %c0_i32_1 = arith.constant 0 : i32
    return %arg0, %c0_i32, %c0_i32_0 : i32, i32, i32
  }
}

module attributes {stable_mosaic.version = 11 : i64} {
  func.func @_groupnorm_kernel(%arg0: i32, %arg1: memref<1x16x64xf32, #tpu.memory_space<vmem>>, %arg2: memref<64x32xf32, #tpu.memory_space<vmem>>, %arg3: memref<32x64xf32, #tpu.memory_space<vmem>>, %arg4: memref<1x1x64xf32, #tpu.memory_space<vmem>>, %arg5: memref<1x1x64xf32, #tpu.memory_space<vmem>>, %arg6: memref<1x16x64xf32, #tpu.memory_space<vmem>>) attributes {dimension_semantics = [#tpu.dimension_semantics<parallel>], iteration_bounds = array<i64: 2>, scalar_prefetch = 0 : i64, scratch_operands = 0 : i64, tpu.core_type = #tpu.core_type<tc>, window_params = [{transform_indices = @transform_0, window_bounds = array<i64: 1, 16, 64>}, {pipeline_mode = #tpu.pipeline_mode<synchronous>, transform_indices = @transform_1, window_bounds = array<i64: 64, 32>}, {pipeline_mode = #tpu.pipeline_mode<synchronous>, transform_indices = @transform_2, window_bounds = array<i64: 32, 64>}, {pipeline_mode = #tpu.pipeline_mode<synchronous>, transform_indices = @transform_3, window_bounds = array<i64: 1, 1, 64>}, {pipeline_mode = #tpu.pipeline_mode<synchronous>, transform_indices = @transform_4, window_bounds = array<i64: 1, 1, 64>}, {transform_indices = @transform_5, window_bounds = array<i64: 1, 16, 64>}]} {
    %c0 = arith.constant 0 : index
    %c0_0 = arith.constant 0 : index
    %c0_1 = arith.constant 0 : index
    %0 = vector.load %arg1[%c0, %c0_0, %c0_1] : memref<1x16x64xf32, #tpu.memory_space<vmem>>, vector<1x16x64xf32>
    %1 = vector.shape_cast %0 : vector<1x16x64xf32> to vector<16x64xf32>
    %c0_2 = arith.constant 0 : index
    %c0_3 = arith.constant 0 : index
    %2 = vector.load %arg2[%c0_2, %c0_3] : memref<64x32xf32, #tpu.memory_space<vmem>>, vector<64x32xf32>
    %c0_4 = arith.constant 0 : index
    %c0_5 = arith.constant 0 : index
    %3 = vector.load %arg3[%c0_4, %c0_5] : memref<32x64xf32, #tpu.memory_space<vmem>>, vector<32x64xf32>
    %cst = arith.constant dense<0.000000e+00> : vector<64xf32>
    %4 = vector.multi_reduction <add>, %1, %cst [0] : vector<16x64xf32> to vector<64xf32>
    %5 = vector.shape_cast %4 : vector<64xf32> to vector<1x64xf32>
    %6 = arith.mulf %1, %1 : vector<16x64xf32>
    %cst_6 = arith.constant dense<0.000000e+00> : vector<64xf32>
    %7 = vector.multi_reduction <add>, %6, %cst_6 [0] : vector<16x64xf32> to vector<64xf32>
    %8 = vector.shape_cast %7 : vector<64xf32> to vector<1x64xf32>
    %cst_7 = arith.constant dense<0.000000e+00> : vector<1x32xf32>
    %9 = tpu.matmul %5, %2, %cst_7 {dimension_numbers = #tpu.dot_dimension_numbers<[1], [0], [0], [1], [0, 0, 1, 1], [], []>} : vector<1x64xf32>, vector<64x32xf32>, vector<1x32xf32> -> vector<1x32xf32>
    %cst_8 = arith.constant dense<0.000000e+00> : vector<1x32xf32>
    %10 = tpu.matmul %8, %2, %cst_8 {dimension_numbers = #tpu.dot_dimension_numbers<[1], [0], [0], [1], [0, 0, 1, 1], [], []>} : vector<1x64xf32>, vector<64x32xf32>, vector<1x32xf32> -> vector<1x32xf32>
    %cst_9 = arith.constant 3.125000e-02 : f32
    %11 = vector.broadcast %cst_9 : f32 to vector<1x32xf32>
    %12 = arith.mulf %9, %11 : vector<1x32xf32>
    %cst_10 = arith.constant 3.125000e-02 : f32
    %13 = vector.broadcast %cst_10 : f32 to vector<1x32xf32>
    %14 = arith.mulf %10, %13 : vector<1x32xf32>
    %15 = arith.mulf %12, %12 : vector<1x32xf32>
    %16 = arith.subf %14, %15 : vector<1x32xf32>
    %cst_11 = arith.constant 9.99999997E-7 : f32
    %17 = vector.broadcast %cst_11 : f32 to vector<1x32xf32>
    %18 = arith.addf %16, %17 : vector<1x32xf32>
    %19 = math.rsqrt %18 : vector<1x32xf32>
    %cst_12 = arith.constant dense<0.000000e+00> : vector<1x64xf32>
    %20 = tpu.matmul %12, %3, %cst_12 {dimension_numbers = #tpu.dot_dimension_numbers<[1], [0], [0], [1], [0, 0, 1, 1], [], []>} : vector<1x32xf32>, vector<32x64xf32>, vector<1x64xf32> -> vector<1x64xf32>
    %cst_13 = arith.constant dense<0.000000e+00> : vector<1x64xf32>
    %21 = tpu.matmul %19, %3, %cst_13 {dimension_numbers = #tpu.dot_dimension_numbers<[1], [0], [0], [1], [0, 0, 1, 1], [], []>} : vector<1x32xf32>, vector<32x64xf32>, vector<1x64xf32> -> vector<1x64xf32>
    %22 = vector.broadcast %20 : vector<1x64xf32> to vector<16x64xf32>
    %23 = arith.subf %1, %22 : vector<16x64xf32>
    %24 = vector.broadcast %21 : vector<1x64xf32> to vector<16x64xf32>
    %25 = arith.mulf %23, %24 : vector<16x64xf32>
    %c0_14 = arith.constant 0 : index
    %c0_15 = arith.constant 0 : index
    %c0_16 = arith.constant 0 : index
    %26 = vector.load %arg4[%c0_14, %c0_15, %c0_16] : memref<1x1x64xf32, #tpu.memory_space<vmem>>, vector<1x1x64xf32>
    %27 = vector.shape_cast %26 : vector<1x1x64xf32> to vector<1x64xf32>
    %28 = vector.broadcast %27 : vector<1x64xf32> to vector<16x64xf32>
    %29 = arith.mulf %25, %28 : vector<16x64xf32>
    %c0_17 = arith.constant 0 : index
    %c0_18 = arith.constant 0 : index
    %c0_19 = arith.constant 0 : index
    %30 = vector.load %arg5[%c0_17, %c0_18, %c0_19] : memref<1x1x64xf32, #tpu.memory_space<vmem>>, vector<1x1x64xf32>
    %31 = vector.shape_cast %30 : vector<1x1x64xf32> to vector<1x64xf32>
    %32 = vector.broadcast %31 : vector<1x64xf32> to vector<16x64xf32>
    %33 = arith.addf %29, %32 : vector<16x64xf32>
    %34 = vector.shape_cast %33 : vector<16x64xf32> to vector<1x16x64xf32>
    %c0_20 = arith.constant 0 : index
    %c0_21 = arith.constant 0 : index
    %c0_22 = arith.constant 0 : index
    %35 = vector.load %arg6[%c0_20, %c0_21, %c0_22] : memref<1x16x64xf32, #tpu.memory_space<vmem>>, vector<1x16x64xf32>
    tpu.vector_store %arg6[%c0_20, %c0_21, %c0_22], %34 {strides = array<i32>} : memref<1x16x64xf32, #tpu.memory_space<vmem>>, vector<1x16x64xf32>,
    return
  }
  func.func @transform_0(%arg0: i32) -> (i32, i32, i32) {
    %c0_i32 = arith.constant 0 : i32
    %c0_i32_0 = arith.constant 0 : i32
    %c0_i32_1 = arith.constant 0 : i32
    return %arg0, %c0_i32, %c0_i32_0 : i32, i32, i32
  }
  func.func @transform_1(%arg0: i32) -> (i32, i32) {
    %c0_i32 = arith.constant 0 : i32
    %c0_i32_0 = arith.constant 0 : i32
    %c0_i32_1 = arith.constant 0 : i32
    return %c0_i32, %c0_i32_0 : i32, i32
  }
  func.func @transform_2(%arg0: i32) -> (i32, i32) {
    %c0_i32 = arith.constant 0 : i32
    %c0_i32_0 = arith.constant 0 : i32
    %c0_i32_1 = arith.constant 0 : i32
    return %c0_i32, %c0_i32_0 : i32, i32
  }
  func.func @transform_3(%arg0: i32) -> (i32, i32, i32) {
    %c0_i32 = arith.constant 0 : i32
    %c0_i32_0 = arith.constant 0 : i32
    %c0_i32_1 = arith.constant 0 : i32
    %c0_i32_2 = arith.constant 0 : i32
    return %c0_i32, %c0_i32_0, %c0_i32_1 : i32, i32, i32
  }
  func.func @transform_4(%arg0: i32) -> (i32, i32, i32) {
    %c0_i32 = arith.constant 0 : i32
    %c0_i32_0 = arith.constant 0 : i32
    %c0_i32_1 = arith.constant 0 : i32
    %c0_i32_2 = arith.constant 0 : i32
    return %c0_i32, %c0_i32_0, %c0_i32_1 : i32, i32, i32
  }
  func.func @transform_5(%arg0: i32) -> (i32, i32, i32) {
    %c0_i32 = arith.constant 0 : i32
    %c0_i32_0 = arith.constant 0 : i32
    %c0_i32_1 = arith.constant 0 : i32
    return %arg0, %c0_i32, %c0_i32_0 : i32, i32, i32
  }
}

module attributes {stable_mosaic.version = 11 : i64} {
  func.func @_fused_matmul_kernel(%arg0: i32, %arg1: i32, %arg2: i32, %arg3: memref<32x128xf32, #tpu.memory_space<vmem>>, %arg4: memref<128x128xbf16, #tpu.memory_space<vmem>>, %arg5: memref<1x128xf32, #tpu.memory_space<vmem>>, %arg6: memref<32x128xf32, #tpu.memory_space<vmem>>, %arg7: memref<32x128xf32, #tpu.memory_space<vmem>>) attributes {dimension_semantics = [#tpu.dimension_semantics<parallel>, #tpu.dimension_semantics<parallel>, #tpu.dimension_semantics<arbitrary>], iteration_bounds = array<i64: 1, 1, 1>, scalar_prefetch = 0 : i64, scratch_operands = 1 : i64, tpu.core_type = #tpu.core_type<tc>, window_params = [{transform_indices = @transform_0, window_bounds = array<i64: 32, 128>}, {transform_indices = @transform_1, window_bounds = array<i64: 128, 128>}, {transform_indices = @transform_2, window_bounds = array<i64: 1, 128>}, {transform_indices = @transform_3, window_bounds = array<i64: 32, 128>}]} {
    %c0_i32 = arith.constant 0 : i32
    %0 = arith.cmpi eq, %arg2, %c0_i32 : i32
    %1 = arith.extui %0 : i1 to i32
    %c0_i32_0 = arith.constant 0 : i32
    %2 = arith.cmpi ne, %1, %c0_i32_0 : i32
    scf.if %2 {
      %cst_10 = arith.constant 0.000000e+00 : f32
      %13 = vector.broadcast %cst_10 : f32 to vector<32x128xf32>
      %c0_11 = arith.constant 0 : index
      %c0_12 = arith.constant 0 : index
      %14 = vector.load %arg7[%c0_11, %c0_12] : memref<32x128xf32, #tpu.memory_space<vmem>>, vector<32x128xf32>
      tpu.vector_store %arg7[%c0_11, %c0_12], %13 {strides = array<i32>} : memref<32x128xf32, #tpu.memory_space<vmem>>, vector<32x128xf32>,
    } else {
    }
    %c0 = arith.constant 0 : index
    %c0_1 = arith.constant 0 : index
    %3 = vector.load %arg3[%c0, %c0_1] : memref<32x128xf32, #tpu.memory_space<vmem>>, vector<32x128xf32>
    %c0_2 = arith.constant 0 : index
    %c0_3 = arith.constant 0 : index
    %4 = vector.load %arg7[%c0_2, %c0_3] : memref<32x128xf32, #tpu.memory_space<vmem>>, vector<32x128xf32>
    %5 = arith.truncf %3 : vector<32x128xf32> to vector<32x128xbf16>
    %c0_4 = arith.constant 0 : index
    %c0_5 = arith.constant 0 : index
    %6 = vector.load %arg4[%c0_4, %c0_5] : memref<128x128xbf16, #tpu.memory_space<vmem>>, vector<128x128xbf16>
    %cst = arith.constant dense<0.000000e+00> : vector<32x128xf32>
    %7 = tpu.matmul %5, %6, %cst {dimension_numbers = #tpu.dot_dimension_numbers<[1], [0], [0], [1], [0, 0, 1, 1], [], []>} : vector<32x128xbf16>, vector<128x128xbf16>, vector<32x128xf32> -> vector<32x128xf32>
    %8 = arith.addf %4, %7 : vector<32x128xf32>
    %c0_6 = arith.constant 0 : index
    %c0_7 = arith.constant 0 : index
    %9 = vector.load %arg7[%c0_6, %c0_7] : memref<32x128xf32, #tpu.memory_space<vmem>>, vector<32x128xf32>
    tpu.vector_store %arg7[%c0_6, %c0_7], %8 {strides = array<i32>} : memref<32x128xf32, #tpu.memory_space<vmem>>, vector<32x128xf32>,
    %c0_i32_8 = arith.constant 0 : i32
    %10 = arith.cmpi eq, %arg2, %c0_i32_8 : i32
    %11 = arith.extui %10 : i1 to i32
    %c0_i32_9 = arith.constant 0 : i32
    %12 = arith.cmpi ne, %11, %c0_i32_9 : i32
    scf.if %12 {
      %c0_10 = arith.constant 0 : index
      %c0_11 = arith.constant 0 : index
      %13 = vector.load %arg7[%c0_10, %c0_11] : memref<32x128xf32, #tpu.memory_space<vmem>>, vector<32x128xf32>
      %c0_12 = arith.constant 0 : index
      %c0_13 = arith.constant 0 : index
      %14 = vector.load %arg5[%c0_12, %c0_13] : memref<1x128xf32, #tpu.memory_space<vmem>>, vector<1x128xf32>
      %15 = vector.broadcast %14 : vector<1x128xf32> to vector<32x128xf32>
      %16 = arith.addf %13, %15 : vector<32x128xf32>
      %c0_14 = arith.constant 0 : index
      %c0_15 = arith.constant 0 : index
      %17 = vector.load %arg6[%c0_14, %c0_15] : memref<32x128xf32, #tpu.memory_space<vmem>>, vector<32x128xf32>
      tpu.vector_store %arg6[%c0_14, %c0_15], %16 {strides = array<i32>} : memref<32x128xf32, #tpu.memory_space<vmem>>, vector<32x128xf32>,
    } else {
    }
    return
  }
  func.func @transform_0(%arg0: i32, %arg1: i32, %arg2: i32) -> (i32, i32) {
    %c0_i32 = arith.constant 0 : i32
    return %arg0, %arg2 : i32, i32
  }
  func.func @transform_1(%arg0: i32, %arg1: i32, %arg2: i32) -> (i32, i32) {
    %c0_i32 = arith.constant 0 : i32
    return %arg2, %arg1 : i32, i32
  }
  func.func @transform_2(%arg0: i32, %arg1: i32, %arg2: i32) -> (i32, i32) {
    %c0_i32 = arith.constant 0 : i32
    %c0_i32_0 = arith.constant 0 : i32
    return %c0_i32, %arg1 : i32, i32
  }
  func.func @transform_3(%arg0: i32, %arg1: i32, %arg2: i32) -> (i32, i32) {
    %c0_i32 = arith.constant 0 : i32
    return %arg0, %arg1 : i32, i32
  }
}

module attributes {stable_mosaic.version = 11 : i64} {
  func.func @_fused_matmul_kernel(%arg0: i32, %arg1: i32, %arg2: i32, %arg3: memref<32x128xf32, #tpu.memory_space<vmem>>, %arg4: memref<128x256xbf16, #tpu.memory_space<vmem>>, %arg5: memref<1x256xf32, #tpu.memory_space<vmem>>, %arg6: memref<1x128xf32, #tpu.memory_space<vmem>>, %arg7: memref<1x128xf32, #tpu.memory_space<vmem>>, %arg8: memref<32x256xf32, #tpu.memory_space<vmem>>, %arg9: memref<32x256xf32, #tpu.memory_space<vmem>>) attributes {dimension_semantics = [#tpu.dimension_semantics<parallel>, #tpu.dimension_semantics<parallel>, #tpu.dimension_semantics<arbitrary>], iteration_bounds = array<i64: 1, 1, 1>, scalar_prefetch = 0 : i64, scratch_operands = 1 : i64, tpu.core_type = #tpu.core_type<tc>, window_params = [{transform_indices = @transform_0, window_bounds = array<i64: 32, 128>}, {transform_indices = @transform_1, window_bounds = array<i64: 128, 256>}, {transform_indices = @transform_2, window_bounds = array<i64: 1, 256>}, {transform_indices = @transform_3, window_bounds = array<i64: 1, 128>}, {transform_indices = @transform_4, window_bounds = array<i64: 1, 128>}, {transform_indices = @transform_5, window_bounds = array<i64: 32, 256>}]} {
    %c0_i32 = arith.constant 0 : i32
    %0 = arith.cmpi eq, %arg2, %c0_i32 : i32
    %1 = arith.extui %0 : i1 to i32
    %c0_i32_0 = arith.constant 0 : i32
    %2 = arith.cmpi ne, %1, %c0_i32_0 : i32
    scf.if %2 {
      %cst_19 = arith.constant 0.000000e+00 : f32
      %37 = vector.broadcast %cst_19 : f32 to vector<32x256xf32>
      %c0_20 = arith.constant 0 : index
      %c0_21 = arith.constant 0 : index
      %38 = vector.load %arg9[%c0_20, %c0_21] : memref<32x256xf32, #tpu.memory_space<vmem>>, vector<32x256xf32>
      tpu.vector_store %arg9[%c0_20, %c0_21], %37 {strides = array<i32>} : memref<32x256xf32, #tpu.memory_space<vmem>>, vector<32x256xf32>,
    } else {
    }
    %c0 = arith.constant 0 : index
    %c0_1 = arith.constant 0 : index
    %3 = vector.load %arg3[%c0, %c0_1] : memref<32x128xf32, #tpu.memory_space<vmem>>, vector<32x128xf32>
    %cst = arith.constant dense<0.000000e+00> : vector<32xf32>
    %4 = vector.multi_reduction <add>, %3, %cst [1] : vector<32x128xf32> to vector<32xf32>
    %5 = vector.shape_cast %4 : vector<32xf32> to vector<32x1xf32>
    %cst_2 = arith.constant 1.562500e-02 : f32
    %6 = vector.broadcast %cst_2 : f32 to vector<32x1xf32>
    %7 = arith.mulf %5, %6 : vector<32x1xf32>
    %8 = arith.mulf %3, %3 : vector<32x128xf32>
    %cst_3 = arith.constant dense<0.000000e+00> : vector<32xf32>
    %9 = vector.multi_reduction <add>, %8, %cst_3 [1] : vector<32x128xf32> to vector<32xf32>
    %10 = vector.shape_cast %9 : vector<32xf32> to vector<32x1xf32>
    %cst_4 = arith.constant 1.562500e-02 : f32
    %11 = vector.broadcast %cst_4 : f32 to vector<32x1xf32>
    %12 = arith.mulf %10, %11 : vector<32x1xf32>
    %13 = arith.mulf %7, %7 : vector<32x1xf32>
    %14 = arith.subf %12, %13 : vector<32x1xf32>
    %15 = vector.broadcast %7 : vector<32x1xf32> to vector<32x128xf32>
    %16 = arith.subf %3, %15 : vector<32x128xf32>
    %cst_5 = arith.constant 9.99999974E-6 : f32
    %17 = vector.broadcast %cst_5 : f32 to vector<32x1xf32>
    %18 = arith.addf %14, %17 : vector<32x1xf32>
    %19 = math.rsqrt %18 : vector<32x1xf32>
    %20 = vector.broadcast %19 : vector<32x1xf32> to vector<32x128xf32>
    %21 = arith.mulf %16, %20 : vector<32x128xf32>
    %c0_6 = arith.constant 0 : index
    %c0_7 = arith.constant 0 : index
    %22 = vector.load %arg6[%c0_6, %c0_7] : memref<1x128xf32, #tpu.memory_space<vmem>>, vector<1x128xf32>
    %23 = vector.broadcast %22 : vector<1x128xf32> to vector<32x128xf32>
    %24 = arith.mulf %21, %23 : vector<32x128xf32>
    %c0_8 = arith.constant 0 : index
    %c0_9 = arith.constant 0 : index
    %25 = vector.load %arg7[%c0_8, %c0_9] : memref<1x128xf32, #tpu.memory_space<vmem>>, vector<1x128xf32>
    %26 = vector.broadcast %25 : vector<1x128xf32> to vector<32x128xf32>
    %27 = arith.addf %24, %26 : vector<32x128xf32>
    %c0_10 = arith.constant 0 : index
    %c0_11 = arith.constant 0 : index
    %28 = vector.load %arg9[%c0_10, %c0_11] : memref<32x256xf32, #tpu.memory_space<vmem>>, vector<32x256xf32>
    %29 = arith.truncf %27 : vector<32x128xf32> to vector<32x128xbf16>
    %c0_12 = arith.constant 0 : index
    %c0_13 = arith.constant 0 : index
    %30 = vector.load %arg4[%c0_12, %c0_13] : memref<128x256xbf16, #tpu.memory_space<vmem>>, vector<128x256xbf16>
    %cst_14 = arith.constant dense<0.000000e+00> : vector<32x256xf32>
    %31 = tpu.matmul %29, %30, %cst_14 {dimension_numbers = #tpu.dot_dimension_numbers<[1], [0], [0], [1], [0, 0, 1, 1], [], []>} : vector<32x128xbf16>, vector<128x256xbf16>, vector<32x256xf32> -> vector<32x256xf32>
    %32 = arith.addf %28, %31 : vector<32x256xf32>
    %c0_15 = arith.constant 0 : index
    %c0_16 = arith.constant 0 : index
    %33 = vector.load %arg9[%c0_15, %c0_16] : memref<32x256xf32, #tpu.memory_space<vmem>>, vector<32x256xf32>
    tpu.vector_store %arg9[%c0_15, %c0_16], %32 {strides = array<i32>} : memref<32x256xf32, #tpu.memory_space<vmem>>, vector<32x256xf32>,
    %c0_i32_17 = arith.constant 0 : i32
    %34 = arith.cmpi eq, %arg2, %c0_i32_17 : i32
    %35 = arith.extui %34 : i1 to i32
    %c0_i32_18 = arith.constant 0 : i32
    %36 = arith.cmpi ne, %35, %c0_i32_18 : i32
    scf.if %36 {
      %c0_19 = arith.constant 0 : index
      %c0_20 = arith.constant 0 : index
      %37 = vector.load %arg9[%c0_19, %c0_20] : memref<32x256xf32, #tpu.memory_space<vmem>>, vector<32x256xf32>
      %c0_21 = arith.constant 0 : index
      %c0_22 = arith.constant 0 : index
      %38 = vector.load %arg5[%c0_21, %c0_22] : memref<1x256xf32, #tpu.memory_space<vmem>>, vector<1x256xf32>
      %39 = vector.broadcast %38 : vector<1x256xf32> to vector<32x256xf32>
      %40 = arith.addf %37, %39 : vector<32x256xf32>
      %c0_23 = arith.constant 0 : index
      %c0_24 = arith.constant 0 : index
      %41 = vector.load %arg8[%c0_23, %c0_24] : memref<32x256xf32, #tpu.memory_space<vmem>>, vector<32x256xf32>
      tpu.vector_store %arg8[%c0_23, %c0_24], %40 {strides = array<i32>} : memref<32x256xf32, #tpu.memory_space<vmem>>, vector<32x256xf32>,
    } else {
    }
    return
  }
  func.func @transform_0(%arg0: i32, %arg1: i32, %arg2: i32) -> (i32, i32) {
    %c0_i32 = arith.constant 0 : i32
    return %arg0, %arg2 : i32, i32
  }
  func.func @transform_1(%arg0: i32, %arg1: i32, %arg2: i32) -> (i32, i32) {
    %c0_i32 = arith.constant 0 : i32
    return %arg2, %arg1 : i32, i32
  }
  func.func @transform_2(%arg0: i32, %arg1: i32, %arg2: i32) -> (i32, i32) {
    %c0_i32 = arith.constant 0 : i32
    %c0_i32_0 = arith.constant 0 : i32
    return %c0_i32, %arg1 : i32, i32
  }
  func.func @transform_3(%arg0: i32, %arg1: i32, %arg2: i32) -> (i32, i32) {
    %c0_i32 = arith.constant 0 : i32
    %c0_i32_0 = arith.constant 0 : i32
    return %c0_i32, %arg2 : i32, i32
  }
  func.func @transform_4(%arg0: i32, %arg1: i32, %arg2: i32) -> (i32, i32) {
    %c0_i32 = arith.constant 0 : i32
    %c0_i32_0 = arith.constant 0 : i32
    return %c0_i32, %arg2 : i32, i32
  }
  func.func @transform_5(%arg0: i32, %arg1: i32, %arg2: i32) -> (i32, i32) {
    %c0_i32 = arith.constant 0 : i32
    return %arg0, %arg1 : i32, i32
  }
}

module attributes {stable_mosaic.version = 11 : i64} {
  func.func @_attention_kernel(%arg0: i32, %arg1: memref<1x16x8xf32, #tpu.memory_space<vmem>>, %arg2: memref<1x16x8xf32, #tpu.memory_space<vmem>>, %arg3: memref<1x16x8xf32, #tpu.memory_space<vmem>>, %arg4: memref<1x16x8xf32, #tpu.memory_space<vmem>>) attributes {dimension_semantics = [#tpu.dimension_semantics<parallel>], iteration_bounds = array<i64: 16>, scalar_prefetch = 0 : i64, scratch_operands = 0 : i64, tpu.core_type = #tpu.core_type<tc>, window_params = [{transform_indices = @transform_0, window_bounds = array<i64: 1, 16, 8>}, {transform_indices = @transform_1, window_bounds = array<i64: 1, 16, 8>}, {transform_indices = @transform_2, window_bounds = array<i64: 1, 16, 8>}, {transform_indices = @transform_3, window_bounds = array<i64: 1, 16, 8>}]} {
    %c0 = arith.constant 0 : index
    %c0_0 = arith.constant 0 : index
    %c0_1 = arith.constant 0 : index
    %0 = vector.load %arg1[%c0, %c0_0, %c0_1] : memref<1x16x8xf32, #tpu.memory_space<vmem>>, vector<1x16x8xf32>
    %1 = arith.truncf %0 : vector<1x16x8xf32> to vector<1x16x8xbf16>
    %c0_2 = arith.constant 0 : index
    %c0_3 = arith.constant 0 : index
    %c0_4 = arith.constant 0 : index
    %2 = vector.load %arg2[%c0_2, %c0_3, %c0_4] : memref<1x16x8xf32, #tpu.memory_space<vmem>>, vector<1x16x8xf32>
    %3 = arith.truncf %2 : vector<1x16x8xf32> to vector<1x16x8xbf16>
    %c0_5 = arith.constant 0 : index
    %c0_6 = arith.constant 0 : index
    %c0_7 = arith.constant 0 : index
    %4 = vector.load %arg3[%c0_5, %c0_6, %c0_7] : memref<1x16x8xf32, #tpu.memory_space<vmem>>, vector<1x16x8xf32>
    %5 = arith.truncf %4 : vector<1x16x8xf32> to vector<1x16x8xbf16>
    "tpu.trace_start"() <{level = 10 : i32, message = "bqd,bkd->bqk"}> : () -> ()
    %cst = arith.constant dense<0.000000e+00> : vector<1x16x16xf32>
    %6 = tpu.matmul %1, %3, %cst {dimension_numbers = #tpu.dot_dimension_numbers<[2], [2], [1], [1], [0, 0, 0, 1, 1, 1], [0], [0]>} : vector<1x16x8xbf16>, vector<1x16x8xbf16>, vector<1x16x16xf32> -> vector<1x16x16xf32>
    "tpu.trace_stop"() : () -> ()
    %cst_8 = arith.constant 0.353553385 : f32
    %7 = vector.broadcast %cst_8 : f32 to vector<1x16x16xf32>
    %8 = arith.mulf %6, %7 : vector<1x16x16xf32>
    %cst_9 = arith.constant dense<0xFF800000> : vector<1x16xf32>
    %9 = vector.multi_reduction <maximumf>, %8, %cst_9 [2] : vector<1x16x16xf32> to vector<1x16xf32>
    %10 = vector.shape_cast %9 : vector<1x16xf32> to vector<1x16x1xf32>
    %11 = vector.broadcast %10 : vector<1x16x1xf32> to vector<1x16x16xf32>
    %12 = arith.subf %8, %11 : vector<1x16x16xf32>
    %13 = math.exp %12 : vector<1x16x16xf32>
    %cst_10 = arith.constant dense<0.000000e+00> : vector<1x16xf32>
    %14 = vector.multi_reduction <add>, %13, %cst_10 [2] : vector<1x16x16xf32> to vector<1x16xf32>
    %15 = vector.shape_cast %14 : vector<1x16xf32> to vector<1x16x1xf32>
    %16 = tpu.reciprocal %15 {approx = true} : vector<1x16x1xf32> -> vector<1x16x1xf32>
    %17 = vector.broadcast %16 : vector<1x16x1xf32> to vector<1x16x16xf32>
    %18 = arith.mulf %13, %17 : vector<1x16x16xf32>
    %19 = arith.truncf %18 : vector<1x16x16xf32> to vector<1x16x16xbf16>
    "tpu.trace_start"() <{level = 10 : i32, message = "bqk,bkd->bqd"}> : () -> ()
    %cst_11 = arith.constant dense<0.000000e+00> : vector<1x16x8xf32>
    %20 = tpu.matmul %19, %5, %cst_11 {dimension_numbers = #tpu.dot_dimension_numbers<[2], [1], [1], [2], [0, 0, 0, 1, 1, 2], [0], [0]>} : vector<1x16x16xbf16>, vector<1x16x8xbf16>, vector<1x16x8xf32> -> vector<1x16x8xf32>
    "tpu.trace_stop"() : () -> ()
    %c0_12 = arith.constant 0 : index
    %c0_13 = arith.constant 0 : index
    %c0_14 = arith.constant 0 : index
    %21 = vector.load %arg4[%c0_12, %c0_13, %c0_14] : memref<1x16x8xf32, #tpu.memory_space<vmem>>, vector<1x16x8xf32>
    tpu.vector_store %arg4[%c0_12, %c0_13, %c0_14], %20 {strides = array<i32>} : memref<1x16x8xf32, #tpu.memory_space<vmem>>, vector<1x16x8xf32>,
    return
  }
  func.func @transform_0(%arg0: i32) -> (i32, i32, i32) {
    %c0_i32 = arith.constant 0 : i32
    %c0_i32_0 = arith.constant 0 : i32
    %c0_i32_1 = arith.constant 0 : i32
    return %arg0, %c0_i32, %c0_i32_0 : i32, i32, i32
  }
  func.func @transform_1(%arg0: i32) -> (i32, i32, i32) {
    %c0_i32 = arith.constant 0 : i32
    %c0_i32_0 = arith.constant 0 : i32
    %c0_i32_1 = arith.constant 0 : i32
    return %arg0, %c0_i32, %c0_i32_0 : i32, i32, i32
  }
  func.func @transform_2(%arg0: i32) -> (i32, i32, i32) {
    %c0_i32 = arith.constant 0 : i32
    %c0_i32_0 = arith.constant 0 : i32
    %c0_i32_1 = arith.constant 0 : i32
    return %arg0, %c0_i32, %c0_i32_0 : i32, i32, i32
  }
  func.func @transform_3(%arg0: i32) -> (i32, i32, i32) {
    %c0_i32 = arith.constant 0 : i32
    %c0_i32_0 = arith.constant 0 : i32
    %c0_i32_1 = arith.constant 0 : i32
    return %arg0, %c0_i32, %c0_i32_0 : i32, i32, i32
  }
}

module attributes {stable_mosaic.version = 11 : i64} {
  func.func @_fused_matmul_kernel(%arg0: i32, %arg1: i32, %arg2: i32, %arg3: memref<32x128xf32, #tpu.memory_space<vmem>>, %arg4: memref<128x128xbf16, #tpu.memory_space<vmem>>, %arg5: memref<1x128xf32, #tpu.memory_space<vmem>>, %arg6: memref<32x128xf32, #tpu.memory_space<vmem>>, %arg7: memref<32x128xf32, #tpu.memory_space<vmem>>, %arg8: memref<32x128xf32, #tpu.memory_space<vmem>>) attributes {dimension_semantics = [#tpu.dimension_semantics<parallel>, #tpu.dimension_semantics<parallel>, #tpu.dimension_semantics<arbitrary>], iteration_bounds = array<i64: 1, 1, 1>, scalar_prefetch = 0 : i64, scratch_operands = 1 : i64, tpu.core_type = #tpu.core_type<tc>, window_params = [{transform_indices = @transform_0, window_bounds = array<i64: 32, 128>}, {transform_indices = @transform_1, window_bounds = array<i64: 128, 128>}, {transform_indices = @transform_2, window_bounds = array<i64: 1, 128>}, {transform_indices = @transform_3, window_bounds = array<i64: 32, 128>}, {transform_indices = @transform_4, window_bounds = array<i64: 32, 128>}]} {
    %c0_i32 = arith.constant 0 : i32
    %0 = arith.cmpi eq, %arg2, %c0_i32 : i32
    %1 = arith.extui %0 : i1 to i32
    %c0_i32_0 = arith.constant 0 : i32
    %2 = arith.cmpi ne, %1, %c0_i32_0 : i32
    scf.if %2 {
      %cst_10 = arith.constant 0.000000e+00 : f32
      %13 = vector.broadcast %cst_10 : f32 to vector<32x128xf32>
      %c0_11 = arith.constant 0 : index
      %c0_12 = arith.constant 0 : index
      %14 = vector.load %arg8[%c0_11, %c0_12] : memref<32x128xf32, #tpu.memory_space<vmem>>, vector<32x128xf32>
      tpu.vector_store %arg8[%c0_11, %c0_12], %13 {strides = array<i32>} : memref<32x128xf32, #tpu.memory_space<vmem>>, vector<32x128xf32>,
    } else {
    }
    %c0 = arith.constant 0 : index
    %c0_1 = arith.constant 0 : index
    %3 = vector.load %arg3[%c0, %c0_1] : memref<32x128xf32, #tpu.memory_space<vmem>>, vector<32x128xf32>
    %c0_2 = arith.constant 0 : index
    %c0_3 = arith.constant 0 : index
    %4 = vector.load %arg8[%c0_2, %c0_3] : memref<32x128xf32, #tpu.memory_space<vmem>>, vector<32x128xf32>
    %5 = arith.truncf %3 : vector<32x128xf32> to vector<32x128xbf16>
    %c0_4 = arith.constant 0 : index
    %c0_5 = arith.constant 0 : index
    %6 = vector.load %arg4[%c0_4, %c0_5] : memref<128x128xbf16, #tpu.memory_space<vmem>>, vector<128x128xbf16>
    %cst = arith.constant dense<0.000000e+00> : vector<32x128xf32>
    %7 = tpu.matmul %5, %6, %cst {dimension_numbers = #tpu.dot_dimension_numbers<[1], [0], [0], [1], [0, 0, 1, 1], [], []>} : vector<32x128xbf16>, vector<128x128xbf16>, vector<32x128xf32> -> vector<32x128xf32>
    %8 = arith.addf %4, %7 : vector<32x128xf32>
    %c0_6 = arith.constant 0 : index
    %c0_7 = arith.constant 0 : index
    %9 = vector.load %arg8[%c0_6, %c0_7] : memref<32x128xf32, #tpu.memory_space<vmem>>, vector<32x128xf32>
    tpu.vector_store %arg8[%c0_6, %c0_7], %8 {strides = array<i32>} : memref<32x128xf32, #tpu.memory_space<vmem>>, vector<32x128xf32>,
    %c0_i32_8 = arith.constant 0 : i32
    %10 = arith.cmpi eq, %arg2, %c0_i32_8 : i32
    %11 = arith.extui %10 : i1 to i32
    %c0_i32_9 = arith.constant 0 : i32
    %12 = arith.cmpi ne, %11, %c0_i32_9 : i32
    scf.if %12 {
      %c0_10 = arith.constant 0 : index
      %c0_11 = arith.constant 0 : index
      %13 = vector.load %arg8[%c0_10, %c0_11] : memref<32x128xf32, #tpu.memory_space<vmem>>, vector<32x128xf32>
      %c0_12 = arith.constant 0 : index
      %c0_13 = arith.constant 0 : index
      %14 = vector.load %arg5[%c0_12, %c0_13] : memref<1x128xf32, #tpu.memory_space<vmem>>, vector<1x128xf32>
      %15 = vector.broadcast %14 : vector<1x128xf32> to vector<32x128xf32>
      %16 = arith.addf %13, %15 : vector<32x128xf32>
      %c0_14 = arith.constant 0 : index
      %c0_15 = arith.constant 0 : index
      %17 = vector.load %arg6[%c0_14, %c0_15] : memref<32x128xf32, #tpu.memory_space<vmem>>, vector<32x128xf32>
      %18 = arith.addf %16, %17 : vector<32x128xf32>
      %c0_16 = arith.constant 0 : index
      %c0_17 = arith.constant 0 : index
      %19 = vector.load %arg7[%c0_16, %c0_17] : memref<32x128xf32, #tpu.memory_space<vmem>>, vector<32x128xf32>
      tpu.vector_store %arg7[%c0_16, %c0_17], %18 {strides = array<i32>} : memref<32x128xf32, #tpu.memory_space<vmem>>, vector<32x128xf32>,
    } else {
    }
    return
  }
  func.func @transform_0(%arg0: i32, %arg1: i32, %arg2: i32) -> (i32, i32) {
    %c0_i32 = arith.constant 0 : i32
    return %arg0, %arg2 : i32, i32
  }
  func.func @transform_1(%arg0: i32, %arg1: i32, %arg2: i32) -> (i32, i32) {
    %c0_i32 = arith.constant 0 : i32
    return %arg2, %arg1 : i32, i32
  }
  func.func @transform_2(%arg0: i32, %arg1: i32, %arg2: i32) -> (i32, i32) {
    %c0_i32 = arith.constant 0 : i32
    %c0_i32_0 = arith.constant 0 : i32
    return %c0_i32, %arg1 : i32, i32
  }
  func.func @transform_3(%arg0: i32, %arg1: i32, %arg2: i32) -> (i32, i32) {
    %c0_i32 = arith.constant 0 : i32
    return %arg0, %arg1 : i32, i32
  }
  func.func @transform_4(%arg0: i32, %arg1: i32, %arg2: i32) -> (i32, i32) {
    %c0_i32 = arith.constant 0 : i32
    return %arg0, %arg1 : i32, i32
  }
}

module attributes {stable_mosaic.version = 11 : i64} {
  func.func @_fused_matmul_kernel(%arg0: i32, %arg1: i32, %arg2: i32, %arg3: memref<32x128xf32, #tpu.memory_space<vmem>>, %arg4: memref<128x128xbf16, #tpu.memory_space<vmem>>, %arg5: memref<1x128xf32, #tpu.memory_space<vmem>>, %arg6: memref<1x128xf32, #tpu.memory_space<vmem>>, %arg7: memref<1x128xf32, #tpu.memory_space<vmem>>, %arg8: memref<32x128xf32, #tpu.memory_space<vmem>>, %arg9: memref<32x128xf32, #tpu.memory_space<vmem>>) attributes {dimension_semantics = [#tpu.dimension_semantics<parallel>, #tpu.dimension_semantics<parallel>, #tpu.dimension_semantics<arbitrary>], iteration_bounds = array<i64: 1, 1, 1>, scalar_prefetch = 0 : i64, scratch_operands = 1 : i64, tpu.core_type = #tpu.core_type<tc>, window_params = [{transform_indices = @transform_0, window_bounds = array<i64: 32, 128>}, {transform_indices = @transform_1, window_bounds = array<i64: 128, 128>}, {transform_indices = @transform_2, window_bounds = array<i64: 1, 128>}, {transform_indices = @transform_3, window_bounds = array<i64: 1, 128>}, {transform_indices = @transform_4, window_bounds = array<i64: 1, 128>}, {transform_indices = @transform_5, window_bounds = array<i64: 32, 128>}]} {
    %c0_i32 = arith.constant 0 : i32
    %0 = arith.cmpi eq, %arg2, %c0_i32 : i32
    %1 = arith.extui %0 : i1 to i32
    %c0_i32_0 = arith.constant 0 : i32
    %2 = arith.cmpi ne, %1, %c0_i32_0 : i32
    scf.if %2 {
      %cst_19 = arith.constant 0.000000e+00 : f32
      %37 = vector.broadcast %cst_19 : f32 to vector<32x128xf32>
      %c0_20 = arith.constant 0 : index
      %c0_21 = arith.constant 0 : index
      %38 = vector.load %arg9[%c0_20, %c0_21] : memref<32x128xf32, #tpu.memory_space<vmem>>, vector<32x128xf32>
      tpu.vector_store %arg9[%c0_20, %c0_21], %37 {strides = array<i32>} : memref<32x128xf32, #tpu.memory_space<vmem>>, vector<32x128xf32>,
    } else {
    }
    %c0 = arith.constant 0 : index
    %c0_1 = arith.constant 0 : index
    %3 = vector.load %arg3[%c0, %c0_1] : memref<32x128xf32, #tpu.memory_space<vmem>>, vector<32x128xf32>
    %cst = arith.constant dense<0.000000e+00> : vector<32xf32>
    %4 = vector.multi_reduction <add>, %3, %cst [1] : vector<32x128xf32> to vector<32xf32>
    %5 = vector.shape_cast %4 : vector<32xf32> to vector<32x1xf32>
    %cst_2 = arith.constant 1.562500e-02 : f32
    %6 = vector.broadcast %cst_2 : f32 to vector<32x1xf32>
    %7 = arith.mulf %5, %6 : vector<32x1xf32>
    %8 = arith.mulf %3, %3 : vector<32x128xf32>
    %cst_3 = arith.constant dense<0.000000e+00> : vector<32xf32>
    %9 = vector.multi_reduction <add>, %8, %cst_3 [1] : vector<32x128xf32> to vector<32xf32>
    %10 = vector.shape_cast %9 : vector<32xf32> to vector<32x1xf32>
    %cst_4 = arith.constant 1.562500e-02 : f32
    %11 = vector.broadcast %cst_4 : f32 to vector<32x1xf32>
    %12 = arith.mulf %10, %11 : vector<32x1xf32>
    %13 = arith.mulf %7, %7 : vector<32x1xf32>
    %14 = arith.subf %12, %13 : vector<32x1xf32>
    %15 = vector.broadcast %7 : vector<32x1xf32> to vector<32x128xf32>
    %16 = arith.subf %3, %15 : vector<32x128xf32>
    %cst_5 = arith.constant 9.99999974E-6 : f32
    %17 = vector.broadcast %cst_5 : f32 to vector<32x1xf32>
    %18 = arith.addf %14, %17 : vector<32x1xf32>
    %19 = math.rsqrt %18 : vector<32x1xf32>
    %20 = vector.broadcast %19 : vector<32x1xf32> to vector<32x128xf32>
    %21 = arith.mulf %16, %20 : vector<32x128xf32>
    %c0_6 = arith.constant 0 : index
    %c0_7 = arith.constant 0 : index
    %22 = vector.load %arg6[%c0_6, %c0_7] : memref<1x128xf32, #tpu.memory_space<vmem>>, vector<1x128xf32>
    %23 = vector.broadcast %22 : vector<1x128xf32> to vector<32x128xf32>
    %24 = arith.mulf %21, %23 : vector<32x128xf32>
    %c0_8 = arith.constant 0 : index
    %c0_9 = arith.constant 0 : index
    %25 = vector.load %arg7[%c0_8, %c0_9] : memref<1x128xf32, #tpu.memory_space<vmem>>, vector<1x128xf32>
    %26 = vector.broadcast %25 : vector<1x128xf32> to vector<32x128xf32>
    %27 = arith.addf %24, %26 : vector<32x128xf32>
    %c0_10 = arith.constant 0 : index
    %c0_11 = arith.constant 0 : index
    %28 = vector.load %arg9[%c0_10, %c0_11] : memref<32x128xf32, #tpu.memory_space<vmem>>, vector<32x128xf32>
    %29 = arith.truncf %27 : vector<32x128xf32> to vector<32x128xbf16>
    %c0_12 = arith.constant 0 : index
    %c0_13 = arith.constant 0 : index
    %30 = vector.load %arg4[%c0_12, %c0_13] : memref<128x128xbf16, #tpu.memory_space<vmem>>, vector<128x128xbf16>
    %cst_14 = arith.constant dense<0.000000e+00> : vector<32x128xf32>
    %31 = tpu.matmul %29, %30, %cst_14 {dimension_numbers = #tpu.dot_dimension_numbers<[1], [0], [0], [1], [0, 0, 1, 1], [], []>} : vector<32x128xbf16>, vector<128x128xbf16>, vector<32x128xf32> -> vector<32x128xf32>
    %32 = arith.addf %28, %31 : vector<32x128xf32>
    %c0_15 = arith.constant 0 : index
    %c0_16 = arith.constant 0 : index
    %33 = vector.load %arg9[%c0_15, %c0_16] : memref<32x128xf32, #tpu.memory_space<vmem>>, vector<32x128xf32>
    tpu.vector_store %arg9[%c0_15, %c0_16], %32 {strides = array<i32>} : memref<32x128xf32, #tpu.memory_space<vmem>>, vector<32x128xf32>,
    %c0_i32_17 = arith.constant 0 : i32
    %34 = arith.cmpi eq, %arg2, %c0_i32_17 : i32
    %35 = arith.extui %34 : i1 to i32
    %c0_i32_18 = arith.constant 0 : i32
    %36 = arith.cmpi ne, %35, %c0_i32_18 : i32
    scf.if %36 {
      %c0_19 = arith.constant 0 : index
      %c0_20 = arith.constant 0 : index
      %37 = vector.load %arg9[%c0_19, %c0_20] : memref<32x128xf32, #tpu.memory_space<vmem>>, vector<32x128xf32>
      %c0_21 = arith.constant 0 : index
      %c0_22 = arith.constant 0 : index
      %38 = vector.load %arg5[%c0_21, %c0_22] : memref<1x128xf32, #tpu.memory_space<vmem>>, vector<1x128xf32>
      %39 = vector.broadcast %38 : vector<1x128xf32> to vector<32x128xf32>
      %40 = arith.addf %37, %39 : vector<32x128xf32>
      %c0_23 = arith.constant 0 : index
      %c0_24 = arith.constant 0 : index
      %41 = vector.load %arg8[%c0_23, %c0_24] : memref<32x128xf32, #tpu.memory_space<vmem>>, vector<32x128xf32>
      tpu.vector_store %arg8[%c0_23, %c0_24], %40 {strides = array<i32>} : memref<32x128xf32, #tpu.memory_space<vmem>>, vector<32x128xf32>,
    } else {
    }
    return
  }
  func.func @transform_0(%arg0: i32, %arg1: i32, %arg2: i32) -> (i32, i32) {
    %c0_i32 = arith.constant 0 : i32
    return %arg0, %arg2 : i32, i32
  }
  func.func @transform_1(%arg0: i32, %arg1: i32, %arg2: i32) -> (i32, i32) {
    %c0_i32 = arith.constant 0 : i32
    return %arg2, %arg1 : i32, i32
  }
  func.func @transform_2(%arg0: i32, %arg1: i32, %arg2: i32) -> (i32, i32) {
    %c0_i32 = arith.constant 0 : i32
    %c0_i32_0 = arith.constant 0 : i32
    return %c0_i32, %arg1 : i32, i32
  }
  func.func @transform_3(%arg0: i32, %arg1: i32, %arg2: i32) -> (i32, i32) {
    %c0_i32 = arith.constant 0 : i32
    %c0_i32_0 = arith.constant 0 : i32
    return %c0_i32, %arg2 : i32, i32
  }
  func.func @transform_4(%arg0: i32, %arg1: i32, %arg2: i32) -> (i32, i32) {
    %c0_i32 = arith.constant 0 : i32
    %c0_i32_0 = arith.constant 0 : i32
    return %c0_i32, %arg2 : i32, i32
  }
  func.func @transform_5(%arg0: i32, %arg1: i32, %arg2: i32) -> (i32, i32) {
    %c0_i32 = arith.constant 0 : i32
    return %arg0, %arg1 : i32, i32
  }
}

module attributes {stable_mosaic.version = 11 : i64} {
  func.func @_fused_matmul_kernel(%arg0: i32, %arg1: i32, %arg2: i32, %arg3: memref<16x512xf32, #tpu.memory_space<vmem>>, %arg4: memref<512x128xbf16, #tpu.memory_space<vmem>>, %arg5: memref<1x128xf32, #tpu.memory_space<vmem>>, %arg6: memref<16x128xf32, #tpu.memory_space<vmem>>, %arg7: memref<16x128xf32, #tpu.memory_space<vmem>>) attributes {dimension_semantics = [#tpu.dimension_semantics<parallel>, #tpu.dimension_semantics<parallel>, #tpu.dimension_semantics<arbitrary>], iteration_bounds = array<i64: 1, 1, 2>, scalar_prefetch = 0 : i64, scratch_operands = 1 : i64, tpu.core_type = #tpu.core_type<tc>, window_params = [{transform_indices = @transform_0, window_bounds = array<i64: 16, 512>}, {transform_indices = @transform_1, window_bounds = array<i64: 512, 128>}, {transform_indices = @transform_2, window_bounds = array<i64: 1, 128>}, {transform_indices = @transform_3, window_bounds = array<i64: 16, 128>}]} {
    %c0_i32 = arith.constant 0 : i32
    %0 = arith.cmpi eq, %arg2, %c0_i32 : i32
    %1 = arith.extui %0 : i1 to i32
    %c0_i32_0 = arith.constant 0 : i32
    %2 = arith.cmpi ne, %1, %c0_i32_0 : i32
    scf.if %2 {
      %cst_9 = arith.constant 0.000000e+00 : f32
      %13 = vector.broadcast %cst_9 : f32 to vector<16x128xf32>
      %c0_10 = arith.constant 0 : index
      %c0_11 = arith.constant 0 : index
      %14 = vector.load %arg7[%c0_10, %c0_11] : memref<16x128xf32, #tpu.memory_space<vmem>>, vector<16x128xf32>
      tpu.vector_store %arg7[%c0_10, %c0_11], %13 {strides = array<i32>} : memref<16x128xf32, #tpu.memory_space<vmem>>, vector<16x128xf32>,
    } else {
    }
    %c0 = arith.constant 0 : index
    %c0_1 = arith.constant 0 : index
    %3 = vector.load %arg3[%c0, %c0_1] : memref<16x512xf32, #tpu.memory_space<vmem>>, vector<16x512xf32>
    %c0_2 = arith.constant 0 : index
    %c0_3 = arith.constant 0 : index
    %4 = vector.load %arg7[%c0_2, %c0_3] : memref<16x128xf32, #tpu.memory_space<vmem>>, vector<16x128xf32>
    %5 = arith.truncf %3 : vector<16x512xf32> to vector<16x512xbf16>
    %c0_4 = arith.constant 0 : index
    %c0_5 = arith.constant 0 : index
    %6 = vector.load %arg4[%c0_4, %c0_5] : memref<512x128xbf16, #tpu.memory_space<vmem>>, vector<512x128xbf16>
    %cst = arith.constant dense<0.000000e+00> : vector<16x128xf32>
    %7 = tpu.matmul %5, %6, %cst {dimension_numbers = #tpu.dot_dimension_numbers<[1], [0], [0], [1], [0, 0, 1, 1], [], []>} : vector<16x512xbf16>, vector<512x128xbf16>, vector<16x128xf32> -> vector<16x128xf32>
    %8 = arith.addf %4, %7 : vector<16x128xf32>
    %c0_6 = arith.constant 0 : index
    %c0_7 = arith.constant 0 : index
    %9 = vector.load %arg7[%c0_6, %c0_7] : memref<16x128xf32, #tpu.memory_space<vmem>>, vector<16x128xf32>
    tpu.vector_store %arg7[%c0_6, %c0_7], %8 {strides = array<i32>} : memref<16x128xf32, #tpu.memory_space<vmem>>, vector<16x128xf32>,
    %c1_i32 = arith.constant 1 : i32
    %10 = arith.cmpi eq, %arg2, %c1_i32 : i32
    %11 = arith.extui %10 : i1 to i32
    %c0_i32_8 = arith.constant 0 : i32
    %12 = arith.cmpi ne, %11, %c0_i32_8 : i32
    scf.if %12 {
      %c0_9 = arith.constant 0 : index
      %c0_10 = arith.constant 0 : index
      %13 = vector.load %arg7[%c0_9, %c0_10] : memref<16x128xf32, #tpu.memory_space<vmem>>, vector<16x128xf32>
      %c0_11 = arith.constant 0 : index
      %c0_12 = arith.constant 0 : index
      %14 = vector.load %arg5[%c0_11, %c0_12] : memref<1x128xf32, #tpu.memory_space<vmem>>, vector<1x128xf32>
      %15 = vector.broadcast %14 : vector<1x128xf32> to vector<16x128xf32>
      %16 = arith.addf %13, %15 : vector<16x128xf32>
      %c0_13 = arith.constant 0 : index
      %c0_14 = arith.constant 0 : index
      %17 = vector.load %arg6[%c0_13, %c0_14] : memref<16x128xf32, #tpu.memory_space<vmem>>, vector<16x128xf32>
      tpu.vector_store %arg6[%c0_13, %c0_14], %16 {strides = array<i32>} : memref<16x128xf32, #tpu.memory_space<vmem>>, vector<16x128xf32>,
    } else {
    }
    return
  }
  func.func @transform_0(%arg0: i32, %arg1: i32, %arg2: i32) -> (i32, i32) {
    %c0_i32 = arith.constant 0 : i32
    return %arg0, %arg2 : i32, i32
  }
  func.func @transform_1(%arg0: i32, %arg1: i32, %arg2: i32) -> (i32, i32) {
    %c0_i32 = arith.constant 0 : i32
    return %arg2, %arg1 : i32, i32
  }
  func.func @transform_2(%arg0: i32, %arg1: i32, %arg2: i32) -> (i32, i32) {
    %c0_i32 = arith.constant 0 : i32
    %c0_i32_0 = arith.constant 0 : i32
    return %c0_i32, %arg1 : i32, i32
  }
  func.func @transform_3(%arg0: i32, %arg1: i32, %arg2: i32) -> (i32, i32) {
    %c0_i32 = arith.constant 0 : i32
    return %arg0, %arg1 : i32, i32
  }
}

module attributes {stable_mosaic.version = 11 : i64} {
  func.func @_attention_kernel(%arg0: i32, %arg1: memref<1x16x8xf32, #tpu.memory_space<vmem>>, %arg2: memref<1x8x8xf32, #tpu.memory_space<vmem>>, %arg3: memref<1x8x8xf32, #tpu.memory_space<vmem>>, %arg4: memref<1x16x8xf32, #tpu.memory_space<vmem>>) attributes {dimension_semantics = [#tpu.dimension_semantics<parallel>], iteration_bounds = array<i64: 16>, scalar_prefetch = 0 : i64, scratch_operands = 0 : i64, tpu.core_type = #tpu.core_type<tc>, window_params = [{transform_indices = @transform_0, window_bounds = array<i64: 1, 16, 8>}, {transform_indices = @transform_1, window_bounds = array<i64: 1, 8, 8>}, {transform_indices = @transform_2, window_bounds = array<i64: 1, 8, 8>}, {transform_indices = @transform_3, window_bounds = array<i64: 1, 16, 8>}]} {
    %c0 = arith.constant 0 : index
    %c0_0 = arith.constant 0 : index
    %c0_1 = arith.constant 0 : index
    %0 = vector.load %arg1[%c0, %c0_0, %c0_1] : memref<1x16x8xf32, #tpu.memory_space<vmem>>, vector<1x16x8xf32>
    %1 = arith.truncf %0 : vector<1x16x8xf32> to vector<1x16x8xbf16>
    %c0_2 = arith.constant 0 : index
    %c0_3 = arith.constant 0 : index
    %c0_4 = arith.constant 0 : index
    %2 = vector.load %arg2[%c0_2, %c0_3, %c0_4] : memref<1x8x8xf32, #tpu.memory_space<vmem>>, vector<1x8x8xf32>
    %3 = arith.truncf %2 : vector<1x8x8xf32> to vector<1x8x8xbf16>
    %c0_5 = arith.constant 0 : index
    %c0_6 = arith.constant 0 : index
    %c0_7 = arith.constant 0 : index
    %4 = vector.load %arg3[%c0_5, %c0_6, %c0_7] : memref<1x8x8xf32, #tpu.memory_space<vmem>>, vector<1x8x8xf32>
    %5 = arith.truncf %4 : vector<1x8x8xf32> to vector<1x8x8xbf16>
    "tpu.trace_start"() <{level = 10 : i32, message = "bqd,bkd->bqk"}> : () -> ()
    %cst = arith.constant dense<0.000000e+00> : vector<1x16x8xf32>
    %6 = tpu.matmul %1, %3, %cst {dimension_numbers = #tpu.dot_dimension_numbers<[2], [2], [1], [1], [0, 0, 0, 1, 1, 1], [0], [0]>} : vector<1x16x8xbf16>, vector<1x8x8xbf16>, vector<1x16x8xf32> -> vector<1x16x8xf32>
    "tpu.trace_stop"() : () -> ()
    %cst_8 = arith.constant 0.353553385 : f32
    %7 = vector.broadcast %cst_8 : f32 to vector<1x16x8xf32>
    %8 = arith.mulf %6, %7 : vector<1x16x8xf32>
    %cst_9 = arith.constant dense<0xFF800000> : vector<1x16xf32>
    %9 = vector.multi_reduction <maximumf>, %8, %cst_9 [2] : vector<1x16x8xf32> to vector<1x16xf32>
    %10 = vector.shape_cast %9 : vector<1x16xf32> to vector<1x16x1xf32>
    %11 = vector.broadcast %10 : vector<1x16x1xf32> to vector<1x16x8xf32>
    %12 = arith.subf %8, %11 : vector<1x16x8xf32>
    %13 = math.exp %12 : vector<1x16x8xf32>
    %cst_10 = arith.constant dense<0.000000e+00> : vector<1x16xf32>
    %14 = vector.multi_reduction <add>, %13, %cst_10 [2] : vector<1x16x8xf32> to vector<1x16xf32>
    %15 = vector.shape_cast %14 : vector<1x16xf32> to vector<1x16x1xf32>
    %16 = tpu.reciprocal %15 {approx = true} : vector<1x16x1xf32> -> vector<1x16x1xf32>
    %17 = vector.broadcast %16 : vector<1x16x1xf32> to vector<1x16x8xf32>
    %18 = arith.mulf %13, %17 : vector<1x16x8xf32>
    %19 = arith.truncf %18 : vector<1x16x8xf32> to vector<1x16x8xbf16>
    "tpu.trace_start"() <{level = 10 : i32, message = "bqk,bkd->bqd"}> : () -> ()
    %cst_11 = arith.constant dense<0.000000e+00> : vector<1x16x8xf32>
    %20 = tpu.matmul %19, %5, %cst_11 {dimension_numbers = #tpu.dot_dimension_numbers<[2], [1], [1], [2], [0, 0, 0, 1, 1, 2], [0], [0]>} : vector<1x16x8xbf16>, vector<1x8x8xbf16>, vector<1x16x8xf32> -> vector<1x16x8xf32>
    "tpu.trace_stop"() : () -> ()
    %c0_12 = arith.constant 0 : index
    %c0_13 = arith.constant 0 : index
    %c0_14 = arith.constant 0 : index
    %21 = vector.load %arg4[%c0_12, %c0_13, %c0_14] : memref<1x16x8xf32, #tpu.memory_space<vmem>>, vector<1x16x8xf32>
    tpu.vector_store %arg4[%c0_12, %c0_13, %c0_14], %20 {strides = array<i32>} : memref<1x16x8xf32, #tpu.memory_space<vmem>>, vector<1x16x8xf32>,
    return
  }
  func.func @transform_0(%arg0: i32) -> (i32, i32, i32) {
    %c0_i32 = arith.constant 0 : i32
    %c0_i32_0 = arith.constant 0 : i32
    %c0_i32_1 = arith.constant 0 : i32
    return %arg0, %c0_i32, %c0_i32_0 : i32, i32, i32
  }
  func.func @transform_1(%arg0: i32) -> (i32, i32, i32) {
    %c0_i32 = arith.constant 0 : i32
    %c0_i32_0 = arith.constant 0 : i32
    %c0_i32_1 = arith.constant 0 : i32
    return %arg0, %c0_i32, %c0_i32_0 : i32, i32, i32
  }
  func.func @transform_2(%arg0: i32) -> (i32, i32, i32) {
    %c0_i32 = arith.constant 0 : i32
    %c0_i32_0 = arith.constant 0 : i32
    %c0_i32_1 = arith.constant 0 : i32
    return %arg0, %c0_i32, %c0_i32_0 : i32, i32, i32
  }
  func.func @transform_3(%arg0: i32) -> (i32, i32, i32) {
    %c0_i32 = arith.constant 0 : i32
    %c0_i32_0 = arith.constant 0 : i32
    %c0_i32_1 = arith.constant 0 : i32
    return %arg0, %c0_i32, %c0_i32_0 : i32, i32, i32
  }
}

module attributes {stable_mosaic.version = 11 : i64} {
  func.func @_fused_matmul_kernel(%arg0: i32, %arg1: i32, %arg2: i32, %arg3: memref<32x128xf32, #tpu.memory_space<vmem>>, %arg4: memref<128x256xbf16, #tpu.memory_space<vmem>>, %arg5: memref<1x256xf32, #tpu.memory_space<vmem>>, %arg6: memref<1x128xf32, #tpu.memory_space<vmem>>, %arg7: memref<1x128xf32, #tpu.memory_space<vmem>>, %arg8: memref<32x256xf32, #tpu.memory_space<vmem>>, %arg9: memref<32x256xf32, #tpu.memory_space<vmem>>) attributes {dimension_semantics = [#tpu.dimension_semantics<parallel>, #tpu.dimension_semantics<parallel>, #tpu.dimension_semantics<arbitrary>], iteration_bounds = array<i64: 1, 2, 1>, scalar_prefetch = 0 : i64, scratch_operands = 1 : i64, tpu.core_type = #tpu.core_type<tc>, window_params = [{transform_indices = @transform_0, window_bounds = array<i64: 32, 128>}, {transform_indices = @transform_1, window_bounds = array<i64: 128, 256>}, {transform_indices = @transform_2, window_bounds = array<i64: 1, 256>}, {transform_indices = @transform_3, window_bounds = array<i64: 1, 128>}, {transform_indices = @transform_4, window_bounds = array<i64: 1, 128>}, {transform_indices = @transform_5, window_bounds = array<i64: 32, 256>}]} {
    %c0_i32 = arith.constant 0 : i32
    %0 = arith.cmpi eq, %arg2, %c0_i32 : i32
    %1 = arith.extui %0 : i1 to i32
    %c0_i32_0 = arith.constant 0 : i32
    %2 = arith.cmpi ne, %1, %c0_i32_0 : i32
    scf.if %2 {
      %cst_19 = arith.constant 0.000000e+00 : f32
      %37 = vector.broadcast %cst_19 : f32 to vector<32x256xf32>
      %c0_20 = arith.constant 0 : index
      %c0_21 = arith.constant 0 : index
      %38 = vector.load %arg9[%c0_20, %c0_21] : memref<32x256xf32, #tpu.memory_space<vmem>>, vector<32x256xf32>
      tpu.vector_store %arg9[%c0_20, %c0_21], %37 {strides = array<i32>} : memref<32x256xf32, #tpu.memory_space<vmem>>, vector<32x256xf32>,
    } else {
    }
    %c0 = arith.constant 0 : index
    %c0_1 = arith.constant 0 : index
    %3 = vector.load %arg3[%c0, %c0_1] : memref<32x128xf32, #tpu.memory_space<vmem>>, vector<32x128xf32>
    %cst = arith.constant dense<0.000000e+00> : vector<32xf32>
    %4 = vector.multi_reduction <add>, %3, %cst [1] : vector<32x128xf32> to vector<32xf32>
    %5 = vector.shape_cast %4 : vector<32xf32> to vector<32x1xf32>
    %cst_2 = arith.constant 1.562500e-02 : f32
    %6 = vector.broadcast %cst_2 : f32 to vector<32x1xf32>
    %7 = arith.mulf %5, %6 : vector<32x1xf32>
    %8 = arith.mulf %3, %3 : vector<32x128xf32>
    %cst_3 = arith.constant dense<0.000000e+00> : vector<32xf32>
    %9 = vector.multi_reduction <add>, %8, %cst_3 [1] : vector<32x128xf32> to vector<32xf32>
    %10 = vector.shape_cast %9 : vector<32xf32> to vector<32x1xf32>
    %cst_4 = arith.constant 1.562500e-02 : f32
    %11 = vector.broadcast %cst_4 : f32 to vector<32x1xf32>
    %12 = arith.mulf %10, %11 : vector<32x1xf32>
    %13 = arith.mulf %7, %7 : vector<32x1xf32>
    %14 = arith.subf %12, %13 : vector<32x1xf32>
    %15 = vector.broadcast %7 : vector<32x1xf32> to vector<32x128xf32>
    %16 = arith.subf %3, %15 : vector<32x128xf32>
    %cst_5 = arith.constant 9.99999974E-6 : f32
    %17 = vector.broadcast %cst_5 : f32 to vector<32x1xf32>
    %18 = arith.addf %14, %17 : vector<32x1xf32>
    %19 = math.rsqrt %18 : vector<32x1xf32>
    %20 = vector.broadcast %19 : vector<32x1xf32> to vector<32x128xf32>
    %21 = arith.mulf %16, %20 : vector<32x128xf32>
    %c0_6 = arith.constant 0 : index
    %c0_7 = arith.constant 0 : index
    %22 = vector.load %arg6[%c0_6, %c0_7] : memref<1x128xf32, #tpu.memory_space<vmem>>, vector<1x128xf32>
    %23 = vector.broadcast %22 : vector<1x128xf32> to vector<32x128xf32>
    %24 = arith.mulf %21, %23 : vector<32x128xf32>
    %c0_8 = arith.constant 0 : index
    %c0_9 = arith.constant 0 : index
    %25 = vector.load %arg7[%c0_8, %c0_9] : memref<1x128xf32, #tpu.memory_space<vmem>>, vector<1x128xf32>
    %26 = vector.broadcast %25 : vector<1x128xf32> to vector<32x128xf32>
    %27 = arith.addf %24, %26 : vector<32x128xf32>
    %c0_10 = arith.constant 0 : index
    %c0_11 = arith.constant 0 : index
    %28 = vector.load %arg9[%c0_10, %c0_11] : memref<32x256xf32, #tpu.memory_space<vmem>>, vector<32x256xf32>
    %29 = arith.truncf %27 : vector<32x128xf32> to vector<32x128xbf16>
    %c0_12 = arith.constant 0 : index
    %c0_13 = arith.constant 0 : index
    %30 = vector.load %arg4[%c0_12, %c0_13] : memref<128x256xbf16, #tpu.memory_space<vmem>>, vector<128x256xbf16>
    %cst_14 = arith.constant dense<0.000000e+00> : vector<32x256xf32>
    %31 = tpu.matmul %29, %30, %cst_14 {dimension_numbers = #tpu.dot_dimension_numbers<[1], [0], [0], [1], [0, 0, 1, 1], [], []>} : vector<32x128xbf16>, vector<128x256xbf16>, vector<32x256xf32> -> vector<32x256xf32>
    %32 = arith.addf %28, %31 : vector<32x256xf32>
    %c0_15 = arith.constant 0 : index
    %c0_16 = arith.constant 0 : index
    %33 = vector.load %arg9[%c0_15, %c0_16] : memref<32x256xf32, #tpu.memory_space<vmem>>, vector<32x256xf32>
    tpu.vector_store %arg9[%c0_15, %c0_16], %32 {strides = array<i32>} : memref<32x256xf32, #tpu.memory_space<vmem>>, vector<32x256xf32>,
    %c0_i32_17 = arith.constant 0 : i32
    %34 = arith.cmpi eq, %arg2, %c0_i32_17 : i32
    %35 = arith.extui %34 : i1 to i32
    %c0_i32_18 = arith.constant 0 : i32
    %36 = arith.cmpi ne, %35, %c0_i32_18 : i32
    scf.if %36 {
      %c0_19 = arith.constant 0 : index
      %c0_20 = arith.constant 0 : index
      %37 = vector.load %arg9[%c0_19, %c0_20] : memref<32x256xf32, #tpu.memory_space<vmem>>, vector<32x256xf32>
      %c0_21 = arith.constant 0 : index
      %c0_22 = arith.constant 0 : index
      %38 = vector.load %arg5[%c0_21, %c0_22] : memref<1x256xf32, #tpu.memory_space<vmem>>, vector<1x256xf32>
      %39 = vector.broadcast %38 : vector<1x256xf32> to vector<32x256xf32>
      %40 = arith.addf %37, %39 : vector<32x256xf32>
      %c0_23 = arith.constant 0 : index
      %c0_24 = arith.constant 0 : index
      %41 = vector.load %arg8[%c0_23, %c0_24] : memref<32x256xf32, #tpu.memory_space<vmem>>, vector<32x256xf32>
      tpu.vector_store %arg8[%c0_23, %c0_24], %40 {strides = array<i32>} : memref<32x256xf32, #tpu.memory_space<vmem>>, vector<32x256xf32>,
    } else {
    }
    return
  }
  func.func @transform_0(%arg0: i32, %arg1: i32, %arg2: i32) -> (i32, i32) {
    %c0_i32 = arith.constant 0 : i32
    return %arg0, %arg2 : i32, i32
  }
  func.func @transform_1(%arg0: i32, %arg1: i32, %arg2: i32) -> (i32, i32) {
    %c0_i32 = arith.constant 0 : i32
    return %arg2, %arg1 : i32, i32
  }
  func.func @transform_2(%arg0: i32, %arg1: i32, %arg2: i32) -> (i32, i32) {
    %c0_i32 = arith.constant 0 : i32
    %c0_i32_0 = arith.constant 0 : i32
    return %c0_i32, %arg1 : i32, i32
  }
  func.func @transform_3(%arg0: i32, %arg1: i32, %arg2: i32) -> (i32, i32) {
    %c0_i32 = arith.constant 0 : i32
    %c0_i32_0 = arith.constant 0 : i32
    return %c0_i32, %arg2 : i32, i32
  }
  func.func @transform_4(%arg0: i32, %arg1: i32, %arg2: i32) -> (i32, i32) {
    %c0_i32 = arith.constant 0 : i32
    %c0_i32_0 = arith.constant 0 : i32
    return %c0_i32, %arg2 : i32, i32
  }
  func.func @transform_5(%arg0: i32, %arg1: i32, %arg2: i32) -> (i32, i32) {
    %c0_i32 = arith.constant 0 : i32
    return %arg0, %arg1 : i32, i32
  }
}

module attributes {stable_mosaic.version = 11 : i64} {
  func.func @_fused_matmul_kernel(%arg0: i32, %arg1: i32, %arg2: i32, %arg3: memref<32x256xf32, #tpu.memory_space<vmem>>, %arg4: memref<256x128xbf16, #tpu.memory_space<vmem>>, %arg5: memref<1x128xf32, #tpu.memory_space<vmem>>, %arg6: memref<32x128xf32, #tpu.memory_space<vmem>>, %arg7: memref<32x128xf32, #tpu.memory_space<vmem>>, %arg8: memref<32x128xf32, #tpu.memory_space<vmem>>) attributes {dimension_semantics = [#tpu.dimension_semantics<parallel>, #tpu.dimension_semantics<parallel>, #tpu.dimension_semantics<arbitrary>], iteration_bounds = array<i64: 1, 1, 1>, scalar_prefetch = 0 : i64, scratch_operands = 1 : i64, tpu.core_type = #tpu.core_type<tc>, window_params = [{transform_indices = @transform_0, window_bounds = array<i64: 32, 256>}, {transform_indices = @transform_1, window_bounds = array<i64: 256, 128>}, {transform_indices = @transform_2, window_bounds = array<i64: 1, 128>}, {transform_indices = @transform_3, window_bounds = array<i64: 32, 128>}, {transform_indices = @transform_4, window_bounds = array<i64: 32, 128>}]} {
    %c0_i32 = arith.constant 0 : i32
    %0 = arith.cmpi eq, %arg2, %c0_i32 : i32
    %1 = arith.extui %0 : i1 to i32
    %c0_i32_0 = arith.constant 0 : i32
    %2 = arith.cmpi ne, %1, %c0_i32_0 : i32
    scf.if %2 {
      %cst_10 = arith.constant 0.000000e+00 : f32
      %13 = vector.broadcast %cst_10 : f32 to vector<32x128xf32>
      %c0_11 = arith.constant 0 : index
      %c0_12 = arith.constant 0 : index
      %14 = vector.load %arg8[%c0_11, %c0_12] : memref<32x128xf32, #tpu.memory_space<vmem>>, vector<32x128xf32>
      tpu.vector_store %arg8[%c0_11, %c0_12], %13 {strides = array<i32>} : memref<32x128xf32, #tpu.memory_space<vmem>>, vector<32x128xf32>,
    } else {
    }
    %c0 = arith.constant 0 : index
    %c0_1 = arith.constant 0 : index
    %3 = vector.load %arg3[%c0, %c0_1] : memref<32x256xf32, #tpu.memory_space<vmem>>, vector<32x256xf32>
    %c0_2 = arith.constant 0 : index
    %c0_3 = arith.constant 0 : index
    %4 = vector.load %arg8[%c0_2, %c0_3] : memref<32x128xf32, #tpu.memory_space<vmem>>, vector<32x128xf32>
    %5 = arith.truncf %3 : vector<32x256xf32> to vector<32x256xbf16>
    %c0_4 = arith.constant 0 : index
    %c0_5 = arith.constant 0 : index
    %6 = vector.load %arg4[%c0_4, %c0_5] : memref<256x128xbf16, #tpu.memory_space<vmem>>, vector<256x128xbf16>
    %cst = arith.constant dense<0.000000e+00> : vector<32x128xf32>
    %7 = tpu.matmul %5, %6, %cst {dimension_numbers = #tpu.dot_dimension_numbers<[1], [0], [0], [1], [0, 0, 1, 1], [], []>} : vector<32x256xbf16>, vector<256x128xbf16>, vector<32x128xf32> -> vector<32x128xf32>
    %8 = arith.addf %4, %7 : vector<32x128xf32>
    %c0_6 = arith.constant 0 : index
    %c0_7 = arith.constant 0 : index
    %9 = vector.load %arg8[%c0_6, %c0_7] : memref<32x128xf32, #tpu.memory_space<vmem>>, vector<32x128xf32>
    tpu.vector_store %arg8[%c0_6, %c0_7], %8 {strides = array<i32>} : memref<32x128xf32, #tpu.memory_space<vmem>>, vector<32x128xf32>,
    %c0_i32_8 = arith.constant 0 : i32
    %10 = arith.cmpi eq, %arg2, %c0_i32_8 : i32
    %11 = arith.extui %10 : i1 to i32
    %c0_i32_9 = arith.constant 0 : i32
    %12 = arith.cmpi ne, %11, %c0_i32_9 : i32
    scf.if %12 {
      %c0_10 = arith.constant 0 : index
      %c0_11 = arith.constant 0 : index
      %13 = vector.load %arg8[%c0_10, %c0_11] : memref<32x128xf32, #tpu.memory_space<vmem>>, vector<32x128xf32>
      %c0_12 = arith.constant 0 : index
      %c0_13 = arith.constant 0 : index
      %14 = vector.load %arg5[%c0_12, %c0_13] : memref<1x128xf32, #tpu.memory_space<vmem>>, vector<1x128xf32>
      %15 = vector.broadcast %14 : vector<1x128xf32> to vector<32x128xf32>
      %16 = arith.addf %13, %15 : vector<32x128xf32>
      %c0_14 = arith.constant 0 : index
      %c0_15 = arith.constant 0 : index
      %17 = vector.load %arg6[%c0_14, %c0_15] : memref<32x128xf32, #tpu.memory_space<vmem>>, vector<32x128xf32>
      %18 = arith.addf %16, %17 : vector<32x128xf32>
      %c0_16 = arith.constant 0 : index
      %c0_17 = arith.constant 0 : index
      %19 = vector.load %arg7[%c0_16, %c0_17] : memref<32x128xf32, #tpu.memory_space<vmem>>, vector<32x128xf32>
      tpu.vector_store %arg7[%c0_16, %c0_17], %18 {strides = array<i32>} : memref<32x128xf32, #tpu.memory_space<vmem>>, vector<32x128xf32>,
    } else {
    }
    return
  }
  func.func @transform_0(%arg0: i32, %arg1: i32, %arg2: i32) -> (i32, i32) {
    %c0_i32 = arith.constant 0 : i32
    return %arg0, %arg2 : i32, i32
  }
  func.func @transform_1(%arg0: i32, %arg1: i32, %arg2: i32) -> (i32, i32) {
    %c0_i32 = arith.constant 0 : i32
    return %arg2, %arg1 : i32, i32
  }
  func.func @transform_2(%arg0: i32, %arg1: i32, %arg2: i32) -> (i32, i32) {
    %c0_i32 = arith.constant 0 : i32
    %c0_i32_0 = arith.constant 0 : i32
    return %c0_i32, %arg1 : i32, i32
  }
  func.func @transform_3(%arg0: i32, %arg1: i32, %arg2: i32) -> (i32, i32) {
    %c0_i32 = arith.constant 0 : i32
    return %arg0, %arg1 : i32, i32
  }
  func.func @transform_4(%arg0: i32, %arg1: i32, %arg2: i32) -> (i32, i32) {
    %c0_i32 = arith.constant 0 : i32
    return %arg0, %arg1 : i32, i32
  }
}

module attributes {stable_mosaic.version = 11 : i64} {
  func.func @_groupnorm_kernel(%arg0: i32, %arg1: memref<1x16x96xf32, #tpu.memory_space<vmem>>, %arg2: memref<96x32xf32, #tpu.memory_space<vmem>>, %arg3: memref<32x96xf32, #tpu.memory_space<vmem>>, %arg4: memref<1x1x96xf32, #tpu.memory_space<vmem>>, %arg5: memref<1x1x96xf32, #tpu.memory_space<vmem>>, %arg6: memref<1x16x96xf32, #tpu.memory_space<vmem>>) attributes {dimension_semantics = [#tpu.dimension_semantics<parallel>], iteration_bounds = array<i64: 2>, scalar_prefetch = 0 : i64, scratch_operands = 0 : i64, tpu.core_type = #tpu.core_type<tc>, window_params = [{transform_indices = @transform_0, window_bounds = array<i64: 1, 16, 96>}, {pipeline_mode = #tpu.pipeline_mode<synchronous>, transform_indices = @transform_1, window_bounds = array<i64: 96, 32>}, {pipeline_mode = #tpu.pipeline_mode<synchronous>, transform_indices = @transform_2, window_bounds = array<i64: 32, 96>}, {pipeline_mode = #tpu.pipeline_mode<synchronous>, transform_indices = @transform_3, window_bounds = array<i64: 1, 1, 96>}, {pipeline_mode = #tpu.pipeline_mode<synchronous>, transform_indices = @transform_4, window_bounds = array<i64: 1, 1, 96>}, {transform_indices = @transform_5, window_bounds = array<i64: 1, 16, 96>}]} {
    %c0 = arith.constant 0 : index
    %c0_0 = arith.constant 0 : index
    %c0_1 = arith.constant 0 : index
    %0 = vector.load %arg1[%c0, %c0_0, %c0_1] : memref<1x16x96xf32, #tpu.memory_space<vmem>>, vector<1x16x96xf32>
    %1 = vector.shape_cast %0 : vector<1x16x96xf32> to vector<16x96xf32>
    %c0_2 = arith.constant 0 : index
    %c0_3 = arith.constant 0 : index
    %2 = vector.load %arg2[%c0_2, %c0_3] : memref<96x32xf32, #tpu.memory_space<vmem>>, vector<96x32xf32>
    %c0_4 = arith.constant 0 : index
    %c0_5 = arith.constant 0 : index
    %3 = vector.load %arg3[%c0_4, %c0_5] : memref<32x96xf32, #tpu.memory_space<vmem>>, vector<32x96xf32>
    %cst = arith.constant dense<0.000000e+00> : vector<96xf32>
    %4 = vector.multi_reduction <add>, %1, %cst [0] : vector<16x96xf32> to vector<96xf32>
    %5 = vector.shape_cast %4 : vector<96xf32> to vector<1x96xf32>
    %6 = arith.mulf %1, %1 : vector<16x96xf32>
    %cst_6 = arith.constant dense<0.000000e+00> : vector<96xf32>
    %7 = vector.multi_reduction <add>, %6, %cst_6 [0] : vector<16x96xf32> to vector<96xf32>
    %8 = vector.shape_cast %7 : vector<96xf32> to vector<1x96xf32>
    %cst_7 = arith.constant dense<0.000000e+00> : vector<1x32xf32>
    %9 = tpu.matmul %5, %2, %cst_7 {dimension_numbers = #tpu.dot_dimension_numbers<[1], [0], [0], [1], [0, 0, 1, 1], [], []>} : vector<1x96xf32>, vector<96x32xf32>, vector<1x32xf32> -> vector<1x32xf32>
    %cst_8 = arith.constant dense<0.000000e+00> : vector<1x32xf32>
    %10 = tpu.matmul %8, %2, %cst_8 {dimension_numbers = #tpu.dot_dimension_numbers<[1], [0], [0], [1], [0, 0, 1, 1], [], []>} : vector<1x96xf32>, vector<96x32xf32>, vector<1x32xf32> -> vector<1x32xf32>
    %cst_9 = arith.constant 0.020833334 : f32
    %11 = vector.broadcast %cst_9 : f32 to vector<1x32xf32>
    %12 = arith.mulf %9, %11 : vector<1x32xf32>
    %cst_10 = arith.constant 0.020833334 : f32
    %13 = vector.broadcast %cst_10 : f32 to vector<1x32xf32>
    %14 = arith.mulf %10, %13 : vector<1x32xf32>
    %15 = arith.mulf %12, %12 : vector<1x32xf32>
    %16 = arith.subf %14, %15 : vector<1x32xf32>
    %cst_11 = arith.constant 9.99999974E-6 : f32
    %17 = vector.broadcast %cst_11 : f32 to vector<1x32xf32>
    %18 = arith.addf %16, %17 : vector<1x32xf32>
    %19 = math.rsqrt %18 : vector<1x32xf32>
    %cst_12 = arith.constant dense<0.000000e+00> : vector<1x96xf32>
    %20 = tpu.matmul %12, %3, %cst_12 {dimension_numbers = #tpu.dot_dimension_numbers<[1], [0], [0], [1], [0, 0, 1, 1], [], []>} : vector<1x32xf32>, vector<32x96xf32>, vector<1x96xf32> -> vector<1x96xf32>
    %cst_13 = arith.constant dense<0.000000e+00> : vector<1x96xf32>
    %21 = tpu.matmul %19, %3, %cst_13 {dimension_numbers = #tpu.dot_dimension_numbers<[1], [0], [0], [1], [0, 0, 1, 1], [], []>} : vector<1x32xf32>, vector<32x96xf32>, vector<1x96xf32> -> vector<1x96xf32>
    %22 = vector.broadcast %20 : vector<1x96xf32> to vector<16x96xf32>
    %23 = arith.subf %1, %22 : vector<16x96xf32>
    %24 = vector.broadcast %21 : vector<1x96xf32> to vector<16x96xf32>
    %25 = arith.mulf %23, %24 : vector<16x96xf32>
    %c0_14 = arith.constant 0 : index
    %c0_15 = arith.constant 0 : index
    %c0_16 = arith.constant 0 : index
    %26 = vector.load %arg4[%c0_14, %c0_15, %c0_16] : memref<1x1x96xf32, #tpu.memory_space<vmem>>, vector<1x1x96xf32>
    %27 = vector.shape_cast %26 : vector<1x1x96xf32> to vector<1x96xf32>
    %28 = vector.broadcast %27 : vector<1x96xf32> to vector<16x96xf32>
    %29 = arith.mulf %25, %28 : vector<16x96xf32>
    %c0_17 = arith.constant 0 : index
    %c0_18 = arith.constant 0 : index
    %c0_19 = arith.constant 0 : index
    %30 = vector.load %arg5[%c0_17, %c0_18, %c0_19] : memref<1x1x96xf32, #tpu.memory_space<vmem>>, vector<1x1x96xf32>
    %31 = vector.shape_cast %30 : vector<1x1x96xf32> to vector<1x96xf32>
    %32 = vector.broadcast %31 : vector<1x96xf32> to vector<16x96xf32>
    %33 = arith.addf %29, %32 : vector<16x96xf32>
    %34 = arith.negf %33 : vector<16x96xf32>
    %35 = math.exp %34 : vector<16x96xf32>
    %cst_20 = arith.constant 1.000000e+00 : f32
    %36 = vector.broadcast %cst_20 : f32 to vector<16x96xf32>
    %37 = arith.addf %36, %35 : vector<16x96xf32>
    %38 = arith.divf %36, %37 : vector<16x96xf32>
    %39 = arith.mulf %33, %38 : vector<16x96xf32>
    %40 = vector.shape_cast %39 : vector<16x96xf32> to vector<1x16x96xf32>
    %c0_21 = arith.constant 0 : index
    %c0_22 = arith.constant 0 : index
    %c0_23 = arith.constant 0 : index
    %41 = vector.load %arg6[%c0_21, %c0_22, %c0_23] : memref<1x16x96xf32, #tpu.memory_space<vmem>>, vector<1x16x96xf32>
    tpu.vector_store %arg6[%c0_21, %c0_22, %c0_23], %40 {strides = array<i32>} : memref<1x16x96xf32, #tpu.memory_space<vmem>>, vector<1x16x96xf32>,
    return
  }
  func.func @transform_0(%arg0: i32) -> (i32, i32, i32) {
    %c0_i32 = arith.constant 0 : i32
    %c0_i32_0 = arith.constant 0 : i32
    %c0_i32_1 = arith.constant 0 : i32
    return %arg0, %c0_i32, %c0_i32_0 : i32, i32, i32
  }
  func.func @transform_1(%arg0: i32) -> (i32, i32) {
    %c0_i32 = arith.constant 0 : i32
    %c0_i32_0 = arith.constant 0 : i32
    %c0_i32_1 = arith.constant 0 : i32
    return %c0_i32, %c0_i32_0 : i32, i32
  }
  func.func @transform_2(%arg0: i32) -> (i32, i32) {
    %c0_i32 = arith.constant 0 : i32
    %c0_i32_0 = arith.constant 0 : i32
    %c0_i32_1 = arith.constant 0 : i32
    return %c0_i32, %c0_i32_0 : i32, i32
  }
  func.func @transform_3(%arg0: i32) -> (i32, i32, i32) {
    %c0_i32 = arith.constant 0 : i32
    %c0_i32_0 = arith.constant 0 : i32
    %c0_i32_1 = arith.constant 0 : i32
    %c0_i32_2 = arith.constant 0 : i32
    return %c0_i32, %c0_i32_0, %c0_i32_1 : i32, i32, i32
  }
  func.func @transform_4(%arg0: i32) -> (i32, i32, i32) {
    %c0_i32 = arith.constant 0 : i32
    %c0_i32_0 = arith.constant 0 : i32
    %c0_i32_1 = arith.constant 0 : i32
    %c0_i32_2 = arith.constant 0 : i32
    return %c0_i32, %c0_i32_0, %c0_i32_1 : i32, i32, i32
  }
  func.func @transform_5(%arg0: i32) -> (i32, i32, i32) {
    %c0_i32 = arith.constant 0 : i32
    %c0_i32_0 = arith.constant 0 : i32
    %c0_i32_1 = arith.constant 0 : i32
    return %arg0, %c0_i32, %c0_i32_0 : i32, i32, i32
  }
}

module attributes {stable_mosaic.version = 11 : i64} {
  func.func @_conv3_kernel(%arg0: i32, %arg1: memref<1x18x96xf32, #tpu.memory_space<vmem>>, %arg2: memref<3x96x64xbf16, #tpu.memory_space<vmem>>, %arg3: memref<1x64xf32, #tpu.memory_space<vmem>>, %arg4: memref<1x1x64xf32, #tpu.memory_space<vmem>>, %arg5: memref<1x16x64xf32, #tpu.memory_space<vmem>>) attributes {dimension_semantics = [#tpu.dimension_semantics<parallel>], iteration_bounds = array<i64: 2>, scalar_prefetch = 0 : i64, scratch_operands = 0 : i64, tpu.core_type = #tpu.core_type<tc>, window_params = [{transform_indices = @transform_0, window_bounds = array<i64: 1, 18, 96>}, {pipeline_mode = #tpu.pipeline_mode<synchronous>, transform_indices = @transform_1, window_bounds = array<i64: 3, 96, 64>}, {pipeline_mode = #tpu.pipeline_mode<synchronous>, transform_indices = @transform_2, window_bounds = array<i64: 1, 64>}, {transform_indices = @transform_3, window_bounds = array<i64: 1, 1, 64>}, {transform_indices = @transform_4, window_bounds = array<i64: 1, 16, 64>}]} {
    %c0 = arith.constant 0 : index
    %c0_0 = arith.constant 0 : index
    %c0_1 = arith.constant 0 : index
    %0 = vector.load %arg2[%c0, %c0_0, %c0_1] : memref<3x96x64xbf16, #tpu.memory_space<vmem>>, vector<3x96x64xbf16>
    %c0_2 = arith.constant 0 : index
    %c0_3 = arith.constant 0 : index
    %c0_4 = arith.constant 0 : index
    %1 = vector.load %arg1[%c0_2, %c0_3, %c0_4] : memref<1x18x96xf32, #tpu.memory_space<vmem>>, vector<1x16x96xf32>
    %2 = vector.shape_cast %1 : vector<1x16x96xf32> to vector<16x96xf32>
    %3 = arith.truncf %2 : vector<16x96xf32> to vector<16x96xbf16>
    %c0_5 = arith.constant 0 : index
    %c1 = arith.constant 1 : index
    %c0_6 = arith.constant 0 : index
    %4 = vector.load %arg1[%c0_5, %c1, %c0_6] : memref<1x18x96xf32, #tpu.memory_space<vmem>>, vector<1x16x96xf32>
    %5 = vector.shape_cast %4 : vector<1x16x96xf32> to vector<16x96xf32>
    %6 = arith.truncf %5 : vector<16x96xf32> to vector<16x96xbf16>
    %c0_7 = arith.constant 0 : index
    %c2 = arith.constant 2 : index
    %c0_8 = arith.constant 0 : index
    %7 = vector.load %arg1[%c0_7, %c2, %c0_8] : memref<1x18x96xf32, #tpu.memory_space<vmem>>, vector<1x16x96xf32>
    %8 = vector.shape_cast %7 : vector<1x16x96xf32> to vector<16x96xf32>
    %9 = arith.truncf %8 : vector<16x96xf32> to vector<16x96xbf16>
    %10 = vector.extract_strided_slice %0 {offsets = [0, 0, 0], sizes = [1, 96, 64], strides = [1, 1, 1]} : vector<3x96x64xbf16> to vector<1x96x64xbf16>
    %11 = vector.shape_cast %10 : vector<1x96x64xbf16> to vector<96x64xbf16>
    %cst = arith.constant dense<0.000000e+00> : vector<16x64xf32>
    %12 = tpu.matmul %3, %11, %cst {dimension_numbers = #tpu.dot_dimension_numbers<[1], [0], [0], [1], [0, 0, 1, 1], [], []>} : vector<16x96xbf16>, vector<96x64xbf16>, vector<16x64xf32> -> vector<16x64xf32>
    %13 = vector.extract_strided_slice %0 {offsets = [1, 0, 0], sizes = [1, 96, 64], strides = [1, 1, 1]} : vector<3x96x64xbf16> to vector<1x96x64xbf16>
    %14 = vector.shape_cast %13 : vector<1x96x64xbf16> to vector<96x64xbf16>
    %cst_9 = arith.constant dense<0.000000e+00> : vector<16x64xf32>
    %15 = tpu.matmul %6, %14, %cst_9 {dimension_numbers = #tpu.dot_dimension_numbers<[1], [0], [0], [1], [0, 0, 1, 1], [], []>} : vector<16x96xbf16>, vector<96x64xbf16>, vector<16x64xf32> -> vector<16x64xf32>
    %16 = arith.addf %12, %15 : vector<16x64xf32>
    %17 = vector.extract_strided_slice %0 {offsets = [2, 0, 0], sizes = [1, 96, 64], strides = [1, 1, 1]} : vector<3x96x64xbf16> to vector<1x96x64xbf16>
    %18 = vector.shape_cast %17 : vector<1x96x64xbf16> to vector<96x64xbf16>
    %cst_10 = arith.constant dense<0.000000e+00> : vector<16x64xf32>
    %19 = tpu.matmul %9, %18, %cst_10 {dimension_numbers = #tpu.dot_dimension_numbers<[1], [0], [0], [1], [0, 0, 1, 1], [], []>} : vector<16x96xbf16>, vector<96x64xbf16>, vector<16x64xf32> -> vector<16x64xf32>
    %20 = arith.addf %16, %19 : vector<16x64xf32>
    %c0_11 = arith.constant 0 : index
    %c0_12 = arith.constant 0 : index
    %21 = vector.load %arg3[%c0_11, %c0_12] : memref<1x64xf32, #tpu.memory_space<vmem>>, vector<1x64xf32>
    %22 = vector.broadcast %21 : vector<1x64xf32> to vector<16x64xf32>
    %23 = arith.addf %20, %22 : vector<16x64xf32>
    %c0_13 = arith.constant 0 : index
    %c0_14 = arith.constant 0 : index
    %c0_15 = arith.constant 0 : index
    %24 = vector.load %arg4[%c0_13, %c0_14, %c0_15] : memref<1x1x64xf32, #tpu.memory_space<vmem>>, vector<1x1x64xf32>
    %25 = vector.shape_cast %24 : vector<1x1x64xf32> to vector<1x64xf32>
    %26 = vector.broadcast %25 : vector<1x64xf32> to vector<16x64xf32>
    %27 = arith.addf %23, %26 : vector<16x64xf32>
    %28 = vector.shape_cast %27 : vector<16x64xf32> to vector<1x16x64xf32>
    %c0_16 = arith.constant 0 : index
    %c0_17 = arith.constant 0 : index
    %c0_18 = arith.constant 0 : index
    %29 = vector.load %arg5[%c0_16, %c0_17, %c0_18] : memref<1x16x64xf32, #tpu.memory_space<vmem>>, vector<1x16x64xf32>
    tpu.vector_store %arg5[%c0_16, %c0_17, %c0_18], %28 {strides = array<i32>} : memref<1x16x64xf32, #tpu.memory_space<vmem>>, vector<1x16x64xf32>,
    return
  }
  func.func @transform_0(%arg0: i32) -> (i32, i32, i32) {
    %c0_i32 = arith.constant 0 : i32
    %c0_i32_0 = arith.constant 0 : i32
    %c0_i32_1 = arith.constant 0 : i32
    return %arg0, %c0_i32, %c0_i32_0 : i32, i32, i32
  }
  func.func @transform_1(%arg0: i32) -> (i32, i32, i32) {
    %c0_i32 = arith.constant 0 : i32
    %c0_i32_0 = arith.constant 0 : i32
    %c0_i32_1 = arith.constant 0 : i32
    %c0_i32_2 = arith.constant 0 : i32
    return %c0_i32, %c0_i32_0, %c0_i32_1 : i32, i32, i32
  }
  func.func @transform_2(%arg0: i32) -> (i32, i32) {
    %c0_i32 = arith.constant 0 : i32
    %c0_i32_0 = arith.constant 0 : i32
    %c0_i32_1 = arith.constant 0 : i32
    return %c0_i32, %c0_i32_0 : i32, i32
  }
  func.func @transform_3(%arg0: i32) -> (i32, i32, i32) {
    %c0_i32 = arith.constant 0 : i32
    %c0_i32_0 = arith.constant 0 : i32
    %c0_i32_1 = arith.constant 0 : i32
    return %arg0, %c0_i32, %c0_i32_0 : i32, i32, i32
  }
  func.func @transform_4(%arg0: i32) -> (i32, i32, i32) {
    %c0_i32 = arith.constant 0 : i32
    %c0_i32_0 = arith.constant 0 : i32
    %c0_i32_1 = arith.constant 0 : i32
    return %arg0, %c0_i32, %c0_i32_0 : i32, i32, i32
  }
}

module attributes {stable_mosaic.version = 11 : i64} {
  func.func @_conv3_kernel(%arg0: i32, %arg1: memref<1x18x64xf32, #tpu.memory_space<vmem>>, %arg2: memref<3x64x64xbf16, #tpu.memory_space<vmem>>, %arg3: memref<1x64xf32, #tpu.memory_space<vmem>>, %arg4: memref<1x16x64xf32, #tpu.memory_space<vmem>>) attributes {dimension_semantics = [#tpu.dimension_semantics<parallel>], iteration_bounds = array<i64: 2>, scalar_prefetch = 0 : i64, scratch_operands = 0 : i64, tpu.core_type = #tpu.core_type<tc>, window_params = [{transform_indices = @transform_0, window_bounds = array<i64: 1, 18, 64>}, {pipeline_mode = #tpu.pipeline_mode<synchronous>, transform_indices = @transform_1, window_bounds = array<i64: 3, 64, 64>}, {pipeline_mode = #tpu.pipeline_mode<synchronous>, transform_indices = @transform_2, window_bounds = array<i64: 1, 64>}, {transform_indices = @transform_3, window_bounds = array<i64: 1, 16, 64>}]} {
    %c0 = arith.constant 0 : index
    %c0_0 = arith.constant 0 : index
    %c0_1 = arith.constant 0 : index
    %0 = vector.load %arg2[%c0, %c0_0, %c0_1] : memref<3x64x64xbf16, #tpu.memory_space<vmem>>, vector<3x64x64xbf16>
    %c0_2 = arith.constant 0 : index
    %c0_3 = arith.constant 0 : index
    %c0_4 = arith.constant 0 : index
    %1 = vector.load %arg1[%c0_2, %c0_3, %c0_4] : memref<1x18x64xf32, #tpu.memory_space<vmem>>, vector<1x16x64xf32>
    %2 = vector.shape_cast %1 : vector<1x16x64xf32> to vector<16x64xf32>
    %3 = arith.truncf %2 : vector<16x64xf32> to vector<16x64xbf16>
    %c0_5 = arith.constant 0 : index
    %c1 = arith.constant 1 : index
    %c0_6 = arith.constant 0 : index
    %4 = vector.load %arg1[%c0_5, %c1, %c0_6] : memref<1x18x64xf32, #tpu.memory_space<vmem>>, vector<1x16x64xf32>
    %5 = vector.shape_cast %4 : vector<1x16x64xf32> to vector<16x64xf32>
    %6 = arith.truncf %5 : vector<16x64xf32> to vector<16x64xbf16>
    %c0_7 = arith.constant 0 : index
    %c2 = arith.constant 2 : index
    %c0_8 = arith.constant 0 : index
    %7 = vector.load %arg1[%c0_7, %c2, %c0_8] : memref<1x18x64xf32, #tpu.memory_space<vmem>>, vector<1x16x64xf32>
    %8 = vector.shape_cast %7 : vector<1x16x64xf32> to vector<16x64xf32>
    %9 = arith.truncf %8 : vector<16x64xf32> to vector<16x64xbf16>
    %10 = vector.extract_strided_slice %0 {offsets = [0, 0, 0], sizes = [1, 64, 64], strides = [1, 1, 1]} : vector<3x64x64xbf16> to vector<1x64x64xbf16>
    %11 = vector.shape_cast %10 : vector<1x64x64xbf16> to vector<64x64xbf16>
    %cst = arith.constant dense<0.000000e+00> : vector<16x64xf32>
    %12 = tpu.matmul %3, %11, %cst {dimension_numbers = #tpu.dot_dimension_numbers<[1], [0], [0], [1], [0, 0, 1, 1], [], []>} : vector<16x64xbf16>, vector<64x64xbf16>, vector<16x64xf32> -> vector<16x64xf32>
    %13 = vector.extract_strided_slice %0 {offsets = [1, 0, 0], sizes = [1, 64, 64], strides = [1, 1, 1]} : vector<3x64x64xbf16> to vector<1x64x64xbf16>
    %14 = vector.shape_cast %13 : vector<1x64x64xbf16> to vector<64x64xbf16>
    %cst_9 = arith.constant dense<0.000000e+00> : vector<16x64xf32>
    %15 = tpu.matmul %6, %14, %cst_9 {dimension_numbers = #tpu.dot_dimension_numbers<[1], [0], [0], [1], [0, 0, 1, 1], [], []>} : vector<16x64xbf16>, vector<64x64xbf16>, vector<16x64xf32> -> vector<16x64xf32>
    %16 = arith.addf %12, %15 : vector<16x64xf32>
    %17 = vector.extract_strided_slice %0 {offsets = [2, 0, 0], sizes = [1, 64, 64], strides = [1, 1, 1]} : vector<3x64x64xbf16> to vector<1x64x64xbf16>
    %18 = vector.shape_cast %17 : vector<1x64x64xbf16> to vector<64x64xbf16>
    %cst_10 = arith.constant dense<0.000000e+00> : vector<16x64xf32>
    %19 = tpu.matmul %9, %18, %cst_10 {dimension_numbers = #tpu.dot_dimension_numbers<[1], [0], [0], [1], [0, 0, 1, 1], [], []>} : vector<16x64xbf16>, vector<64x64xbf16>, vector<16x64xf32> -> vector<16x64xf32>
    %20 = arith.addf %16, %19 : vector<16x64xf32>
    %c0_11 = arith.constant 0 : index
    %c0_12 = arith.constant 0 : index
    %21 = vector.load %arg3[%c0_11, %c0_12] : memref<1x64xf32, #tpu.memory_space<vmem>>, vector<1x64xf32>
    %22 = vector.broadcast %21 : vector<1x64xf32> to vector<16x64xf32>
    %23 = arith.addf %20, %22 : vector<16x64xf32>
    %24 = vector.shape_cast %23 : vector<16x64xf32> to vector<1x16x64xf32>
    %c0_13 = arith.constant 0 : index
    %c0_14 = arith.constant 0 : index
    %c0_15 = arith.constant 0 : index
    %25 = vector.load %arg4[%c0_13, %c0_14, %c0_15] : memref<1x16x64xf32, #tpu.memory_space<vmem>>, vector<1x16x64xf32>
    tpu.vector_store %arg4[%c0_13, %c0_14, %c0_15], %24 {strides = array<i32>} : memref<1x16x64xf32, #tpu.memory_space<vmem>>, vector<1x16x64xf32>,
    return
  }
  func.func @transform_0(%arg0: i32) -> (i32, i32, i32) {
    %c0_i32 = arith.constant 0 : i32
    %c0_i32_0 = arith.constant 0 : i32
    %c0_i32_1 = arith.constant 0 : i32
    return %arg0, %c0_i32, %c0_i32_0 : i32, i32, i32
  }
  func.func @transform_1(%arg0: i32) -> (i32, i32, i32) {
    %c0_i32 = arith.constant 0 : i32
    %c0_i32_0 = arith.constant 0 : i32
    %c0_i32_1 = arith.constant 0 : i32
    %c0_i32_2 = arith.constant 0 : i32
    return %c0_i32, %c0_i32_0, %c0_i32_1 : i32, i32, i32
  }
  func.func @transform_2(%arg0: i32) -> (i32, i32) {
    %c0_i32 = arith.constant 0 : i32
    %c0_i32_0 = arith.constant 0 : i32
    %c0_i32_1 = arith.constant 0 : i32
    return %c0_i32, %c0_i32_0 : i32, i32
  }
  func.func @transform_3(%arg0: i32) -> (i32, i32, i32) {
    %c0_i32 = arith.constant 0 : i32
    %c0_i32_0 = arith.constant 0 : i32
    %c0_i32_1 = arith.constant 0 : i32
    return %arg0, %c0_i32, %c0_i32_0 : i32, i32, i32
  }
}

</mosaic_0001>

<llo_original>
// kernel: upblock_forward.55
$region0: #{upblock_forward.55}
  #allocation0 [shape = 'u32[]', space=smem, size = 0x4, offset = 0x4, fixed_abs, tag = 'smem constant byte address 0x4 - core index']
  #allocation1 [shape = 'u32[72,128]{1,0:T(1,128)}', space=vmem, size = 0x9000, scoped, tag = 'internal scratch']
  %s0 = inlined_call_operand.vmem [shape: f32[2,16,64], index: 0, kind: input, shape index: {}]
  %s1 = inlined_call_operand.vmem [shape: f32[64,32], index: 1, kind: input, shape index: {}]
  %s2 = inlined_call_operand.vmem [shape: f32[32,64], index: 2, kind: input, shape index: {}]
  %s3 = inlined_call_operand.vmem [shape: f32[1,1,64], index: 3, kind: input, shape index: {}]
  %s4 = inlined_call_operand.vmem [shape: f32[1,1,64], index: 4, kind: input, shape index: {}]
  %s5 = inlined_call_operand.vmem [shape: f32[2,16,64], index: 5, kind: output, shape index: {}]
  %s6 = sld [smem:[#allocation0]]
  $region53: #{upblock_forward.55} parent=0
    _
  %s8 = ssub.s32 1, %s6
  %s9 = scalar_select 0, %s8, %s6
  loop: start=0, step=1, limit=4
  $region2: #{upblock_forward.55} parent=0 // loop_pre_header
    _
  $region3: #{upblock_forward.55} parent=0 // loop_header
    %s11 = sphi 0, %s15
    %p12 = scmp.ge.s32.totalorder %s11, 4
    %s21 = sphi 0, %s23
    %s24 = sphi 0, %s21
    %s25 = sphi 0, %s24
    %s41 = sphi 0, %s25
    %s45 = sphi 0, %s45
    %s47 = sphi 0, %s45
    %s48 = sphi 0, %s47
    %s62 = sphi 0, %s48
    %s66 = sphi 0, %s66
    %s68 = sphi 0, %s66
    %s69 = sphi 0, %s68
    %s83 = sphi 0, %s69
    %s87 = sphi 0, %s87
    %s89 = sphi 0, %s87
    %s90 = sphi 0, %s89
    %s104 = sphi 0, %s90
    %s108 = sphi 0, %s108
    %s110 = sphi 0, %s108
    %s111 = sphi 0, %s110
    %s125 = sphi 0, %s111
    %s131 = sphi 0, %s133
    %s134 = sphi 0, %s131
    %s135 = sphi 0, %s134
    %s151 = sphi 0, %s135
  $region4: #{upblock_forward.55} parent=0 // loop_header_branch
    %14 = sbr.rel (%p12) target = $region8
  $region5: #{upblock_forward.55} parent=0 // loop_body
    %s16 = ssub.s32 %s11, 1
    %s17 = ssub.s32 %s11, 2
    %s18 = sadd.s32 %s11, 1
    %s19 = ssub.s32 %s11, %s18
    %p20 = scmp.eq.s32.totalorder %s19, 0
    %s22 = sadd.s32 %s21, 1
    %s23 = scalar_select %p20, %s21, %s22
    %p26 = pneg %p20
    %p27 = scmp.eq.s32.totalorder %s11, 1
    %p28 = por %p26, %p27
    %p29 = scmp.ne.s32.totalorder %s21, %s24
    %p30 = scmp.eq.s32.totalorder %s11, 0
    %p31 = por %p29, %p30
    %p32 = scmp.ne.s32.totalorder %s21, %s24
    %p33 = scmp.eq.s32.totalorder %s16, 1
    %p34 = por %p32, %p33
    %p35 = scmp.ne.s32.totalorder %s24, %s25
    %p36 = scmp.eq.s32.totalorder %s16, 0
    %p37 = por %p35, %p36
    %p38 = scmp.ne.s32.totalorder %s24, %s25
    %p39 = scmp.eq.s32.totalorder %s17, 1
    %p40 = por %p38, %p39
    %p42 = scmp.ne.s32.totalorder %s25, %s41
    %p43 = scmp.eq.s32.totalorder %s17, 0
    %p44 = por %p42, %p43
    %s46 = sadd.s32 %s45, 1
    %p49 = scmp.eq.s32.totalorder %s11, 1
    %p50 = scmp.ne.s32.totalorder %s45, %s47
    %p51 = scmp.eq.s32.totalorder %s11, 0
    %p52 = por %p50, %p51
    %p53 = scmp.ne.s32.totalorder %s45, %s47
    %p54 = scmp.eq.s32.totalorder %s16, 1
    %p55 = por %p53, %p54
    %p56 = scmp.ne.s32.totalorder %s47, %s48
    %p57 = scmp.eq.s32.totalorder %s16, 0
    %p58 = por %p56, %p57
    %p59 = scmp.ne.s32.totalorder %s47, %s48
    %p60 = scmp.eq.s32.totalorder %s17, 1
    %p61 = por %p59, %p60
    %p63 = scmp.ne.s32.totalorder %s48, %s62
    %p64 = scmp.eq.s32.totalorder %s17, 0
    %p65 = por %p63, %p64
    %s67 = sadd.s32 %s66, 1
    %p70 = scmp.eq.s32.totalorder %s11, 1
    %p71 = scmp.ne.s32.totalorder %s66, %s68
    %p72 = scmp.eq.s32.totalorder %s11, 0
    %p73 = por %p71, %p72
    %p74 = scmp.ne.s32.totalorder %s66, %s68
    %p75 = scmp.eq.s32.totalorder %s16, 1
    %p76 = por %p74, %p75
    %p77 = scmp.ne.s32.totalorder %s68, %s69
    %p78 = scmp.eq.s32.totalorder %s16, 0
    %p79 = por %p77, %p78
    %p80 = scmp.ne.s32.totalorder %s68, %s69
    %p81 = scmp.eq.s32.totalorder %s17, 1
    %p82 = por %p80, %p81
    %p84 = scmp.ne.s32.totalorder %s69, %s83
    %p85 = scmp.eq.s32.totalorder %s17, 0
    %p86 = por %p84, %p85
    %s88 = sadd.s32 %s87, 1
    %p91 = scmp.eq.s32.totalorder %s11, 1
    %p92 = scmp.ne.s32.totalorder %s87, %s89
    %p93 = scmp.eq.s32.totalorder %s11, 0
    %p94 = por %p92, %p93
    %p95 = scmp.ne.s32.totalorder %s87, %s89
    %p96 = scmp.eq.s32.totalorder %s16, 1
    %p97 = por %p95, %p96
    %p98 = scmp.ne.s32.totalorder %s89, %s90
    %p99 = scmp.eq.s32.totalorder %s16, 0
    %p100 = por %p98, %p99
    %p101 = scmp.ne.s32.totalorder %s89, %s90
    %p102 = scmp.eq.s32.totalorder %s17, 1
    %p103 = por %p101, %p102
    %p105 = scmp.ne.s32.totalorder %s90, %s104
    %p106 = scmp.eq.s32.totalorder %s17, 0
    %p107 = por %p105, %p106
    %s109 = sadd.s32 %s108, 1
    %p112 = scmp.eq.s32.totalorder %s11, 1
    %p113 = scmp.ne.s32.totalorder %s108, %s110
    %p114 = scmp.eq.s32.totalorder %s11, 0
    %p115 = por %p113, %p114
    %p116 = scmp.ne.s32.totalorder %s108, %s110
    %p117 = scmp.eq.s32.totalorder %s16, 1
    %p118 = por %p116, %p117
    %p119 = scmp.ne.s32.totalorder %s110, %s111
    %p120 = scmp.eq.s32.totalorder %s16, 0
    %p121 = por %p119, %p120
    %p122 = scmp.ne.s32.totalorder %s110, %s111
    %p123 = scmp.eq.s32.totalorder %s17, 1
    %p124 = por %p122, %p123
    %p126 = scmp.ne.s32.totalorder %s111, %s125
    %p127 = scmp.eq.s32.totalorder %s17, 0
    %p128 = por %p126, %p127
    %s129 = ssub.s32 %s11, %s18
    %p130 = scmp.eq.s32.totalorder %s129, 0
    %s132 = sadd.s32 %s131, 1
    %s133 = scalar_select %p130, %s131, %s132
    %p136 = pneg %p130
    %p137 = scmp.eq.s32.totalorder %s11, 1
    %p138 = por %p136, %p137
    %p139 = scmp.ne.s32.totalorder %s131, %s134
    %p140 = scmp.eq.s32.totalorder %s11, 0
    %p141 = por %p139, %p140
    %p142 = scmp.ne.s32.totalorder %s131, %s134
    %p143 = scmp.eq.s32.totalorder %s16, 1
    %p144 = por %p142, %p143
    %p145 = scmp.ne.s32.totalorder %s134, %s135
    %p146 = scmp.eq.s32.totalorder %s16, 0
    %p147 = por %p145, %p146
    %p148 = scmp.ne.s32.totalorder %s134, %s135
    %p149 = scmp.eq.s32.totalorder %s17, 1
    %p150 = por %p148, %p149
    %p152 = scmp.ne.s32.totalorder %s135, %s151
    %p153 = scmp.eq.s32.totalorder %s17, 0
    %p154 = por %p152, %p153
    %p155 = scmp.le.s32.totalorder 1, %s11
    %p156 = scmp.lt.s32.totalorder %s11, 3
    %p157 = pnand %p155, %p156
    %p158 = pneg %p157
    // Predicated region
    $region9: #{upblock_forward.55} parent=5 // pred_check
      _
    $region10: #{upblock_forward.55} parent=5 // pred_check_branch
      %160 = sbr.rel (%p157) target = $region12
    $region11: #{upblock_forward.55} parent=5 // pred_region
      %s161 = ssub.s32 %s11, 1
      // Predicated region
      $region13: #{upblock_forward.55} parent=11 // pred_check
        %p162 = pneg %p58
      $region14: #{upblock_forward.55} parent=11 // pred_check_branch
        %164 = sbr.rel (%p162) target = $region16
      $region15: #{upblock_forward.55} parent=11 // pred_region
        _
      $region16: #{upblock_forward.55} parent=11 // pred_fallthru
        _
      // Predicated region
      $region17: #{upblock_forward.55} parent=11 // pred_check
        %p165 = pneg %p79
      $region18: #{upblock_forward.55} parent=11 // pred_check_branch
        %167 = sbr.rel (%p165) target = $region20
      $region19: #{upblock_forward.55} parent=11 // pred_region
        _
      $region20: #{upblock_forward.55} parent=11 // pred_fallthru
        _
      // Predicated region
      $region21: #{upblock_forward.55} parent=11 // pred_check
        %p168 = pneg %p100
      $region22: #{upblock_forward.55} parent=11 // pred_check_branch
        %170 = sbr.rel (%p168) target = $region24
      $region23: #{upblock_forward.55} parent=11 // pred_region
        _
      $region24: #{upblock_forward.55} parent=11 // pred_fallthru
        _
      // Predicated region
      $region25: #{upblock_forward.55} parent=11 // pred_check
        %p171 = pneg %p121
      $region26: #{upblock_forward.55} parent=11 // pred_check_branch
        %173 = sbr.rel (%p171) target = $region28
      $region27: #{upblock_forward.55} parent=11 // pred_region
        _
      $region28: #{upblock_forward.55} parent=11 // pred_fallthru
        _
    $region12: #{upblock_forward.55} parent=5 // pred_fallthru
      _
    %p174 = scmp.lt.s32.totalorder %s11, 2
    // Predicated region
    $region29: #{upblock_forward.55} parent=5 // pred_check
      %p175 = pneg %p174
    $region30: #{upblock_forward.55} parent=5 // pred_check_branch
      %177 = sbr.rel (%p175) target = $region32
    $region31: #{upblock_forward.55} parent=5 // pred_region
      // Predicated region
      $region33: #{upblock_forward.55} parent=31 // pred_check
        %p178 = pneg %p31
      $region34: #{upblock_forward.55} parent=31 // pred_check_branch
        %180 = sbr.rel (%p178) target = $region36
      $region35: #{upblock_forward.55} parent=31 // pred_region
        %p181 = scmp.lt.s32.totalorder %s11, 1
        %s182 = scalar_select %p181, %s11, 1
        %s183 = smul.addr %s182, 2
        %s184 = smul.addr %s183, 8
        %s185 = scalar_lea.vmem %s0, %s184
      $region36: #{upblock_forward.55} parent=31 // pred_fallthru
        _
    $region32: #{upblock_forward.55} parent=5 // pred_fallthru
      _
    %p186 = scmp.le.s32.totalorder 1, %s11
    %p187 = scmp.lt.s32.totalorder %s11, 3
    %p188 = pnand %p186, %p187
    %p189 = pneg %p188
    // Predicated region
    $region37: #{upblock_forward.55} parent=5 // pred_check
      _
    $region38: #{upblock_forward.55} parent=5 // pred_check_branch
      %191 = sbr.rel (%p188) target = $region40
    $region39: #{upblock_forward.55} parent=5 // pred_region
      %s192 = ssub.s32 %s11, 1
      %p193 = scmp.lt.s32.totalorder %s16, 1
      %s194 = scalar_select %p193, %s16, 1
      %s195 = smul.addr %s194, 2
      %s196 = smul.addr %s195, 8
      %s197 = scalar_lea.vmem %s0, %s196
      %p198 = pneg %p37
      %p199 = pneg %p34
      %p200 = pneg %p58
      %p201 = pneg %p55
      %p202 = pneg %p79
      %p203 = pneg %p76
      %p204 = pneg %p100
      %p205 = pneg %p97
      %p206 = pneg %p121
      %p207 = pneg %p118
      %p208 = pneg %p147
      %p209 = pneg %p144
      %p210 = scmp.lt.s32.totalorder %s16, 1
      %s211 = scalar_select %p210, %s16, 1
      %s212 = smul.addr %s211, 2
      %s213 = smul.addr %s212, 8
      %s214 = scalar_lea.vmem %s5, %s213
      %p215 = scmp.lt.s32.totalorder %s16, 1
      %s216 = scalar_select %p215, %s16, 1
      %s217 = smul.addr %s216, 2
      %s218 = smul.addr %s217, 8
      %s219 = scalar_lea.vmem %s0, %s218
      %p220 = scmp.lt.s32.totalorder %s16, 1
      %s221 = scalar_select %p220, %s16, 1
      %s222 = smul.addr %s221, 2
      %s223 = smul.addr %s222, 8
      %s224 = scalar_lea.vmem %s5, %s223
      %v225 = vld [vmem:[%s219] sm:$0xff]
      %v226 = vld [vmem:[%s219 + $0x8] sm:$0xff]
      %v227 = vld [vmem:[%s1] sm:$0xff]
      %v228 = vld [vmem:[%s1 + $0x8] sm:$0xff]
      %v229 = vld [vmem:[%s1 + $0x10] sm:$0xff]
      %v230 = vld [vmem:[%s1 + $0x18] sm:$0xff]
      %v231 = vld [vmem:[%s1 + $0x20] sm:$0xff]
      %v232 = vld [vmem:[%s1 + $0x28] sm:$0xff]
      %v233 = vld [vmem:[%s1 + $0x30] sm:$0xff]
      %v234 = vld [vmem:[%s1 + $0x38] sm:$0xff]
      %v235 = vld [vmem:[%s2] sm:$0xff]
      %v236 = vld [vmem:[%s2 + $0x8] sm:$0xff]
      %v237 = vld [vmem:[%s2 + $0x10] sm:$0xff]
      %v238 = vld [vmem:[%s2 + $0x18] sm:$0xff]
      %vm239 = vcmask 523264
      %v240 = vsel %vm239, %v225, 0.0
      %v241 = vsel %vm239, %v226, 0.0
      %v242 = vadd.f32 %v240, %v241
      %v243 = vrot.slane %v242, 4
      %v244 = vadd.f32 %v242, %v243
      %v245 = vrot.slane %v244, 2
      %v246 = vadd.f32 %v244, %v245
      %v247 = vrot.slane %v246, 1
      %v248 = vadd.f32 %v246, %v247
      %v249 = vmul.f32 %v225, %v225
      %v250 = vmul.f32 %v226, %v226
      %v251 = vsel %vm239, %v249, 0.0
      %v252 = vsel %vm239, %v250, 0.0
      %v253 = vadd.f32 %v251, %v252
      %v254 = vrot.slane %v253, 4
      %v255 = vadd.f32 %v253, %v254
      %v256 = vrot.slane %v255, 2
      %v257 = vadd.f32 %v255, %v256
      %v258 = vrot.slane %v257, 1
      %v259 = vadd.f32 %v257, %v258
      %v261 = vsel %vm239, %v248, 0
      %263 = vmatpush.msra.mxu0 0.0
      %264 = vmatpush.msra.mxu0 0.0
      %265 = vmatpush.msra.mxu0 0.0
      %266 = vmatpush.msra.mxu0 0.0
      %267 = vmatpush.msra.mxu0 0.0
      %268 = vmatpush.msra.mxu0 0.0
      %269 = vmatpush.msra.mxu0 0.0
      %270 = vmatpush.msra.mxu0 0.0
      %271 = vmatpush.msra.mxu0 %v234
      %272 = vmatpush.msra.mxu0 %v233
      %273 = vmatpush.msra.mxu0 %v232
      %274 = vmatpush.msra.mxu0 %v231
      %275 = vmatpush.msra.mxu0 %v230
      %276 = vmatpush.msra.mxu0 %v229
      %277 = vmatpush.msra.mxu0 %v228
      %278 = vmatpush.msra.mxu0 %v227
      %279 = vmatmul.f32.gmra.mxu0 %v261
      %v280 = vpop.f32.mrf.mxu0
      %v281 = vadd.f32 0.0, %v280
      %282 = vdwg.mxu0
      %v284 = vsel %vm239, %v259, 0
      %286 = vmatpush.msra.mxu0 0.0
      %287 = vmatpush.msra.mxu0 0.0
      %288 = vmatpush.msra.mxu0 0.0
      %289 = vmatpush.msra.mxu0 0.0
      %290 = vmatpush.msra.mxu0 0.0
      %291 = vmatpush.msra.mxu0 0.0
      %292 = vmatpush.msra.mxu0 0.0
      %293 = vmatpush.msra.mxu0 0.0
      %294 = vmatpush.msra.mxu0 %v234
      %295 = vmatpush.msra.mxu0 %v233
      %296 = vmatpush.msra.mxu0 %v232
      %297 = vmatpush.msra.mxu0 %v231
      %298 = vmatpush.msra.mxu0 %v230
      %299 = vmatpush.msra.mxu0 %v229
      %300 = vmatpush.msra.mxu0 %v228
      %301 = vmatpush.msra.mxu0 %v227
      %302 = vmatmul.f32.gmra.mxu0 %v284
      %v303 = vpop.f32.mrf.mxu0
      %v304 = vadd.f32 0.0, %v303
      %305 = vdwg.mxu0
      %v306 = vmul.f32 %v281, 0.03125
      %v307 = vmul.f32 %v304, 0.03125
      %v308 = vmul.f32 %v306, %v306
      %v309 = vsub.f32 %v307, %v308
      %v310 = vadd.f32 %v309, 1e-05
      %v311 = vrsqrt.pop %v310
      %v312 = vmul.f32 %v311, %v310
      %v313 = vmul.f32 %v312, %v311
      %v314 = vmul.f32 0.5, %v313
      %v315 = vsub.f32 1.5, %v314
      %v316 = vmul.f32 %v311, %v315
      %vm317 = vweird.f32 %v310
      %vm318 = vweird.f32 %v311
      %vm319 = vmor %vm317, %vm318
      %v320 = vsel %vm319, %v311, %v316
      %vm321 = vcmask 261120
      %v323 = vsel %vm321, %v306, 0
      %325 = vmatpush.msra.mxu0 0.0
      %326 = vmatpush.msra.mxu0 0.0
      %327 = vmatpush.msra.mxu0 0.0
      %328 = vmatpush.msra.mxu0 0.0
      %329 = vmatpush.msra.mxu0 0.0
      %330 = vmatpush.msra.mxu0 0.0
      %331 = vmatpush.msra.mxu0 0.0
      %332 = vmatpush.msra.mxu0 0.0
      %333 = vmatpush.msra.mxu0 0.0
      %334 = vmatpush.msra.mxu0 0.0
      %335 = vmatpush.msra.mxu0 0.0
      %336 = vmatpush.msra.mxu0 0.0
      %337 = vmatpush.msra.mxu0 %v238
      %338 = vmatpush.msra.mxu0 %v237
      %339 = vmatpush.msra.mxu0 %v236
      %340 = vmatpush.msra.mxu0 %v235
      %341 = vmatmul.f32.gmra.mxu0 %v323
      %v342 = vpop.f32.mrf.mxu0
      %v343 = vadd.f32 0.0, %v342
      %344 = vdwg.mxu0
      %v346 = vsel %vm321, %v320, 0
      %348 = vmatpush.msra.mxu0 0.0
      %349 = vmatpush.msra.mxu0 0.0
      %350 = vmatpush.msra.mxu0 0.0
      %351 = vmatpush.msra.mxu0 0.0
      %352 = vmatpush.msra.mxu0 0.0
      %353 = vmatpush.msra.mxu0 0.0
      %354 = vmatpush.msra.mxu0 0.0
      %355 = vmatpush.msra.mxu0 0.0
      %356 = vmatpush.msra.mxu0 0.0
      %357 = vmatpush.msra.mxu0 0.0
      %358 = vmatpush.msra.mxu0 0.0
      %359 = vmatpush.msra.mxu0 0.0
      %360 = vmatpush.msra.mxu0 %v238
      %361 = vmatpush.msra.mxu0 %v237
      %362 = vmatpush.msra.mxu0 %v236
      %363 = vmatpush.msra.mxu0 %v235
      %364 = vmatmul.f32.gmra.mxu0 %v346
      %v365 = vpop.f32.mrf.mxu0
      %v366 = vadd.f32 0.0, %v365
      %367 = vdwg.mxu0
      %v368 = vperm.slane %v343, 0
      %v369 = vsub.f32 %v225, %v368
      %v370 = vsub.f32 %v226, %v368
      %v371 = vperm.slane %v366, 0
      %v372 = vmul.f32 %v369, %v371
      %v373 = vmul.f32 %v370, %v371
      %v374 = vld [vmem:[%s3] sm:$0x1]
      %v376 = vperm.slane %v374, 0
      %v378 = vmul.f32 %v372, %v376
      %v379 = vmul.f32 %v373, %v376
      %v380 = vld [vmem:[%s4] sm:$0x1]
      %v382 = vperm.slane %v380, 0
      %v384 = vadd.f32 %v378, %v382
      %v385 = vadd.f32 %v379, %v382
      %v386 = vxor.u32 %v384, 2147483648
      %v387 = vxor.u32 %v385, 2147483648
      %v388 = vmul.f32 %v386, 1.442695
      %v389 = vpow.pop %v388
      %v390 = vmul.f32 %v387, 1.442695
      %v391 = vpow.pop %v390
      %v392 = vadd.f32 %v389, 1.0
      %v393 = vadd.f32 %v391, 1.0
      %v394 = vrcp.pop %v392
      %v395 = vmul.f32 %v392, %v394
      %v396 = vsub.f32 1.0, %v395
      %v397 = vmul.f32 %v394, %v396
      %v398 = vadd.f32 %v394, %v397
      %vm399 = vweird.f32 %v392
      %vm400 = vweird.f32 %v394
      %vm401 = vmor %vm399, %vm400
      %v402 = vsel %vm401, %v394, %v398
      %v403 = vand.u32 2147483647, %v392
      %vm404 = vcmp.eq.f32.partialorder %v403, 8.507059e+37
      %v405 = vand.u32 %v392, 2147483648
      %v406 = vor.u32 1.1754944e-38, %v405
      %v407 = vsel %vm404, %v406, %v402
      %v408 = vmul.f32 1.0, %v407
      %v409 = vrcp.pop %v393
      %v410 = vmul.f32 %v393, %v409
      %v411 = vsub.f32 1.0, %v410
      %v412 = vmul.f32 %v409, %v411
      %v413 = vadd.f32 %v409, %v412
      %vm414 = vweird.f32 %v393
      %vm415 = vweird.f32 %v409
      %vm416 = vmor %vm414, %vm415
      %v417 = vsel %vm416, %v409, %v413
      %v418 = vand.u32 2147483647, %v393
      %vm419 = vcmp.eq.f32.partialorder %v418, 8.507059e+37
      %v420 = vand.u32 %v393, 2147483648
      %v421 = vor.u32 1.1754944e-38, %v420
      %v422 = vsel %vm419, %v421, %v417
      %v423 = vmul.f32 1.0, %v422
      %v424 = vmul.f32 %v384, %v408
      %v425 = vmul.f32 %v385, %v423
      %426 = vst.msk [vmem:[%s224] sm:$0xff] %vm239, %v424
      %427 = vst.msk [vmem:[%s224 + $0x8] sm:$0xff] %vm239, %v425
      %p428 = scmp.lt.s32.totalorder %s16, 1
      %s429 = scalar_select %p428, %s16, 1
      %s430 = smul.addr %s429, 2
      %s431 = smul.addr %s430, 8
      %s432 = scalar_lea.vmem %s5, %s431
      // Predicated region
      $region41: #{upblock_forward.55} parent=39 // pred_check
        %p433 = pneg %p144
      $region42: #{upblock_forward.55} parent=39 // pred_check_branch
        %435 = sbr.rel (%p433) target = $region44
      $region43: #{upblock_forward.55} parent=39 // pred_region
        _
      $region44: #{upblock_forward.55} parent=39 // pred_fallthru
        _
    $region40: #{upblock_forward.55} parent=5 // pred_fallthru
      _
    %p436 = scmp.le.s32.totalorder 2, %s11
    // Predicated region
    $region45: #{upblock_forward.55} parent=5 // pred_check
      %p437 = pneg %p436
    $region46: #{upblock_forward.55} parent=5 // pred_check_branch
      %439 = sbr.rel (%p437) target = $region48
    $region47: #{upblock_forward.55} parent=5 // pred_region
      %s440 = ssub.s32 %s11, 2
      // Predicated region
      $region49: #{upblock_forward.55} parent=47 // pred_check
        %p441 = pneg %p150
      $region50: #{upblock_forward.55} parent=47 // pred_check_branch
        %443 = sbr.rel (%p441) target = $region52
      $region51: #{upblock_forward.55} parent=47 // pred_region
        %p444 = scmp.lt.s32.totalorder %s17, 1
        %s445 = scalar_select %p444, %s17, 1
        %s446 = smul.addr %s445, 2
        %s447 = smul.addr %s446, 8
        %s448 = scalar_lea.vmem %s5, %s447
      $region52: #{upblock_forward.55} parent=47 // pred_fallthru
        _
    $region48: #{upblock_forward.55} parent=5 // pred_fallthru
      _
  $region6: #{upblock_forward.55} parent=0 // loop_footer
    %s15 = sadd.s32 1, %s11
  $region7: #{upblock_forward.55} parent=0 // loop_footer_branch
    %10 = sbr.rel target = $region3
  $region8: #{upblock_forward.55} parent=0 // loop_exit
    _

// kernel: upblock_forward.54
$region0: #{upblock_forward.54}
  #allocation0 [shape = 'u32[]', space=smem, size = 0x4, offset = 0x4, fixed_abs, tag = 'smem constant byte address 0x4 - core index']
  #allocation1 [shape = 'u32[72,128]{1,0:T(1,128)}', space=vmem, size = 0x9000, scoped, tag = 'internal scratch']
  #allocation2 [shape = 'f32[8,128]{1,0:T(8,128)}', space=vmem, size = 0x1000, scoped, tag = 'scratch operand']
  %s0 = inlined_call_operand.vmem [shape: f32[8,1536], index: 0, kind: input, shape index: {}]
  %s1 = inlined_call_operand.vmem [shape: bf16[1536,128], index: 1, kind: input, shape index: {}]
  %s2 = inlined_call_operand.vmem [shape: f32[1,128], index: 2, kind: input, shape index: {}]
  %s3 = inlined_call_operand.vmem [shape: f32[8,128], index: 3, kind: output, shape index: {}]
  %s4 = sld [smem:[#allocation0]]
  $region53: #{upblock_forward.54} parent=0
    _
  %s6 = ssub.s32 1, %s4
  %s7 = scalar_select 0, %s6, %s4
  loop: start=0, step=1, limit=5
  $region2: #{upblock_forward.54} parent=0 // loop_pre_header
    _
  $region3: #{upblock_forward.54} parent=0 // loop_header
    %s9 = sphi 0, %s13
    %p10 = scmp.ge.s32.totalorder %s9, 5
    %s16 = sphi 0, %s35
    %s17 = sphi 0, %s31
    %s18 = sphi 0, %s27
    %s19 = sphi 0, %s16
    %s20 = sphi 0, %s17
    %s21 = sphi 0, %s18
    %s22 = sphi 0, %s19
    %s23 = sphi 0, %s20
    %s24 = sphi 0, %s21
    %s40 = sphi 0, %s42
    %s43 = sphi 0, %s40
    %s44 = sphi 0, %s43
    %s60 = sphi 0, %s44
    %s68 = sphi 0, %s70
    %s71 = sphi 0, %s68
    %s72 = sphi 0, %s71
    %s88 = sphi 0, %s72
    %s94 = sphi 0, %s96
    %s97 = sphi 0, %s94
    %s98 = sphi 0, %s97
    %s114 = sphi 0, %s98
    %s122 = sphi 0, %s124
    %s125 = sphi 0, %s122
    %s126 = sphi 0, %s125
    %s142 = sphi 0, %s126
  $region4: #{upblock_forward.54} parent=0 // loop_header_branch
    %12 = sbr.rel (%p10) target = $region8
  $region5: #{upblock_forward.54} parent=0 // loop_body
    %s14 = ssub.s32 %s9, 1
    %s15 = ssub.s32 %s9, 2
    %s25 = sadd.s32 1, %s18
    %p26 = scmp.ge.s32.totalorder %s25, 3
    %s27 = scalar_select %p26, 0, %s25
    %s28 = sadd.s32 1, %s17
    %s29 = scalar_select %p26, %s28, %s17
    %p30 = scmp.ge.s32.totalorder %s29, 1
    %s31 = scalar_select %p30, 0, %s29
    %s32 = sadd.s32 1, %s16
    %s33 = scalar_select %p30, %s32, %s16
    %p34 = scmp.ge.s32.totalorder %s33, 1
    %s35 = scalar_select %p34, 0, %s33
    %s36 = ssub.s32 %s16, %s35
    %s37 = ssub.s32 %s18, %s27
    %s38 = sor.u32 %s36, %s37
    %p39 = scmp.eq.s32.totalorder %s38, 0
    %s41 = sadd.s32 %s40, 1
    %s42 = scalar_select %p39, %s40, %s41
    %p45 = pneg %p39
    %p46 = scmp.eq.s32.totalorder %s9, 2
    %p47 = por %p45, %p46
    %p48 = scmp.ne.s32.totalorder %s40, %s43
    %p49 = scmp.eq.s32.totalorder %s9, 0
    %p50 = por %p48, %p49
    %p51 = scmp.ne.s32.totalorder %s40, %s43
    %p52 = scmp.eq.s32.totalorder %s14, 2
    %p53 = por %p51, %p52
    %p54 = scmp.ne.s32.totalorder %s43, %s44
    %p55 = scmp.eq.s32.totalorder %s14, 0
    %p56 = por %p54, %p55
    %p57 = scmp.ne.s32.totalorder %s43, %s44
    %p58 = scmp.eq.s32.totalorder %s15, 2
    %p59 = por %p57, %p58
    %p61 = scmp.ne.s32.totalorder %s44, %s60
    %p62 = scmp.eq.s32.totalorder %s15, 0
    %p63 = por %p61, %p62
    %s64 = ssub.s32 %s18, %s27
    %s65 = ssub.s32 %s17, %s31
    %s66 = sor.u32 %s64, %s65
    %p67 = scmp.eq.s32.totalorder %s66, 0
    %s69 = sadd.s32 %s68, 1
    %s70 = scalar_select %p67, %s68, %s69
    %p73 = pneg %p67
    %p74 = scmp.eq.s32.totalorder %s9, 2
    %p75 = por %p73, %p74
    %p76 = scmp.ne.s32.totalorder %s68, %s71
    %p77 = scmp.eq.s32.totalorder %s9, 0
    %p78 = por %p76, %p77
    %p79 = scmp.ne.s32.totalorder %s68, %s71
    %p80 = scmp.eq.s32.totalorder %s14, 2
    %p81 = por %p79, %p80
    %p82 = scmp.ne.s32.totalorder %s71, %s72
    %p83 = scmp.eq.s32.totalorder %s14, 0
    %p84 = por %p82, %p83
    %p85 = scmp.ne.s32.totalorder %s71, %s72
    %p86 = scmp.eq.s32.totalorder %s15, 2
    %p87 = por %p85, %p86
    %p89 = scmp.ne.s32.totalorder %s72, %s88
    %p90 = scmp.eq.s32.totalorder %s15, 0
    %p91 = por %p89, %p90
    %s92 = ssub.s32 %s17, %s31
    %p93 = scmp.eq.s32.totalorder %s92, 0
    %s95 = sadd.s32 %s94, 1
    %s96 = scalar_select %p93, %s94, %s95
    %p99 = pneg %p93
    %p100 = scmp.eq.s32.totalorder %s9, 2
    %p101 = por %p99, %p100
    %p102 = scmp.ne.s32.totalorder %s94, %s97
    %p103 = scmp.eq.s32.totalorder %s9, 0
    %p104 = por %p102, %p103
    %p105 = scmp.ne.s32.totalorder %s94, %s97
    %p106 = scmp.eq.s32.totalorder %s14, 2
    %p107 = por %p105, %p106
    %p108 = scmp.ne.s32.totalorder %s97, %s98
    %p109 = scmp.eq.s32.totalorder %s14, 0
    %p110 = por %p108, %p109
    %p111 = scmp.ne.s32.totalorder %s97, %s98
    %p112 = scmp.eq.s32.totalorder %s15, 2
    %p113 = por %p111, %p112
    %p115 = scmp.ne.s32.totalorder %s98, %s114
    %p116 = scmp.eq.s32.totalorder %s15, 0
    %p117 = por %p115, %p116
    %s118 = ssub.s32 %s16, %s35
    %s119 = ssub.s32 %s17, %s31
    %s120 = sor.u32 %s118, %s119
    %p121 = scmp.eq.s32.totalorder %s120, 0
    %s123 = sadd.s32 %s122, 1
    %s124 = scalar_select %p121, %s122, %s123
    %p127 = pneg %p121
    %p128 = scmp.eq.s32.totalorder %s9, 2
    %p129 = por %p127, %p128
    %p130 = scmp.ne.s32.totalorder %s122, %s125
    %p131 = scmp.eq.s32.totalorder %s9, 0
    %p132 = por %p130, %p131
    %p133 = scmp.ne.s32.totalorder %s122, %s125
    %p134 = scmp.eq.s32.totalorder %s14, 2
    %p135 = por %p133, %p134
    %p136 = scmp.ne.s32.totalorder %s125, %s126
    %p137 = scmp.eq.s32.totalorder %s14, 0
    %p138 = por %p136, %p137
    %p139 = scmp.ne.s32.totalorder %s125, %s126
    %p140 = scmp.eq.s32.totalorder %s15, 2
    %p141 = por %p139, %p140
    %p143 = scmp.ne.s32.totalorder %s126, %s142
    %p144 = scmp.eq.s32.totalorder %s15, 0
    %p145 = por %p143, %p144
    %p146 = scmp.le.s32.totalorder 1, %s9
    %p147 = scmp.lt.s32.totalorder %s9, 4
    %p148 = pnand %p146, %p147
    %p149 = pneg %p148
    // Predicated region
    $region9: #{upblock_forward.54} parent=5 // pred_check
      _
    $region10: #{upblock_forward.54} parent=5 // pred_check_branch
      %151 = sbr.rel (%p148) target = $region12
    $region11: #{upblock_forward.54} parent=5 // pred_region
      %s152 = ssub.s32 %s9, 1
      // Predicated region
      $region13: #{upblock_forward.54} parent=11 // pred_check
        %p153 = pneg %p110
      $region14: #{upblock_forward.54} parent=11 // pred_check_branch
        %155 = sbr.rel (%p153) target = $region16
      $region15: #{upblock_forward.54} parent=11 // pred_region
        %p156 = scmp.lt.s32.totalorder %s20, 0
        %s157 = scalar_select %p156, %s20, 0
        %s158 = scalar_lea.vmem %s2, %s157
      $region16: #{upblock_forward.54} parent=11 // pred_fallthru
        _
    $region12: #{upblock_forward.54} parent=5 // pred_fallthru
      _
    %p159 = scmp.lt.s32.totalorder %s9, 3
    // Predicated region
    $region17: #{upblock_forward.54} parent=5 // pred_check
      %p160 = pneg %p159
    $region18: #{upblock_forward.54} parent=5 // pred_check_branch
      %162 = sbr.rel (%p160) target = $region20
    $region19: #{upblock_forward.54} parent=5 // pred_region
      // Predicated region
      $region21: #{upblock_forward.54} parent=19 // pred_check
        %p163 = pneg %p50
      $region22: #{upblock_forward.54} parent=19 // pred_check_branch
        %165 = sbr.rel (%p163) target = $region24
      $region23: #{upblock_forward.54} parent=19 // pred_region
        %s166 = smul.u32 4, %s18
        %p167 = scmp.lt.s32.totalorder %s16, 0
        %s168 = scalar_select %p167, %s16, 0
        %p169 = scmp.lt.s32.totalorder %s166, 11
        %s170 = scalar_select %p169, %s166, 11
        %s171 = smul.addr %s168, 12
        %s172 = sadd.s32 %s170, %s171
        %s173 = smul.addr %s172, 8
        %s174 = scalar_lea.vmem %s0, %s173
        %s175 = smul.u32 4, %s18
      $region24: #{upblock_forward.54} parent=19 // pred_fallthru
        _
      // Predicated region
      $region25: #{upblock_forward.54} parent=19 // pred_check
        %p176 = pneg %p78
      $region26: #{upblock_forward.54} parent=19 // pred_check_branch
        %178 = sbr.rel (%p176) target = $region28
      $region27: #{upblock_forward.54} parent=19 // pred_region
        %s179 = smul.u32 64, %s18
        %p180 = scmp.lt.s32.totalorder %s179, 191
        %s181 = scalar_select %p180, %s179, 191
        %p182 = scmp.lt.s32.totalorder %s17, 0
        %s183 = scalar_select %p182, %s17, 0
        %s184 = sadd.s32 %s183, %s181
        %s185 = smul.addr %s184, 4
        %s186 = scalar_lea.vmem %s1, %s185
        %s187 = smul.u32 64, %s18
      $region28: #{upblock_forward.54} parent=19 // pred_fallthru
        _
    $region20: #{upblock_forward.54} parent=5 // pred_fallthru
      _
    %p188 = scmp.le.s32.totalorder 1, %s9
    %p189 = scmp.lt.s32.totalorder %s9, 4
    %p190 = pnand %p188, %p189
    %p191 = pneg %p190
    // Predicated region
    $region29: #{upblock_forward.54} parent=5 // pred_check
      _
    $region30: #{upblock_forward.54} parent=5 // pred_check_branch
      %193 = sbr.rel (%p190) target = $region32
    $region31: #{upblock_forward.54} parent=5 // pred_region
      %s194 = ssub.s32 %s9, 1
      %s195 = smul.u32 4, %s21
      %p196 = scmp.lt.s32.totalorder %s19, 0
      %s197 = scalar_select %p196, %s19, 0
      %p198 = scmp.lt.s32.totalorder %s195, 11
      %s199 = scalar_select %p198, %s195, 11
      %s200 = smul.addr %s197, 12
      %s201 = sadd.s32 %s199, %s200
      %s202 = smul.addr %s201, 8
      %s203 = scalar_lea.vmem %s0, %s202
      %p204 = pneg %p56
      %p205 = pneg %p53
      %s206 = smul.u32 64, %s21
      %p207 = scmp.lt.s32.totalorder %s206, 191
      %s208 = scalar_select %p207, %s206, 191
      %p209 = scmp.lt.s32.totalorder %s20, 0
      %s210 = scalar_select %p209, %s20, 0
      %s211 = sadd.s32 %s210, %s208
      %s212 = smul.addr %s211, 4
      %s213 = scalar_lea.vmem %s1, %s212
      %p214 = pneg %p84
      %p215 = pneg %p81
      %p216 = scmp.lt.s32.totalorder %s20, 0
      %s217 = scalar_select %p216, %s20, 0
      %s218 = scalar_lea.vmem %s2, %s217
      %p219 = pneg %p110
      %p220 = pneg %p107
      %p221 = pneg %p138
      %p222 = pneg %p135
      %p223 = scmp.lt.s32.totalorder %s19, 0
      %s224 = scalar_select %p223, %s19, 0
      %p225 = scmp.lt.s32.totalorder %s20, 0
      %s226 = scalar_select %p225, %s20, 0
      %s227 = sadd.s32 %s226, %s224
      %s228 = smul.addr %s227, 8
      %s229 = scalar_lea.vmem %s3, %s228
      %s230 = smul.u32 4, %s21
      %p231 = scmp.lt.s32.totalorder %s19, 0
      %s232 = scalar_select %p231, %s19, 0
      %p233 = scmp.lt.s32.totalorder %s230, 11
      %s234 = scalar_select %p233, %s230, 11
      %s235 = smul.addr %s232, 12
      %s236 = sadd.s32 %s234, %s235
      %s237 = smul.addr %s236, 8
      %s238 = scalar_lea.vmem %s0, %s237
      %s239 = smul.u32 4, %s21
      %s240 = smul.u32 64, %s21
      %p241 = scmp.lt.s32.totalorder %s240, 191
      %s242 = scalar_select %p241, %s240, 191
      %p243 = scmp.lt.s32.totalorder %s20, 0
      %s244 = scalar_select %p243, %s20, 0
      %s245 = sadd.s32 %s244, %s242
      %s246 = smul.addr %s245, 4
      %s247 = scalar_lea.vmem %s1, %s246
      %s248 = smul.u32 64, %s21
      %p249 = scmp.lt.s32.totalorder %s20, 0
      %s250 = scalar_select %p249, %s20, 0
      %s251 = scalar_lea.vmem %s2, %s250
      %p252 = scmp.lt.s32.totalorder %s19, 0
      %s253 = scalar_select %p252, %s19, 0
      %p254 = scmp.lt.s32.totalorder %s20, 0
      %s255 = scalar_select %p254, %s20, 0
      %s256 = sadd.s32 %s255, %s253
      %s257 = smul.addr %s256, 8
      %s258 = scalar_lea.vmem %s3, %s257
      %p259 = scmp.eq.s32.totalorder %s21, 0
      // Predicated region
      $region33: #{upblock_forward.54} parent=31 // pred_check
        %p260 = pneg %p259
      $region34: #{upblock_forward.54} parent=31 // pred_check_branch
        %262 = sbr.rel (%p260) target = $region36
      $region35: #{upblock_forward.54} parent=31 // pred_region
        %263 = vst [vmem:[#allocation2] sm:$0xff] 0.0
      $region36: #{upblock_forward.54} parent=31 // pred_fallthru
        _
      %v264 = vld [vmem:[%s238] sm:$0xff]
      %v265 = vld [vmem:[%s238 + $0x8] sm:$0xff]
      %v266 = vld [vmem:[%s238 + $0x10] sm:$0xff]
      %v267 = vld [vmem:[%s238 + $0x18] sm:$0xff]
      %v268 = vxor.u32 %v264, 2147483648
      %v269 = vxor.u32 %v265, 2147483648
      %v270 = vxor.u32 %v266, 2147483648
      %v271 = vxor.u32 %v267, 2147483648
      %v272 = vmul.f32 %v268, 1.442695
      %v273 = vpow.pop %v272
      %v274 = vmul.f32 %v269, 1.442695
      %v275 = vpow.pop %v274
      %v276 = vmul.f32 %v270, 1.442695
      %v277 = vpow.pop %v276
      %v278 = vmul.f32 %v271, 1.442695
      %v279 = vpow.pop %v278
      %v280 = vadd.f32 %v273, 1.0
      %v281 = vadd.f32 %v275, 1.0
      %v282 = vadd.f32 %v277, 1.0
      %v283 = vadd.f32 %v279, 1.0
      %v284 = vrcp.pop %v280
      %v285 = vmul.f32 %v280, %v284
      %v286 = vsub.f32 1.0, %v285
      %v287 = vmul.f32 %v284, %v286
      %v288 = vadd.f32 %v284, %v287
      %vm289 = vweird.f32 %v280
      %vm290 = vweird.f32 %v284
      %vm291 = vmor %vm289, %vm290
      %v292 = vsel %vm291, %v284, %v288
      %v293 = vand.u32 2147483647, %v280
      %vm294 = vcmp.eq.f32.partialorder %v293, 8.507059e+37
      %v295 = vand.u32 %v280, 2147483648
      %v296 = vor.u32 1.1754944e-38, %v295
      %v297 = vsel %vm294, %v296, %v292
      %v298 = vmul.f32 1.0, %v297
      %v299 = vrcp.pop %v281
      %v300 = vmul.f32 %v281, %v299
      %v301 = vsub.f32 1.0, %v300
      %v302 = vmul.f32 %v299, %v301
      %v303 = vadd.f32 %v299, %v302
      %vm304 = vweird.f32 %v281
      %vm305 = vweird.f32 %v299
      %vm306 = vmor %vm304, %vm305
      %v307 = vsel %vm306, %v299, %v303
      %v308 = vand.u32 2147483647, %v281
      %vm309 = vcmp.eq.f32.partialorder %v308, 8.507059e+37
      %v310 = vand.u32 %v281, 2147483648
      %v311 = vor.u32 1.1754944e-38, %v310
      %v312 = vsel %vm309, %v311, %v307
      %v313 = vmul.f32 1.0, %v312
      %v314 = vrcp.pop %v282
      %v315 = vmul.f32 %v282, %v314
      %v316 = vsub.f32 1.0, %v315
      %v317 = vmul.f32 %v314, %v316
      %v318 = vadd.f32 %v314, %v317
      %vm319 = vweird.f32 %v282
      %vm320 = vweird.f32 %v314
      %vm321 = vmor %vm319, %vm320
      %v322 = vsel %vm321, %v314, %v318
      %v323 = vand.u32 2147483647, %v282
      %vm324 = vcmp.eq.f32.partialorder %v323, 8.507059e+37
      %v325 = vand.u32 %v282, 2147483648
      %v326 = vor.u32 1.1754944e-38, %v325
      %v327 = vsel %vm324, %v326, %v322
      %v328 = vmul.f32 1.0, %v327
      %v329 = vrcp.pop %v283
      %v330 = vmul.f32 %v283, %v329
      %v331 = vsub.f32 1.0, %v330
      %v332 = vmul.f32 %v329, %v331
      %v333 = vadd.f32 %v329, %v332
      %vm334 = vweird.f32 %v283
      %vm335 = vweird.f32 %v329
      %vm336 = vmor %vm334, %vm335
      %v337 = vsel %vm336, %v329, %v333
      %v338 = vand.u32 2147483647, %v283
      %vm339 = vcmp.eq.f32.partialorder %v338, 8.507059e+37
      %v340 = vand.u32 %v283, 2147483648
      %v341 = vor.u32 1.1754944e-38, %v340
      %v342 = vsel %vm339, %v341, %v337
      %v343 = vmul.f32 1.0, %v342
      %v344 = vmul.f32 %v264, %v298
      %v345 = vmul.f32 %v265, %v313
      %v346 = vmul.f32 %v266, %v328
      %v347 = vmul.f32 %v267, %v343
      %v348 = vld [vmem:[#allocation2] sm:$0xff]
      %v349 = vpack.c.bf16 %v344, %v344
      %v350 = vpack.c.bf16 %v345, %v345
      %v351 = vpack.c.bf16 %v346, %v346
      %v352 = vpack.c.bf16 %v347, %v347
      %v353 = vld [vmem:[%s247] sm:$0xf]
      %v354 = vld [vmem:[%s247 + $0x4] sm:$0xf]
      %v355 = vld [vmem:[%s247 + $0x8] sm:$0xf]
      %v356 = vld [vmem:[%s247 + $0xc] sm:$0xf]
      %v357 = vld [vmem:[%s247 + $0x10] sm:$0xf]
      %v358 = vld [vmem:[%s247 + $0x14] sm:$0xf]
      %v359 = vld [vmem:[%s247 + $0x18] sm:$0xf]
      %v360 = vld [vmem:[%s247 + $0x1c] sm:$0xf]
      %v361 = vld [vmem:[%s247 + $0x20] sm:$0xf]
      %v362 = vld [vmem:[%s247 + $0x24] sm:$0xf]
      %v363 = vld [vmem:[%s247 + $0x28] sm:$0xf]
      %v364 = vld [vmem:[%s247 + $0x2c] sm:$0xf]
      %v365 = vld [vmem:[%s247 + $0x30] sm:$0xf]
      %v366 = vld [vmem:[%s247 + $0x34] sm:$0xf]
      %v367 = vld [vmem:[%s247 + $0x38] sm:$0xf]
      %v368 = vld [vmem:[%s247 + $0x3c] sm:$0xf]
      %v369 = vld [vmem:[%s247 + $0x40] sm:$0xf]
      %v370 = vld [vmem:[%s247 + $0x44] sm:$0xf]
      %v371 = vld [vmem:[%s247 + $0x48] sm:$0xf]
      %v372 = vld [vmem:[%s247 + $0x4c] sm:$0xf]
      %v373 = vld [vmem:[%s247 + $0x50] sm:$0xf]
      %v374 = vld [vmem:[%s247 + $0x54] sm:$0xf]
      %v375 = vld [vmem:[%s247 + $0x58] sm:$0xf]
      %v376 = vld [vmem:[%s247 + $0x5c] sm:$0xf]
      %v377 = vld [vmem:[%s247 + $0x60] sm:$0xf]
      %v378 = vld [vmem:[%s247 + $0x64] sm:$0xf]
      %v379 = vld [vmem:[%s247 + $0x68] sm:$0xf]
      %v380 = vld [vmem:[%s247 + $0x6c] sm:$0xf]
      %v381 = vld [vmem:[%s247 + $0x70] sm:$0xf]
      %v382 = vld [vmem:[%s247 + $0x74] sm:$0xf]
      %v383 = vld [vmem:[%s247 + $0x78] sm:$0xf]
      %v384 = vld [vmem:[%s247 + $0x7c] sm:$0xf]
      %v385 = vld [vmem:[%s247 + $0x80] sm:$0xf]
      %v386 = vld [vmem:[%s247 + $0x84] sm:$0xf]
      %v387 = vld [vmem:[%s247 + $0x88] sm:$0xf]
      %v388 = vld [vmem:[%s247 + $0x8c] sm:$0xf]
      %v389 = vld [vmem:[%s247 + $0x90] sm:$0xf]
      %v390 = vld [vmem:[%s247 + $0x94] sm:$0xf]
      %v391 = vld [vmem:[%s247 + $0x98] sm:$0xf]
      %v392 = vld [vmem:[%s247 + $0x9c] sm:$0xf]
      %v393 = vld [vmem:[%s247 + $0xa0] sm:$0xf]
      %v394 = vld [vmem:[%s247 + $0xa4] sm:$0xf]
      %v395 = vld [vmem:[%s247 + $0xa8] sm:$0xf]
      %v396 = vld [vmem:[%s247 + $0xac] sm:$0xf]
      %v397 = vld [vmem:[%s247 + $0xb0] sm:$0xf]
      %v398 = vld [vmem:[%s247 + $0xb4] sm:$0xf]
      %v399 = vld [vmem:[%s247 + $0xb8] sm:$0xf]
      %v400 = vld [vmem:[%s247 + $0xbc] sm:$0xf]
      %v401 = vld [vmem:[%s247 + $0xc0] sm:$0xf]
      %v402 = vld [vmem:[%s247 + $0xc4] sm:$0xf]
      %v403 = vld [vmem:[%s247 + $0xc8] sm:$0xf]
      %v404 = vld [vmem:[%s247 + $0xcc] sm:$0xf]
      %v405 = vld [vmem:[%s247 + $0xd0] sm:$0xf]
      %v406 = vld [vmem:[%s247 + $0xd4] sm:$0xf]
      %v407 = vld [vmem:[%s247 + $0xd8] sm:$0xf]
      %v408 = vld [vmem:[%s247 + $0xdc] sm:$0xf]
      %v409 = vld [vmem:[%s247 + $0xe0] sm:$0xf]
      %v410 = vld [vmem:[%s247 + $0xe4] sm:$0xf]
      %v411 = vld [vmem:[%s247 + $0xe8] sm:$0xf]
      %v412 = vld [vmem:[%s247 + $0xec] sm:$0xf]
      %v413 = vld [vmem:[%s247 + $0xf0] sm:$0xf]
      %v414 = vld [vmem:[%s247 + $0xf4] sm:$0xf]
      %v415 = vld [vmem:[%s247 + $0xf8] sm:$0xf]
      %v416 = vld [vmem:[%s247 + $0xfc] sm:$0xf]
      %v481 = vunpack.c.l.b16 %v353
      %v482 = vunpack.c.l.b16 %v354
      %v483 = vunpack.c.l.b16 %v355
      %v484 = vunpack.c.l.b16 %v356
      %v485 = vunpack.c.l.b16 %v357
      %v486 = vunpack.c.l.b16 %v358
      %v487 = vunpack.c.l.b16 %v359
      %v488 = vunpack.c.l.b16 %v360
      %v489 = vunpack.c.l.b16 %v361
      %v490 = vunpack.c.l.b16 %v362
      %v491 = vunpack.c.l.b16 %v363
      %v492 = vunpack.c.l.b16 %v364
      %v493 = vunpack.c.l.b16 %v365
      %v494 = vunpack.c.l.b16 %v366
      %v495 = vunpack.c.l.b16 %v367
      %v496 = vunpack.c.l.b16 %v368
      %v497 = vunpack.c.l.b16 %v369
      %v498 = vunpack.c.l.b16 %v370
      %v499 = vunpack.c.l.b16 %v371
      %v500 = vunpack.c.l.b16 %v372
      %v501 = vunpack.c.l.b16 %v373
      %v502 = vunpack.c.l.b16 %v374
      %v503 = vunpack.c.l.b16 %v375
      %v504 = vunpack.c.l.b16 %v376
      %v505 = vunpack.c.l.b16 %v377
      %v506 = vunpack.c.l.b16 %v378
      %v507 = vunpack.c.l.b16 %v379
      %v508 = vunpack.c.l.b16 %v380
      %v509 = vunpack.c.l.b16 %v381
      %v510 = vunpack.c.l.b16 %v382
      %v511 = vunpack.c.l.b16 %v383
      %v512 = vunpack.c.l.b16 %v384
      %v513 = vunpack.c.l.b16 %v385
      %v514 = vunpack.c.l.b16 %v386
      %v515 = vunpack.c.l.b16 %v387
      %v516 = vunpack.c.l.b16 %v388
      %v517 = vunpack.c.l.b16 %v389
      %v518 = vunpack.c.l.b16 %v390
      %v519 = vunpack.c.l.b16 %v391
      %v520 = vunpack.c.l.b16 %v392
      %v521 = vunpack.c.l.b16 %v393
      %v522 = vunpack.c.l.b16 %v394
      %v523 = vunpack.c.l.b16 %v395
      %v524 = vunpack.c.l.b16 %v396
      %v525 = vunpack.c.l.b16 %v397
      %v526 = vunpack.c.l.b16 %v398
      %v527 = vunpack.c.l.b16 %v399
      %v528 = vunpack.c.l.b16 %v400
      %v529 = vunpack.c.l.b16 %v401
      %v530 = vunpack.c.l.b16 %v402
      %v531 = vunpack.c.l.b16 %v403
      %v532 = vunpack.c.l.b16 %v404
      %v533 = vunpack.c.l.b16 %v405
      %v534 = vunpack.c.l.b16 %v406
      %v535 = vunpack.c.l.b16 %v407
      %v536 = vunpack.c.l.b16 %v408
      %v537 = vunpack.c.l.b16 %v409
      %v538 = vunpack.c.l.b16 %v410
      %v539 = vunpack.c.l.b16 %v411
      %v540 = vunpack.c.l.b16 %v412
      %v541 = vunpack.c.l.b16 %v413
      %v542 = vunpack.c.l.b16 %v414
      %v543 = vunpack.c.l.b16 %v415
      %v544 = vunpack.c.l.b16 %v416
      %v545 = vpack.c.b16 %v482, %v481
      %v546 = vpack.c.b16 %v484, %v483
      %v547 = vpack.c.b16 %v486, %v485
      %v548 = vpack.c.b16 %v488, %v487
      %v549 = vpack.c.b16 %v490, %v489
      %v550 = vpack.c.b16 %v492, %v491
      %v551 = vpack.c.b16 %v494, %v493
      %v552 = vpack.c.b16 %v496, %v495
      %v553 = vpack.c.b16 %v498, %v497
      %v554 = vpack.c.b16 %v500, %v499
      %v555 = vpack.c.b16 %v502, %v501
      %v556 = vpack.c.b16 %v504, %v503
      %v557 = vpack.c.b16 %v506, %v505
      %v558 = vpack.c.b16 %v508, %v507
      %v559 = vpack.c.b16 %v510, %v509
      %v560 = vpack.c.b16 %v512, %v511
      %v561 = vpack.c.b16 %v514, %v513
      %v562 = vpack.c.b16 %v516, %v515
      %v563 = vpack.c.b16 %v518, %v517
      %v564 = vpack.c.b16 %v520, %v519
      %v565 = vpack.c.b16 %v522, %v521
      %v566 = vpack.c.b16 %v524, %v523
      %v567 = vpack.c.b16 %v526, %v525
      %v568 = vpack.c.b16 %v528, %v527
      %v569 = vpack.c.b16 %v530, %v529
      %v570 = vpack.c.b16 %v532, %v531
      %v571 = vpack.c.b16 %v534, %v533
      %v572 = vpack.c.b16 %v536, %v535
      %v573 = vpack.c.b16 %v538, %v537
      %v574 = vpack.c.b16 %v540, %v539
      %v575 = vpack.c.b16 %v542, %v541
      %v576 = vpack.c.b16 %v544, %v543
      %609 = vmatpush.bf16.msra.mxu0 %v552
      %610 = vmatpush.bf16.msra.mxu0 %v551
      %611 = vmatpush.bf16.msra.mxu0 %v550
      %612 = vmatpush.bf16.msra.mxu0 %v549
      %613 = vmatpush.bf16.msra.mxu0 %v548
      %614 = vmatpush.bf16.msra.mxu0 %v547
      %615 = vmatpush.bf16.msra.mxu0 %v546
      %616 = vmatpush.bf16.msra.mxu0 %v545
      %617 = vmatmul.bf16.gmra.mxu0 %v349
      %v618 = vpop.f32.mrf.mxu0
      %v619 = vadd.f32 0.0, %v618
      %v620 = vpop.f32.mrf.mxu0
      %621 = vdwg.mxu0
      %622 = vmatpush.bf16.msra.mxu0 %v560
      %623 = vmatpush.bf16.msra.mxu0 %v559
      %624 = vmatpush.bf16.msra.mxu0 %v558
      %625 = vmatpush.bf16.msra.mxu0 %v557
      %626 = vmatpush.bf16.msra.mxu0 %v556
      %627 = vmatpush.bf16.msra.mxu0 %v555
      %628 = vmatpush.bf16.msra.mxu0 %v554
      %629 = vmatpush.bf16.msra.mxu0 %v553
      %630 = vmatmul.bf16.gmra.mxu0 %v350
      %v631 = vpop.f32.mrf.mxu0
      %v632 = vadd.f32 %v619, %v631
      %v633 = vpop.f32.mrf.mxu0
      %634 = vdwg.mxu0
      %635 = vmatpush.bf16.msra.mxu0 %v568
      %636 = vmatpush.bf16.msra.mxu0 %v567
      %637 = vmatpush.bf16.msra.mxu0 %v566
      %638 = vmatpush.bf16.msra.mxu0 %v565
      %639 = vmatpush.bf16.msra.mxu0 %v564
      %640 = vmatpush.bf16.msra.mxu0 %v563
      %641 = vmatpush.bf16.msra.mxu0 %v562
      %642 = vmatpush.bf16.msra.mxu0 %v561
      %643 = vmatmul.bf16.gmra.mxu0 %v351
      %v644 = vpop.f32.mrf.mxu0
      %v645 = vadd.f32 %v632, %v644
      %v646 = vpop.f32.mrf.mxu0
      %647 = vdwg.mxu0
      %648 = vmatpush.bf16.msra.mxu0 %v576
      %649 = vmatpush.bf16.msra.mxu0 %v575
      %650 = vmatpush.bf16.msra.mxu0 %v574
      %651 = vmatpush.bf16.msra.mxu0 %v573
      %652 = vmatpush.bf16.msra.mxu0 %v572
      %653 = vmatpush.bf16.msra.mxu0 %v571
      %654 = vmatpush.bf16.msra.mxu0 %v570
      %655 = vmatpush.bf16.msra.mxu0 %v569
      %656 = vmatmul.bf16.gmra.mxu0 %v352
      %v657 = vpop.f32.mrf.mxu0
      %v658 = vadd.f32 %v645, %v657
      %v659 = vpop.f32.mrf.mxu0
      %660 = vdwg.mxu0
      %v661 = vadd.f32 %v348, %v658
      %662 = vst [vmem:[#allocation2] sm:$0xff] %v661
      %p663 = scmp.eq.s32.totalorder %s21, 2
      // Predicated region
      $region37: #{upblock_forward.54} parent=31 // pred_check
        %p664 = pneg %p663
      $region38: #{upblock_forward.54} parent=31 // pred_check_branch
        %666 = sbr.rel (%p664) target = $region40
      $region39: #{upblock_forward.54} parent=31 // pred_region
        %v667 = vld [vmem:[#allocation2] sm:$0xff]
        %v668 = vld [vmem:[%s251] sm:$0x1]
        %v670 = vperm.slane %v668, 0
        %v672 = vadd.f32 %v667, %v670
        %673 = vst [vmem:[%s258] sm:$0xff] %v672
      $region40: #{upblock_forward.54} parent=31 // pred_fallthru
        _
      %p674 = scmp.lt.s32.totalorder %s19, 0
      %s675 = scalar_select %p674, %s19, 0
      %p676 = scmp.lt.s32.totalorder %s20, 0
      %s677 = scalar_select %p676, %s20, 0
      %s678 = sadd.s32 %s677, %s675
      %s679 = smul.addr %s678, 8
      %s680 = scalar_lea.vmem %s3, %s679
      // Predicated region
      $region41: #{upblock_forward.54} parent=31 // pred_check
        %p681 = pneg %p135
      $region42: #{upblock_forward.54} parent=31 // pred_check_branch
        %683 = sbr.rel (%p681) target = $region44
      $region43: #{upblock_forward.54} parent=31 // pred_region
        _
      $region44: #{upblock_forward.54} parent=31 // pred_fallthru
        _
      // Predicated region
      $region45: #{upblock_forward.54} parent=31 // pred_check
        %p684 = pneg %p135
      $region46: #{upblock_forward.54} parent=31 // pred_check_branch
        %686 = sbr.rel (%p684) target = $region48
      $region47: #{upblock_forward.54} parent=31 // pred_region
        %p687 = scmp.lt.s32.totalorder %s19, 0
        %s688 = scalar_select %p687, %s19, 0
        %p689 = scmp.lt.s32.totalorder %s20, 0
        %s690 = scalar_select %p689, %s20, 0
        %s691 = sadd.s32 %s690, %s688
        %s692 = smul.addr %s691, 8
        %s693 = scalar_lea.vmem %s3, %s692
      $region48: #{upblock_forward.54} parent=31 // pred_fallthru
        _
    $region32: #{upblock_forward.54} parent=5 // pred_fallthru
      _
    %p694 = scmp.le.s32.totalorder 2, %s9
    // Predicated region
    $region49: #{upblock_forward.54} parent=5 // pred_check
      %p695 = pneg %p694
    $region50: #{upblock_forward.54} parent=5 // pred_check_branch
      %697 = sbr.rel (%p695) target = $region52
    $region51: #{upblock_forward.54} parent=5 // pred_region
      %s698 = ssub.s32 %s9, 2
    $region52: #{upblock_forward.54} parent=5 // pred_fallthru
      _
  $region6: #{upblock_forward.54} parent=0 // loop_footer
    %s13 = sadd.s32 1, %s9
  $region7: #{upblock_forward.54} parent=0 // loop_footer_branch
    %8 = sbr.rel target = $region3
  $region8: #{upblock_forward.54} parent=0 // loop_exit
    _

// kernel: upblock_forward.56
$region0: #{upblock_forward.56}
  #allocation0 [shape = 'u32[]', space=smem, size = 0x4, offset = 0x4, fixed_abs, tag = 'smem constant byte address 0x4 - core index']
  #allocation1 [shape = 'u32[72,128]{1,0:T(1,128)}', space=vmem, size = 0x9000, scoped, tag = 'internal scratch']
  %s0 = inlined_call_operand.vmem [shape: f32[2,18,64], index: 0, kind: input, shape index: {}]
  %s1 = inlined_call_operand.vmem [shape: bf16[3,64,64], index: 1, kind: input, shape index: {}]
  %s2 = inlined_call_operand.vmem [shape: f32[1,64], index: 2, kind: input, shape index: {}]
  %s3 = inlined_call_operand.vmem [shape: f32[2,1,64], index: 3, kind: input, shape index: {}]
  %s4 = inlined_call_operand.vmem [shape: f32[2,16,64], index: 4, kind: output, shape index: {}]
  %s5 = sld [smem:[#allocation0]]
  $region49: #{upblock_forward.56} parent=0
    _
  %s7 = ssub.s32 1, %s5
  %s8 = scalar_select 0, %s7, %s5
  loop: start=0, step=1, limit=4
  $region2: #{upblock_forward.56} parent=0 // loop_pre_header
    _
  $region3: #{upblock_forward.56} parent=0 // loop_header
    %s10 = sphi 0, %s14
    %p11 = scmp.ge.s32.totalorder %s10, 4
    %s20 = sphi 0, %s22
    %s23 = sphi 0, %s20
    %s24 = sphi 0, %s23
    %s40 = sphi 0, %s24
    %s44 = sphi 0, %s44
    %s46 = sphi 0, %s44
    %s47 = sphi 0, %s46
    %s61 = sphi 0, %s47
    %s65 = sphi 0, %s65
    %s67 = sphi 0, %s65
    %s68 = sphi 0, %s67
    %s82 = sphi 0, %s68
    %s88 = sphi 0, %s90
    %s91 = sphi 0, %s88
    %s92 = sphi 0, %s91
    %s108 = sphi 0, %s92
    %s114 = sphi 0, %s116
    %s117 = sphi 0, %s114
    %s118 = sphi 0, %s117
    %s134 = sphi 0, %s118
  $region4: #{upblock_forward.56} parent=0 // loop_header_branch
    %13 = sbr.rel (%p11) target = $region8
  $region5: #{upblock_forward.56} parent=0 // loop_body
    %s15 = ssub.s32 %s10, 1
    %s16 = ssub.s32 %s10, 2
    %s17 = sadd.s32 %s10, 1
    %s18 = ssub.s32 %s10, %s17
    %p19 = scmp.eq.s32.totalorder %s18, 0
    %s21 = sadd.s32 %s20, 1
    %s22 = scalar_select %p19, %s20, %s21
    %p25 = pneg %p19
    %p26 = scmp.eq.s32.totalorder %s10, 1
    %p27 = por %p25, %p26
    %p28 = scmp.ne.s32.totalorder %s20, %s23
    %p29 = scmp.eq.s32.totalorder %s10, 0
    %p30 = por %p28, %p29
    %p31 = scmp.ne.s32.totalorder %s20, %s23
    %p32 = scmp.eq.s32.totalorder %s15, 1
    %p33 = por %p31, %p32
    %p34 = scmp.ne.s32.totalorder %s23, %s24
    %p35 = scmp.eq.s32.totalorder %s15, 0
    %p36 = por %p34, %p35
    %p37 = scmp.ne.s32.totalorder %s23, %s24
    %p38 = scmp.eq.s32.totalorder %s16, 1
    %p39 = por %p37, %p38
    %p41 = scmp.ne.s32.totalorder %s24, %s40
    %p42 = scmp.eq.s32.totalorder %s16, 0
    %p43 = por %p41, %p42
    %s45 = sadd.s32 %s44, 1
    %p48 = scmp.eq.s32.totalorder %s10, 1
    %p49 = scmp.ne.s32.totalorder %s44, %s46
    %p50 = scmp.eq.s32.totalorder %s10, 0
    %p51 = por %p49, %p50
    %p52 = scmp.ne.s32.totalorder %s44, %s46
    %p53 = scmp.eq.s32.totalorder %s15, 1
    %p54 = por %p52, %p53
    %p55 = scmp.ne.s32.totalorder %s46, %s47
    %p56 = scmp.eq.s32.totalorder %s15, 0
    %p57 = por %p55, %p56
    %p58 = scmp.ne.s32.totalorder %s46, %s47
    %p59 = scmp.eq.s32.totalorder %s16, 1
    %p60 = por %p58, %p59
    %p62 = scmp.ne.s32.totalorder %s47, %s61
    %p63 = scmp.eq.s32.totalorder %s16, 0
    %p64 = por %p62, %p63
    %s66 = sadd.s32 %s65, 1
    %p69 = scmp.eq.s32.totalorder %s10, 1
    %p70 = scmp.ne.s32.totalorder %s65, %s67
    %p71 = scmp.eq.s32.totalorder %s10, 0
    %p72 = por %p70, %p71
    %p73 = scmp.ne.s32.totalorder %s65, %s67
    %p74 = scmp.eq.s32.totalorder %s15, 1
    %p75 = por %p73, %p74
    %p76 = scmp.ne.s32.totalorder %s67, %s68
    %p77 = scmp.eq.s32.totalorder %s15, 0
    %p78 = por %p76, %p77
    %p79 = scmp.ne.s32.totalorder %s67, %s68
    %p80 = scmp.eq.s32.totalorder %s16, 1
    %p81 = por %p79, %p80
    %p83 = scmp.ne.s32.totalorder %s68, %s82
    %p84 = scmp.eq.s32.totalorder %s16, 0
    %p85 = por %p83, %p84
    %s86 = ssub.s32 %s10, %s17
    %p87 = scmp.eq.s32.totalorder %s86, 0
    %s89 = sadd.s32 %s88, 1
    %s90 = scalar_select %p87, %s88, %s89
    %p93 = pneg %p87
    %p94 = scmp.eq.s32.totalorder %s10, 1
    %p95 = por %p93, %p94
    %p96 = scmp.ne.s32.totalorder %s88, %s91
    %p97 = scmp.eq.s32.totalorder %s10, 0
    %p98 = por %p96, %p97
    %p99 = scmp.ne.s32.totalorder %s88, %s91
    %p100 = scmp.eq.s32.totalorder %s15, 1
    %p101 = por %p99, %p100
    %p102 = scmp.ne.s32.totalorder %s91, %s92
    %p103 = scmp.eq.s32.totalorder %s15, 0
    %p104 = por %p102, %p103
    %p105 = scmp.ne.s32.totalorder %s91, %s92
    %p106 = scmp.eq.s32.totalorder %s16, 1
    %p107 = por %p105, %p106
    %p109 = scmp.ne.s32.totalorder %s92, %s108
    %p110 = scmp.eq.s32.totalorder %s16, 0
    %p111 = por %p109, %p110
    %s112 = ssub.s32 %s10, %s17
    %p113 = scmp.eq.s32.totalorder %s112, 0
    %s115 = sadd.s32 %s114, 1
    %s116 = scalar_select %p113, %s114, %s115
    %p119 = pneg %p113
    %p120 = scmp.eq.s32.totalorder %s10, 1
    %p121 = por %p119, %p120
    %p122 = scmp.ne.s32.totalorder %s114, %s117
    %p123 = scmp.eq.s32.totalorder %s10, 0
    %p124 = por %p122, %p123
    %p125 = scmp.ne.s32.totalorder %s114, %s117
    %p126 = scmp.eq.s32.totalorder %s15, 1
    %p127 = por %p125, %p126
    %p128 = scmp.ne.s32.totalorder %s117, %s118
    %p129 = scmp.eq.s32.totalorder %s15, 0
    %p130 = por %p128, %p129
    %p131 = scmp.ne.s32.totalorder %s117, %s118
    %p132 = scmp.eq.s32.totalorder %s16, 1
    %p133 = por %p131, %p132
    %p135 = scmp.ne.s32.totalorder %s118, %s134
    %p136 = scmp.eq.s32.totalorder %s16, 0
    %p137 = por %p135, %p136
    %p138 = scmp.le.s32.totalorder 1, %s10
    %p139 = scmp.lt.s32.totalorder %s10, 3
    %p140 = pnand %p138, %p139
    %p141 = pneg %p140
    // Predicated region
    $region9: #{upblock_forward.56} parent=5 // pred_check
      _
    $region10: #{upblock_forward.56} parent=5 // pred_check_branch
      %143 = sbr.rel (%p140) target = $region12
    $region11: #{upblock_forward.56} parent=5 // pred_region
      %s144 = ssub.s32 %s10, 1
      // Predicated region
      $region13: #{upblock_forward.56} parent=11 // pred_check
        %p145 = pneg %p57
      $region14: #{upblock_forward.56} parent=11 // pred_check_branch
        %147 = sbr.rel (%p145) target = $region16
      $region15: #{upblock_forward.56} parent=11 // pred_region
        _
      $region16: #{upblock_forward.56} parent=11 // pred_fallthru
        _
      // Predicated region
      $region17: #{upblock_forward.56} parent=11 // pred_check
        %p148 = pneg %p78
      $region18: #{upblock_forward.56} parent=11 // pred_check_branch
        %150 = sbr.rel (%p148) target = $region20
      $region19: #{upblock_forward.56} parent=11 // pred_region
        _
      $region20: #{upblock_forward.56} parent=11 // pred_fallthru
        _
    $region12: #{upblock_forward.56} parent=5 // pred_fallthru
      _
    %p151 = scmp.lt.s32.totalorder %s10, 2
    // Predicated region
    $region21: #{upblock_forward.56} parent=5 // pred_check
      %p152 = pneg %p151
    $region22: #{upblock_forward.56} parent=5 // pred_check_branch
      %154 = sbr.rel (%p152) target = $region24
    $region23: #{upblock_forward.56} parent=5 // pred_region
      // Predicated region
      $region25: #{upblock_forward.56} parent=23 // pred_check
        %p155 = pneg %p30
      $region26: #{upblock_forward.56} parent=23 // pred_check_branch
        %157 = sbr.rel (%p155) target = $region28
      $region27: #{upblock_forward.56} parent=23 // pred_region
        %p158 = scmp.lt.s32.totalorder %s10, 1
        %s159 = scalar_select %p158, %s10, 1
        %s160 = smul.addr %s159, 3
        %s161 = smul.addr %s160, 8
        %s162 = scalar_lea.vmem %s0, %s161
      $region28: #{upblock_forward.56} parent=23 // pred_fallthru
        _
      // Predicated region
      $region29: #{upblock_forward.56} parent=23 // pred_check
        %p163 = pneg %p98
      $region30: #{upblock_forward.56} parent=23 // pred_check_branch
        %165 = sbr.rel (%p163) target = $region32
      $region31: #{upblock_forward.56} parent=23 // pred_region
        %p166 = scmp.lt.s32.totalorder %s10, 1
        %s167 = scalar_select %p166, %s10, 1
        %s168 = scalar_lea.vmem %s3, %s167
      $region32: #{upblock_forward.56} parent=23 // pred_fallthru
        _
    $region24: #{upblock_forward.56} parent=5 // pred_fallthru
      _
    %p169 = scmp.le.s32.totalorder 1, %s10
    %p170 = scmp.lt.s32.totalorder %s10, 3
    %p171 = pnand %p169, %p170
    %p172 = pneg %p171
    // Predicated region
    $region33: #{upblock_forward.56} parent=5 // pred_check
      _
    $region34: #{upblock_forward.56} parent=5 // pred_check_branch
      %174 = sbr.rel (%p171) target = $region36
    $region35: #{upblock_forward.56} parent=5 // pred_region
      %s175 = ssub.s32 %s10, 1
      %p176 = scmp.lt.s32.totalorder %s15, 1
      %s177 = scalar_select %p176, %s15, 1
      %s178 = smul.addr %s177, 3
      %s179 = smul.addr %s178, 8
      %s180 = scalar_lea.vmem %s0, %s179
      %p181 = pneg %p36
      %p182 = pneg %p33
      %p183 = pneg %p57
      %p184 = pneg %p54
      %p185 = pneg %p78
      %p186 = pneg %p75
      %p187 = scmp.lt.s32.totalorder %s15, 1
      %s188 = scalar_select %p187, %s15, 1
      %s189 = scalar_lea.vmem %s3, %s188
      %p190 = pneg %p104
      %p191 = pneg %p101
      %p192 = pneg %p130
      %p193 = pneg %p127
      %p194 = scmp.lt.s32.totalorder %s15, 1
      %s195 = scalar_select %p194, %s15, 1
      %s196 = smul.addr %s195, 2
      %s197 = smul.addr %s196, 8
      %s198 = scalar_lea.vmem %s4, %s197
      %p199 = scmp.lt.s32.totalorder %s15, 1
      %s200 = scalar_select %p199, %s15, 1
      %s201 = smul.addr %s200, 3
      %s202 = smul.addr %s201, 8
      %s203 = scalar_lea.vmem %s0, %s202
      %p204 = scmp.lt.s32.totalorder %s15, 1
      %s205 = scalar_select %p204, %s15, 1
      %s206 = scalar_lea.vmem %s3, %s205
      %p207 = scmp.lt.s32.totalorder %s15, 1
      %s208 = scalar_select %p207, %s15, 1
      %s209 = smul.addr %s208, 2
      %s210 = smul.addr %s209, 8
      %s211 = scalar_lea.vmem %s4, %s210
      %v213 = vld [vmem:[%s1] sm:$0xf]
      %v214 = vld [vmem:[%s1 + $0x4] sm:$0xf]
      %v215 = vld [vmem:[%s1 + $0x8] sm:$0xf]
      %v216 = vld [vmem:[%s1 + $0xc] sm:$0xf]
      %v217 = vld [vmem:[%s1 + $0x10] sm:$0xf]
      %v218 = vld [vmem:[%s1 + $0x14] sm:$0xf]
      %v219 = vld [vmem:[%s1 + $0x18] sm:$0xf]
      %v220 = vld [vmem:[%s1 + $0x1c] sm:$0xf]
      %v221 = vld [vmem:[%s1 + $0x20] sm:$0xf]
      %v222 = vld [vmem:[%s1 + $0x24] sm:$0xf]
      %v223 = vld [vmem:[%s1 + $0x28] sm:$0xf]
      %v224 = vld [vmem:[%s1 + $0x2c] sm:$0xf]
      %v225 = vld [vmem:[%s1 + $0x30] sm:$0xf]
      %v226 = vld [vmem:[%s1 + $0x34] sm:$0xf]
      %v227 = vld [vmem:[%s1 + $0x38] sm:$0xf]
      %v228 = vld [vmem:[%s1 + $0x3c] sm:$0xf]
      %v229 = vld [vmem:[%s1 + $0x40] sm:$0xf]
      %v230 = vld [vmem:[%s1 + $0x44] sm:$0xf]
      %v231 = vld [vmem:[%s1 + $0x48] sm:$0xf]
      %v232 = vld [vmem:[%s1 + $0x4c] sm:$0xf]
      %v233 = vld [vmem:[%s1 + $0x50] sm:$0xf]
      %v234 = vld [vmem:[%s1 + $0x54] sm:$0xf]
      %v235 = vld [vmem:[%s1 + $0x58] sm:$0xf]
      %v236 = vld [vmem:[%s1 + $0x5c] sm:$0xf]
      %v237 = vld [vmem:[%s203] sm:$0xff]
      %v238 = vld [vmem:[%s203 + $0x8] sm:$0xff]
      %v239 = vpack.c.bf16 %v238, %v237
      %v240 = vld [vmem:[%s203 + $0x1] sm:$0xff]
      %v241 = vld [vmem:[%s203 + $0x9] sm:$0xff]
      %v242 = vpack.c.bf16 %v241, %v240
      %v243 = vld [vmem:[%s203 + $0x2] sm:$0xff]
      %v244 = vld [vmem:[%s203 + $0xa] sm:$0xff]
      %v245 = vpack.c.bf16 %v244, %v243
      %v254 = vunpack.c.l.b16 %v221
      %v255 = vunpack.c.l.b16 %v222
      %v256 = vunpack.c.l.b16 %v223
      %v257 = vunpack.c.l.b16 %v224
      %v258 = vunpack.c.l.b16 %v225
      %v259 = vunpack.c.l.b16 %v226
      %v260 = vunpack.c.l.b16 %v227
      %v261 = vunpack.c.l.b16 %v228
      %v262 = vpack.c.b16 %v255, %v254
      %v263 = vpack.c.b16 %v257, %v256
      %v264 = vpack.c.b16 %v259, %v258
      %v265 = vpack.c.b16 %v261, %v260
      %vm270 = vcmask 523264
      %v272 = vsel %vm270, %v242, 0
      %274 = vmatpush.bf16.msra.mxu0 0
      %275 = vmatpush.bf16.msra.mxu0 0
      %276 = vmatpush.bf16.msra.mxu0 0
      %277 = vmatpush.bf16.msra.mxu0 0
      %278 = vmatpush.bf16.msra.mxu0 %v265
      %279 = vmatpush.bf16.msra.mxu0 %v264
      %280 = vmatpush.bf16.msra.mxu0 %v263
      %281 = vmatpush.bf16.msra.mxu0 %v262
      %282 = vmatmul.bf16.gmra.mxu0 %v272
      %v283 = vpop.f32.mrf.mxu0
      %v284 = vadd.f32 0.0, %v283
      %v285 = vpop.f32.mrf.mxu0
      %v286 = vadd.f32 0.0, %v285
      %287 = vdwg.mxu0
      %v296 = vunpack.c.l.b16 %v213
      %v297 = vunpack.c.l.b16 %v214
      %v298 = vunpack.c.l.b16 %v215
      %v299 = vunpack.c.l.b16 %v216
      %v300 = vunpack.c.l.b16 %v217
      %v301 = vunpack.c.l.b16 %v218
      %v302 = vunpack.c.l.b16 %v219
      %v303 = vunpack.c.l.b16 %v220
      %v304 = vpack.c.b16 %v297, %v296
      %v305 = vpack.c.b16 %v299, %v298
      %v306 = vpack.c.b16 %v301, %v300
      %v307 = vpack.c.b16 %v303, %v302
      %v313 = vsel %vm270, %v239, 0
      %315 = vmatpush.bf16.msra.mxu0 0
      %316 = vmatpush.bf16.msra.mxu0 0
      %317 = vmatpush.bf16.msra.mxu0 0
      %318 = vmatpush.bf16.msra.mxu0 0
      %319 = vmatpush.bf16.msra.mxu0 %v307
      %320 = vmatpush.bf16.msra.mxu0 %v306
      %321 = vmatpush.bf16.msra.mxu0 %v305
      %322 = vmatpush.bf16.msra.mxu0 %v304
      %323 = vmatmul.bf16.gmra.mxu0 %v313
      %v324 = vpop.f32.mrf.mxu0
      %v325 = vadd.f32 %v284, %v324
      %v326 = vpop.f32.mrf.mxu0
      %v327 = vadd.f32 %v286, %v326
      %328 = vdwg.mxu0
      %v337 = vunpack.c.l.b16 %v229
      %v338 = vunpack.c.l.b16 %v230
      %v339 = vunpack.c.l.b16 %v231
      %v340 = vunpack.c.l.b16 %v232
      %v341 = vunpack.c.l.b16 %v233
      %v342 = vunpack.c.l.b16 %v234
      %v343 = vunpack.c.l.b16 %v235
      %v344 = vunpack.c.l.b16 %v236
      %v345 = vpack.c.b16 %v338, %v337
      %v346 = vpack.c.b16 %v340, %v339
      %v347 = vpack.c.b16 %v342, %v341
      %v348 = vpack.c.b16 %v344, %v343
      %v354 = vsel %vm270, %v245, 0
      %356 = vmatpush.bf16.msra.mxu0 0
      %357 = vmatpush.bf16.msra.mxu0 0
      %358 = vmatpush.bf16.msra.mxu0 0
      %359 = vmatpush.bf16.msra.mxu0 0
      %360 = vmatpush.bf16.msra.mxu0 %v348
      %361 = vmatpush.bf16.msra.mxu0 %v347
      %362 = vmatpush.bf16.msra.mxu0 %v346
      %363 = vmatpush.bf16.msra.mxu0 %v345
      %364 = vmatmul.bf16.gmra.mxu0 %v354
      %v365 = vpop.f32.mrf.mxu0
      %v366 = vadd.f32 0.0, %v365
      %v367 = vpop.f32.mrf.mxu0
      %v368 = vadd.f32 0.0, %v367
      %369 = vdwg.mxu0
      %v370 = vadd.f32 %v325, %v366
      %v371 = vadd.f32 %v327, %v368
      %v372 = vld [vmem:[%s2] sm:$0x1]
      %v374 = vperm.slane %v372, 0
      %v376 = vadd.f32 %v370, %v374
      %v377 = vadd.f32 %v371, %v374
      %v378 = vld [vmem:[%s206] sm:$0x1]
      %v380 = vperm.slane %v378, 0
      %v382 = vadd.f32 %v376, %v380
      %v383 = vadd.f32 %v377, %v380
      %384 = vst.msk [vmem:[%s211] sm:$0xff] %vm270, %v382
      %385 = vst.msk [vmem:[%s211 + $0x8] sm:$0xff] %vm270, %v383
      %p386 = scmp.lt.s32.totalorder %s15, 1
      %s387 = scalar_select %p386, %s15, 1
      %s388 = smul.addr %s387, 2
      %s389 = smul.addr %s388, 8
      %s390 = scalar_lea.vmem %s4, %s389
      // Predicated region
      $region37: #{upblock_forward.56} parent=35 // pred_check
        %p391 = pneg %p127
      $region38: #{upblock_forward.56} parent=35 // pred_check_branch
        %393 = sbr.rel (%p391) target = $region40
      $region39: #{upblock_forward.56} parent=35 // pred_region
        _
      $region40: #{upblock_forward.56} parent=35 // pred_fallthru
        _
    $region36: #{upblock_forward.56} parent=5 // pred_fallthru
      _
    %p394 = scmp.le.s32.totalorder 2, %s10
    // Predicated region
    $region41: #{upblock_forward.56} parent=5 // pred_check
      %p395 = pneg %p394
    $region42: #{upblock_forward.56} parent=5 // pred_check_branch
      %397 = sbr.rel (%p395) target = $region44
    $region43: #{upblock_forward.56} parent=5 // pred_region
      %s398 = ssub.s32 %s10, 2
      // Predicated region
      $region45: #{upblock_forward.56} parent=43 // pred_check
        %p399 = pneg %p133
      $region46: #{upblock_forward.56} parent=43 // pred_check_branch
        %401 = sbr.rel (%p399) target = $region48
      $region47: #{upblock_forward.56} parent=43 // pred_region
        %p402 = scmp.lt.s32.totalorder %s16, 1
        %s403 = scalar_select %p402, %s16, 1
        %s404 = smul.addr %s403, 2
        %s405 = smul.addr %s404, 8
        %s406 = scalar_lea.vmem %s4, %s405
      $region48: #{upblock_forward.56} parent=43 // pred_fallthru
        _
    $region44: #{upblock_forward.56} parent=5 // pred_fallthru
      _
  $region6: #{upblock_forward.56} parent=0 // loop_footer
    %s14 = sadd.s32 1, %s10
  $region7: #{upblock_forward.56} parent=0 // loop_footer_branch
    %9 = sbr.rel target = $region3
  $region8: #{upblock_forward.56} parent=0 // loop_exit
    _

// kernel: upblock_forward.58
$region0: #{upblock_forward.58}
  #allocation0 [shape = 'u32[]', space=smem, size = 0x4, offset = 0x4, fixed_abs, tag = 'smem constant byte address 0x4 - core index']
  #allocation1 [shape = 'u32[72,128]{1,0:T(1,128)}', space=vmem, size = 0x9000, scoped, tag = 'internal scratch']
  %s0 = inlined_call_operand.vmem [shape: f32[2,18,64], index: 0, kind: input, shape index: {}]
  %s1 = inlined_call_operand.vmem [shape: bf16[3,64,64], index: 1, kind: input, shape index: {}]
  %s2 = inlined_call_operand.vmem [shape: f32[1,64], index: 2, kind: input, shape index: {}]
  %s3 = inlined_call_operand.vmem [shape: f32[2,16,64], index: 3, kind: input, shape index: {}]
  %s4 = inlined_call_operand.vmem [shape: f32[2,16,64], index: 4, kind: output, shape index: {}]
  %s5 = sld [smem:[#allocation0]]
  $region49: #{upblock_forward.58} parent=0
    _
  %s7 = ssub.s32 1, %s5
  %s8 = scalar_select 0, %s7, %s5
  loop: start=0, step=1, limit=4
  $region2: #{upblock_forward.58} parent=0 // loop_pre_header
    _
  $region3: #{upblock_forward.58} parent=0 // loop_header
    %s10 = sphi 0, %s14
    %p11 = scmp.ge.s32.totalorder %s10, 4
    %s20 = sphi 0, %s22
    %s23 = sphi 0, %s20
    %s24 = sphi 0, %s23
    %s40 = sphi 0, %s24
    %s44 = sphi 0, %s44
    %s46 = sphi 0, %s44
    %s47 = sphi 0, %s46
    %s61 = sphi 0, %s47
    %s65 = sphi 0, %s65
    %s67 = sphi 0, %s65
    %s68 = sphi 0, %s67
    %s82 = sphi 0, %s68
    %s88 = sphi 0, %s90
    %s91 = sphi 0, %s88
    %s92 = sphi 0, %s91
    %s108 = sphi 0, %s92
    %s114 = sphi 0, %s116
    %s117 = sphi 0, %s114
    %s118 = sphi 0, %s117
    %s134 = sphi 0, %s118
  $region4: #{upblock_forward.58} parent=0 // loop_header_branch
    %13 = sbr.rel (%p11) target = $region8
  $region5: #{upblock_forward.58} parent=0 // loop_body
    %s15 = ssub.s32 %s10, 1
    %s16 = ssub.s32 %s10, 2
    %s17 = sadd.s32 %s10, 1
    %s18 = ssub.s32 %s10, %s17
    %p19 = scmp.eq.s32.totalorder %s18, 0
    %s21 = sadd.s32 %s20, 1
    %s22 = scalar_select %p19, %s20, %s21
    %p25 = pneg %p19
    %p26 = scmp.eq.s32.totalorder %s10, 1
    %p27 = por %p25, %p26
    %p28 = scmp.ne.s32.totalorder %s20, %s23
    %p29 = scmp.eq.s32.totalorder %s10, 0
    %p30 = por %p28, %p29
    %p31 = scmp.ne.s32.totalorder %s20, %s23
    %p32 = scmp.eq.s32.totalorder %s15, 1
    %p33 = por %p31, %p32
    %p34 = scmp.ne.s32.totalorder %s23, %s24
    %p35 = scmp.eq.s32.totalorder %s15, 0
    %p36 = por %p34, %p35
    %p37 = scmp.ne.s32.totalorder %s23, %s24
    %p38 = scmp.eq.s32.totalorder %s16, 1
    %p39 = por %p37, %p38
    %p41 = scmp.ne.s32.totalorder %s24, %s40
    %p42 = scmp.eq.s32.totalorder %s16, 0
    %p43 = por %p41, %p42
    %s45 = sadd.s32 %s44, 1
    %p48 = scmp.eq.s32.totalorder %s10, 1
    %p49 = scmp.ne.s32.totalorder %s44, %s46
    %p50 = scmp.eq.s32.totalorder %s10, 0
    %p51 = por %p49, %p50
    %p52 = scmp.ne.s32.totalorder %s44, %s46
    %p53 = scmp.eq.s32.totalorder %s15, 1
    %p54 = por %p52, %p53
    %p55 = scmp.ne.s32.totalorder %s46, %s47
    %p56 = scmp.eq.s32.totalorder %s15, 0
    %p57 = por %p55, %p56
    %p58 = scmp.ne.s32.totalorder %s46, %s47
    %p59 = scmp.eq.s32.totalorder %s16, 1
    %p60 = por %p58, %p59
    %p62 = scmp.ne.s32.totalorder %s47, %s61
    %p63 = scmp.eq.s32.totalorder %s16, 0
    %p64 = por %p62, %p63
    %s66 = sadd.s32 %s65, 1
    %p69 = scmp.eq.s32.totalorder %s10, 1
    %p70 = scmp.ne.s32.totalorder %s65, %s67
    %p71 = scmp.eq.s32.totalorder %s10, 0
    %p72 = por %p70, %p71
    %p73 = scmp.ne.s32.totalorder %s65, %s67
    %p74 = scmp.eq.s32.totalorder %s15, 1
    %p75 = por %p73, %p74
    %p76 = scmp.ne.s32.totalorder %s67, %s68
    %p77 = scmp.eq.s32.totalorder %s15, 0
    %p78 = por %p76, %p77
    %p79 = scmp.ne.s32.totalorder %s67, %s68
    %p80 = scmp.eq.s32.totalorder %s16, 1
    %p81 = por %p79, %p80
    %p83 = scmp.ne.s32.totalorder %s68, %s82
    %p84 = scmp.eq.s32.totalorder %s16, 0
    %p85 = por %p83, %p84
    %s86 = ssub.s32 %s10, %s17
    %p87 = scmp.eq.s32.totalorder %s86, 0
    %s89 = sadd.s32 %s88, 1
    %s90 = scalar_select %p87, %s88, %s89
    %p93 = pneg %p87
    %p94 = scmp.eq.s32.totalorder %s10, 1
    %p95 = por %p93, %p94
    %p96 = scmp.ne.s32.totalorder %s88, %s91
    %p97 = scmp.eq.s32.totalorder %s10, 0
    %p98 = por %p96, %p97
    %p99 = scmp.ne.s32.totalorder %s88, %s91
    %p100 = scmp.eq.s32.totalorder %s15, 1
    %p101 = por %p99, %p100
    %p102 = scmp.ne.s32.totalorder %s91, %s92
    %p103 = scmp.eq.s32.totalorder %s15, 0
    %p104 = por %p102, %p103
    %p105 = scmp.ne.s32.totalorder %s91, %s92
    %p106 = scmp.eq.s32.totalorder %s16, 1
    %p107 = por %p105, %p106
    %p109 = scmp.ne.s32.totalorder %s92, %s108
    %p110 = scmp.eq.s32.totalorder %s16, 0
    %p111 = por %p109, %p110
    %s112 = ssub.s32 %s10, %s17
    %p113 = scmp.eq.s32.totalorder %s112, 0
    %s115 = sadd.s32 %s114, 1
    %s116 = scalar_select %p113, %s114, %s115
    %p119 = pneg %p113
    %p120 = scmp.eq.s32.totalorder %s10, 1
    %p121 = por %p119, %p120
    %p122 = scmp.ne.s32.totalorder %s114, %s117
    %p123 = scmp.eq.s32.totalorder %s10, 0
    %p124 = por %p122, %p123
    %p125 = scmp.ne.s32.totalorder %s114, %s117
    %p126 = scmp.eq.s32.totalorder %s15, 1
    %p127 = por %p125, %p126
    %p128 = scmp.ne.s32.totalorder %s117, %s118
    %p129 = scmp.eq.s32.totalorder %s15, 0
    %p130 = por %p128, %p129
    %p131 = scmp.ne.s32.totalorder %s117, %s118
    %p132 = scmp.eq.s32.totalorder %s16, 1
    %p133 = por %p131, %p132
    %p135 = scmp.ne.s32.totalorder %s118, %s134
    %p136 = scmp.eq.s32.totalorder %s16, 0
    %p137 = por %p135, %p136
    %p138 = scmp.le.s32.totalorder 1, %s10
    %p139 = scmp.lt.s32.totalorder %s10, 3
    %p140 = pnand %p138, %p139
    %p141 = pneg %p140
    // Predicated region
    $region9: #{upblock_forward.58} parent=5 // pred_check
      _
    $region10: #{upblock_forward.58} parent=5 // pred_check_branch
      %143 = sbr.rel (%p140) target = $region12
    $region11: #{upblock_forward.58} parent=5 // pred_region
      %s144 = ssub.s32 %s10, 1
      // Predicated region
      $region13: #{upblock_forward.58} parent=11 // pred_check
        %p145 = pneg %p57
      $region14: #{upblock_forward.58} parent=11 // pred_check_branch
        %147 = sbr.rel (%p145) target = $region16
      $region15: #{upblock_forward.58} parent=11 // pred_region
        _
      $region16: #{upblock_forward.58} parent=11 // pred_fallthru
        _
      // Predicated region
      $region17: #{upblock_forward.58} parent=11 // pred_check
        %p148 = pneg %p78
      $region18: #{upblock_forward.58} parent=11 // pred_check_branch
        %150 = sbr.rel (%p148) target = $region20
      $region19: #{upblock_forward.58} parent=11 // pred_region
        _
      $region20: #{upblock_forward.58} parent=11 // pred_fallthru
        _
    $region12: #{upblock_forward.58} parent=5 // pred_fallthru
      _
    %p151 = scmp.lt.s32.totalorder %s10, 2
    // Predicated region
    $region21: #{upblock_forward.58} parent=5 // pred_check
      %p152 = pneg %p151
    $region22: #{upblock_forward.58} parent=5 // pred_check_branch
      %154 = sbr.rel (%p152) target = $region24
    $region23: #{upblock_forward.58} parent=5 // pred_region
      // Predicated region
      $region25: #{upblock_forward.58} parent=23 // pred_check
        %p155 = pneg %p30
      $region26: #{upblock_forward.58} parent=23 // pred_check_branch
        %157 = sbr.rel (%p155) target = $region28
      $region27: #{upblock_forward.58} parent=23 // pred_region
        %p158 = scmp.lt.s32.totalorder %s10, 1
        %s159 = scalar_select %p158, %s10, 1
        %s160 = smul.addr %s159, 3
        %s161 = smul.addr %s160, 8
        %s162 = scalar_lea.vmem %s0, %s161
      $region28: #{upblock_forward.58} parent=23 // pred_fallthru
        _
      // Predicated region
      $region29: #{upblock_forward.58} parent=23 // pred_check
        %p163 = pneg %p98
      $region30: #{upblock_forward.58} parent=23 // pred_check_branch
        %165 = sbr.rel (%p163) target = $region32
      $region31: #{upblock_forward.58} parent=23 // pred_region
        %p166 = scmp.lt.s32.totalorder %s10, 1
        %s167 = scalar_select %p166, %s10, 1
        %s168 = smul.addr %s167, 2
        %s169 = smul.addr %s168, 8
        %s170 = scalar_lea.vmem %s3, %s169
      $region32: #{upblock_forward.58} parent=23 // pred_fallthru
        _
    $region24: #{upblock_forward.58} parent=5 // pred_fallthru
      _
    %p171 = scmp.le.s32.totalorder 1, %s10
    %p172 = scmp.lt.s32.totalorder %s10, 3
    %p173 = pnand %p171, %p172
    %p174 = pneg %p173
    // Predicated region
    $region33: #{upblock_forward.58} parent=5 // pred_check
      _
    $region34: #{upblock_forward.58} parent=5 // pred_check_branch
      %176 = sbr.rel (%p173) target = $region36
    $region35: #{upblock_forward.58} parent=5 // pred_region
      %s177 = ssub.s32 %s10, 1
      %p178 = scmp.lt.s32.totalorder %s15, 1
      %s179 = scalar_select %p178, %s15, 1
      %s180 = smul.addr %s179, 3
      %s181 = smul.addr %s180, 8
      %s182 = scalar_lea.vmem %s0, %s181
      %p183 = pneg %p36
      %p184 = pneg %p33
      %p185 = pneg %p57
      %p186 = pneg %p54
      %p187 = pneg %p78
      %p188 = pneg %p75
      %p189 = scmp.lt.s32.totalorder %s15, 1
      %s190 = scalar_select %p189, %s15, 1
      %s191 = smul.addr %s190, 2
      %s192 = smul.addr %s191, 8
      %s193 = scalar_lea.vmem %s3, %s192
      %p194 = pneg %p104
      %p195 = pneg %p101
      %p196 = pneg %p130
      %p197 = pneg %p127
      %p198 = scmp.lt.s32.totalorder %s15, 1
      %s199 = scalar_select %p198, %s15, 1
      %s200 = smul.addr %s199, 2
      %s201 = smul.addr %s200, 8
      %s202 = scalar_lea.vmem %s4, %s201
      %p203 = scmp.lt.s32.totalorder %s15, 1
      %s204 = scalar_select %p203, %s15, 1
      %s205 = smul.addr %s204, 3
      %s206 = smul.addr %s205, 8
      %s207 = scalar_lea.vmem %s0, %s206
      %p208 = scmp.lt.s32.totalorder %s15, 1
      %s209 = scalar_select %p208, %s15, 1
      %s210 = smul.addr %s209, 2
      %s211 = smul.addr %s210, 8
      %s212 = scalar_lea.vmem %s3, %s211
      %p213 = scmp.lt.s32.totalorder %s15, 1
      %s214 = scalar_select %p213, %s15, 1
      %s215 = smul.addr %s214, 2
      %s216 = smul.addr %s215, 8
      %s217 = scalar_lea.vmem %s4, %s216
      %v219 = vld [vmem:[%s1] sm:$0xf]
      %v220 = vld [vmem:[%s1 + $0x4] sm:$0xf]
      %v221 = vld [vmem:[%s1 + $0x8] sm:$0xf]
      %v222 = vld [vmem:[%s1 + $0xc] sm:$0xf]
      %v223 = vld [vmem:[%s1 + $0x10] sm:$0xf]
      %v224 = vld [vmem:[%s1 + $0x14] sm:$0xf]
      %v225 = vld [vmem:[%s1 + $0x18] sm:$0xf]
      %v226 = vld [vmem:[%s1 + $0x1c] sm:$0xf]
      %v227 = vld [vmem:[%s1 + $0x20] sm:$0xf]
      %v228 = vld [vmem:[%s1 + $0x24] sm:$0xf]
      %v229 = vld [vmem:[%s1 + $0x28] sm:$0xf]
      %v230 = vld [vmem:[%s1 + $0x2c] sm:$0xf]
      %v231 = vld [vmem:[%s1 + $0x30] sm:$0xf]
      %v232 = vld [vmem:[%s1 + $0x34] sm:$0xf]
      %v233 = vld [vmem:[%s1 + $0x38] sm:$0xf]
      %v234 = vld [vmem:[%s1 + $0x3c] sm:$0xf]
      %v235 = vld [vmem:[%s1 + $0x40] sm:$0xf]
      %v236 = vld [vmem:[%s1 + $0x44] sm:$0xf]
      %v237 = vld [vmem:[%s1 + $0x48] sm:$0xf]
      %v238 = vld [vmem:[%s1 + $0x4c] sm:$0xf]
      %v239 = vld [vmem:[%s1 + $0x50] sm:$0xf]
      %v240 = vld [vmem:[%s1 + $0x54] sm:$0xf]
      %v241 = vld [vmem:[%s1 + $0x58] sm:$0xf]
      %v242 = vld [vmem:[%s1 + $0x5c] sm:$0xf]
      %v243 = vld [vmem:[%s207] sm:$0xff]
      %v244 = vld [vmem:[%s207 + $0x8] sm:$0xff]
      %v245 = vpack.c.bf16 %v244, %v243
      %v246 = vld [vmem:[%s207 + $0x1] sm:$0xff]
      %v247 = vld [vmem:[%s207 + $0x9] sm:$0xff]
      %v248 = vpack.c.bf16 %v247, %v246
      %v249 = vld [vmem:[%s207 + $0x2] sm:$0xff]
      %v250 = vld [vmem:[%s207 + $0xa] sm:$0xff]
      %v251 = vpack.c.bf16 %v250, %v249
      %v260 = vunpack.c.l.b16 %v227
      %v261 = vunpack.c.l.b16 %v228
      %v262 = vunpack.c.l.b16 %v229
      %v263 = vunpack.c.l.b16 %v230
      %v264 = vunpack.c.l.b16 %v231
      %v265 = vunpack.c.l.b16 %v232
      %v266 = vunpack.c.l.b16 %v233
      %v267 = vunpack.c.l.b16 %v234
      %v268 = vpack.c.b16 %v261, %v260
      %v269 = vpack.c.b16 %v263, %v262
      %v270 = vpack.c.b16 %v265, %v264
      %v271 = vpack.c.b16 %v267, %v266
      %vm276 = vcmask 523264
      %v278 = vsel %vm276, %v248, 0
      %280 = vmatpush.bf16.msra.mxu0 0
      %281 = vmatpush.bf16.msra.mxu0 0
      %282 = vmatpush.bf16.msra.mxu0 0
      %283 = vmatpush.bf16.msra.mxu0 0
      %284 = vmatpush.bf16.msra.mxu0 %v271
      %285 = vmatpush.bf16.msra.mxu0 %v270
      %286 = vmatpush.bf16.msra.mxu0 %v269
      %287 = vmatpush.bf16.msra.mxu0 %v268
      %288 = vmatmul.bf16.gmra.mxu0 %v278
      %v289 = vpop.f32.mrf.mxu0
      %v290 = vadd.f32 0.0, %v289
      %v291 = vpop.f32.mrf.mxu0
      %v292 = vadd.f32 0.0, %v291
      %293 = vdwg.mxu0
      %v302 = vunpack.c.l.b16 %v219
      %v303 = vunpack.c.l.b16 %v220
      %v304 = vunpack.c.l.b16 %v221
      %v305 = vunpack.c.l.b16 %v222
      %v306 = vunpack.c.l.b16 %v223
      %v307 = vunpack.c.l.b16 %v224
      %v308 = vunpack.c.l.b16 %v225
      %v309 = vunpack.c.l.b16 %v226
      %v310 = vpack.c.b16 %v303, %v302
      %v311 = vpack.c.b16 %v305, %v304
      %v312 = vpack.c.b16 %v307, %v306
      %v313 = vpack.c.b16 %v309, %v308
      %v319 = vsel %vm276, %v245, 0
      %321 = vmatpush.bf16.msra.mxu0 0
      %322 = vmatpush.bf16.msra.mxu0 0
      %323 = vmatpush.bf16.msra.mxu0 0
      %324 = vmatpush.bf16.msra.mxu0 0
      %325 = vmatpush.bf16.msra.mxu0 %v313
      %326 = vmatpush.bf16.msra.mxu0 %v312
      %327 = vmatpush.bf16.msra.mxu0 %v311
      %328 = vmatpush.bf16.msra.mxu0 %v310
      %329 = vmatmul.bf16.gmra.mxu0 %v319
      %v330 = vpop.f32.mrf.mxu0
      %v331 = vadd.f32 %v290, %v330
      %v332 = vpop.f32.mrf.mxu0
      %v333 = vadd.f32 %v292, %v332
      %334 = vdwg.mxu0
      %v343 = vunpack.c.l.b16 %v235
      %v344 = vunpack.c.l.b16 %v236
      %v345 = vunpack.c.l.b16 %v237
      %v346 = vunpack.c.l.b16 %v238
      %v347 = vunpack.c.l.b16 %v239
      %v348 = vunpack.c.l.b16 %v240
      %v349 = vunpack.c.l.b16 %v241
      %v350 = vunpack.c.l.b16 %v242
      %v351 = vpack.c.b16 %v344, %v343
      %v352 = vpack.c.b16 %v346, %v345
      %v353 = vpack.c.b16 %v348, %v347
      %v354 = vpack.c.b16 %v350, %v349
      %v360 = vsel %vm276, %v251, 0
      %362 = vmatpush.bf16.msra.mxu0 0
      %363 = vmatpush.bf16.msra.mxu0 0
      %364 = vmatpush.bf16.msra.mxu0 0
      %365 = vmatpush.bf16.msra.mxu0 0
      %366 = vmatpush.bf16.msra.mxu0 %v354
      %367 = vmatpush.bf16.msra.mxu0 %v353
      %368 = vmatpush.bf16.msra.mxu0 %v352
      %369 = vmatpush.bf16.msra.mxu0 %v351
      %370 = vmatmul.bf16.gmra.mxu0 %v360
      %v371 = vpop.f32.mrf.mxu0
      %v372 = vadd.f32 0.0, %v371
      %v373 = vpop.f32.mrf.mxu0
      %v374 = vadd.f32 0.0, %v373
      %375 = vdwg.mxu0
      %v376 = vadd.f32 %v331, %v372
      %v377 = vadd.f32 %v333, %v374
      %v378 = vld [vmem:[%s2] sm:$0x1]
      %v380 = vperm.slane %v378, 0
      %v382 = vadd.f32 %v376, %v380
      %v383 = vadd.f32 %v377, %v380
      %v384 = vld [vmem:[%s212] sm:$0xff]
      %v385 = vld [vmem:[%s212 + $0x8] sm:$0xff]
      %v386 = vadd.f32 %v382, %v384
      %v387 = vadd.f32 %v383, %v385
      %388 = vst.msk [vmem:[%s217] sm:$0xff] %vm276, %v386
      %389 = vst.msk [vmem:[%s217 + $0x8] sm:$0xff] %vm276, %v387
      %p390 = scmp.lt.s32.totalorder %s15, 1
      %s391 = scalar_select %p390, %s15, 1
      %s392 = smul.addr %s391, 2
      %s393 = smul.addr %s392, 8
      %s394 = scalar_lea.vmem %s4, %s393
      // Predicated region
      $region37: #{upblock_forward.58} parent=35 // pred_check
        %p395 = pneg %p127
      $region38: #{upblock_forward.58} parent=35 // pred_check_branch
        %397 = sbr.rel (%p395) target = $region40
      $region39: #{upblock_forward.58} parent=35 // pred_region
        _
      $region40: #{upblock_forward.58} parent=35 // pred_fallthru
        _
    $region36: #{upblock_forward.58} parent=5 // pred_fallthru
      _
    %p398 = scmp.le.s32.totalorder 2, %s10
    // Predicated region
    $region41: #{upblock_forward.58} parent=5 // pred_check
      %p399 = pneg %p398
    $region42: #{upblock_forward.58} parent=5 // pred_check_branch
      %401 = sbr.rel (%p399) target = $region44
    $region43: #{upblock_forward.58} parent=5 // pred_region
      %s402 = ssub.s32 %s10, 2
      // Predicated region
      $region45: #{upblock_forward.58} parent=43 // pred_check
        %p403 = pneg %p133
      $region46: #{upblock_forward.58} parent=43 // pred_check_branch
        %405 = sbr.rel (%p403) target = $region48
      $region47: #{upblock_forward.58} parent=43 // pred_region
        %p406 = scmp.lt.s32.totalorder %s16, 1
        %s407 = scalar_select %p406, %s16, 1
        %s408 = smul.addr %s407, 2
        %s409 = smul.addr %s408, 8
        %s410 = scalar_lea.vmem %s4, %s409
      $region48: #{upblock_forward.58} parent=43 // pred_fallthru
        _
    $region44: #{upblock_forward.58} parent=5 // pred_fallthru
      _
  $region6: #{upblock_forward.58} parent=0 // loop_footer
    %s14 = sadd.s32 1, %s10
  $region7: #{upblock_forward.58} parent=0 // loop_footer_branch
    %9 = sbr.rel target = $region3
  $region8: #{upblock_forward.58} parent=0 // loop_exit
    _

// kernel: upblock_forward.59
$region0: #{upblock_forward.59}
  #allocation0 [shape = 'u32[]', space=smem, size = 0x4, offset = 0x4, fixed_abs, tag = 'smem constant byte address 0x4 - core index']
  #allocation1 [shape = 'u32[72,128]{1,0:T(1,128)}', space=vmem, size = 0x9000, scoped, tag = 'internal scratch']
  %s0 = inlined_call_operand.vmem [shape: f32[2,16,64], index: 0, kind: input, shape index: {}]
  %s1 = inlined_call_operand.vmem [shape: f32[64,32], index: 1, kind: input, shape index: {}]
  %s2 = inlined_call_operand.vmem [shape: f32[32,64], index: 2, kind: input, shape index: {}]
  %s3 = inlined_call_operand.vmem [shape: f32[1,1,64], index: 3, kind: input, shape index: {}]
  %s4 = inlined_call_operand.vmem [shape: f32[1,1,64], index: 4, kind: input, shape index: {}]
  %s5 = inlined_call_operand.vmem [shape: f32[2,16,64], index: 5, kind: output, shape index: {}]
  %s6 = sld [smem:[#allocation0]]
  $region53: #{upblock_forward.59} parent=0
    _
  %s8 = ssub.s32 1, %s6
  %s9 = scalar_select 0, %s8, %s6
  loop: start=0, step=1, limit=4
  $region2: #{upblock_forward.59} parent=0 // loop_pre_header
    _
  $region3: #{upblock_forward.59} parent=0 // loop_header
    %s11 = sphi 0, %s15
    %p12 = scmp.ge.s32.totalorder %s11, 4
    %s21 = sphi 0, %s23
    %s24 = sphi 0, %s21
    %s25 = sphi 0, %s24
    %s41 = sphi 0, %s25
    %s45 = sphi 0, %s45
    %s47 = sphi 0, %s45
    %s48 = sphi 0, %s47
    %s62 = sphi 0, %s48
    %s66 = sphi 0, %s66
    %s68 = sphi 0, %s66
    %s69 = sphi 0, %s68
    %s83 = sphi 0, %s69
    %s87 = sphi 0, %s87
    %s89 = sphi 0, %s87
    %s90 = sphi 0, %s89
    %s104 = sphi 0, %s90
    %s108 = sphi 0, %s108
    %s110 = sphi 0, %s108
    %s111 = sphi 0, %s110
    %s125 = sphi 0, %s111
    %s131 = sphi 0, %s133
    %s134 = sphi 0, %s131
    %s135 = sphi 0, %s134
    %s151 = sphi 0, %s135
  $region4: #{upblock_forward.59} parent=0 // loop_header_branch
    %14 = sbr.rel (%p12) target = $region8
  $region5: #{upblock_forward.59} parent=0 // loop_body
    %s16 = ssub.s32 %s11, 1
    %s17 = ssub.s32 %s11, 2
    %s18 = sadd.s32 %s11, 1
    %s19 = ssub.s32 %s11, %s18
    %p20 = scmp.eq.s32.totalorder %s19, 0
    %s22 = sadd.s32 %s21, 1
    %s23 = scalar_select %p20, %s21, %s22
    %p26 = pneg %p20
    %p27 = scmp.eq.s32.totalorder %s11, 1
    %p28 = por %p26, %p27
    %p29 = scmp.ne.s32.totalorder %s21, %s24
    %p30 = scmp.eq.s32.totalorder %s11, 0
    %p31 = por %p29, %p30
    %p32 = scmp.ne.s32.totalorder %s21, %s24
    %p33 = scmp.eq.s32.totalorder %s16, 1
    %p34 = por %p32, %p33
    %p35 = scmp.ne.s32.totalorder %s24, %s25
    %p36 = scmp.eq.s32.totalorder %s16, 0
    %p37 = por %p35, %p36
    %p38 = scmp.ne.s32.totalorder %s24, %s25
    %p39 = scmp.eq.s32.totalorder %s17, 1
    %p40 = por %p38, %p39
    %p42 = scmp.ne.s32.totalorder %s25, %s41
    %p43 = scmp.eq.s32.totalorder %s17, 0
    %p44 = por %p42, %p43
    %s46 = sadd.s32 %s45, 1
    %p49 = scmp.eq.s32.totalorder %s11, 1
    %p50 = scmp.ne.s32.totalorder %s45, %s47
    %p51 = scmp.eq.s32.totalorder %s11, 0
    %p52 = por %p50, %p51
    %p53 = scmp.ne.s32.totalorder %s45, %s47
    %p54 = scmp.eq.s32.totalorder %s16, 1
    %p55 = por %p53, %p54
    %p56 = scmp.ne.s32.totalorder %s47, %s48
    %p57 = scmp.eq.s32.totalorder %s16, 0
    %p58 = por %p56, %p57
    %p59 = scmp.ne.s32.totalorder %s47, %s48
    %p60 = scmp.eq.s32.totalorder %s17, 1
    %p61 = por %p59, %p60
    %p63 = scmp.ne.s32.totalorder %s48, %s62
    %p64 = scmp.eq.s32.totalorder %s17, 0
    %p65 = por %p63, %p64
    %s67 = sadd.s32 %s66, 1
    %p70 = scmp.eq.s32.totalorder %s11, 1
    %p71 = scmp.ne.s32.totalorder %s66, %s68
    %p72 = scmp.eq.s32.totalorder %s11, 0
    %p73 = por %p71, %p72
    %p74 = scmp.ne.s32.totalorder %s66, %s68
    %p75 = scmp.eq.s32.totalorder %s16, 1
    %p76 = por %p74, %p75
    %p77 = scmp.ne.s32.totalorder %s68, %s69
    %p78 = scmp.eq.s32.totalorder %s16, 0
    %p79 = por %p77, %p78
    %p80 = scmp.ne.s32.totalorder %s68, %s69
    %p81 = scmp.eq.s32.totalorder %s17, 1
    %p82 = por %p80, %p81
    %p84 = scmp.ne.s32.totalorder %s69, %s83
    %p85 = scmp.eq.s32.totalorder %s17, 0
    %p86 = por %p84, %p85
    %s88 = sadd.s32 %s87, 1
    %p91 = scmp.eq.s32.totalorder %s11, 1
    %p92 = scmp.ne.s32.totalorder %s87, %s89
    %p93 = scmp.eq.s32.totalorder %s11, 0
    %p94 = por %p92, %p93
    %p95 = scmp.ne.s32.totalorder %s87, %s89
    %p96 = scmp.eq.s32.totalorder %s16, 1
    %p97 = por %p95, %p96
    %p98 = scmp.ne.s32.totalorder %s89, %s90
    %p99 = scmp.eq.s32.totalorder %s16, 0
    %p100 = por %p98, %p99
    %p101 = scmp.ne.s32.totalorder %s89, %s90
    %p102 = scmp.eq.s32.totalorder %s17, 1
    %p103 = por %p101, %p102
    %p105 = scmp.ne.s32.totalorder %s90, %s104
    %p106 = scmp.eq.s32.totalorder %s17, 0
    %p107 = por %p105, %p106
    %s109 = sadd.s32 %s108, 1
    %p112 = scmp.eq.s32.totalorder %s11, 1
    %p113 = scmp.ne.s32.totalorder %s108, %s110
    %p114 = scmp.eq.s32.totalorder %s11, 0
    %p115 = por %p113, %p114
    %p116 = scmp.ne.s32.totalorder %s108, %s110
    %p117 = scmp.eq.s32.totalorder %s16, 1
    %p118 = por %p116, %p117
    %p119 = scmp.ne.s32.totalorder %s110, %s111
    %p120 = scmp.eq.s32.totalorder %s16, 0
    %p121 = por %p119, %p120
    %p122 = scmp.ne.s32.totalorder %s110, %s111
    %p123 = scmp.eq.s32.totalorder %s17, 1
    %p124 = por %p122, %p123
    %p126 = scmp.ne.s32.totalorder %s111, %s125
    %p127 = scmp.eq.s32.totalorder %s17, 0
    %p128 = por %p126, %p127
    %s129 = ssub.s32 %s11, %s18
    %p130 = scmp.eq.s32.totalorder %s129, 0
    %s132 = sadd.s32 %s131, 1
    %s133 = scalar_select %p130, %s131, %s132
    %p136 = pneg %p130
    %p137 = scmp.eq.s32.totalorder %s11, 1
    %p138 = por %p136, %p137
    %p139 = scmp.ne.s32.totalorder %s131, %s134
    %p140 = scmp.eq.s32.totalorder %s11, 0
    %p141 = por %p139, %p140
    %p142 = scmp.ne.s32.totalorder %s131, %s134
    %p143 = scmp.eq.s32.totalorder %s16, 1
    %p144 = por %p142, %p143
    %p145 = scmp.ne.s32.totalorder %s134, %s135
    %p146 = scmp.eq.s32.totalorder %s16, 0
    %p147 = por %p145, %p146
    %p148 = scmp.ne.s32.totalorder %s134, %s135
    %p149 = scmp.eq.s32.totalorder %s17, 1
    %p150 = por %p148, %p149
    %p152 = scmp.ne.s32.totalorder %s135, %s151
    %p153 = scmp.eq.s32.totalorder %s17, 0
    %p154 = por %p152, %p153
    %p155 = scmp.le.s32.totalorder 1, %s11
    %p156 = scmp.lt.s32.totalorder %s11, 3
    %p157 = pnand %p155, %p156
    %p158 = pneg %p157
    // Predicated region
    $region9: #{upblock_forward.59} parent=5 // pred_check
      _
    $region10: #{upblock_forward.59} parent=5 // pred_check_branch
      %160 = sbr.rel (%p157) target = $region12
    $region11: #{upblock_forward.59} parent=5 // pred_region
      %s161 = ssub.s32 %s11, 1
      // Predicated region
      $region13: #{upblock_forward.59} parent=11 // pred_check
        %p162 = pneg %p58
      $region14: #{upblock_forward.59} parent=11 // pred_check_branch
        %164 = sbr.rel (%p162) target = $region16
      $region15: #{upblock_forward.59} parent=11 // pred_region
        _
      $region16: #{upblock_forward.59} parent=11 // pred_fallthru
        _
      // Predicated region
      $region17: #{upblock_forward.59} parent=11 // pred_check
        %p165 = pneg %p79
      $region18: #{upblock_forward.59} parent=11 // pred_check_branch
        %167 = sbr.rel (%p165) target = $region20
      $region19: #{upblock_forward.59} parent=11 // pred_region
        _
      $region20: #{upblock_forward.59} parent=11 // pred_fallthru
        _
      // Predicated region
      $region21: #{upblock_forward.59} parent=11 // pred_check
        %p168 = pneg %p100
      $region22: #{upblock_forward.59} parent=11 // pred_check_branch
        %170 = sbr.rel (%p168) target = $region24
      $region23: #{upblock_forward.59} parent=11 // pred_region
        _
      $region24: #{upblock_forward.59} parent=11 // pred_fallthru
        _
      // Predicated region
      $region25: #{upblock_forward.59} parent=11 // pred_check
        %p171 = pneg %p121
      $region26: #{upblock_forward.59} parent=11 // pred_check_branch
        %173 = sbr.rel (%p171) target = $region28
      $region27: #{upblock_forward.59} parent=11 // pred_region
        _
      $region28: #{upblock_forward.59} parent=11 // pred_fallthru
        _
    $region12: #{upblock_forward.59} parent=5 // pred_fallthru
      _
    %p174 = scmp.lt.s32.totalorder %s11, 2
    // Predicated region
    $region29: #{upblock_forward.59} parent=5 // pred_check
      %p175 = pneg %p174
    $region30: #{upblock_forward.59} parent=5 // pred_check_branch
      %177 = sbr.rel (%p175) target = $region32
    $region31: #{upblock_forward.59} parent=5 // pred_region
      // Predicated region
      $region33: #{upblock_forward.59} parent=31 // pred_check
        %p178 = pneg %p31
      $region34: #{upblock_forward.59} parent=31 // pred_check_branch
        %180 = sbr.rel (%p178) target = $region36
      $region35: #{upblock_forward.59} parent=31 // pred_region
        %p181 = scmp.lt.s32.totalorder %s11, 1
        %s182 = scalar_select %p181, %s11, 1
        %s183 = smul.addr %s182, 2
        %s184 = smul.addr %s183, 8
        %s185 = scalar_lea.vmem %s0, %s184
      $region36: #{upblock_forward.59} parent=31 // pred_fallthru
        _
    $region32: #{upblock_forward.59} parent=5 // pred_fallthru
      _
    %p186 = scmp.le.s32.totalorder 1, %s11
    %p187 = scmp.lt.s32.totalorder %s11, 3
    %p188 = pnand %p186, %p187
    %p189 = pneg %p188
    // Predicated region
    $region37: #{upblock_forward.59} parent=5 // pred_check
      _
    $region38: #{upblock_forward.59} parent=5 // pred_check_branch
      %191 = sbr.rel (%p188) target = $region40
    $region39: #{upblock_forward.59} parent=5 // pred_region
      %s192 = ssub.s32 %s11, 1
      %p193 = scmp.lt.s32.totalorder %s16, 1
      %s194 = scalar_select %p193, %s16, 1
      %s195 = smul.addr %s194, 2
      %s196 = smul.addr %s195, 8
      %s197 = scalar_lea.vmem %s0, %s196
      %p198 = pneg %p37
      %p199 = pneg %p34
      %p200 = pneg %p58
      %p201 = pneg %p55
      %p202 = pneg %p79
      %p203 = pneg %p76
      %p204 = pneg %p100
      %p205 = pneg %p97
      %p206 = pneg %p121
      %p207 = pneg %p118
      %p208 = pneg %p147
      %p209 = pneg %p144
      %p210 = scmp.lt.s32.totalorder %s16, 1
      %s211 = scalar_select %p210, %s16, 1
      %s212 = smul.addr %s211, 2
      %s213 = smul.addr %s212, 8
      %s214 = scalar_lea.vmem %s5, %s213
      %p215 = scmp.lt.s32.totalorder %s16, 1
      %s216 = scalar_select %p215, %s16, 1
      %s217 = smul.addr %s216, 2
      %s218 = smul.addr %s217, 8
      %s219 = scalar_lea.vmem %s0, %s218
      %p220 = scmp.lt.s32.totalorder %s16, 1
      %s221 = scalar_select %p220, %s16, 1
      %s222 = smul.addr %s221, 2
      %s223 = smul.addr %s222, 8
      %s224 = scalar_lea.vmem %s5, %s223
      %v225 = vld [vmem:[%s219] sm:$0xff]
      %v226 = vld [vmem:[%s219 + $0x8] sm:$0xff]
      %v227 = vld [vmem:[%s1] sm:$0xff]
      %v228 = vld [vmem:[%s1 + $0x8] sm:$0xff]
      %v229 = vld [vmem:[%s1 + $0x10] sm:$0xff]
      %v230 = vld [vmem:[%s1 + $0x18] sm:$0xff]
      %v231 = vld [vmem:[%s1 + $0x20] sm:$0xff]
      %v232 = vld [vmem:[%s1 + $0x28] sm:$0xff]
      %v233 = vld [vmem:[%s1 + $0x30] sm:$0xff]
      %v234 = vld [vmem:[%s1 + $0x38] sm:$0xff]
      %v235 = vld [vmem:[%s2] sm:$0xff]
      %v236 = vld [vmem:[%s2 + $0x8] sm:$0xff]
      %v237 = vld [vmem:[%s2 + $0x10] sm:$0xff]
      %v238 = vld [vmem:[%s2 + $0x18] sm:$0xff]
      %vm239 = vcmask 523264
      %v240 = vsel %vm239, %v225, 0.0
      %v241 = vsel %vm239, %v226, 0.0
      %v242 = vadd.f32 %v240, %v241
      %v243 = vrot.slane %v242, 4
      %v244 = vadd.f32 %v242, %v243
      %v245 = vrot.slane %v244, 2
      %v246 = vadd.f32 %v244, %v245
      %v247 = vrot.slane %v246, 1
      %v248 = vadd.f32 %v246, %v247
      %v249 = vmul.f32 %v225, %v225
      %v250 = vmul.f32 %v226, %v226
      %v251 = vsel %vm239, %v249, 0.0
      %v252 = vsel %vm239, %v250, 0.0
      %v253 = vadd.f32 %v251, %v252
      %v254 = vrot.slane %v253, 4
      %v255 = vadd.f32 %v253, %v254
      %v256 = vrot.slane %v255, 2
      %v257 = vadd.f32 %v255, %v256
      %v258 = vrot.slane %v257, 1
      %v259 = vadd.f32 %v257, %v258
      %v261 = vsel %vm239, %v248, 0
      %263 = vmatpush.msra.mxu0 0.0
      %264 = vmatpush.msra.mxu0 0.0
      %265 = vmatpush.msra.mxu0 0.0
      %266 = vmatpush.msra.mxu0 0.0
      %267 = vmatpush.msra.mxu0 0.0
      %268 = vmatpush.msra.mxu0 0.0
      %269 = vmatpush.msra.mxu0 0.0
      %270 = vmatpush.msra.mxu0 0.0
      %271 = vmatpush.msra.mxu0 %v234
      %272 = vmatpush.msra.mxu0 %v233
      %273 = vmatpush.msra.mxu0 %v232
      %274 = vmatpush.msra.mxu0 %v231
      %275 = vmatpush.msra.mxu0 %v230
      %276 = vmatpush.msra.mxu0 %v229
      %277 = vmatpush.msra.mxu0 %v228
      %278 = vmatpush.msra.mxu0 %v227
      %279 = vmatmul.f32.gmra.mxu0 %v261
      %v280 = vpop.f32.mrf.mxu0
      %v281 = vadd.f32 0.0, %v280
      %282 = vdwg.mxu0
      %v284 = vsel %vm239, %v259, 0
      %286 = vmatpush.msra.mxu0 0.0
      %287 = vmatpush.msra.mxu0 0.0
      %288 = vmatpush.msra.mxu0 0.0
      %289 = vmatpush.msra.mxu0 0.0
      %290 = vmatpush.msra.mxu0 0.0
      %291 = vmatpush.msra.mxu0 0.0
      %292 = vmatpush.msra.mxu0 0.0
      %293 = vmatpush.msra.mxu0 0.0
      %294 = vmatpush.msra.mxu0 %v234
      %295 = vmatpush.msra.mxu0 %v233
      %296 = vmatpush.msra.mxu0 %v232
      %297 = vmatpush.msra.mxu0 %v231
      %298 = vmatpush.msra.mxu0 %v230
      %299 = vmatpush.msra.mxu0 %v229
      %300 = vmatpush.msra.mxu0 %v228
      %301 = vmatpush.msra.mxu0 %v227
      %302 = vmatmul.f32.gmra.mxu0 %v284
      %v303 = vpop.f32.mrf.mxu0
      %v304 = vadd.f32 0.0, %v303
      %305 = vdwg.mxu0
      %v306 = vmul.f32 %v281, 0.03125
      %v307 = vmul.f32 %v304, 0.03125
      %v308 = vmul.f32 %v306, %v306
      %v309 = vsub.f32 %v307, %v308
      %v310 = vadd.f32 %v309, 1e-06
      %v311 = vrsqrt.pop %v310
      %v312 = vmul.f32 %v311, %v310
      %v313 = vmul.f32 %v312, %v311
      %v314 = vmul.f32 0.5, %v313
      %v315 = vsub.f32 1.5, %v314
      %v316 = vmul.f32 %v311, %v315
      %vm317 = vweird.f32 %v310
      %vm318 = vweird.f32 %v311
      %vm319 = vmor %vm317, %vm318
      %v320 = vsel %vm319, %v311, %v316
      %vm321 = vcmask 261120
      %v323 = vsel %vm321, %v306, 0
      %325 = vmatpush.msra.mxu0 0.0
      %326 = vmatpush.msra.mxu0 0.0
      %327 = vmatpush.msra.mxu0 0.0
      %328 = vmatpush.msra.mxu0 0.0
      %329 = vmatpush.msra.mxu0 0.0
      %330 = vmatpush.msra.mxu0 0.0
      %331 = vmatpush.msra.mxu0 0.0
      %332 = vmatpush.msra.mxu0 0.0
      %333 = vmatpush.msra.mxu0 0.0
      %334 = vmatpush.msra.mxu0 0.0
      %335 = vmatpush.msra.mxu0 0.0
      %336 = vmatpush.msra.mxu0 0.0
      %337 = vmatpush.msra.mxu0 %v238
      %338 = vmatpush.msra.mxu0 %v237
      %339 = vmatpush.msra.mxu0 %v236
      %340 = vmatpush.msra.mxu0 %v235
      %341 = vmatmul.f32.gmra.mxu0 %v323
      %v342 = vpop.f32.mrf.mxu0
      %v343 = vadd.f32 0.0, %v342
      %344 = vdwg.mxu0
      %v346 = vsel %vm321, %v320, 0
      %348 = vmatpush.msra.mxu0 0.0
      %349 = vmatpush.msra.mxu0 0.0
      %350 = vmatpush.msra.mxu0 0.0
      %351 = vmatpush.msra.mxu0 0.0
      %352 = vmatpush.msra.mxu0 0.0
      %353 = vmatpush.msra.mxu0 0.0
      %354 = vmatpush.msra.mxu0 0.0
      %355 = vmatpush.msra.mxu0 0.0
      %356 = vmatpush.msra.mxu0 0.0
      %357 = vmatpush.msra.mxu0 0.0
      %358 = vmatpush.msra.mxu0 0.0
      %359 = vmatpush.msra.mxu0 0.0
      %360 = vmatpush.msra.mxu0 %v238
      %361 = vmatpush.msra.mxu0 %v237
      %362 = vmatpush.msra.mxu0 %v236
      %363 = vmatpush.msra.mxu0 %v235
      %364 = vmatmul.f32.gmra.mxu0 %v346
      %v365 = vpop.f32.mrf.mxu0
      %v366 = vadd.f32 0.0, %v365
      %367 = vdwg.mxu0
      %v368 = vperm.slane %v343, 0
      %v369 = vsub.f32 %v225, %v368
      %v370 = vsub.f32 %v226, %v368
      %v371 = vperm.slane %v366, 0
      %v372 = vmul.f32 %v369, %v371
      %v373 = vmul.f32 %v370, %v371
      %v374 = vld [vmem:[%s3] sm:$0x1]
      %v376 = vperm.slane %v374, 0
      %v378 = vmul.f32 %v372, %v376
      %v379 = vmul.f32 %v373, %v376
      %v380 = vld [vmem:[%s4] sm:$0x1]
      %v382 = vperm.slane %v380, 0
      %v384 = vadd.f32 %v378, %v382
      %v385 = vadd.f32 %v379, %v382
      %386 = vst.msk [vmem:[%s224] sm:$0xff] %vm239, %v384
      %387 = vst.msk [vmem:[%s224 + $0x8] sm:$0xff] %vm239, %v385
      %p388 = scmp.lt.s32.totalorder %s16, 1
      %s389 = scalar_select %p388, %s16, 1
      %s390 = smul.addr %s389, 2
      %s391 = smul.addr %s390, 8
      %s392 = scalar_lea.vmem %s5, %s391
      // Predicated region
      $region41: #{upblock_forward.59} parent=39 // pred_check
        %p393 = pneg %p144
      $region42: #{upblock_forward.59} parent=39 // pred_check_branch
        %395 = sbr.rel (%p393) target = $region44
      $region43: #{upblock_forward.59} parent=39 // pred_region
        _
      $region44: #{upblock_forward.59} parent=39 // pred_fallthru
        _
    $region40: #{upblock_forward.59} parent=5 // pred_fallthru
      _
    %p396 = scmp.le.s32.totalorder 2, %s11
    // Predicated region
    $region45: #{upblock_forward.59} parent=5 // pred_check
      %p397 = pneg %p396
    $region46: #{upblock_forward.59} parent=5 // pred_check_branch
      %399 = sbr.rel (%p397) target = $region48
    $region47: #{upblock_forward.59} parent=5 // pred_region
      %s400 = ssub.s32 %s11, 2
      // Predicated region
      $region49: #{upblock_forward.59} parent=47 // pred_check
        %p401 = pneg %p150
      $region50: #{upblock_forward.59} parent=47 // pred_check_branch
        %403 = sbr.rel (%p401) target = $region52
      $region51: #{upblock_forward.59} parent=47 // pred_region
        %p404 = scmp.lt.s32.totalorder %s17, 1
        %s405 = scalar_select %p404, %s17, 1
        %s406 = smul.addr %s405, 2
        %s407 = smul.addr %s406, 8
        %s408 = scalar_lea.vmem %s5, %s407
      $region52: #{upblock_forward.59} parent=47 // pred_fallthru
        _
    $region48: #{upblock_forward.59} parent=5 // pred_fallthru
      _
  $region6: #{upblock_forward.59} parent=0 // loop_footer
    %s15 = sadd.s32 1, %s11
  $region7: #{upblock_forward.59} parent=0 // loop_footer_branch
    %10 = sbr.rel target = $region3
  $region8: #{upblock_forward.59} parent=0 // loop_exit
    _

// kernel: upblock_forward.60
$region0: #{upblock_forward.60}
  #allocation0 [shape = 'u32[]', space=smem, size = 0x4, offset = 0x4, fixed_abs, tag = 'smem constant byte address 0x4 - core index']
  #allocation1 [shape = 'u32[72,128]{1,0:T(1,128)}', space=vmem, size = 0x9000, scoped, tag = 'internal scratch']
  #allocation2 [shape = 'f32[32,128]{1,0:T(8,128)}', space=vmem, size = 0x4000, scoped, tag = 'scratch operand']
  %s0 = inlined_call_operand.vmem [shape: f32[32,128], index: 0, kind: input, shape index: {}]
  %s1 = inlined_call_operand.vmem [shape: bf16[128,128], index: 1, kind: input, shape index: {}]
  %s2 = inlined_call_operand.vmem [shape: f32[1,128], index: 2, kind: input, shape index: {}]
  %s3 = inlined_call_operand.vmem [shape: f32[32,128], index: 3, kind: output, shape index: {}]
  %s4 = sld [smem:[#allocation0]]
  $region30: #{upblock_forward.60} parent=0
    _
  %s6 = ssub.s32 1, %s4
  %s7 = scalar_select 0, %s6, %s4
  // Predicated region
  $region2: #{upblock_forward.60} parent=0 // pred_check
    _
  $region3: #{upblock_forward.60} parent=0 // pred_check_branch
    %9 = sbr.rel (0) target = $region5
  $region4: #{upblock_forward.60} parent=0 // pred_region
    _
  $region5: #{upblock_forward.60} parent=0 // pred_fallthru
    _
  // Predicated region
  $region6: #{upblock_forward.60} parent=0 // pred_check
    _
  $region7: #{upblock_forward.60} parent=0 // pred_check_branch
    %11 = sbr.rel (0) target = $region9
  $region8: #{upblock_forward.60} parent=0 // pred_region
    _
  $region9: #{upblock_forward.60} parent=0 // pred_fallthru
    _
  // Predicated region
  $region10: #{upblock_forward.60} parent=0 // pred_check
    _
  $region11: #{upblock_forward.60} parent=0 // pred_check_branch
    %13 = sbr.rel (0) target = $region13
  $region12: #{upblock_forward.60} parent=0 // pred_region
    _
  $region13: #{upblock_forward.60} parent=0 // pred_fallthru
    _
  %p14 = scmp.eq.s32.totalorder 0, 0
  // Predicated region
  $region14: #{upblock_forward.60} parent=0 // pred_check
    %p15 = pneg %p14
  $region15: #{upblock_forward.60} parent=0 // pred_check_branch
    %17 = sbr.rel (%p15) target = $region17
  $region16: #{upblock_forward.60} parent=0 // pred_region
    %18 = vst [vmem:[#allocation2] sm:$0xff] 0.0
    %19 = vst [vmem:[#allocation2 + $0x8] sm:$0xff] 0.0
    %20 = vst [vmem:[#allocation2 + $0x10] sm:$0xff] 0.0
    %21 = vst [vmem:[#allocation2 + $0x18] sm:$0xff] 0.0
  $region17: #{upblock_forward.60} parent=0 // pred_fallthru
    _
  %v22 = vld [vmem:[%s0] sm:$0xff]
  %v23 = vld [vmem:[%s0 + $0x8] sm:$0xff]
  %v24 = vld [vmem:[%s0 + $0x10] sm:$0xff]
  %v25 = vld [vmem:[%s0 + $0x18] sm:$0xff]
  %v26 = vld [vmem:[#allocation2] sm:$0xff]
  %v27 = vld [vmem:[#allocation2 + $0x8] sm:$0xff]
  %v28 = vld [vmem:[#allocation2 + $0x10] sm:$0xff]
  %v29 = vld [vmem:[#allocation2 + $0x18] sm:$0xff]
  %v30 = vpack.c.bf16 %v23, %v22
  %v31 = vpack.c.bf16 %v25, %v24
  %v32 = vld [vmem:[%s1] sm:$0xf]
  %v33 = vld [vmem:[%s1 + $0x4] sm:$0xf]
  %v34 = vld [vmem:[%s1 + $0x8] sm:$0xf]
  %v35 = vld [vmem:[%s1 + $0xc] sm:$0xf]
  %v36 = vld [vmem:[%s1 + $0x10] sm:$0xf]
  %v37 = vld [vmem:[%s1 + $0x14] sm:$0xf]
  %v38 = vld [vmem:[%s1 + $0x18] sm:$0xf]
  %v39 = vld [vmem:[%s1 + $0x1c] sm:$0xf]
  %v40 = vld [vmem:[%s1 + $0x20] sm:$0xf]
  %v41 = vld [vmem:[%s1 + $0x24] sm:$0xf]
  %v42 = vld [vmem:[%s1 + $0x28] sm:$0xf]
  %v43 = vld [vmem:[%s1 + $0x2c] sm:$0xf]
  %v44 = vld [vmem:[%s1 + $0x30] sm:$0xf]
  %v45 = vld [vmem:[%s1 + $0x34] sm:$0xf]
  %v46 = vld [vmem:[%s1 + $0x38] sm:$0xf]
  %v47 = vld [vmem:[%s1 + $0x3c] sm:$0xf]
  %v64 = vunpack.c.l.b16 %v32
  %v65 = vunpack.c.l.b16 %v33
  %v66 = vunpack.c.l.b16 %v34
  %v67 = vunpack.c.l.b16 %v35
  %v68 = vunpack.c.l.b16 %v36
  %v69 = vunpack.c.l.b16 %v37
  %v70 = vunpack.c.l.b16 %v38
  %v71 = vunpack.c.l.b16 %v39
  %v72 = vunpack.c.l.b16 %v40
  %v73 = vunpack.c.l.b16 %v41
  %v74 = vunpack.c.l.b16 %v42
  %v75 = vunpack.c.l.b16 %v43
  %v76 = vunpack.c.l.b16 %v44
  %v77 = vunpack.c.l.b16 %v45
  %v78 = vunpack.c.l.b16 %v46
  %v79 = vunpack.c.l.b16 %v47
  %v80 = vpack.c.b16 %v65, %v64
  %v81 = vpack.c.b16 %v67, %v66
  %v82 = vpack.c.b16 %v69, %v68
  %v83 = vpack.c.b16 %v71, %v70
  %v84 = vpack.c.b16 %v73, %v72
  %v85 = vpack.c.b16 %v75, %v74
  %v86 = vpack.c.b16 %v77, %v76
  %v87 = vpack.c.b16 %v79, %v78
  %96 = vmatpush.bf16.msra.mxu0 %v87
  %97 = vmatpush.bf16.msra.mxu0 %v86
  %98 = vmatpush.bf16.msra.mxu0 %v85
  %99 = vmatpush.bf16.msra.mxu0 %v84
  %100 = vmatpush.bf16.msra.mxu0 %v83
  %101 = vmatpush.bf16.msra.mxu0 %v82
  %102 = vmatpush.bf16.msra.mxu0 %v81
  %103 = vmatpush.bf16.msra.mxu0 %v80
  %104 = vmatmul.bf16.gmra.mxu0 %v30
  %v105 = vpop.f32.mrf.mxu0
  %v106 = vadd.f32 0.0, %v105
  %v107 = vpop.f32.mrf.mxu0
  %v108 = vadd.f32 0.0, %v107
  %109 = vmatmul.bf16.gmra.mxu0 %v31
  %v110 = vpop.f32.mrf.mxu0
  %v111 = vadd.f32 0.0, %v110
  %v112 = vpop.f32.mrf.mxu0
  %v113 = vadd.f32 0.0, %v112
  %114 = vdwg.mxu0
  %v115 = vadd.f32 %v26, %v106
  %v116 = vadd.f32 %v27, %v108
  %v117 = vadd.f32 %v28, %v111
  %v118 = vadd.f32 %v29, %v113
  %119 = vst [vmem:[#allocation2] sm:$0xff] %v115
  %120 = vst [vmem:[#allocation2 + $0x8] sm:$0xff] %v116
  %121 = vst [vmem:[#allocation2 + $0x10] sm:$0xff] %v117
  %122 = vst [vmem:[#allocation2 + $0x18] sm:$0xff] %v118
  // Predicated region
  $region18: #{upblock_forward.60} parent=0 // pred_check
    %p123 = pneg %p14
  $region19: #{upblock_forward.60} parent=0 // pred_check_branch
    %125 = sbr.rel (%p123) target = $region21
  $region20: #{upblock_forward.60} parent=0 // pred_region
    %v126 = vld [vmem:[#allocation2] sm:$0xff]
    %v127 = vld [vmem:[#allocation2 + $0x8] sm:$0xff]
    %v128 = vld [vmem:[#allocation2 + $0x10] sm:$0xff]
    %v129 = vld [vmem:[#allocation2 + $0x18] sm:$0xff]
    %v130 = vld [vmem:[%s2] sm:$0x1]
    %v132 = vperm.slane %v130, 0
    %v134 = vadd.f32 %v126, %v132
    %v135 = vadd.f32 %v127, %v132
    %v136 = vadd.f32 %v128, %v132
    %v137 = vadd.f32 %v129, %v132
    %138 = vst [vmem:[%s3] sm:$0xff] %v134
    %139 = vst [vmem:[%s3 + $0x8] sm:$0xff] %v135
    %140 = vst [vmem:[%s3 + $0x10] sm:$0xff] %v136
    %141 = vst [vmem:[%s3 + $0x18] sm:$0xff] %v137
  $region21: #{upblock_forward.60} parent=0 // pred_fallthru
    _
  // Predicated region
  $region22: #{upblock_forward.60} parent=0 // pred_check
    _
  $region23: #{upblock_forward.60} parent=0 // pred_check_branch
    %143 = sbr.rel (0) target = $region25
  $region24: #{upblock_forward.60} parent=0 // pred_region
    _
  $region25: #{upblock_forward.60} parent=0 // pred_fallthru
    _
  // Predicated region
  $region26: #{upblock_forward.60} parent=0 // pred_check
    _
  $region27: #{upblock_forward.60} parent=0 // pred_check_branch
    %145 = sbr.rel (0) target = $region29
  $region28: #{upblock_forward.60} parent=0 // pred_region
    _
  $region29: #{upblock_forward.60} parent=0 // pred_fallthru
    _

// kernel: upblock_forward.61
$region0: #{upblock_forward.61}
  #allocation0 [shape = 'u32[]', space=smem, size = 0x4, offset = 0x4, fixed_abs, tag = 'smem constant byte address 0x4 - core index']
  #allocation1 [shape = 'u32[72,128]{1,0:T(1,128)}', space=vmem, size = 0x9000, scoped, tag = 'internal scratch']
  #allocation2 [shape = 'f32[32,256]{1,0:T(8,128)}', space=vmem, size = 0x8000, scoped, tag = 'scratch operand']
  %s0 = inlined_call_operand.vmem [shape: f32[32,128], index: 0, kind: input, shape index: {}]
  %s1 = inlined_call_operand.vmem [shape: bf16[128,256], index: 1, kind: input, shape index: {}]
  %s2 = inlined_call_operand.vmem [shape: f32[1,256], index: 2, kind: input, shape index: {}]
  %s3 = inlined_call_operand.vmem [shape: f32[1,128], index: 3, kind: input, shape index: {}]
  %s4 = inlined_call_operand.vmem [shape: f32[1,128], index: 4, kind: input, shape index: {}]
  %s5 = inlined_call_operand.vmem [shape: f32[32,256], index: 5, kind: output, shape index: {}]
  %s6 = sld [smem:[#allocation0]]
  $region38: #{upblock_forward.61} parent=0
    _
  %s8 = ssub.s32 1, %s6
  %s9 = scalar_select 0, %s8, %s6
  // Predicated region
  $region2: #{upblock_forward.61} parent=0 // pred_check
    _
  $region3: #{upblock_forward.61} parent=0 // pred_check_branch
    %11 = sbr.rel (0) target = $region5
  $region4: #{upblock_forward.61} parent=0 // pred_region
    _
  $region5: #{upblock_forward.61} parent=0 // pred_fallthru
    _
  // Predicated region
  $region6: #{upblock_forward.61} parent=0 // pred_check
    _
  $region7: #{upblock_forward.61} parent=0 // pred_check_branch
    %13 = sbr.rel (0) target = $region9
  $region8: #{upblock_forward.61} parent=0 // pred_region
    _
  $region9: #{upblock_forward.61} parent=0 // pred_fallthru
    _
  // Predicated region
  $region10: #{upblock_forward.61} parent=0 // pred_check
    _
  $region11: #{upblock_forward.61} parent=0 // pred_check_branch
    %15 = sbr.rel (0) target = $region13
  $region12: #{upblock_forward.61} parent=0 // pred_region
    _
  $region13: #{upblock_forward.61} parent=0 // pred_fallthru
    _
  // Predicated region
  $region14: #{upblock_forward.61} parent=0 // pred_check
    _
  $region15: #{upblock_forward.61} parent=0 // pred_check_branch
    %17 = sbr.rel (0) target = $region17
  $region16: #{upblock_forward.61} parent=0 // pred_region
    _
  $region17: #{upblock_forward.61} parent=0 // pred_fallthru
    _
  // Predicated region
  $region18: #{upblock_forward.61} parent=0 // pred_check
    _
  $region19: #{upblock_forward.61} parent=0 // pred_check_branch
    %19 = sbr.rel (0) target = $region21
  $region20: #{upblock_forward.61} parent=0 // pred_region
    _
  $region21: #{upblock_forward.61} parent=0 // pred_fallthru
    _
  %p20 = scmp.eq.s32.totalorder 0, 0
  // Predicated region
  $region22: #{upblock_forward.61} parent=0 // pred_check
    %p21 = pneg %p20
  $region23: #{upblock_forward.61} parent=0 // pred_check_branch
    %23 = sbr.rel (%p21) target = $region25
  $region24: #{upblock_forward.61} parent=0 // pred_region
    %24 = vst [vmem:[#allocation2] sm:$0xff] 0.0
    %25 = vst [vmem:[#allocation2 + $0x8] sm:$0xff] 0.0
    %26 = vst [vmem:[#allocation2 + $0x10] sm:$0xff] 0.0
    %27 = vst [vmem:[#allocation2 + $0x18] sm:$0xff] 0.0
    %28 = vst [vmem:[#allocation2 + $0x20] sm:$0xff] 0.0
    %29 = vst [vmem:[#allocation2 + $0x28] sm:$0xff] 0.0
    %30 = vst [vmem:[#allocation2 + $0x30] sm:$0xff] 0.0
    %31 = vst [vmem:[#allocation2 + $0x38] sm:$0xff] 0.0
  $region25: #{upblock_forward.61} parent=0 // pred_fallthru
    _
  %v32 = vld [vmem:[%s0] sm:$0xff]
  %v33 = vld [vmem:[%s0 + $0x8] sm:$0xff]
  %v34 = vld [vmem:[%s0 + $0x10] sm:$0xff]
  %v35 = vld [vmem:[%s0 + $0x18] sm:$0xff]
  %36 = vadd.xlane.f32.xlu0 %v32
  %v37 = vpop.xlane.xlu0 %36
  %38 = vadd.xlane.f32.xlu0 %v33
  %v39 = vpop.xlane.xlu0 %38
  %40 = vadd.xlane.f32.xlu0 %v34
  %v41 = vpop.xlane.xlu0 %40
  %42 = vadd.xlane.f32.xlu0 %v35
  %v43 = vpop.xlane.xlu0 %42
  %v44 = vmul.f32 %v37, 0.015625
  %v45 = vmul.f32 %v39, 0.015625
  %v46 = vmul.f32 %v41, 0.015625
  %v47 = vmul.f32 %v43, 0.015625
  %v48 = vmul.f32 %v32, %v32
  %v49 = vmul.f32 %v33, %v33
  %v50 = vmul.f32 %v34, %v34
  %v51 = vmul.f32 %v35, %v35
  %52 = vadd.xlane.f32.xlu0 %v48
  %v53 = vpop.xlane.xlu0 %52
  %54 = vadd.xlane.f32.xlu0 %v49
  %v55 = vpop.xlane.xlu0 %54
  %56 = vadd.xlane.f32.xlu0 %v50
  %v57 = vpop.xlane.xlu0 %56
  %58 = vadd.xlane.f32.xlu0 %v51
  %v59 = vpop.xlane.xlu0 %58
  %v60 = vmul.f32 %v53, 0.015625
  %v61 = vmul.f32 %v55, 0.015625
  %v62 = vmul.f32 %v57, 0.015625
  %v63 = vmul.f32 %v59, 0.015625
  %v64 = vmul.f32 %v44, %v44
  %v65 = vmul.f32 %v45, %v45
  %v66 = vmul.f32 %v46, %v46
  %v67 = vmul.f32 %v47, %v47
  %v68 = vsub.f32 %v60, %v64
  %v69 = vsub.f32 %v61, %v65
  %v70 = vsub.f32 %v62, %v66
  %v71 = vsub.f32 %v63, %v67
  %v72 = vsub.f32 %v32, %v44
  %v73 = vsub.f32 %v33, %v45
  %v74 = vsub.f32 %v34, %v46
  %v75 = vsub.f32 %v35, %v47
  %v76 = vadd.f32 %v68, 1e-05
  %v77 = vadd.f32 %v69, 1e-05
  %v78 = vadd.f32 %v70, 1e-05
  %v79 = vadd.f32 %v71, 1e-05
  %v80 = vrsqrt.pop %v76
  %v81 = vmul.f32 %v80, %v76
  %v82 = vmul.f32 %v81, %v80
  %v83 = vmul.f32 0.5, %v82
  %v84 = vsub.f32 1.5, %v83
  %v85 = vmul.f32 %v80, %v84
  %vm86 = vweird.f32 %v76
  %vm87 = vweird.f32 %v80
  %vm88 = vmor %vm86, %vm87
  %v89 = vsel %vm88, %v80, %v85
  %v90 = vrsqrt.pop %v77
  %v91 = vmul.f32 %v90, %v77
  %v92 = vmul.f32 %v91, %v90
  %v93 = vmul.f32 0.5, %v92
  %v94 = vsub.f32 1.5, %v93
  %v95 = vmul.f32 %v90, %v94
  %vm96 = vweird.f32 %v77
  %vm97 = vweird.f32 %v90
  %vm98 = vmor %vm96, %vm97
  %v99 = vsel %vm98, %v90, %v95
  %v100 = vrsqrt.pop %v78
  %v101 = vmul.f32 %v100, %v78
  %v102 = vmul.f32 %v101, %v100
  %v103 = vmul.f32 0.5, %v102
  %v104 = vsub.f32 1.5, %v103
  %v105 = vmul.f32 %v100, %v104
  %vm106 = vweird.f32 %v78
  %vm107 = vweird.f32 %v100
  %vm108 = vmor %vm106, %vm107
  %v109 = vsel %vm108, %v100, %v105
  %v110 = vrsqrt.pop %v79
  %v111 = vmul.f32 %v110, %v79
  %v112 = vmul.f32 %v111, %v110
  %v113 = vmul.f32 0.5, %v112
  %v114 = vsub.f32 1.5, %v113
  %v115 = vmul.f32 %v110, %v114
  %vm116 = vweird.f32 %v79
  %vm117 = vweird.f32 %v110
  %vm118 = vmor %vm116, %vm117
  %v119 = vsel %vm118, %v110, %v115
  %v120 = vmul.f32 %v72, %v89
  %v121 = vmul.f32 %v73, %v99
  %v122 = vmul.f32 %v74, %v109
  %v123 = vmul.f32 %v75, %v119
  %v124 = vld [vmem:[%s3] sm:$0x1]
  %v126 = vperm.slane %v124, 0
  %v128 = vmul.f32 %v120, %v126
  %v129 = vmul.f32 %v121, %v126
  %v130 = vmul.f32 %v122, %v126
  %v131 = vmul.f32 %v123, %v126
  %v132 = vld [vmem:[%s4] sm:$0x1]
  %v134 = vperm.slane %v132, 0
  %v136 = vadd.f32 %v128, %v134
  %v137 = vadd.f32 %v129, %v134
  %v138 = vadd.f32 %v130, %v134
  %v139 = vadd.f32 %v131, %v134
  %v140 = vld [vmem:[#allocation2] sm:$0xff]
  %v141 = vld [vmem:[#allocation2 + $0x8] sm:$0xff]
  %v142 = vld [vmem:[#allocation2 + $0x10] sm:$0xff]
  %v143 = vld [vmem:[#allocation2 + $0x18] sm:$0xff]
  %v144 = vld [vmem:[#allocation2 + $0x20] sm:$0xff]
  %v145 = vld [vmem:[#allocation2 + $0x28] sm:$0xff]
  %v146 = vld [vmem:[#allocation2 + $0x30] sm:$0xff]
  %v147 = vld [vmem:[#allocation2 + $0x38] sm:$0xff]
  %v148 = vpack.c.bf16 %v137, %v136
  %v149 = vpack.c.bf16 %v139, %v138
  %v150 = vld [vmem:[%s1] sm:$0xff]
  %v151 = vld [vmem:[%s1 + $0x8] sm:$0xff]
  %v152 = vld [vmem:[%s1 + $0x10] sm:$0xff]
  %v153 = vld [vmem:[%s1 + $0x18] sm:$0xff]
  %v154 = vld [vmem:[%s1 + $0x20] sm:$0xff]
  %v155 = vld [vmem:[%s1 + $0x28] sm:$0xff]
  %v156 = vld [vmem:[%s1 + $0x30] sm:$0xff]
  %v157 = vld [vmem:[%s1 + $0x38] sm:$0xff]
  %v158 = vld [vmem:[%s1 + $0x40] sm:$0xff]
  %v159 = vld [vmem:[%s1 + $0x48] sm:$0xff]
  %v160 = vld [vmem:[%s1 + $0x50] sm:$0xff]
  %v161 = vld [vmem:[%s1 + $0x58] sm:$0xff]
  %v162 = vld [vmem:[%s1 + $0x60] sm:$0xff]
  %v163 = vld [vmem:[%s1 + $0x68] sm:$0xff]
  %v164 = vld [vmem:[%s1 + $0x70] sm:$0xff]
  %v165 = vld [vmem:[%s1 + $0x78] sm:$0xff]
  %v182 = vunpack.c.l.b16 %v150
  %v183 = vunpack.c.h.b16 %v150
  %v184 = vunpack.c.l.b16 %v151
  %v185 = vunpack.c.h.b16 %v151
  %v186 = vunpack.c.l.b16 %v152
  %v187 = vunpack.c.h.b16 %v152
  %v188 = vunpack.c.l.b16 %v153
  %v189 = vunpack.c.h.b16 %v153
  %v190 = vunpack.c.l.b16 %v154
  %v191 = vunpack.c.h.b16 %v154
  %v192 = vunpack.c.l.b16 %v155
  %v193 = vunpack.c.h.b16 %v155
  %v194 = vunpack.c.l.b16 %v156
  %v195 = vunpack.c.h.b16 %v156
  %v196 = vunpack.c.l.b16 %v157
  %v197 = vunpack.c.h.b16 %v157
  %v198 = vunpack.c.l.b16 %v158
  %v199 = vunpack.c.h.b16 %v158
  %v200 = vunpack.c.l.b16 %v159
  %v201 = vunpack.c.h.b16 %v159
  %v202 = vunpack.c.l.b16 %v160
  %v203 = vunpack.c.h.b16 %v160
  %v204 = vunpack.c.l.b16 %v161
  %v205 = vunpack.c.h.b16 %v161
  %v206 = vunpack.c.l.b16 %v162
  %v207 = vunpack.c.h.b16 %v162
  %v208 = vunpack.c.l.b16 %v163
  %v209 = vunpack.c.h.b16 %v163
  %v210 = vunpack.c.l.b16 %v164
  %v211 = vunpack.c.h.b16 %v164
  %v212 = vunpack.c.l.b16 %v165
  %v213 = vunpack.c.h.b16 %v165
  %v214 = vpack.c.b16 %v184, %v182
  %v215 = vpack.c.b16 %v185, %v183
  %v216 = vpack.c.b16 %v188, %v186
  %v217 = vpack.c.b16 %v189, %v187
  %v218 = vpack.c.b16 %v192, %v190
  %v219 = vpack.c.b16 %v193, %v191
  %v220 = vpack.c.b16 %v196, %v194
  %v221 = vpack.c.b16 %v197, %v195
  %v222 = vpack.c.b16 %v200, %v198
  %v223 = vpack.c.b16 %v201, %v199
  %v224 = vpack.c.b16 %v204, %v202
  %v225 = vpack.c.b16 %v205, %v203
  %v226 = vpack.c.b16 %v208, %v206
  %v227 = vpack.c.b16 %v209, %v207
  %v228 = vpack.c.b16 %v212, %v210
  %v229 = vpack.c.b16 %v213, %v211
  %246 = vmatpush.bf16.msra.mxu0 %v228
  %247 = vmatpush.bf16.msra.mxu0 %v226
  %248 = vmatpush.bf16.msra.mxu0 %v224
  %249 = vmatpush.bf16.msra.mxu0 %v222
  %250 = vmatpush.bf16.msra.mxu0 %v220
  %251 = vmatpush.bf16.msra.mxu0 %v218
  %252 = vmatpush.bf16.msra.mxu0 %v216
  %253 = vmatpush.bf16.msra.mxu0 %v214
  %254 = vmatmul.bf16.gmra.mxu0 %v148
  %v255 = vpop.f32.mrf.mxu0
  %v256 = vadd.f32 0.0, %v255
  %v257 = vpop.f32.mrf.mxu0
  %v258 = vadd.f32 0.0, %v257
  %259 = vmatmul.bf16.gmra.mxu0 %v149
  %v260 = vpop.f32.mrf.mxu0
  %v261 = vadd.f32 0.0, %v260
  %v262 = vpop.f32.mrf.mxu0
  %v263 = vadd.f32 0.0, %v262
  %264 = vdwg.mxu0
  %265 = vmatpush.bf16.msra.mxu0 %v229
  %266 = vmatpush.bf16.msra.mxu0 %v227
  %267 = vmatpush.bf16.msra.mxu0 %v225
  %268 = vmatpush.bf16.msra.mxu0 %v223
  %269 = vmatpush.bf16.msra.mxu0 %v221
  %270 = vmatpush.bf16.msra.mxu0 %v219
  %271 = vmatpush.bf16.msra.mxu0 %v217
  %272 = vmatpush.bf16.msra.mxu0 %v215
  %273 = vmatmul.bf16.gmra.mxu0 %v148
  %v274 = vpop.f32.mrf.mxu0
  %v275 = vadd.f32 0.0, %v274
  %v276 = vpop.f32.mrf.mxu0
  %v277 = vadd.f32 0.0, %v276
  %278 = vmatmul.bf16.gmra.mxu0 %v149
  %v279 = vpop.f32.mrf.mxu0
  %v280 = vadd.f32 0.0, %v279
  %v281 = vpop.f32.mrf.mxu0
  %v282 = vadd.f32 0.0, %v281
  %283 = vdwg.mxu0
  %v284 = vadd.f32 %v140, %v256
  %v285 = vadd.f32 %v141, %v275
  %v286 = vadd.f32 %v142, %v258
  %v287 = vadd.f32 %v143, %v277
  %v288 = vadd.f32 %v144, %v261
  %v289 = vadd.f32 %v145, %v280
  %v290 = vadd.f32 %v146, %v263
  %v291 = vadd.f32 %v147, %v282
  %292 = vst [vmem:[#allocation2] sm:$0xff] %v284
  %293 = vst [vmem:[#allocation2 + $0x8] sm:$0xff] %v285
  %294 = vst [vmem:[#allocation2 + $0x10] sm:$0xff] %v286
  %295 = vst [vmem:[#allocation2 + $0x18] sm:$0xff] %v287
  %296 = vst [vmem:[#allocation2 + $0x20] sm:$0xff] %v288
  %297 = vst [vmem:[#allocation2 + $0x28] sm:$0xff] %v289
  %298 = vst [vmem:[#allocation2 + $0x30] sm:$0xff] %v290
  %299 = vst [vmem:[#allocation2 + $0x38] sm:$0xff] %v291
  // Predicated region
  $region26: #{upblock_forward.61} parent=0 // pred_check
    %p300 = pneg %p20
  $region27: #{upblock_forward.61} parent=0 // pred_check_branch
    %302 = sbr.rel (%p300) target = $region29
  $region28: #{upblock_forward.61} parent=0 // pred_region
    %v303 = vld [vmem:[#allocation2] sm:$0xff]
    %v304 = vld [vmem:[#allocation2 + $0x8] sm:$0xff]
    %v305 = vld [vmem:[#allocation2 + $0x10] sm:$0xff]
    %v306 = vld [vmem:[#allocation2 + $0x18] sm:$0xff]
    %v307 = vld [vmem:[#allocation2 + $0x20] sm:$0xff]
    %v308 = vld [vmem:[#allocation2 + $0x28] sm:$0xff]
    %v309 = vld [vmem:[#allocation2 + $0x30] sm:$0xff]
    %v310 = vld [vmem:[#allocation2 + $0x38] sm:$0xff]
    %v311 = vld [vmem:[%s2] sm:$0x3]
    %v313 = vperm.slane %v311, 0
    %v314 = vperm.slane %v311, 1
    %v317 = vadd.f32 %v303, %v313
    %v318 = vadd.f32 %v304, %v314
    %v319 = vadd.f32 %v305, %v313
    %v320 = vadd.f32 %v306, %v314
    %v321 = vadd.f32 %v307, %v313
    %v322 = vadd.f32 %v308, %v314
    %v323 = vadd.f32 %v309, %v313
    %v324 = vadd.f32 %v310, %v314
    %325 = vst [vmem:[%s5] sm:$0xff] %v317
    %326 = vst [vmem:[%s5 + $0x8] sm:$0xff] %v318
    %327 = vst [vmem:[%s5 + $0x10] sm:$0xff] %v319
    %328 = vst [vmem:[%s5 + $0x18] sm:$0xff] %v320
    %329 = vst [vmem:[%s5 + $0x20] sm:$0xff] %v321
    %330 = vst [vmem:[%s5 + $0x28] sm:$0xff] %v322
    %331 = vst [vmem:[%s5 + $0x30] sm:$0xff] %v323
    %332 = vst [vmem:[%s5 + $0x38] sm:$0xff] %v324
  $region29: #{upblock_forward.61} parent=0 // pred_fallthru
    _
  // Predicated region
  $region30: #{upblock_forward.61} parent=0 // pred_check
    _
  $region31: #{upblock_forward.61} parent=0 // pred_check_branch
    %334 = sbr.rel (0) target = $region33
  $region32: #{upblock_forward.61} parent=0 // pred_region
    _
  $region33: #{upblock_forward.61} parent=0 // pred_fallthru
    _
  // Predicated region
  $region34: #{upblock_forward.61} parent=0 // pred_check
    _
  $region35: #{upblock_forward.61} parent=0 // pred_check_branch
    %336 = sbr.rel (0) target = $region37
  $region36: #{upblock_forward.61} parent=0 // pred_region
    _
  $region37: #{upblock_forward.61} parent=0 // pred_fallthru
    _

// kernel: upblock_forward.62
$region0: #{upblock_forward.62}
  #allocation0 [shape = 'u32[]', space=smem, size = 0x4, offset = 0x4, fixed_abs, tag = 'smem constant byte address 0x4 - core index']
  #allocation1 [shape = 'u32[72,128]{1,0:T(1,128)}', space=vmem, size = 0x9000, scoped, tag = 'internal scratch']
  %s0 = inlined_call_operand.vmem [shape: f32[16,16,8], index: 0, kind: input, shape index: {}]
  %s1 = inlined_call_operand.vmem [shape: f32[16,16,8], index: 1, kind: input, shape index: {}]
  %s2 = inlined_call_operand.vmem [shape: f32[16,16,8], index: 2, kind: input, shape index: {}]
  %s3 = inlined_call_operand.vmem [shape: f32[16,16,8], index: 3, kind: output, shape index: {}]
  %s4 = sld [smem:[#allocation0]]
  $region45: #{upblock_forward.62} parent=0
    _
  %s6 = ssub.s32 1, %s4
  %s7 = scalar_select 0, %s6, %s4
  loop: start=0, step=1, limit=18
  $region2: #{upblock_forward.62} parent=0 // loop_pre_header
    _
  $region3: #{upblock_forward.62} parent=0 // loop_header
    %s9 = sphi 0, %s13
    %p10 = scmp.ge.s32.totalorder %s9, 18
    %s19 = sphi 0, %s21
    %s22 = sphi 0, %s19
    %s23 = sphi 0, %s22
    %s39 = sphi 0, %s23
    %s45 = sphi 0, %s47
    %s48 = sphi 0, %s45
    %s49 = sphi 0, %s48
    %s65 = sphi 0, %s49
    %s71 = sphi 0, %s73
    %s74 = sphi 0, %s71
    %s75 = sphi 0, %s74
    %s91 = sphi 0, %s75
    %s97 = sphi 0, %s99
    %s100 = sphi 0, %s97
    %s101 = sphi 0, %s100
    %s117 = sphi 0, %s101
  $region4: #{upblock_forward.62} parent=0 // loop_header_branch
    %12 = sbr.rel (%p10) target = $region8
  $region5: #{upblock_forward.62} parent=0 // loop_body
    %s14 = ssub.s32 %s9, 1
    %s15 = ssub.s32 %s9, 2
    %s16 = sadd.s32 %s9, 1
    %s17 = ssub.s32 %s9, %s16
    %p18 = scmp.eq.s32.totalorder %s17, 0
    %s20 = sadd.s32 %s19, 1
    %s21 = scalar_select %p18, %s19, %s20
    %p24 = pneg %p18
    %p25 = scmp.eq.s32.totalorder %s9, 15
    %p26 = por %p24, %p25
    %p27 = scmp.ne.s32.totalorder %s19, %s22
    %p28 = scmp.eq.s32.totalorder %s9, 0
    %p29 = por %p27, %p28
    %p30 = scmp.ne.s32.totalorder %s19, %s22
    %p31 = scmp.eq.s32.totalorder %s14, 15
    %p32 = por %p30, %p31
    %p33 = scmp.ne.s32.totalorder %s22, %s23
    %p34 = scmp.eq.s32.totalorder %s14, 0
    %p35 = por %p33, %p34
    %p36 = scmp.ne.s32.totalorder %s22, %s23
    %p37 = scmp.eq.s32.totalorder %s15, 15
    %p38 = por %p36, %p37
    %p40 = scmp.ne.s32.totalorder %s23, %s39
    %p41 = scmp.eq.s32.totalorder %s15, 0
    %p42 = por %p40, %p41
    %s43 = ssub.s32 %s9, %s16
    %p44 = scmp.eq.s32.totalorder %s43, 0
    %s46 = sadd.s32 %s45, 1
    %s47 = scalar_select %p44, %s45, %s46
    %p50 = pneg %p44
    %p51 = scmp.eq.s32.totalorder %s9, 15
    %p52 = por %p50, %p51
    %p53 = scmp.ne.s32.totalorder %s45, %s48
    %p54 = scmp.eq.s32.totalorder %s9, 0
    %p55 = por %p53, %p54
    %p56 = scmp.ne.s32.totalorder %s45, %s48
    %p57 = scmp.eq.s32.totalorder %s14, 15
    %p58 = por %p56, %p57
    %p59 = scmp.ne.s32.totalorder %s48, %s49
    %p60 = scmp.eq.s32.totalorder %s14, 0
    %p61 = por %p59, %p60
    %p62 = scmp.ne.s32.totalorder %s48, %s49
    %p63 = scmp.eq.s32.totalorder %s15, 15
    %p64 = por %p62, %p63
    %p66 = scmp.ne.s32.totalorder %s49, %s65
    %p67 = scmp.eq.s32.totalorder %s15, 0
    %p68 = por %p66, %p67
    %s69 = ssub.s32 %s9, %s16
    %p70 = scmp.eq.s32.totalorder %s69, 0
    %s72 = sadd.s32 %s71, 1
    %s73 = scalar_select %p70, %s71, %s72
    %p76 = pneg %p70
    %p77 = scmp.eq.s32.totalorder %s9, 15
    %p78 = por %p76, %p77
    %p79 = scmp.ne.s32.totalorder %s71, %s74
    %p80 = scmp.eq.s32.totalorder %s9, 0
    %p81 = por %p79, %p80
    %p82 = scmp.ne.s32.totalorder %s71, %s74
    %p83 = scmp.eq.s32.totalorder %s14, 15
    %p84 = por %p82, %p83
    %p85 = scmp.ne.s32.totalorder %s74, %s75
    %p86 = scmp.eq.s32.totalorder %s14, 0
    %p87 = por %p85, %p86
    %p88 = scmp.ne.s32.totalorder %s74, %s75
    %p89 = scmp.eq.s32.totalorder %s15, 15
    %p90 = por %p88, %p89
    %p92 = scmp.ne.s32.totalorder %s75, %s91
    %p93 = scmp.eq.s32.totalorder %s15, 0
    %p94 = por %p92, %p93
    %s95 = ssub.s32 %s9, %s16
    %p96 = scmp.eq.s32.totalorder %s95, 0
    %s98 = sadd.s32 %s97, 1
    %s99 = scalar_select %p96, %s97, %s98
    %p102 = pneg %p96
    %p103 = scmp.eq.s32.totalorder %s9, 15
    %p104 = por %p102, %p103
    %p105 = scmp.ne.s32.totalorder %s97, %s100
    %p106 = scmp.eq.s32.totalorder %s9, 0
    %p107 = por %p105, %p106
    %p108 = scmp.ne.s32.totalorder %s97, %s100
    %p109 = scmp.eq.s32.totalorder %s14, 15
    %p110 = por %p108, %p109
    %p111 = scmp.ne.s32.totalorder %s100, %s101
    %p112 = scmp.eq.s32.totalorder %s14, 0
    %p113 = por %p111, %p112
    %p114 = scmp.ne.s32.totalorder %s100, %s101
    %p115 = scmp.eq.s32.totalorder %s15, 15
    %p116 = por %p114, %p115
    %p118 = scmp.ne.s32.totalorder %s101, %s117
    %p119 = scmp.eq.s32.totalorder %s15, 0
    %p120 = por %p118, %p119
    %p121 = scmp.le.s32.totalorder 1, %s9
    %p122 = scmp.lt.s32.totalorder %s9, 17
    %p123 = pnand %p121, %p122
    %p124 = pneg %p123
    // Predicated region
    $region9: #{upblock_forward.62} parent=5 // pred_check
      _
    $region10: #{upblock_forward.62} parent=5 // pred_check_branch
      %126 = sbr.rel (%p123) target = $region12
    $region11: #{upblock_forward.62} parent=5 // pred_region
      %s127 = ssub.s32 %s9, 1
    $region12: #{upblock_forward.62} parent=5 // pred_fallthru
      _
    %p128 = scmp.lt.s32.totalorder %s9, 16
    // Predicated region
    $region13: #{upblock_forward.62} parent=5 // pred_check
      %p129 = pneg %p128
    $region14: #{upblock_forward.62} parent=5 // pred_check_branch
      %131 = sbr.rel (%p129) target = $region16
    $region15: #{upblock_forward.62} parent=5 // pred_region
      // Predicated region
      $region17: #{upblock_forward.62} parent=15 // pred_check
        %p132 = pneg %p29
      $region18: #{upblock_forward.62} parent=15 // pred_check_branch
        %134 = sbr.rel (%p132) target = $region20
      $region19: #{upblock_forward.62} parent=15 // pred_region
        %p135 = scmp.lt.s32.totalorder %s9, 15
        %s136 = scalar_select %p135, %s9, 15
        %s137 = smul.addr %s136, 2
        %s138 = smul.addr %s137, 8
        %s139 = scalar_lea.vmem %s0, %s138
      $region20: #{upblock_forward.62} parent=15 // pred_fallthru
        _
      // Predicated region
      $region21: #{upblock_forward.62} parent=15 // pred_check
        %p140 = pneg %p55
      $region22: #{upblock_forward.62} parent=15 // pred_check_branch
        %142 = sbr.rel (%p140) target = $region24
      $region23: #{upblock_forward.62} parent=15 // pred_region
        %p143 = scmp.lt.s32.totalorder %s9, 15
        %s144 = scalar_select %p143, %s9, 15
        %s145 = smul.addr %s144, 2
        %s146 = smul.addr %s145, 8
        %s147 = scalar_lea.vmem %s1, %s146
      $region24: #{upblock_forward.62} parent=15 // pred_fallthru
        _
      // Predicated region
      $region25: #{upblock_forward.62} parent=15 // pred_check
        %p148 = pneg %p81
      $region26: #{upblock_forward.62} parent=15 // pred_check_branch
        %150 = sbr.rel (%p148) target = $region28
      $region27: #{upblock_forward.62} parent=15 // pred_region
        %p151 = scmp.lt.s32.totalorder %s9, 15
        %s152 = scalar_select %p151, %s9, 15
        %s153 = smul.addr %s152, 2
        %s154 = smul.addr %s153, 8
        %s155 = scalar_lea.vmem %s2, %s154
      $region28: #{upblock_forward.62} parent=15 // pred_fallthru
        _
    $region16: #{upblock_forward.62} parent=5 // pred_fallthru
      _
    %p156 = scmp.le.s32.totalorder 1, %s9
    %p157 = scmp.lt.s32.totalorder %s9, 17
    %p158 = pnand %p156, %p157
    %p159 = pneg %p158
    // Predicated region
    $region29: #{upblock_forward.62} parent=5 // pred_check
      _
    $region30: #{upblock_forward.62} parent=5 // pred_check_branch
      %161 = sbr.rel (%p158) target = $region32
    $region31: #{upblock_forward.62} parent=5 // pred_region
      %s162 = ssub.s32 %s9, 1
      %p163 = scmp.lt.s32.totalorder %s14, 15
      %s164 = scalar_select %p163, %s14, 15
      %s165 = smul.addr %s164, 2
      %s166 = smul.addr %s165, 8
      %s167 = scalar_lea.vmem %s0, %s166
      %p168 = pneg %p35
      %p169 = pneg %p32
      %p170 = scmp.lt.s32.totalorder %s14, 15
      %s171 = scalar_select %p170, %s14, 15
      %s172 = smul.addr %s171, 2
      %s173 = smul.addr %s172, 8
      %s174 = scalar_lea.vmem %s1, %s173
      %p175 = pneg %p61
      %p176 = pneg %p58
      %p177 = scmp.lt.s32.totalorder %s14, 15
      %s178 = scalar_select %p177, %s14, 15
      %s179 = smul.addr %s178, 2
      %s180 = smul.addr %s179, 8
      %s181 = scalar_lea.vmem %s2, %s180
      %p182 = pneg %p87
      %p183 = pneg %p84
      %p184 = pneg %p113
      %p185 = pneg %p110
      %p186 = scmp.lt.s32.totalorder %s14, 15
      %s187 = scalar_select %p186, %s14, 15
      %s188 = smul.addr %s187, 2
      %s189 = smul.addr %s188, 8
      %s190 = scalar_lea.vmem %s3, %s189
      %p191 = scmp.lt.s32.totalorder %s14, 15
      %s192 = scalar_select %p191, %s14, 15
      %s193 = smul.addr %s192, 2
      %s194 = smul.addr %s193, 8
      %s195 = scalar_lea.vmem %s0, %s194
      %p196 = scmp.lt.s32.totalorder %s14, 15
      %s197 = scalar_select %p196, %s14, 15
      %s198 = smul.addr %s197, 2
      %s199 = smul.addr %s198, 8
      %s200 = scalar_lea.vmem %s1, %s199
      %p201 = scmp.lt.s32.totalorder %s14, 15
      %s202 = scalar_select %p201, %s14, 15
      %s203 = smul.addr %s202, 2
      %s204 = smul.addr %s203, 8
      %s205 = scalar_lea.vmem %s2, %s204
      %p206 = scmp.lt.s32.totalorder %s14, 15
      %s207 = scalar_select %p206, %s14, 15
      %s208 = smul.addr %s207, 2
      %s209 = smul.addr %s208, 8
      %s210 = scalar_lea.vmem %s3, %s209
      %v212 = vld [vmem:[%s195] sm:$0xff]
      %v213 = vld [vmem:[%s195 + $0x8] sm:$0xff]
      %v214 = vpack.c.bf16 %v212, %v212
      %v215 = vpack.c.bf16 %v213, %v213
      %v216 = vld [vmem:[%s200] sm:$0xff]
      %v217 = vld [vmem:[%s200 + $0x8] sm:$0xff]
      %v218 = vpack.c.bf16 %v216, %v216
      %v219 = vpack.c.bf16 %v217, %v217
      %v220 = vld [vmem:[%s205] sm:$0xff]
      %v221 = vld [vmem:[%s205 + $0x8] sm:$0xff]
      %v222 = vpack.c.bf16 %v220, %v220
      %v223 = vpack.c.bf16 %v221, %v221
      %v226 = vunpack.c.l.b16 %v214
      %v227 = vunpack.c.l.b16 %v215
      %v228 = vpack.c.b16 %v227, %v226
      %v231 = vunpack.c.l.b16 %v218
      %v232 = vunpack.c.l.b16 %v219
      %v233 = vpack.c.b16 %v232, %v231
      %vm234 = vcmask 64512
      %v236 = vsel %vm234, %v228, 0
      %v239 = vsel %vm234, %v233, 0
      %241 = vmatpush.bf16.xpose.msra.mxu0 0
      %242 = vmatpush.bf16.xpose.msra.mxu0 0
      %243 = vmatpush.bf16.xpose.msra.mxu0 0
      %244 = vmatpush.bf16.xpose.msra.mxu0 0
      %245 = vmatpush.bf16.xpose.msra.mxu0 0
      %246 = vmatpush.bf16.xpose.msra.mxu0 0
      %247 = vmatpush.bf16.xpose.msra.mxu0 0
      %248 = vmatpush.bf16.xpose.msra.mxu0 %v239
      %249 = vmatmul.bf16.gmra.mxu0 %v236
      %v250 = vpop.f32.mrf.mxu0
      %v251 = vadd.f32 0.0, %v250
      %v252 = vpop.f32.mrf.mxu0
      %v253 = vadd.f32 0.0, %v252
      %254 = vdwg.mxu0
      %v255 = vmul.f32 %v251, 0.35355338
      %v256 = vmul.f32 %v253, 0.35355338
      %vm257 = vcmask 130048
      %v258 = vsel %vm257, %v255, -inf
      %259 = vmax.xlane.f32.xlu0 %v258
      %v260 = vpop.xlane.xlu0 %259
      %v261 = vsel %vm257, %v256, -inf
      %262 = vmax.xlane.f32.xlu0 %v261
      %v263 = vpop.xlane.xlu0 %262
      %v264 = vsub.f32 %v255, %v260
      %v265 = vsub.f32 %v256, %v263
      %v266 = vmul.f32 %v264, 1.442695
      %v267 = vpow.pop %v266
      %v268 = vmul.f32 %v265, 1.442695
      %v269 = vpow.pop %v268
      %v270 = vsel %vm257, %v267, 0.0
      %271 = vadd.xlane.f32.xlu0 %v270
      %v272 = vpop.xlane.xlu0 %271
      %v273 = vsel %vm257, %v269, 0.0
      %274 = vadd.xlane.f32.xlu0 %v273
      %v275 = vpop.xlane.xlu0 %274
      %v276 = vrcp.pop %v272
      %v277 = vrcp.pop %v275
      %v278 = vmul.f32 %v267, %v276
      %v279 = vmul.f32 %v269, %v277
      %v280 = vpack.c.bf16 %v278, %v278
      %v281 = vpack.c.bf16 %v279, %v279
      %v284 = vunpack.c.l.b16 %v280
      %v285 = vunpack.c.l.b16 %v281
      %v286 = vpack.c.b16 %v285, %v284
      %v289 = vunpack.c.l.b16 %v222
      %v290 = vunpack.c.l.b16 %v223
      %v291 = vpack.c.b16 %v290, %v289
      %v294 = vsel %vm257, %v286, 0
      %296 = vmatpush.bf16.msra.mxu0 0
      %297 = vmatpush.bf16.msra.mxu0 0
      %298 = vmatpush.bf16.msra.mxu0 0
      %299 = vmatpush.bf16.msra.mxu0 0
      %300 = vmatpush.bf16.msra.mxu0 0
      %301 = vmatpush.bf16.msra.mxu0 0
      %302 = vmatpush.bf16.msra.mxu0 0
      %303 = vmatpush.bf16.msra.mxu0 %v291
      %304 = vmatmul.bf16.gmra.mxu0 %v294
      %v305 = vpop.f32.mrf.mxu0
      %v306 = vadd.f32 0.0, %v305
      %v307 = vpop.f32.mrf.mxu0
      %v308 = vadd.f32 0.0, %v307
      %309 = vdwg.mxu0
      %310 = vst.msk [vmem:[%s210] sm:$0xff] %vm234, %v306
      %311 = vst.msk [vmem:[%s210 + $0x8] sm:$0xff] %vm234, %v308
      %p312 = scmp.lt.s32.totalorder %s14, 15
      %s313 = scalar_select %p312, %s14, 15
      %s314 = smul.addr %s313, 2
      %s315 = smul.addr %s314, 8
      %s316 = scalar_lea.vmem %s3, %s315
      // Predicated region
      $region33: #{upblock_forward.62} parent=31 // pred_check
        %p317 = pneg %p110
      $region34: #{upblock_forward.62} parent=31 // pred_check_branch
        %319 = sbr.rel (%p317) target = $region36
      $region35: #{upblock_forward.62} parent=31 // pred_region
        _
      $region36: #{upblock_forward.62} parent=31 // pred_fallthru
        _
    $region32: #{upblock_forward.62} parent=5 // pred_fallthru
      _
    %p320 = scmp.le.s32.totalorder 2, %s9
    // Predicated region
    $region37: #{upblock_forward.62} parent=5 // pred_check
      %p321 = pneg %p320
    $region38: #{upblock_forward.62} parent=5 // pred_check_branch
      %323 = sbr.rel (%p321) target = $region40
    $region39: #{upblock_forward.62} parent=5 // pred_region
      %s324 = ssub.s32 %s9, 2
      // Predicated region
      $region41: #{upblock_forward.62} parent=39 // pred_check
        %p325 = pneg %p116
      $region42: #{upblock_forward.62} parent=39 // pred_check_branch
        %327 = sbr.rel (%p325) target = $region44
      $region43: #{upblock_forward.62} parent=39 // pred_region
        %p328 = scmp.lt.s32.totalorder %s15, 15
        %s329 = scalar_select %p328, %s15, 15
        %s330 = smul.addr %s329, 2
        %s331 = smul.addr %s330, 8
        %s332 = scalar_lea.vmem %s3, %s331
      $region44: #{upblock_forward.62} parent=39 // pred_fallthru
        _
    $region40: #{upblock_forward.62} parent=5 // pred_fallthru
      _
  $region6: #{upblock_forward.62} parent=0 // loop_footer
    %s13 = sadd.s32 1, %s9
  $region7: #{upblock_forward.62} parent=0 // loop_footer_branch
    %8 = sbr.rel target = $region3
  $region8: #{upblock_forward.62} parent=0 // loop_exit
    _

// kernel: upblock_forward.63
$region0: #{upblock_forward.63}
  #allocation0 [shape = 'u32[]', space=smem, size = 0x4, offset = 0x4, fixed_abs, tag = 'smem constant byte address 0x4 - core index']
  #allocation1 [shape = 'u32[72,128]{1,0:T(1,128)}', space=vmem, size = 0x9000, scoped, tag = 'internal scratch']
  #allocation2 [shape = 'f32[32,128]{1,0:T(8,128)}', space=vmem, size = 0x4000, scoped, tag = 'scratch operand']
  %s0 = inlined_call_operand.vmem [shape: f32[32,128], index: 0, kind: input, shape index: {}]
  %s1 = inlined_call_operand.vmem [shape: bf16[128,128], index: 1, kind: input, shape index: {}]
  %s2 = inlined_call_operand.vmem [shape: f32[1,128], index: 2, kind: input, shape index: {}]
  %s3 = inlined_call_operand.vmem [shape: f32[32,128], index: 3, kind: input, shape index: {}]
  %s4 = inlined_call_operand.vmem [shape: f32[32,128], index: 4, kind: output, shape index: {}]
  %s5 = sld [smem:[#allocation0]]
  $region34: #{upblock_forward.63} parent=0
    _
  %s7 = ssub.s32 1, %s5
  %s8 = scalar_select 0, %s7, %s5
  // Predicated region
  $region2: #{upblock_forward.63} parent=0 // pred_check
    _
  $region3: #{upblock_forward.63} parent=0 // pred_check_branch
    %10 = sbr.rel (0) target = $region5
  $region4: #{upblock_forward.63} parent=0 // pred_region
    _
  $region5: #{upblock_forward.63} parent=0 // pred_fallthru
    _
  // Predicated region
  $region6: #{upblock_forward.63} parent=0 // pred_check
    _
  $region7: #{upblock_forward.63} parent=0 // pred_check_branch
    %12 = sbr.rel (0) target = $region9
  $region8: #{upblock_forward.63} parent=0 // pred_region
    _
  $region9: #{upblock_forward.63} parent=0 // pred_fallthru
    _
  // Predicated region
  $region10: #{upblock_forward.63} parent=0 // pred_check
    _
  $region11: #{upblock_forward.63} parent=0 // pred_check_branch
    %14 = sbr.rel (0) target = $region13
  $region12: #{upblock_forward.63} parent=0 // pred_region
    _
  $region13: #{upblock_forward.63} parent=0 // pred_fallthru
    _
  // Predicated region
  $region14: #{upblock_forward.63} parent=0 // pred_check
    _
  $region15: #{upblock_forward.63} parent=0 // pred_check_branch
    %16 = sbr.rel (0) target = $region17
  $region16: #{upblock_forward.63} parent=0 // pred_region
    _
  $region17: #{upblock_forward.63} parent=0 // pred_fallthru
    _
  %p17 = scmp.eq.s32.totalorder 0, 0
  // Predicated region
  $region18: #{upblock_forward.63} parent=0 // pred_check
    %p18 = pneg %p17
  $region19: #{upblock_forward.63} parent=0 // pred_check_branch
    %20 = sbr.rel (%p18) target = $region21
  $region20: #{upblock_forward.63} parent=0 // pred_region
    %21 = vst [vmem:[#allocation2] sm:$0xff] 0.0
    %22 = vst [vmem:[#allocation2 + $0x8] sm:$0xff] 0.0
    %23 = vst [vmem:[#allocation2 + $0x10] sm:$0xff] 0.0
    %24 = vst [vmem:[#allocation2 + $0x18] sm:$0xff] 0.0
  $region21: #{upblock_forward.63} parent=0 // pred_fallthru
    _
  %v25 = vld [vmem:[%s0] sm:$0xff]
  %v26 = vld [vmem:[%s0 + $0x8] sm:$0xff]
  %v27 = vld [vmem:[%s0 + $0x10] sm:$0xff]
  %v28 = vld [vmem:[%s0 + $0x18] sm:$0xff]
  %v29 = vld [vmem:[#allocation2] sm:$0xff]
  %v30 = vld [vmem:[#allocation2 + $0x8] sm:$0xff]
  %v31 = vld [vmem:[#allocation2 + $0x10] sm:$0xff]
  %v32 = vld [vmem:[#allocation2 + $0x18] sm:$0xff]
  %v33 = vpack.c.bf16 %v26, %v25
  %v34 = vpack.c.bf16 %v28, %v27
  %v35 = vld [vmem:[%s1] sm:$0xf]
  %v36 = vld [vmem:[%s1 + $0x4] sm:$0xf]
  %v37 = vld [vmem:[%s1 + $0x8] sm:$0xf]
  %v38 = vld [vmem:[%s1 + $0xc] sm:$0xf]
  %v39 = vld [vmem:[%s1 + $0x10] sm:$0xf]
  %v40 = vld [vmem:[%s1 + $0x14] sm:$0xf]
  %v41 = vld [vmem:[%s1 + $0x18] sm:$0xf]
  %v42 = vld [vmem:[%s1 + $0x1c] sm:$0xf]
  %v43 = vld [vmem:[%s1 + $0x20] sm:$0xf]
  %v44 = vld [vmem:[%s1 + $0x24] sm:$0xf]
  %v45 = vld [vmem:[%s1 + $0x28] sm:$0xf]
  %v46 = vld [vmem:[%s1 + $0x2c] sm:$0xf]
  %v47 = vld [vmem:[%s1 + $0x30] sm:$0xf]
  %v48 = vld [vmem:[%s1 + $0x34] sm:$0xf]
  %v49 = vld [vmem:[%s1 + $0x38] sm:$0xf]
  %v50 = vld [vmem:[%s1 + $0x3c] sm:$0xf]
  %v67 = vunpack.c.l.b16 %v35
  %v68 = vunpack.c.l.b16 %v36
  %v69 = vunpack.c.l.b16 %v37
  %v70 = vunpack.c.l.b16 %v38
  %v71 = vunpack.c.l.b16 %v39
  %v72 = vunpack.c.l.b16 %v40
  %v73 = vunpack.c.l.b16 %v41
  %v74 = vunpack.c.l.b16 %v42
  %v75 = vunpack.c.l.b16 %v43
  %v76 = vunpack.c.l.b16 %v44
  %v77 = vunpack.c.l.b16 %v45
  %v78 = vunpack.c.l.b16 %v46
  %v79 = vunpack.c.l.b16 %v47
  %v80 = vunpack.c.l.b16 %v48
  %v81 = vunpack.c.l.b16 %v49
  %v82 = vunpack.c.l.b16 %v50
  %v83 = vpack.c.b16 %v68, %v67
  %v84 = vpack.c.b16 %v70, %v69
  %v85 = vpack.c.b16 %v72, %v71
  %v86 = vpack.c.b16 %v74, %v73
  %v87 = vpack.c.b16 %v76, %v75
  %v88 = vpack.c.b16 %v78, %v77
  %v89 = vpack.c.b16 %v80, %v79
  %v90 = vpack.c.b16 %v82, %v81
  %99 = vmatpush.bf16.msra.mxu0 %v90
  %100 = vmatpush.bf16.msra.mxu0 %v89
  %101 = vmatpush.bf16.msra.mxu0 %v88
  %102 = vmatpush.bf16.msra.mxu0 %v87
  %103 = vmatpush.bf16.msra.mxu0 %v86
  %104 = vmatpush.bf16.msra.mxu0 %v85
  %105 = vmatpush.bf16.msra.mxu0 %v84
  %106 = vmatpush.bf16.msra.mxu0 %v83
  %107 = vmatmul.bf16.gmra.mxu0 %v33
  %v108 = vpop.f32.mrf.mxu0
  %v109 = vadd.f32 0.0, %v108
  %v110 = vpop.f32.mrf.mxu0
  %v111 = vadd.f32 0.0, %v110
  %112 = vmatmul.bf16.gmra.mxu0 %v34
  %v113 = vpop.f32.mrf.mxu0
  %v114 = vadd.f32 0.0, %v113
  %v115 = vpop.f32.mrf.mxu0
  %v116 = vadd.f32 0.0, %v115
  %117 = vdwg.mxu0
  %v118 = vadd.f32 %v29, %v109
  %v119 = vadd.f32 %v30, %v111
  %v120 = vadd.f32 %v31, %v114
  %v121 = vadd.f32 %v32, %v116
  %122 = vst [vmem:[#allocation2] sm:$0xff] %v118
  %123 = vst [vmem:[#allocation2 + $0x8] sm:$0xff] %v119
  %124 = vst [vmem:[#allocation2 + $0x10] sm:$0xff] %v120
  %125 = vst [vmem:[#allocation2 + $0x18] sm:$0xff] %v121
  // Predicated region
  $region22: #{upblock_forward.63} parent=0 // pred_check
    %p126 = pneg %p17
  $region23: #{upblock_forward.63} parent=0 // pred_check_branch
    %128 = sbr.rel (%p126) target = $region25
  $region24: #{upblock_forward.63} parent=0 // pred_region
    %v129 = vld [vmem:[#allocation2] sm:$0xff]
    %v130 = vld [vmem:[#allocation2 + $0x8] sm:$0xff]
    %v131 = vld [vmem:[#allocation2 + $0x10] sm:$0xff]
    %v132 = vld [vmem:[#allocation2 + $0x18] sm:$0xff]
    %v133 = vld [vmem:[%s2] sm:$0x1]
    %v135 = vperm.slane %v133, 0
    %v137 = vadd.f32 %v129, %v135
    %v138 = vadd.f32 %v130, %v135
    %v139 = vadd.f32 %v131, %v135
    %v140 = vadd.f32 %v132, %v135
    %v141 = vld [vmem:[%s3] sm:$0xff]
    %v142 = vld [vmem:[%s3 + $0x8] sm:$0xff]
    %v143 = vld [vmem:[%s3 + $0x10] sm:$0xff]
    %v144 = vld [vmem:[%s3 + $0x18] sm:$0xff]
    %v145 = vadd.f32 %v137, %v141
    %v146 = vadd.f32 %v138, %v142
    %v147 = vadd.f32 %v139, %v143
    %v148 = vadd.f32 %v140, %v144
    %149 = vst [vmem:[%s4] sm:$0xff] %v145
    %150 = vst [vmem:[%s4 + $0x8] sm:$0xff] %v146
    %151 = vst [vmem:[%s4 + $0x10] sm:$0xff] %v147
    %152 = vst [vmem:[%s4 + $0x18] sm:$0xff] %v148
  $region25: #{upblock_forward.63} parent=0 // pred_fallthru
    _
  // Predicated region
  $region26: #{upblock_forward.63} parent=0 // pred_check
    _
  $region27: #{upblock_forward.63} parent=0 // pred_check_branch
    %154 = sbr.rel (0) target = $region29
  $region28: #{upblock_forward.63} parent=0 // pred_region
    _
  $region29: #{upblock_forward.63} parent=0 // pred_fallthru
    _
  // Predicated region
  $region30: #{upblock_forward.63} parent=0 // pred_check
    _
  $region31: #{upblock_forward.63} parent=0 // pred_check_branch
    %156 = sbr.rel (0) target = $region33
  $region32: #{upblock_forward.63} parent=0 // pred_region
    _
  $region33: #{upblock_forward.63} parent=0 // pred_fallthru
    _

// kernel: upblock_forward.64
$region0: #{upblock_forward.64}
  #allocation0 [shape = 'u32[]', space=smem, size = 0x4, offset = 0x4, fixed_abs, tag = 'smem constant byte address 0x4 - core index']
  #allocation1 [shape = 'u32[72,128]{1,0:T(1,128)}', space=vmem, size = 0x9000, scoped, tag = 'internal scratch']
  #allocation2 [shape = 'f32[32,128]{1,0:T(8,128)}', space=vmem, size = 0x4000, scoped, tag = 'scratch operand']
  %s0 = inlined_call_operand.vmem [shape: f32[32,128], index: 0, kind: input, shape index: {}]
  %s1 = inlined_call_operand.vmem [shape: bf16[128,128], index: 1, kind: input, shape index: {}]
  %s2 = inlined_call_operand.vmem [shape: f32[1,128], index: 2, kind: input, shape index: {}]
  %s3 = inlined_call_operand.vmem [shape: f32[1,128], index: 3, kind: input, shape index: {}]
  %s4 = inlined_call_operand.vmem [shape: f32[1,128], index: 4, kind: input, shape index: {}]
  %s5 = inlined_call_operand.vmem [shape: f32[32,128], index: 5, kind: output, shape index: {}]
  %s6 = sld [smem:[#allocation0]]
  $region38: #{upblock_forward.64} parent=0
    _
  %s8 = ssub.s32 1, %s6
  %s9 = scalar_select 0, %s8, %s6
  // Predicated region
  $region2: #{upblock_forward.64} parent=0 // pred_check
    _
  $region3: #{upblock_forward.64} parent=0 // pred_check_branch
    %11 = sbr.rel (0) target = $region5
  $region4: #{upblock_forward.64} parent=0 // pred_region
    _
  $region5: #{upblock_forward.64} parent=0 // pred_fallthru
    _
  // Predicated region
  $region6: #{upblock_forward.64} parent=0 // pred_check
    _
  $region7: #{upblock_forward.64} parent=0 // pred_check_branch
    %13 = sbr.rel (0) target = $region9
  $region8: #{upblock_forward.64} parent=0 // pred_region
    _
  $region9: #{upblock_forward.64} parent=0 // pred_fallthru
    _
  // Predicated region
  $region10: #{upblock_forward.64} parent=0 // pred_check
    _
  $region11: #{upblock_forward.64} parent=0 // pred_check_branch
    %15 = sbr.rel (0) target = $region13
  $region12: #{upblock_forward.64} parent=0 // pred_region
    _
  $region13: #{upblock_forward.64} parent=0 // pred_fallthru
    _
  // Predicated region
  $region14: #{upblock_forward.64} parent=0 // pred_check
    _
  $region15: #{upblock_forward.64} parent=0 // pred_check_branch
    %17 = sbr.rel (0) target = $region17
  $region16: #{upblock_forward.64} parent=0 // pred_region
    _
  $region17: #{upblock_forward.64} parent=0 // pred_fallthru
    _
  // Predicated region
  $region18: #{upblock_forward.64} parent=0 // pred_check
    _
  $region19: #{upblock_forward.64} parent=0 // pred_check_branch
    %19 = sbr.rel (0) target = $region21
  $region20: #{upblock_forward.64} parent=0 // pred_region
    _
  $region21: #{upblock_forward.64} parent=0 // pred_fallthru
    _
  %p20 = scmp.eq.s32.totalorder 0, 0
  // Predicated region
  $region22: #{upblock_forward.64} parent=0 // pred_check
    %p21 = pneg %p20
  $region23: #{upblock_forward.64} parent=0 // pred_check_branch
    %23 = sbr.rel (%p21) target = $region25
  $region24: #{upblock_forward.64} parent=0 // pred_region
    %24 = vst [vmem:[#allocation2] sm:$0xff] 0.0
    %25 = vst [vmem:[#allocation2 + $0x8] sm:$0xff] 0.0
    %26 = vst [vmem:[#allocation2 + $0x10] sm:$0xff] 0.0
    %27 = vst [vmem:[#allocation2 + $0x18] sm:$0xff] 0.0
  $region25: #{upblock_forward.64} parent=0 // pred_fallthru
    _
  %v28 = vld [vmem:[%s0] sm:$0xff]
  %v29 = vld [vmem:[%s0 + $0x8] sm:$0xff]
  %v30 = vld [vmem:[%s0 + $0x10] sm:$0xff]
  %v31 = vld [vmem:[%s0 + $0x18] sm:$0xff]
  %32 = vadd.xlane.f32.xlu0 %v28
  %v33 = vpop.xlane.xlu0 %32
  %34 = vadd.xlane.f32.xlu0 %v29
  %v35 = vpop.xlane.xlu0 %34
  %36 = vadd.xlane.f32.xlu0 %v30
  %v37 = vpop.xlane.xlu0 %36
  %38 = vadd.xlane.f32.xlu0 %v31
  %v39 = vpop.xlane.xlu0 %38
  %v40 = vmul.f32 %v33, 0.015625
  %v41 = vmul.f32 %v35, 0.015625
  %v42 = vmul.f32 %v37, 0.015625
  %v43 = vmul.f32 %v39, 0.015625
  %v44 = vmul.f32 %v28, %v28
  %v45 = vmul.f32 %v29, %v29
  %v46 = vmul.f32 %v30, %v30
  %v47 = vmul.f32 %v31, %v31
  %48 = vadd.xlane.f32.xlu0 %v44
  %v49 = vpop.xlane.xlu0 %48
  %50 = vadd.xlane.f32.xlu0 %v45
  %v51 = vpop.xlane.xlu0 %50
  %52 = vadd.xlane.f32.xlu0 %v46
  %v53 = vpop.xlane.xlu0 %52
  %54 = vadd.xlane.f32.xlu0 %v47
  %v55 = vpop.xlane.xlu0 %54
  %v56 = vmul.f32 %v49, 0.015625
  %v57 = vmul.f32 %v51, 0.015625
  %v58 = vmul.f32 %v53, 0.015625
  %v59 = vmul.f32 %v55, 0.015625
  %v60 = vmul.f32 %v40, %v40
  %v61 = vmul.f32 %v41, %v41
  %v62 = vmul.f32 %v42, %v42
  %v63 = vmul.f32 %v43, %v43
  %v64 = vsub.f32 %v56, %v60
  %v65 = vsub.f32 %v57, %v61
  %v66 = vsub.f32 %v58, %v62
  %v67 = vsub.f32 %v59, %v63
  %v68 = vsub.f32 %v28, %v40
  %v69 = vsub.f32 %v29, %v41
  %v70 = vsub.f32 %v30, %v42
  %v71 = vsub.f32 %v31, %v43
  %v72 = vadd.f32 %v64, 1e-05
  %v73 = vadd.f32 %v65, 1e-05
  %v74 = vadd.f32 %v66, 1e-05
  %v75 = vadd.f32 %v67, 1e-05
  %v76 = vrsqrt.pop %v72
  %v77 = vmul.f32 %v76, %v72
  %v78 = vmul.f32 %v77, %v76
  %v79 = vmul.f32 0.5, %v78
  %v80 = vsub.f32 1.5, %v79
  %v81 = vmul.f32 %v76, %v80
  %vm82 = vweird.f32 %v72
  %vm83 = vweird.f32 %v76
  %vm84 = vmor %vm82, %vm83
  %v85 = vsel %vm84, %v76, %v81
  %v86 = vrsqrt.pop %v73
  %v87 = vmul.f32 %v86, %v73
  %v88 = vmul.f32 %v87, %v86
  %v89 = vmul.f32 0.5, %v88
  %v90 = vsub.f32 1.5, %v89
  %v91 = vmul.f32 %v86, %v90
  %vm92 = vweird.f32 %v73
  %vm93 = vweird.f32 %v86
  %vm94 = vmor %vm92, %vm93
  %v95 = vsel %vm94, %v86, %v91
  %v96 = vrsqrt.pop %v74
  %v97 = vmul.f32 %v96, %v74
  %v98 = vmul.f32 %v97, %v96
  %v99 = vmul.f32 0.5, %v98
  %v100 = vsub.f32 1.5, %v99
  %v101 = vmul.f32 %v96, %v100
  %vm102 = vweird.f32 %v74
  %vm103 = vweird.f32 %v96
  %vm104 = vmor %vm102, %vm103
  %v105 = vsel %vm104, %v96, %v101
  %v106 = vrsqrt.pop %v75
  %v107 = vmul.f32 %v106, %v75
  %v108 = vmul.f32 %v107, %v106
  %v109 = vmul.f32 0.5, %v108
  %v110 = vsub.f32 1.5, %v109
  %v111 = vmul.f32 %v106, %v110
  %vm112 = vweird.f32 %v75
  %vm113 = vweird.f32 %v106
  %vm114 = vmor %vm112, %vm113
  %v115 = vsel %vm114, %v106, %v111
  %v116 = vmul.f32 %v68, %v85
  %v117 = vmul.f32 %v69, %v95
  %v118 = vmul.f32 %v70, %v105
  %v119 = vmul.f32 %v71, %v115
  %v120 = vld [vmem:[%s3] sm:$0x1]
  %v122 = vperm.slane %v120, 0
  %v124 = vmul.f32 %v116, %v122
  %v125 = vmul.f32 %v117, %v122
  %v126 = vmul.f32 %v118, %v122
  %v127 = vmul.f32 %v119, %v122
  %v128 = vld [vmem:[%s4] sm:$0x1]
  %v130 = vperm.slane %v128, 0
  %v132 = vadd.f32 %v124, %v130
  %v133 = vadd.f32 %v125, %v130
  %v134 = vadd.f32 %v126, %v130
  %v135 = vadd.f32 %v127, %v130
  %v136 = vld [vmem:[#allocation2] sm:$0xff]
  %v137 = vld [vmem:[#allocation2 + $0x8] sm:$0xff]
  %v138 = vld [vmem:[#allocation2 + $0x10] sm:$0xff]
  %v139 = vld [vmem:[#allocation2 + $0x18] sm:$0xff]
  %v140 = vpack.c.bf16 %v133, %v132
  %v141 = vpack.c.bf16 %v135, %v134
  %v142 = vld [vmem:[%s1] sm:$0xf]
  %v143 = vld [vmem:[%s1 + $0x4] sm:$0xf]
  %v144 = vld [vmem:[%s1 + $0x8] sm:$0xf]
  %v145 = vld [vmem:[%s1 + $0xc] sm:$0xf]
  %v146 = vld [vmem:[%s1 + $0x10] sm:$0xf]
  %v147 = vld [vmem:[%s1 + $0x14] sm:$0xf]
  %v148 = vld [vmem:[%s1 + $0x18] sm:$0xf]
  %v149 = vld [vmem:[%s1 + $0x1c] sm:$0xf]
  %v150 = vld [vmem:[%s1 + $0x20] sm:$0xf]
  %v151 = vld [vmem:[%s1 + $0x24] sm:$0xf]
  %v152 = vld [vmem:[%s1 + $0x28] sm:$0xf]
  %v153 = vld [vmem:[%s1 + $0x2c] sm:$0xf]
  %v154 = vld [vmem:[%s1 + $0x30] sm:$0xf]
  %v155 = vld [vmem:[%s1 + $0x34] sm:$0xf]
  %v156 = vld [vmem:[%s1 + $0x38] sm:$0xf]
  %v157 = vld [vmem:[%s1 + $0x3c] sm:$0xf]
  %v174 = vunpack.c.l.b16 %v142
  %v175 = vunpack.c.l.b16 %v143
  %v176 = vunpack.c.l.b16 %v144
  %v177 = vunpack.c.l.b16 %v145
  %v178 = vunpack.c.l.b16 %v146
  %v179 = vunpack.c.l.b16 %v147
  %v180 = vunpack.c.l.b16 %v148
  %v181 = vunpack.c.l.b16 %v149
  %v182 = vunpack.c.l.b16 %v150
  %v183 = vunpack.c.l.b16 %v151
  %v184 = vunpack.c.l.b16 %v152
  %v185 = vunpack.c.l.b16 %v153
  %v186 = vunpack.c.l.b16 %v154
  %v187 = vunpack.c.l.b16 %v155
  %v188 = vunpack.c.l.b16 %v156
  %v189 = vunpack.c.l.b16 %v157
  %v190 = vpack.c.b16 %v175, %v174
  %v191 = vpack.c.b16 %v177, %v176
  %v192 = vpack.c.b16 %v179, %v178
  %v193 = vpack.c.b16 %v181, %v180
  %v194 = vpack.c.b16 %v183, %v182
  %v195 = vpack.c.b16 %v185, %v184
  %v196 = vpack.c.b16 %v187, %v186
  %v197 = vpack.c.b16 %v189, %v188
  %206 = vmatpush.bf16.msra.mxu0 %v197
  %207 = vmatpush.bf16.msra.mxu0 %v196
  %208 = vmatpush.bf16.msra.mxu0 %v195
  %209 = vmatpush.bf16.msra.mxu0 %v194
  %210 = vmatpush.bf16.msra.mxu0 %v193
  %211 = vmatpush.bf16.msra.mxu0 %v192
  %212 = vmatpush.bf16.msra.mxu0 %v191
  %213 = vmatpush.bf16.msra.mxu0 %v190
  %214 = vmatmul.bf16.gmra.mxu0 %v140
  %v215 = vpop.f32.mrf.mxu0
  %v216 = vadd.f32 0.0, %v215
  %v217 = vpop.f32.mrf.mxu0
  %v218 = vadd.f32 0.0, %v217
  %219 = vmatmul.bf16.gmra.mxu0 %v141
  %v220 = vpop.f32.mrf.mxu0
  %v221 = vadd.f32 0.0, %v220
  %v222 = vpop.f32.mrf.mxu0
  %v223 = vadd.f32 0.0, %v222
  %224 = vdwg.mxu0
  %v225 = vadd.f32 %v136, %v216
  %v226 = vadd.f32 %v137, %v218
  %v227 = vadd.f32 %v138, %v221
  %v228 = vadd.f32 %v139, %v223
  %229 = vst [vmem:[#allocation2] sm:$0xff] %v225
  %230 = vst [vmem:[#allocation2 + $0x8] sm:$0xff] %v226
  %231 = vst [vmem:[#allocation2 + $0x10] sm:$0xff] %v227
  %232 = vst [vmem:[#allocation2 + $0x18] sm:$0xff] %v228
  // Predicated region
  $region26: #{upblock_forward.64} parent=0 // pred_check
    %p233 = pneg %p20
  $region27: #{upblock_forward.64} parent=0 // pred_check_branch
    %235 = sbr.rel (%p233) target = $region29
  $region28: #{upblock_forward.64} parent=0 // pred_region
    %v236 = vld [vmem:[#allocation2] sm:$0xff]
    %v237 = vld [vmem:[#allocation2 + $0x8] sm:$0xff]
    %v238 = vld [vmem:[#allocation2 + $0x10] sm:$0xff]
    %v239 = vld [vmem:[#allocation2 + $0x18] sm:$0xff]
    %v240 = vld [vmem:[%s2] sm:$0x1]
    %v242 = vperm.slane %v240, 0
    %v244 = vadd.f32 %v236, %v242
    %v245 = vadd.f32 %v237, %v242
    %v246 = vadd.f32 %v238, %v242
    %v247 = vadd.f32 %v239, %v242
    %248 = vst [vmem:[%s5] sm:$0xff] %v244
    %249 = vst [vmem:[%s5 + $0x8] sm:$0xff] %v245
    %250 = vst [vmem:[%s5 + $0x10] sm:$0xff] %v246
    %251 = vst [vmem:[%s5 + $0x18] sm:$0xff] %v247
  $region29: #{upblock_forward.64} parent=0 // pred_fallthru
    _
  // Predicated region
  $region30: #{upblock_forward.64} parent=0 // pred_check
    _
  $region31: #{upblock_forward.64} parent=0 // pred_check_branch
    %253 = sbr.rel (0) target = $region33
  $region32: #{upblock_forward.64} parent=0 // pred_region
    _
  $region33: #{upblock_forward.64} parent=0 // pred_fallthru
    _
  // Predicated region
  $region34: #{upblock_forward.64} parent=0 // pred_check
    _
  $region35: #{upblock_forward.64} parent=0 // pred_check_branch
    %255 = sbr.rel (0) target = $region37
  $region36: #{upblock_forward.64} parent=0 // pred_region
    _
  $region37: #{upblock_forward.64} parent=0 // pred_fallthru
    _

// kernel: upblock_forward.65
$region0: #{upblock_forward.65}
  #allocation0 [shape = 'u32[]', space=smem, size = 0x4, offset = 0x4, fixed_abs, tag = 'smem constant byte address 0x4 - core index']
  #allocation1 [shape = 'u32[72,128]{1,0:T(1,128)}', space=vmem, size = 0x9000, scoped, tag = 'internal scratch']
  #allocation2 [shape = 'f32[16,128]{1,0:T(8,128)}', space=vmem, size = 0x2000, scoped, tag = 'scratch operand']
  %s0 = inlined_call_operand.vmem [shape: f32[16,1024], index: 0, kind: input, shape index: {}]
  %s1 = inlined_call_operand.vmem [shape: bf16[1024,128], index: 1, kind: input, shape index: {}]
  %s2 = inlined_call_operand.vmem [shape: f32[1,128], index: 2, kind: input, shape index: {}]
  %s3 = inlined_call_operand.vmem [shape: f32[16,128], index: 3, kind: output, shape index: {}]
  %s4 = sld [smem:[#allocation0]]
  $region76: #{upblock_forward.65} parent=0
    _
  %s6 = ssub.s32 1, %s4
  %s7 = scalar_select 0, %s6, %s4
  $region1: #{upblock_forward.65} parent=0
    #allocation3 [shape = 'u8[65536]{0}', space=vmem, size = 0x10000, scoped, tag = 'input window, operand 0']
    loop: start=0, step=1, limit=4
    $region2: #{upblock_forward.65} parent=1 // loop_pre_header
      _
    $region3: #{upblock_forward.65} parent=1 // loop_header
      %s9 = sphi 0, %s13
      %p10 = scmp.ge.s32.totalorder %s9, 4
      %s16 = sphi 0, %s35
      %s17 = sphi 0, %s31
      %s18 = sphi 0, %s27
      %s19 = sphi 0, %s16
      %s20 = sphi 0, %s17
      %s21 = sphi 0, %s18
      %s22 = sphi 0, %s19
      %s23 = sphi 0, %s20
      %s24 = sphi 0, %s21
      %s40 = sphi 0, %s42
      %s43 = sphi 0, %s40
      %s44 = sphi 0, %s43
      %s60 = sphi 0, %s44
      %s68 = sphi 0, %s70
      %s71 = sphi 0, %s68
      %s72 = sphi 0, %s71
      %s88 = sphi 0, %s72
      %s94 = sphi 0, %s96
      %s97 = sphi 0, %s94
      %s98 = sphi 0, %s97
      %s114 = sphi 0, %s98
      %s122 = sphi 0, %s124
      %s125 = sphi 0, %s122
      %s126 = sphi 0, %s125
      %s142 = sphi 0, %s126
    $region4: #{upblock_forward.65} parent=1 // loop_header_branch
      %12 = sbr.rel (%p10) target = $region8
    $region5: #{upblock_forward.65} parent=1 // loop_body
      %s14 = ssub.s32 %s9, 1
      %s15 = ssub.s32 %s9, 2
      %s25 = sadd.s32 1, %s18
      %p26 = scmp.ge.s32.totalorder %s25, 2
      %s27 = scalar_select %p26, 0, %s25
      %s28 = sadd.s32 1, %s17
      %s29 = scalar_select %p26, %s28, %s17
      %p30 = scmp.ge.s32.totalorder %s29, 1
      %s31 = scalar_select %p30, 0, %s29
      %s32 = sadd.s32 1, %s16
      %s33 = scalar_select %p30, %s32, %s16
      %p34 = scmp.ge.s32.totalorder %s33, 1
      %s35 = scalar_select %p34, 0, %s33
      %s36 = ssub.s32 %s16, %s35
      %s37 = ssub.s32 %s18, %s27
      %s38 = sor.u32 %s36, %s37
      %p39 = scmp.eq.s32.totalorder %s38, 0
      %s41 = sadd.s32 %s40, 1
      %s42 = scalar_select %p39, %s40, %s41
      %p45 = pneg %p39
      %p46 = scmp.eq.s32.totalorder %s9, 1
      %p47 = por %p45, %p46
      %p48 = scmp.ne.s32.totalorder %s40, %s43
      %p49 = scmp.eq.s32.totalorder %s9, 0
      %p50 = por %p48, %p49
      %p51 = scmp.ne.s32.totalorder %s40, %s43
      %p52 = scmp.eq.s32.totalorder %s14, 1
      %p53 = por %p51, %p52
      %p54 = scmp.ne.s32.totalorder %s43, %s44
      %p55 = scmp.eq.s32.totalorder %s14, 0
      %p56 = por %p54, %p55
      %p57 = scmp.ne.s32.totalorder %s43, %s44
      %p58 = scmp.eq.s32.totalorder %s15, 1
      %p59 = por %p57, %p58
      %p61 = scmp.ne.s32.totalorder %s44, %s60
      %p62 = scmp.eq.s32.totalorder %s15, 0
      %p63 = por %p61, %p62
      %s64 = ssub.s32 %s18, %s27
      %s65 = ssub.s32 %s17, %s31
      %s66 = sor.u32 %s64, %s65
      %p67 = scmp.eq.s32.totalorder %s66, 0
      %s69 = sadd.s32 %s68, 1
      %s70 = scalar_select %p67, %s68, %s69
      %p73 = pneg %p67
      %p74 = scmp.eq.s32.totalorder %s9, 1
      %p75 = por %p73, %p74
      %p76 = scmp.ne.s32.totalorder %s68, %s71
      %p77 = scmp.eq.s32.totalorder %s9, 0
      %p78 = por %p76, %p77
      %p79 = scmp.ne.s32.totalorder %s68, %s71
      %p80 = scmp.eq.s32.totalorder %s14, 1
      %p81 = por %p79, %p80
      %p82 = scmp.ne.s32.totalorder %s71, %s72
      %p83 = scmp.eq.s32.totalorder %s14, 0
      %p84 = por %p82, %p83
      %p85 = scmp.ne.s32.totalorder %s71, %s72
      %p86 = scmp.eq.s32.totalorder %s15, 1
      %p87 = por %p85, %p86
      %p89 = scmp.ne.s32.totalorder %s72, %s88
      %p90 = scmp.eq.s32.totalorder %s15, 0
      %p91 = por %p89, %p90
      %s92 = ssub.s32 %s17, %s31
      %p93 = scmp.eq.s32.totalorder %s92, 0
      %s95 = sadd.s32 %s94, 1
      %s96 = scalar_select %p93, %s94, %s95
      %p99 = pneg %p93
      %p100 = scmp.eq.s32.totalorder %s9, 1
      %p101 = por %p99, %p100
      %p102 = scmp.ne.s32.totalorder %s94, %s97
      %p103 = scmp.eq.s32.totalorder %s9, 0
      %p104 = por %p102, %p103
      %p105 = scmp.ne.s32.totalorder %s94, %s97
      %p106 = scmp.eq.s32.totalorder %s14, 1
      %p107 = por %p105, %p106
      %p108 = scmp.ne.s32.totalorder %s97, %s98
      %p109 = scmp.eq.s32.totalorder %s14, 0
      %p110 = por %p108, %p109
      %p111 = scmp.ne.s32.totalorder %s97, %s98
      %p112 = scmp.eq.s32.totalorder %s15, 1
      %p113 = por %p111, %p112
      %p115 = scmp.ne.s32.totalorder %s98, %s114
      %p116 = scmp.eq.s32.totalorder %s15, 0
      %p117 = por %p115, %p116
      %s118 = ssub.s32 %s16, %s35
      %s119 = ssub.s32 %s17, %s31
      %s120 = sor.u32 %s118, %s119
      %p121 = scmp.eq.s32.totalorder %s120, 0
      %s123 = sadd.s32 %s122, 1
      %s124 = scalar_select %p121, %s122, %s123
      %p127 = pneg %p121
      %p128 = scmp.eq.s32.totalorder %s9, 1
      %p129 = por %p127, %p128
      %p130 = scmp.ne.s32.totalorder %s122, %s125
      %p131 = scmp.eq.s32.totalorder %s9, 0
      %p132 = por %p130, %p131
      %p133 = scmp.ne.s32.totalorder %s122, %s125
      %p134 = scmp.eq.s32.totalorder %s14, 1
      %p135 = por %p133, %p134
      %p136 = scmp.ne.s32.totalorder %s125, %s126
      %p137 = scmp.eq.s32.totalorder %s14, 0
      %p138 = por %p136, %p137
      %p139 = scmp.ne.s32.totalorder %s125, %s126
      %p140 = scmp.eq.s32.totalorder %s15, 1
      %p141 = por %p139, %p140
      %p143 = scmp.ne.s32.totalorder %s126, %s142
      %p144 = scmp.eq.s32.totalorder %s15, 0
      %p145 = por %p143, %p144
      %p146 = scmp.le.s32.totalorder 1, %s9
      %p147 = scmp.lt.s32.totalorder %s9, 3
      %p148 = pnand %p146, %p147
      %p149 = pneg %p148
      // Predicated region
      $region9: #{upblock_forward.65} parent=5 // pred_check
        _
      $region10: #{upblock_forward.65} parent=5 // pred_check_branch
        %151 = sbr.rel (%p148) target = $region12
      $region11: #{upblock_forward.65} parent=5 // pred_region
        %s152 = ssub.s32 %s9, 1
        // Predicated region
        $region13: #{upblock_forward.65} parent=11 // pred_check
          %p153 = pneg %p110
        $region14: #{upblock_forward.65} parent=11 // pred_check_branch
          %155 = sbr.rel (%p153) target = $region16
        $region15: #{upblock_forward.65} parent=11 // pred_region
          %p156 = scmp.lt.s32.totalorder %s20, 0
          %s157 = scalar_select %p156, %s20, 0
          %s158 = scalar_lea.vmem %s2, %s157
        $region16: #{upblock_forward.65} parent=11 // pred_fallthru
          _
      $region12: #{upblock_forward.65} parent=5 // pred_fallthru
        _
      %p159 = scmp.lt.s32.totalorder %s9, 2
      // Predicated region
      $region17: #{upblock_forward.65} parent=5 // pred_check
        %p160 = pneg %p159
      $region18: #{upblock_forward.65} parent=5 // pred_check_branch
        %162 = sbr.rel (%p160) target = $region20
      $region19: #{upblock_forward.65} parent=5 // pred_region
        // Predicated region
        $region21: #{upblock_forward.65} parent=19 // pred_check
          %p163 = pneg %p50
        $region22: #{upblock_forward.65} parent=19 // pred_check_branch
          %165 = sbr.rel (%p163) target = $region24
        $region23: #{upblock_forward.65} parent=19 // pred_region
          %s166 = sand.u32 %s40, 1
          %s167 = sand.u32 %s40, 1
          %s168 = smul.addr %s167, 64
          %s169 = scalar_lea.vmem [#allocation3], %s168
          %s170 = smul.u32 2, %s16
          %s171 = smul.u32 4, %s18
          %s172 = smul.addr %s170, 8
          %s173 = sadd.s32 %s171, %s172
          %s174 = smul.addr %s173, 8
          %s175 = scalar_lea.vmem %s0, %s174
          // Predicated region
          $region25: #{upblock_forward.65} parent=23 // pred_check
            _
          $region26: #{upblock_forward.65} parent=23 // pred_check_branch
            %177 = sbr.rel (0) target = $region28
          $region27: #{upblock_forward.65} parent=23 // pred_region
            // Predicated region
            $region29: #{upblock_forward.65} parent=27 // pred_check
              _
            $region30: #{upblock_forward.65} parent=27 // pred_check_branch
              %179 = sbr.rel (0) target = $region32
            $region31: #{upblock_forward.65} parent=27 // pred_region
              loop: start=0, step=1, limit=1
              $region33: #{upblock_forward.65} parent=31 // loop_pre_header
                _
              $region34: #{upblock_forward.65} parent=31 // loop_header
                %s181 = sphi 0, %s185
                %p182 = scmp.ge.s32.totalorder %s181, 1
                %s186 = sphi %s175, %s175
                %s187 = sphi %s169, %s169
              $region35: #{upblock_forward.65} parent=31 // loop_header_branch
                %184 = sbr.rel (%p182) target = $region39
              $region36: #{upblock_forward.65} parent=31 // loop_body
                %v188 = vld [vmem:[%s186] sm:$0xff]
                %189 = vst [vmem:[%s187] sm:$0xff] %v188
                %v190 = vld [vmem:[%s186 + $0x8] sm:$0xff]
                %191 = vst [vmem:[%s187 + $0x8] sm:$0xff] %v190
                %v192 = vld [vmem:[%s186 + $0x10] sm:$0xff]
                %193 = vst [vmem:[%s187 + $0x10] sm:$0xff] %v192
                %v194 = vld [vmem:[%s186 + $0x18] sm:$0xff]
                %195 = vst [vmem:[%s187 + $0x18] sm:$0xff] %v194
                %v196 = vld [vmem:[%s186 + $0x40] sm:$0xff]
                %197 = vst [vmem:[%s187 + $0x20] sm:$0xff] %v196
                %v198 = vld [vmem:[%s186 + $0x48] sm:$0xff]
                %199 = vst [vmem:[%s187 + $0x28] sm:$0xff] %v198
                %v200 = vld [vmem:[%s186 + $0x50] sm:$0xff]
                %201 = vst [vmem:[%s187 + $0x30] sm:$0xff] %v200
                %v202 = vld [vmem:[%s186 + $0x58] sm:$0xff]
                %203 = vst [vmem:[%s187 + $0x38] sm:$0xff] %v202
              $region37: #{upblock_forward.65} parent=31 // loop_footer
                %s185 = sadd.s32 1, %s181
              $region38: #{upblock_forward.65} parent=31 // loop_footer_branch
                %180 = sbr.rel target = $region34
              $region39: #{upblock_forward.65} parent=31 // loop_exit
                _
            $region32: #{upblock_forward.65} parent=27 // pred_fallthru
              _
            // Predicated region
            $region40: #{upblock_forward.65} parent=27 // pred_check
              _
            $region41: #{upblock_forward.65} parent=27 // pred_check_branch
              %205 = sbr.rel target = $region43
            $region42: #{upblock_forward.65} parent=27 // pred_region
              _
            $region43: #{upblock_forward.65} parent=27 // pred_fallthru
              _
          $region28: #{upblock_forward.65} parent=23 // pred_fallthru
            _
          %206 = vnop
        $region24: #{upblock_forward.65} parent=19 // pred_fallthru
          _
        // Predicated region
        $region44: #{upblock_forward.65} parent=19 // pred_check
          %p207 = pneg %p78
        $region45: #{upblock_forward.65} parent=19 // pred_check_branch
          %209 = sbr.rel (%p207) target = $region47
        $region46: #{upblock_forward.65} parent=19 // pred_region
          %s210 = smul.u32 64, %s18
          %p211 = scmp.lt.s32.totalorder %s210, 127
          %s212 = scalar_select %p211, %s210, 127
          %p213 = scmp.lt.s32.totalorder %s17, 0
          %s214 = scalar_select %p213, %s17, 0
          %s215 = sadd.s32 %s214, %s212
          %s216 = smul.addr %s215, 4
          %s217 = scalar_lea.vmem %s1, %s216
          %s218 = smul.u32 64, %s18
        $region47: #{upblock_forward.65} parent=19 // pred_fallthru
          _
      $region20: #{upblock_forward.65} parent=5 // pred_fallthru
        _
      %p219 = scmp.le.s32.totalorder 1, %s9
      %p220 = scmp.lt.s32.totalorder %s9, 3
      %p221 = pnand %p219, %p220
      %p222 = pneg %p221
      // Predicated region
      $region48: #{upblock_forward.65} parent=5 // pred_check
        _
      $region49: #{upblock_forward.65} parent=5 // pred_check_branch
        %224 = sbr.rel (%p221) target = $region51
      $region50: #{upblock_forward.65} parent=5 // pred_region
        %s225 = ssub.s32 %s9, 1
        %s226 = sand.u32 %s43, 1
        %s227 = sand.u32 %s43, 1
        %s228 = smul.addr %s227, 64
        %s229 = scalar_lea.vmem [#allocation3], %s228
        // Predicated region
        $region52: #{upblock_forward.65} parent=50 // pred_check
          %p230 = pneg %p56
        $region53: #{upblock_forward.65} parent=50 // pred_check_branch
          %232 = sbr.rel (%p230) target = $region55
        $region54: #{upblock_forward.65} parent=50 // pred_region
          _
        $region55: #{upblock_forward.65} parent=50 // pred_fallthru
          _
        %s233 = sand.u32 %s43, 1
        %s234 = sand.u32 %s43, 1
        %s235 = smul.addr %s234, 64
        %s236 = scalar_lea.vmem [#allocation3], %s235
        %p237 = pneg %p56
        %p238 = pneg %p53
        %s239 = smul.u32 64, %s21
        %p240 = scmp.lt.s32.totalorder %s239, 127
        %s241 = scalar_select %p240, %s239, 127
        %p242 = scmp.lt.s32.totalorder %s20, 0
        %s243 = scalar_select %p242, %s20, 0
        %s244 = sadd.s32 %s243, %s241
        %s245 = smul.addr %s244, 4
        %s246 = scalar_lea.vmem %s1, %s245
        %p247 = pneg %p84
        %p248 = pneg %p81
        %p249 = scmp.lt.s32.totalorder %s20, 0
        %s250 = scalar_select %p249, %s20, 0
        %s251 = scalar_lea.vmem %s2, %s250
        %p252 = pneg %p110
        %p253 = pneg %p107
        %p254 = pneg %p138
        %p255 = pneg %p135
        %s256 = smul.u32 2, %s19
        %p257 = scmp.lt.s32.totalorder %s256, 1
        %s258 = scalar_select %p257, %s256, 1
        %p259 = scmp.lt.s32.totalorder %s20, 0
        %s260 = scalar_select %p259, %s20, 0
        %s261 = sadd.s32 %s260, %s258
        %s262 = smul.addr %s261, 8
        %s263 = scalar_lea.vmem %s3, %s262
        %s264 = smul.u32 2, %s19
        %s265 = smul.u32 4, %s21
        %s266 = smul.u32 64, %s21
        %p267 = scmp.lt.s32.totalorder %s266, 127
        %s268 = scalar_select %p267, %s266, 127
        %p269 = scmp.lt.s32.totalorder %s20, 0
        %s270 = scalar_select %p269, %s20, 0
        %s271 = sadd.s32 %s270, %s268
        %s272 = smul.addr %s271, 4
        %s273 = scalar_lea.vmem %s1, %s272
        %s274 = smul.u32 64, %s21
        %p275 = scmp.lt.s32.totalorder %s20, 0
        %s276 = scalar_select %p275, %s20, 0
        %s277 = scalar_lea.vmem %s2, %s276
        %s278 = smul.u32 2, %s19
        %p279 = scmp.lt.s32.totalorder %s278, 1
        %s280 = scalar_select %p279, %s278, 1
        %p281 = scmp.lt.s32.totalorder %s20, 0
        %s282 = scalar_select %p281, %s20, 0
        %s283 = sadd.s32 %s282, %s280
        %s284 = smul.addr %s283, 8
        %s285 = scalar_lea.vmem %s3, %s284
        %s286 = smul.u32 2, %s19
        %p287 = scmp.eq.s32.totalorder %s21, 0
        // Predicated region
        $region56: #{upblock_forward.65} parent=50 // pred_check
          %p288 = pneg %p287
        $region57: #{upblock_forward.65} parent=50 // pred_check_branch
          %290 = sbr.rel (%p288) target = $region59
        $region58: #{upblock_forward.65} parent=50 // pred_region
          %291 = vst [vmem:[#allocation2] sm:$0xff] 0.0
          %292 = vst [vmem:[#allocation2 + $0x8] sm:$0xff] 0.0
        $region59: #{upblock_forward.65} parent=50 // pred_fallthru
          _
        %v293 = vld [vmem:[%s229] sm:$0xff]
        %v294 = vld [vmem:[%s229 + $0x8] sm:$0xff]
        %v295 = vld [vmem:[%s229 + $0x10] sm:$0xff]
        %v296 = vld [vmem:[%s229 + $0x18] sm:$0xff]
        %v297 = vld [vmem:[%s229 + $0x20] sm:$0xff]
        %v298 = vld [vmem:[%s229 + $0x28] sm:$0xff]
        %v299 = vld [vmem:[%s229 + $0x30] sm:$0xff]
        %v300 = vld [vmem:[%s229 + $0x38] sm:$0xff]
        %v301 = vld [vmem:[#allocation2] sm:$0xff]
        %v302 = vld [vmem:[#allocation2 + $0x8] sm:$0xff]
        %v303 = vpack.c.bf16 %v297, %v293
        %v304 = vpack.c.bf16 %v298, %v294
        %v305 = vpack.c.bf16 %v299, %v295
        %v306 = vpack.c.bf16 %v300, %v296
        %v307 = vld [vmem:[%s273] sm:$0xf]
        %v308 = vld [vmem:[%s273 + $0x4] sm:$0xf]
        %v309 = vld [vmem:[%s273 + $0x8] sm:$0xf]
        %v310 = vld [vmem:[%s273 + $0xc] sm:$0xf]
        %v311 = vld [vmem:[%s273 + $0x10] sm:$0xf]
        %v312 = vld [vmem:[%s273 + $0x14] sm:$0xf]
        %v313 = vld [vmem:[%s273 + $0x18] sm:$0xf]
        %v314 = vld [vmem:[%s273 + $0x1c] sm:$0xf]
        %v315 = vld [vmem:[%s273 + $0x20] sm:$0xf]
        %v316 = vld [vmem:[%s273 + $0x24] sm:$0xf]
        %v317 = vld [vmem:[%s273 + $0x28] sm:$0xf]
        %v318 = vld [vmem:[%s273 + $0x2c] sm:$0xf]
        %v319 = vld [vmem:[%s273 + $0x30] sm:$0xf]
        %v320 = vld [vmem:[%s273 + $0x34] sm:$0xf]
        %v321 = vld [vmem:[%s273 + $0x38] sm:$0xf]
        %v322 = vld [vmem:[%s273 + $0x3c] sm:$0xf]
        %v323 = vld [vmem:[%s273 + $0x40] sm:$0xf]
        %v324 = vld [vmem:[%s273 + $0x44] sm:$0xf]
        %v325 = vld [vmem:[%s273 + $0x48] sm:$0xf]
        %v326 = vld [vmem:[%s273 + $0x4c] sm:$0xf]
        %v327 = vld [vmem:[%s273 + $0x50] sm:$0xf]
        %v328 = vld [vmem:[%s273 + $0x54] sm:$0xf]
        %v329 = vld [vmem:[%s273 + $0x58] sm:$0xf]
        %v330 = vld [vmem:[%s273 + $0x5c] sm:$0xf]
        %v331 = vld [vmem:[%s273 + $0x60] sm:$0xf]
        %v332 = vld [vmem:[%s273 + $0x64] sm:$0xf]
        %v333 = vld [vmem:[%s273 + $0x68] sm:$0xf]
        %v334 = vld [vmem:[%s273 + $0x6c] sm:$0xf]
        %v335 = vld [vmem:[%s273 + $0x70] sm:$0xf]
        %v336 = vld [vmem:[%s273 + $0x74] sm:$0xf]
        %v337 = vld [vmem:[%s273 + $0x78] sm:$0xf]
        %v338 = vld [vmem:[%s273 + $0x7c] sm:$0xf]
        %v339 = vld [vmem:[%s273 + $0x80] sm:$0xf]
        %v340 = vld [vmem:[%s273 + $0x84] sm:$0xf]
        %v341 = vld [vmem:[%s273 + $0x88] sm:$0xf]
        %v342 = vld [vmem:[%s273 + $0x8c] sm:$0xf]
        %v343 = vld [vmem:[%s273 + $0x90] sm:$0xf]
        %v344 = vld [vmem:[%s273 + $0x94] sm:$0xf]
        %v345 = vld [vmem:[%s273 + $0x98] sm:$0xf]
        %v346 = vld [vmem:[%s273 + $0x9c] sm:$0xf]
        %v347 = vld [vmem:[%s273 + $0xa0] sm:$0xf]
        %v348 = vld [vmem:[%s273 + $0xa4] sm:$0xf]
        %v349 = vld [vmem:[%s273 + $0xa8] sm:$0xf]
        %v350 = vld [vmem:[%s273 + $0xac] sm:$0xf]
        %v351 = vld [vmem:[%s273 + $0xb0] sm:$0xf]
        %v352 = vld [vmem:[%s273 + $0xb4] sm:$0xf]
        %v353 = vld [vmem:[%s273 + $0xb8] sm:$0xf]
        %v354 = vld [vmem:[%s273 + $0xbc] sm:$0xf]
        %v355 = vld [vmem:[%s273 + $0xc0] sm:$0xf]
        %v356 = vld [vmem:[%s273 + $0xc4] sm:$0xf]
        %v357 = vld [vmem:[%s273 + $0xc8] sm:$0xf]
        %v358 = vld [vmem:[%s273 + $0xcc] sm:$0xf]
        %v359 = vld [vmem:[%s273 + $0xd0] sm:$0xf]
        %v360 = vld [vmem:[%s273 + $0xd4] sm:$0xf]
        %v361 = vld [vmem:[%s273 + $0xd8] sm:$0xf]
        %v362 = vld [vmem:[%s273 + $0xdc] sm:$0xf]
        %v363 = vld [vmem:[%s273 + $0xe0] sm:$0xf]
        %v364 = vld [vmem:[%s273 + $0xe4] sm:$0xf]
        %v365 = vld [vmem:[%s273 + $0xe8] sm:$0xf]
        %v366 = vld [vmem:[%s273 + $0xec] sm:$0xf]
        %v367 = vld [vmem:[%s273 + $0xf0] sm:$0xf]
        %v368 = vld [vmem:[%s273 + $0xf4] sm:$0xf]
        %v369 = vld [vmem:[%s273 + $0xf8] sm:$0xf]
        %v370 = vld [vmem:[%s273 + $0xfc] sm:$0xf]
        %v435 = vunpack.c.l.b16 %v307
        %v436 = vunpack.c.l.b16 %v308
        %v437 = vunpack.c.l.b16 %v309
        %v438 = vunpack.c.l.b16 %v310
        %v439 = vunpack.c.l.b16 %v311
        %v440 = vunpack.c.l.b16 %v312
        %v441 = vunpack.c.l.b16 %v313
        %v442 = vunpack.c.l.b16 %v314
        %v443 = vunpack.c.l.b16 %v315
        %v444 = vunpack.c.l.b16 %v316
        %v445 = vunpack.c.l.b16 %v317
        %v446 = vunpack.c.l.b16 %v318
        %v447 = vunpack.c.l.b16 %v319
        %v448 = vunpack.c.l.b16 %v320
        %v449 = vunpack.c.l.b16 %v321
        %v450 = vunpack.c.l.b16 %v322
        %v451 = vunpack.c.l.b16 %v323
        %v452 = vunpack.c.l.b16 %v324
        %v453 = vunpack.c.l.b16 %v325
        %v454 = vunpack.c.l.b16 %v326
        %v455 = vunpack.c.l.b16 %v327
        %v456 = vunpack.c.l.b16 %v328
        %v457 = vunpack.c.l.b16 %v329
        %v458 = vunpack.c.l.b16 %v330
        %v459 = vunpack.c.l.b16 %v331
        %v460 = vunpack.c.l.b16 %v332
        %v461 = vunpack.c.l.b16 %v333
        %v462 = vunpack.c.l.b16 %v334
        %v463 = vunpack.c.l.b16 %v335
        %v464 = vunpack.c.l.b16 %v336
        %v465 = vunpack.c.l.b16 %v337
        %v466 = vunpack.c.l.b16 %v338
        %v467 = vunpack.c.l.b16 %v339
        %v468 = vunpack.c.l.b16 %v340
        %v469 = vunpack.c.l.b16 %v341
        %v470 = vunpack.c.l.b16 %v342
        %v471 = vunpack.c.l.b16 %v343
        %v472 = vunpack.c.l.b16 %v344
        %v473 = vunpack.c.l.b16 %v345
        %v474 = vunpack.c.l.b16 %v346
        %v475 = vunpack.c.l.b16 %v347
        %v476 = vunpack.c.l.b16 %v348
        %v477 = vunpack.c.l.b16 %v349
        %v478 = vunpack.c.l.b16 %v350
        %v479 = vunpack.c.l.b16 %v351
        %v480 = vunpack.c.l.b16 %v352
        %v481 = vunpack.c.l.b16 %v353
        %v482 = vunpack.c.l.b16 %v354
        %v483 = vunpack.c.l.b16 %v355
        %v484 = vunpack.c.l.b16 %v356
        %v485 = vunpack.c.l.b16 %v357
        %v486 = vunpack.c.l.b16 %v358
        %v487 = vunpack.c.l.b16 %v359
        %v488 = vunpack.c.l.b16 %v360
        %v489 = vunpack.c.l.b16 %v361
        %v490 = vunpack.c.l.b16 %v362
        %v491 = vunpack.c.l.b16 %v363
        %v492 = vunpack.c.l.b16 %v364
        %v493 = vunpack.c.l.b16 %v365
        %v494 = vunpack.c.l.b16 %v366
        %v495 = vunpack.c.l.b16 %v367
        %v496 = vunpack.c.l.b16 %v368
        %v497 = vunpack.c.l.b16 %v369
        %v498 = vunpack.c.l.b16 %v370
        %v499 = vpack.c.b16 %v436, %v435
        %v500 = vpack.c.b16 %v438, %v437
        %v501 = vpack.c.b16 %v440, %v439
        %v502 = vpack.c.b16 %v442, %v441
        %v503 = vpack.c.b16 %v444, %v443
        %v504 = vpack.c.b16 %v446, %v445
        %v505 = vpack.c.b16 %v448, %v447
        %v506 = vpack.c.b16 %v450, %v449
        %v507 = vpack.c.b16 %v452, %v451
        %v508 = vpack.c.b16 %v454, %v453
        %v509 = vpack.c.b16 %v456, %v455
        %v510 = vpack.c.b16 %v458, %v457
        %v511 = vpack.c.b16 %v460, %v459
        %v512 = vpack.c.b16 %v462, %v461
        %v513 = vpack.c.b16 %v464, %v463
        %v514 = vpack.c.b16 %v466, %v465
        %v515 = vpack.c.b16 %v468, %v467
        %v516 = vpack.c.b16 %v470, %v469
        %v517 = vpack.c.b16 %v472, %v471
        %v518 = vpack.c.b16 %v474, %v473
        %v519 = vpack.c.b16 %v476, %v475
        %v520 = vpack.c.b16 %v478, %v477
        %v521 = vpack.c.b16 %v480, %v479
        %v522 = vpack.c.b16 %v482, %v481
        %v523 = vpack.c.b16 %v484, %v483
        %v524 = vpack.c.b16 %v486, %v485
        %v525 = vpack.c.b16 %v488, %v487
        %v526 = vpack.c.b16 %v490, %v489
        %v527 = vpack.c.b16 %v492, %v491
        %v528 = vpack.c.b16 %v494, %v493
        %v529 = vpack.c.b16 %v496, %v495
        %v530 = vpack.c.b16 %v498, %v497
        %563 = vmatpush.bf16.msra.mxu0 %v506
        %564 = vmatpush.bf16.msra.mxu0 %v505
        %565 = vmatpush.bf16.msra.mxu0 %v504
        %566 = vmatpush.bf16.msra.mxu0 %v503
        %567 = vmatpush.bf16.msra.mxu0 %v502
        %568 = vmatpush.bf16.msra.mxu0 %v501
        %569 = vmatpush.bf16.msra.mxu0 %v500
        %570 = vmatpush.bf16.msra.mxu0 %v499
        %571 = vmatmul.bf16.gmra.mxu0 %v303
        %v572 = vpop.f32.mrf.mxu0
        %v573 = vadd.f32 0.0, %v572
        %v574 = vpop.f32.mrf.mxu0
        %v575 = vadd.f32 0.0, %v574
        %576 = vdwg.mxu0
        %577 = vmatpush.bf16.msra.mxu0 %v514
        %578 = vmatpush.bf16.msra.mxu0 %v513
        %579 = vmatpush.bf16.msra.mxu0 %v512
        %580 = vmatpush.bf16.msra.mxu0 %v511
        %581 = vmatpush.bf16.msra.mxu0 %v510
        %582 = vmatpush.bf16.msra.mxu0 %v509
        %583 = vmatpush.bf16.msra.mxu0 %v508
        %584 = vmatpush.bf16.msra.mxu0 %v507
        %585 = vmatmul.bf16.gmra.mxu0 %v304
        %v586 = vpop.f32.mrf.mxu0
        %v587 = vadd.f32 %v573, %v586
        %v588 = vpop.f32.mrf.mxu0
        %v589 = vadd.f32 %v575, %v588
        %590 = vdwg.mxu0
        %591 = vmatpush.bf16.msra.mxu0 %v522
        %592 = vmatpush.bf16.msra.mxu0 %v521
        %593 = vmatpush.bf16.msra.mxu0 %v520
        %594 = vmatpush.bf16.msra.mxu0 %v519
        %595 = vmatpush.bf16.msra.mxu0 %v518
        %596 = vmatpush.bf16.msra.mxu0 %v517
        %597 = vmatpush.bf16.msra.mxu0 %v516
        %598 = vmatpush.bf16.msra.mxu0 %v515
        %599 = vmatmul.bf16.gmra.mxu0 %v305
        %v600 = vpop.f32.mrf.mxu0
        %v601 = vadd.f32 %v587, %v600
        %v602 = vpop.f32.mrf.mxu0
        %v603 = vadd.f32 %v589, %v602
        %604 = vdwg.mxu0
        %605 = vmatpush.bf16.msra.mxu0 %v530
        %606 = vmatpush.bf16.msra.mxu0 %v529
        %607 = vmatpush.bf16.msra.mxu0 %v528
        %608 = vmatpush.bf16.msra.mxu0 %v527
        %609 = vmatpush.bf16.msra.mxu0 %v526
        %610 = vmatpush.bf16.msra.mxu0 %v525
        %611 = vmatpush.bf16.msra.mxu0 %v524
        %612 = vmatpush.bf16.msra.mxu0 %v523
        %613 = vmatmul.bf16.gmra.mxu0 %v306
        %v614 = vpop.f32.mrf.mxu0
        %v615 = vadd.f32 %v601, %v614
        %v616 = vpop.f32.mrf.mxu0
        %v617 = vadd.f32 %v603, %v616
        %618 = vdwg.mxu0
        %v619 = vadd.f32 %v301, %v615
        %v620 = vadd.f32 %v302, %v617
        %621 = vst [vmem:[#allocation2] sm:$0xff] %v619
        %622 = vst [vmem:[#allocation2 + $0x8] sm:$0xff] %v620
        %p623 = scmp.eq.s32.totalorder %s21, 1
        // Predicated region
        $region60: #{upblock_forward.65} parent=50 // pred_check
          %p624 = pneg %p623
        $region61: #{upblock_forward.65} parent=50 // pred_check_branch
          %626 = sbr.rel (%p624) target = $region63
        $region62: #{upblock_forward.65} parent=50 // pred_region
          %v627 = vld [vmem:[#allocation2] sm:$0xff]
          %v628 = vld [vmem:[#allocation2 + $0x8] sm:$0xff]
          %v629 = vld [vmem:[%s277] sm:$0x1]
          %v631 = vperm.slane %v629, 0
          %v633 = vadd.f32 %v627, %v631
          %v634 = vadd.f32 %v628, %v631
          %635 = vst [vmem:[%s285] sm:$0xff] %v633
          %636 = vst [vmem:[%s285 + $0x8] sm:$0xff] %v634
        $region63: #{upblock_forward.65} parent=50 // pred_fallthru
          _
        %s637 = smul.u32 2, %s19
        %p638 = scmp.lt.s32.totalorder %s637, 1
        %s639 = scalar_select %p638, %s637, 1
        %p640 = scmp.lt.s32.totalorder %s20, 0
        %s641 = scalar_select %p640, %s20, 0
        %s642 = sadd.s32 %s641, %s639
        %s643 = smul.addr %s642, 8
        %s644 = scalar_lea.vmem %s3, %s643
        // Predicated region
        $region64: #{upblock_forward.65} parent=50 // pred_check
          %p645 = pneg %p135
        $region65: #{upblock_forward.65} parent=50 // pred_check_branch
          %647 = sbr.rel (%p645) target = $region67
        $region66: #{upblock_forward.65} parent=50 // pred_region
          %s648 = smul.u32 2, %s19
        $region67: #{upblock_forward.65} parent=50 // pred_fallthru
          _
        // Predicated region
        $region68: #{upblock_forward.65} parent=50 // pred_check
          %p649 = pneg %p135
        $region69: #{upblock_forward.65} parent=50 // pred_check_branch
          %651 = sbr.rel (%p649) target = $region71
        $region70: #{upblock_forward.65} parent=50 // pred_region
          %s652 = smul.u32 2, %s19
          %p653 = scmp.lt.s32.totalorder %s652, 1
          %s654 = scalar_select %p653, %s652, 1
          %p655 = scmp.lt.s32.totalorder %s20, 0
          %s656 = scalar_select %p655, %s20, 0
          %s657 = sadd.s32 %s656, %s654
          %s658 = smul.addr %s657, 8
          %s659 = scalar_lea.vmem %s3, %s658
        $region71: #{upblock_forward.65} parent=50 // pred_fallthru
          _
      $region51: #{upblock_forward.65} parent=5 // pred_fallthru
        _
      %p660 = scmp.le.s32.totalorder 2, %s9
      // Predicated region
      $region72: #{upblock_forward.65} parent=5 // pred_check
        %p661 = pneg %p660
      $region73: #{upblock_forward.65} parent=5 // pred_check_branch
        %663 = sbr.rel (%p661) target = $region75
      $region74: #{upblock_forward.65} parent=5 // pred_region
        %s664 = ssub.s32 %s9, 2
      $region75: #{upblock_forward.65} parent=5 // pred_fallthru
        _
    $region6: #{upblock_forward.65} parent=1 // loop_footer
      %s13 = sadd.s32 1, %s9
    $region7: #{upblock_forward.65} parent=1 // loop_footer_branch
      %8 = sbr.rel target = $region3
    $region8: #{upblock_forward.65} parent=1 // loop_exit
      _

// kernel: upblock_forward.66
$region0: #{upblock_forward.66}
  #allocation0 [shape = 'u32[]', space=smem, size = 0x4, offset = 0x4, fixed_abs, tag = 'smem constant byte address 0x4 - core index']
  #allocation1 [shape = 'u32[72,128]{1,0:T(1,128)}', space=vmem, size = 0x9000, scoped, tag = 'internal scratch']
  %s0 = inlined_call_operand.vmem [shape: f32[16,16,8], index: 0, kind: input, shape index: {}]
  %s1 = inlined_call_operand.vmem [shape: f32[16,8,8], index: 1, kind: input, shape index: {}]
  %s2 = inlined_call_operand.vmem [shape: f32[16,8,8], index: 2, kind: input, shape index: {}]
  %s3 = inlined_call_operand.vmem [shape: f32[16,16,8], index: 3, kind: output, shape index: {}]
  %s4 = sld [smem:[#allocation0]]
  $region45: #{upblock_forward.66} parent=0
    _
  %s6 = ssub.s32 1, %s4
  %s7 = scalar_select 0, %s6, %s4
  loop: start=0, step=1, limit=18
  $region2: #{upblock_forward.66} parent=0 // loop_pre_header
    _
  $region3: #{upblock_forward.66} parent=0 // loop_header
    %s9 = sphi 0, %s13
    %p10 = scmp.ge.s32.totalorder %s9, 18
    %s19 = sphi 0, %s21
    %s22 = sphi 0, %s19
    %s23 = sphi 0, %s22
    %s39 = sphi 0, %s23
    %s45 = sphi 0, %s47
    %s48 = sphi 0, %s45
    %s49 = sphi 0, %s48
    %s65 = sphi 0, %s49
    %s71 = sphi 0, %s73
    %s74 = sphi 0, %s71
    %s75 = sphi 0, %s74
    %s91 = sphi 0, %s75
    %s97 = sphi 0, %s99
    %s100 = sphi 0, %s97
    %s101 = sphi 0, %s100
    %s117 = sphi 0, %s101
  $region4: #{upblock_forward.66} parent=0 // loop_header_branch
    %12 = sbr.rel (%p10) target = $region8
  $region5: #{upblock_forward.66} parent=0 // loop_body
    %s14 = ssub.s32 %s9, 1
    %s15 = ssub.s32 %s9, 2
    %s16 = sadd.s32 %s9, 1
    %s17 = ssub.s32 %s9, %s16
    %p18 = scmp.eq.s32.totalorder %s17, 0
    %s20 = sadd.s32 %s19, 1
    %s21 = scalar_select %p18, %s19, %s20
    %p24 = pneg %p18
    %p25 = scmp.eq.s32.totalorder %s9, 15
    %p26 = por %p24, %p25
    %p27 = scmp.ne.s32.totalorder %s19, %s22
    %p28 = scmp.eq.s32.totalorder %s9, 0
    %p29 = por %p27, %p28
    %p30 = scmp.ne.s32.totalorder %s19, %s22
    %p31 = scmp.eq.s32.totalorder %s14, 15
    %p32 = por %p30, %p31
    %p33 = scmp.ne.s32.totalorder %s22, %s23
    %p34 = scmp.eq.s32.totalorder %s14, 0
    %p35 = por %p33, %p34
    %p36 = scmp.ne.s32.totalorder %s22, %s23
    %p37 = scmp.eq.s32.totalorder %s15, 15
    %p38 = por %p36, %p37
    %p40 = scmp.ne.s32.totalorder %s23, %s39
    %p41 = scmp.eq.s32.totalorder %s15, 0
    %p42 = por %p40, %p41
    %s43 = ssub.s32 %s9, %s16
    %p44 = scmp.eq.s32.totalorder %s43, 0
    %s46 = sadd.s32 %s45, 1
    %s47 = scalar_select %p44, %s45, %s46
    %p50 = pneg %p44
    %p51 = scmp.eq.s32.totalorder %s9, 15
    %p52 = por %p50, %p51
    %p53 = scmp.ne.s32.totalorder %s45, %s48
    %p54 = scmp.eq.s32.totalorder %s9, 0
    %p55 = por %p53, %p54
    %p56 = scmp.ne.s32.totalorder %s45, %s48
    %p57 = scmp.eq.s32.totalorder %s14, 15
    %p58 = por %p56, %p57
    %p59 = scmp.ne.s32.totalorder %s48, %s49
    %p60 = scmp.eq.s32.totalorder %s14, 0
    %p61 = por %p59, %p60
    %p62 = scmp.ne.s32.totalorder %s48, %s49
    %p63 = scmp.eq.s32.totalorder %s15, 15
    %p64 = por %p62, %p63
    %p66 = scmp.ne.s32.totalorder %s49, %s65
    %p67 = scmp.eq.s32.totalorder %s15, 0
    %p68 = por %p66, %p67
    %s69 = ssub.s32 %s9, %s16
    %p70 = scmp.eq.s32.totalorder %s69, 0
    %s72 = sadd.s32 %s71, 1
    %s73 = scalar_select %p70, %s71, %s72
    %p76 = pneg %p70
    %p77 = scmp.eq.s32.totalorder %s9, 15
    %p78 = por %p76, %p77
    %p79 = scmp.ne.s32.totalorder %s71, %s74
    %p80 = scmp.eq.s32.totalorder %s9, 0
    %p81 = por %p79, %p80
    %p82 = scmp.ne.s32.totalorder %s71, %s74
    %p83 = scmp.eq.s32.totalorder %s14, 15
    %p84 = por %p82, %p83
    %p85 = scmp.ne.s32.totalorder %s74, %s75
    %p86 = scmp.eq.s32.totalorder %s14, 0
    %p87 = por %p85, %p86
    %p88 = scmp.ne.s32.totalorder %s74, %s75
    %p89 = scmp.eq.s32.totalorder %s15, 15
    %p90 = por %p88, %p89
    %p92 = scmp.ne.s32.totalorder %s75, %s91
    %p93 = scmp.eq.s32.totalorder %s15, 0
    %p94 = por %p92, %p93
    %s95 = ssub.s32 %s9, %s16
    %p96 = scmp.eq.s32.totalorder %s95, 0
    %s98 = sadd.s32 %s97, 1
    %s99 = scalar_select %p96, %s97, %s98
    %p102 = pneg %p96
    %p103 = scmp.eq.s32.totalorder %s9, 15
    %p104 = por %p102, %p103
    %p105 = scmp.ne.s32.totalorder %s97, %s100
    %p106 = scmp.eq.s32.totalorder %s9, 0
    %p107 = por %p105, %p106
    %p108 = scmp.ne.s32.totalorder %s97, %s100
    %p109 = scmp.eq.s32.totalorder %s14, 15
    %p110 = por %p108, %p109
    %p111 = scmp.ne.s32.totalorder %s100, %s101
    %p112 = scmp.eq.s32.totalorder %s14, 0
    %p113 = por %p111, %p112
    %p114 = scmp.ne.s32.totalorder %s100, %s101
    %p115 = scmp.eq.s32.totalorder %s15, 15
    %p116 = por %p114, %p115
    %p118 = scmp.ne.s32.totalorder %s101, %s117
    %p119 = scmp.eq.s32.totalorder %s15, 0
    %p120 = por %p118, %p119
    %p121 = scmp.le.s32.totalorder 1, %s9
    %p122 = scmp.lt.s32.totalorder %s9, 17
    %p123 = pnand %p121, %p122
    %p124 = pneg %p123
    // Predicated region
    $region9: #{upblock_forward.66} parent=5 // pred_check
      _
    $region10: #{upblock_forward.66} parent=5 // pred_check_branch
      %126 = sbr.rel (%p123) target = $region12
    $region11: #{upblock_forward.66} parent=5 // pred_region
      %s127 = ssub.s32 %s9, 1
    $region12: #{upblock_forward.66} parent=5 // pred_fallthru
      _
    %p128 = scmp.lt.s32.totalorder %s9, 16
    // Predicated region
    $region13: #{upblock_forward.66} parent=5 // pred_check
      %p129 = pneg %p128
    $region14: #{upblock_forward.66} parent=5 // pred_check_branch
      %131 = sbr.rel (%p129) target = $region16
    $region15: #{upblock_forward.66} parent=5 // pred_region
      // Predicated region
      $region17: #{upblock_forward.66} parent=15 // pred_check
        %p132 = pneg %p29
      $region18: #{upblock_forward.66} parent=15 // pred_check_branch
        %134 = sbr.rel (%p132) target = $region20
      $region19: #{upblock_forward.66} parent=15 // pred_region
        %p135 = scmp.lt.s32.totalorder %s9, 15
        %s136 = scalar_select %p135, %s9, 15
        %s137 = smul.addr %s136, 2
        %s138 = smul.addr %s137, 8
        %s139 = scalar_lea.vmem %s0, %s138
      $region20: #{upblock_forward.66} parent=15 // pred_fallthru
        _
      // Predicated region
      $region21: #{upblock_forward.66} parent=15 // pred_check
        %p140 = pneg %p55
      $region22: #{upblock_forward.66} parent=15 // pred_check_branch
        %142 = sbr.rel (%p140) target = $region24
      $region23: #{upblock_forward.66} parent=15 // pred_region
        %p143 = scmp.lt.s32.totalorder %s9, 15
        %s144 = scalar_select %p143, %s9, 15
        %s145 = smul.addr %s144, 8
        %s146 = scalar_lea.vmem %s1, %s145
      $region24: #{upblock_forward.66} parent=15 // pred_fallthru
        _
      // Predicated region
      $region25: #{upblock_forward.66} parent=15 // pred_check
        %p147 = pneg %p81
      $region26: #{upblock_forward.66} parent=15 // pred_check_branch
        %149 = sbr.rel (%p147) target = $region28
      $region27: #{upblock_forward.66} parent=15 // pred_region
        %p150 = scmp.lt.s32.totalorder %s9, 15
        %s151 = scalar_select %p150, %s9, 15
        %s152 = smul.addr %s151, 8
        %s153 = scalar_lea.vmem %s2, %s152
      $region28: #{upblock_forward.66} parent=15 // pred_fallthru
        _
    $region16: #{upblock_forward.66} parent=5 // pred_fallthru
      _
    %p154 = scmp.le.s32.totalorder 1, %s9
    %p155 = scmp.lt.s32.totalorder %s9, 17
    %p156 = pnand %p154, %p155
    %p157 = pneg %p156
    // Predicated region
    $region29: #{upblock_forward.66} parent=5 // pred_check
      _
    $region30: #{upblock_forward.66} parent=5 // pred_check_branch
      %159 = sbr.rel (%p156) target = $region32
    $region31: #{upblock_forward.66} parent=5 // pred_region
      %s160 = ssub.s32 %s9, 1
      %p161 = scmp.lt.s32.totalorder %s14, 15
      %s162 = scalar_select %p161, %s14, 15
      %s163 = smul.addr %s162, 2
      %s164 = smul.addr %s163, 8
      %s165 = scalar_lea.vmem %s0, %s164
      %p166 = pneg %p35
      %p167 = pneg %p32
      %p168 = scmp.lt.s32.totalorder %s14, 15
      %s169 = scalar_select %p168, %s14, 15
      %s170 = smul.addr %s169, 8
      %s171 = scalar_lea.vmem %s1, %s170
      %p172 = pneg %p61
      %p173 = pneg %p58
      %p174 = scmp.lt.s32.totalorder %s14, 15
      %s175 = scalar_select %p174, %s14, 15
      %s176 = smul.addr %s175, 8
      %s177 = scalar_lea.vmem %s2, %s176
      %p178 = pneg %p87
      %p179 = pneg %p84
      %p180 = pneg %p113
      %p181 = pneg %p110
      %p182 = scmp.lt.s32.totalorder %s14, 15
      %s183 = scalar_select %p182, %s14, 15
      %s184 = smul.addr %s183, 2
      %s185 = smul.addr %s184, 8
      %s186 = scalar_lea.vmem %s3, %s185
      %p187 = scmp.lt.s32.totalorder %s14, 15
      %s188 = scalar_select %p187, %s14, 15
      %s189 = smul.addr %s188, 2
      %s190 = smul.addr %s189, 8
      %s191 = scalar_lea.vmem %s0, %s190
      %p192 = scmp.lt.s32.totalorder %s14, 15
      %s193 = scalar_select %p192, %s14, 15
      %s194 = smul.addr %s193, 8
      %s195 = scalar_lea.vmem %s1, %s194
      %p196 = scmp.lt.s32.totalorder %s14, 15
      %s197 = scalar_select %p196, %s14, 15
      %s198 = smul.addr %s197, 8
      %s199 = scalar_lea.vmem %s2, %s198
      %p200 = scmp.lt.s32.totalorder %s14, 15
      %s201 = scalar_select %p200, %s14, 15
      %s202 = smul.addr %s201, 2
      %s203 = smul.addr %s202, 8
      %s204 = scalar_lea.vmem %s3, %s203
      %v206 = vld [vmem:[%s191] sm:$0xff]
      %v207 = vld [vmem:[%s191 + $0x8] sm:$0xff]
      %v208 = vpack.c.bf16 %v206, %v206
      %v209 = vpack.c.bf16 %v207, %v207
      %v210 = vld [vmem:[%s195] sm:$0xff]
      %v211 = vpack.c.bf16 %v210, %v210
      %v212 = vld [vmem:[%s199] sm:$0xff]
      %v213 = vpack.c.bf16 %v212, %v212
      %v216 = vunpack.c.l.b16 %v208
      %v217 = vunpack.c.l.b16 %v209
      %v218 = vpack.c.b16 %v217, %v216
      %vm219 = vcmask 64512
      %v221 = vsel %vm219, %v218, 0
      %v224 = vsel %vm219, %v211, 0
      %226 = vmatpush.bf16.xpose.msra.mxu0 0
      %227 = vmatpush.bf16.xpose.msra.mxu0 0
      %228 = vmatpush.bf16.xpose.msra.mxu0 0
      %229 = vmatpush.bf16.xpose.msra.mxu0 0
      %230 = vmatpush.bf16.xpose.msra.mxu0 0
      %231 = vmatpush.bf16.xpose.msra.mxu0 0
      %232 = vmatpush.bf16.xpose.msra.mxu0 0
      %233 = vmatpush.bf16.xpose.msra.mxu0 %v224
      %234 = vmatmul.bf16.gmra.mxu0 %v221
      %v235 = vpop.f32.mrf.mxu0
      %v236 = vadd.f32 0.0, %v235
      %v237 = vpop.f32.mrf.mxu0
      %v238 = vadd.f32 0.0, %v237
      %239 = vdwg.mxu0
      %v240 = vmul.f32 %v236, 0.35355338
      %v241 = vmul.f32 %v238, 0.35355338
      %v242 = vsel %vm219, %v240, -inf
      %243 = vmax.xlane.f32.xlu0 %v242
      %v244 = vpop.xlane.xlu0 %243
      %v245 = vsel %vm219, %v241, -inf
      %246 = vmax.xlane.f32.xlu0 %v245
      %v247 = vpop.xlane.xlu0 %246
      %v248 = vsub.f32 %v240, %v244
      %v249 = vsub.f32 %v241, %v247
      %v250 = vmul.f32 %v248, 1.442695
      %v251 = vpow.pop %v250
      %v252 = vmul.f32 %v249, 1.442695
      %v253 = vpow.pop %v252
      %v254 = vsel %vm219, %v251, 0.0
      %255 = vadd.xlane.f32.xlu0 %v254
      %v256 = vpop.xlane.xlu0 %255
      %v257 = vsel %vm219, %v253, 0.0
      %258 = vadd.xlane.f32.xlu0 %v257
      %v259 = vpop.xlane.xlu0 %258
      %v260 = vrcp.pop %v256
      %v261 = vrcp.pop %v259
      %v262 = vmul.f32 %v251, %v260
      %v263 = vmul.f32 %v253, %v261
      %v264 = vpack.c.bf16 %v262, %v262
      %v265 = vpack.c.bf16 %v263, %v263
      %v268 = vunpack.c.l.b16 %v264
      %v269 = vunpack.c.l.b16 %v265
      %v270 = vpack.c.b16 %v269, %v268
      %v272 = vsel %vm219, %v270, 0
      %vm274 = vcmask 1043456
      %v276 = vsel %vm274, %v213, 0
      %278 = vmatpush.bf16.msra.mxu0 0
      %279 = vmatpush.bf16.msra.mxu0 0
      %280 = vmatpush.bf16.msra.mxu0 0
      %281 = vmatpush.bf16.msra.mxu0 0
      %282 = vmatpush.bf16.msra.mxu0 0
      %283 = vmatpush.bf16.msra.mxu0 0
      %284 = vmatpush.bf16.msra.mxu0 0
      %285 = vmatpush.bf16.msra.mxu0 %v276
      %286 = vmatmul.bf16.gmra.mxu0 %v272
      %v287 = vpop.f32.mrf.mxu0
      %v288 = vadd.f32 0.0, %v287
      %v289 = vpop.f32.mrf.mxu0
      %v290 = vadd.f32 0.0, %v289
      %291 = vdwg.mxu0
      %292 = vst.msk [vmem:[%s204] sm:$0xff] %vm219, %v288
      %293 = vst.msk [vmem:[%s204 + $0x8] sm:$0xff] %vm219, %v290
      %p294 = scmp.lt.s32.totalorder %s14, 15
      %s295 = scalar_select %p294, %s14, 15
      %s296 = smul.addr %s295, 2
      %s297 = smul.addr %s296, 8
      %s298 = scalar_lea.vmem %s3, %s297
      // Predicated region
      $region33: #{upblock_forward.66} parent=31 // pred_check
        %p299 = pneg %p110
      $region34: #{upblock_forward.66} parent=31 // pred_check_branch
        %301 = sbr.rel (%p299) target = $region36
      $region35: #{upblock_forward.66} parent=31 // pred_region
        _
      $region36: #{upblock_forward.66} parent=31 // pred_fallthru
        _
    $region32: #{upblock_forward.66} parent=5 // pred_fallthru
      _
    %p302 = scmp.le.s32.totalorder 2, %s9
    // Predicated region
    $region37: #{upblock_forward.66} parent=5 // pred_check
      %p303 = pneg %p302
    $region38: #{upblock_forward.66} parent=5 // pred_check_branch
      %305 = sbr.rel (%p303) target = $region40
    $region39: #{upblock_forward.66} parent=5 // pred_region
      %s306 = ssub.s32 %s9, 2
      // Predicated region
      $region41: #{upblock_forward.66} parent=39 // pred_check
        %p307 = pneg %p116
      $region42: #{upblock_forward.66} parent=39 // pred_check_branch
        %309 = sbr.rel (%p307) target = $region44
      $region43: #{upblock_forward.66} parent=39 // pred_region
        %p310 = scmp.lt.s32.totalorder %s15, 15
        %s311 = scalar_select %p310, %s15, 15
        %s312 = smul.addr %s311, 2
        %s313 = smul.addr %s312, 8
        %s314 = scalar_lea.vmem %s3, %s313
      $region44: #{upblock_forward.66} parent=39 // pred_fallthru
        _
    $region40: #{upblock_forward.66} parent=5 // pred_fallthru
      _
  $region6: #{upblock_forward.66} parent=0 // loop_footer
    %s13 = sadd.s32 1, %s9
  $region7: #{upblock_forward.66} parent=0 // loop_footer_branch
    %8 = sbr.rel target = $region3
  $region8: #{upblock_forward.66} parent=0 // loop_exit
    _

// kernel: upblock_forward.68
$region0: #{upblock_forward.68}
  #allocation0 [shape = 'u32[]', space=smem, size = 0x4, offset = 0x4, fixed_abs, tag = 'smem constant byte address 0x4 - core index']
  #allocation1 [shape = 'u32[72,128]{1,0:T(1,128)}', space=vmem, size = 0x9000, scoped, tag = 'internal scratch']
  #allocation2 [shape = 'f32[32,256]{1,0:T(8,128)}', space=vmem, size = 0x8000, scoped, tag = 'scratch operand']
  %s0 = inlined_call_operand.vmem [shape: f32[32,128], index: 0, kind: input, shape index: {}]
  %s1 = inlined_call_operand.vmem [shape: bf16[128,512], index: 1, kind: input, shape index: {}]
  %s2 = inlined_call_operand.vmem [shape: f32[1,512], index: 2, kind: input, shape index: {}]
  %s3 = inlined_call_operand.vmem [shape: f32[1,128], index: 3, kind: input, shape index: {}]
  %s4 = inlined_call_operand.vmem [shape: f32[1,128], index: 4, kind: input, shape index: {}]
  %s5 = inlined_call_operand.vmem [shape: f32[32,512], index: 5, kind: output, shape index: {}]
  %s6 = sld [smem:[#allocation0]]
  $region118: #{upblock_forward.68} parent=0
    _
  %s8 = ssub.s32 1, %s6
  %s9 = scalar_select 0, %s8, %s6
  $region1: #{upblock_forward.68} parent=0
    #allocation3 [shape = 'u8[131072]{0}', space=vmem, size = 0x20000, scoped, tag = 'input window, operand 1']
    #allocation4 [shape = 'u8[65536]{0}', space=vmem, size = 0x10000, scoped, tag = 'output window, operand 0']
    loop: start=0, step=1, limit=4
    $region2: #{upblock_forward.68} parent=1 // loop_pre_header
      _
    $region3: #{upblock_forward.68} parent=1 // loop_header
      %s11 = sphi 0, %s15
      %p12 = scmp.ge.s32.totalorder %s11, 4
      %s18 = sphi 0, %s37
      %s19 = sphi 0, %s33
      %s20 = sphi 0, %s29
      %s21 = sphi 0, %s18
      %s22 = sphi 0, %s19
      %s23 = sphi 0, %s20
      %s24 = sphi 0, %s21
      %s25 = sphi 0, %s22
      %s26 = sphi 0, %s23
      %s42 = sphi 0, %s44
      %s45 = sphi 0, %s42
      %s46 = sphi 0, %s45
      %s62 = sphi 0, %s46
      %s70 = sphi 0, %s72
      %s73 = sphi 0, %s70
      %s74 = sphi 0, %s73
      %s90 = sphi 0, %s74
      %s96 = sphi 0, %s98
      %s99 = sphi 0, %s96
      %s100 = sphi 0, %s99
      %s116 = sphi 0, %s100
      %s122 = sphi 0, %s124
      %s125 = sphi 0, %s122
      %s126 = sphi 0, %s125
      %s142 = sphi 0, %s126
      %s148 = sphi 0, %s150
      %s151 = sphi 0, %s148
      %s152 = sphi 0, %s151
      %s168 = sphi 0, %s152
      %s176 = sphi 0, %s178
      %s179 = sphi 0, %s176
      %s180 = sphi 0, %s179
      %s196 = sphi 0, %s180
    $region4: #{upblock_forward.68} parent=1 // loop_header_branch
      %14 = sbr.rel (%p12) target = $region8
    $region5: #{upblock_forward.68} parent=1 // loop_body
      %s16 = ssub.s32 %s11, 1
      %s17 = ssub.s32 %s11, 2
      %s27 = sadd.s32 1, %s20
      %p28 = scmp.ge.s32.totalorder %s27, 1
      %s29 = scalar_select %p28, 0, %s27
      %s30 = sadd.s32 1, %s19
      %s31 = scalar_select %p28, %s30, %s19
      %p32 = scmp.ge.s32.totalorder %s31, 2
      %s33 = scalar_select %p32, 0, %s31
      %s34 = sadd.s32 1, %s18
      %s35 = scalar_select %p32, %s34, %s18
      %p36 = scmp.ge.s32.totalorder %s35, 1
      %s37 = scalar_select %p36, 0, %s35
      %s38 = ssub.s32 %s18, %s37
      %s39 = ssub.s32 %s20, %s29
      %s40 = sor.u32 %s38, %s39
      %p41 = scmp.eq.s32.totalorder %s40, 0
      %s43 = sadd.s32 %s42, 1
      %s44 = scalar_select %p41, %s42, %s43
      %p47 = pneg %p41
      %p48 = scmp.eq.s32.totalorder %s11, 1
      %p49 = por %p47, %p48
      %p50 = scmp.ne.s32.totalorder %s42, %s45
      %p51 = scmp.eq.s32.totalorder %s11, 0
      %p52 = por %p50, %p51
      %p53 = scmp.ne.s32.totalorder %s42, %s45
      %p54 = scmp.eq.s32.totalorder %s16, 1
      %p55 = por %p53, %p54
      %p56 = scmp.ne.s32.totalorder %s45, %s46
      %p57 = scmp.eq.s32.totalorder %s16, 0
      %p58 = por %p56, %p57
      %p59 = scmp.ne.s32.totalorder %s45, %s46
      %p60 = scmp.eq.s32.totalorder %s17, 1
      %p61 = por %p59, %p60
      %p63 = scmp.ne.s32.totalorder %s46, %s62
      %p64 = scmp.eq.s32.totalorder %s17, 0
      %p65 = por %p63, %p64
      %s66 = ssub.s32 %s20, %s29
      %s67 = ssub.s32 %s19, %s33
      %s68 = sor.u32 %s66, %s67
      %p69 = scmp.eq.s32.totalorder %s68, 0
      %s71 = sadd.s32 %s70, 1
      %s72 = scalar_select %p69, %s70, %s71
      %p75 = pneg %p69
      %p76 = scmp.eq.s32.totalorder %s11, 1
      %p77 = por %p75, %p76
      %p78 = scmp.ne.s32.totalorder %s70, %s73
      %p79 = scmp.eq.s32.totalorder %s11, 0
      %p80 = por %p78, %p79
      %p81 = scmp.ne.s32.totalorder %s70, %s73
      %p82 = scmp.eq.s32.totalorder %s16, 1
      %p83 = por %p81, %p82
      %p84 = scmp.ne.s32.totalorder %s73, %s74
      %p85 = scmp.eq.s32.totalorder %s16, 0
      %p86 = por %p84, %p85
      %p87 = scmp.ne.s32.totalorder %s73, %s74
      %p88 = scmp.eq.s32.totalorder %s17, 1
      %p89 = por %p87, %p88
      %p91 = scmp.ne.s32.totalorder %s74, %s90
      %p92 = scmp.eq.s32.totalorder %s17, 0
      %p93 = por %p91, %p92
      %s94 = ssub.s32 %s19, %s33
      %p95 = scmp.eq.s32.totalorder %s94, 0
      %s97 = sadd.s32 %s96, 1
      %s98 = scalar_select %p95, %s96, %s97
      %p101 = pneg %p95
      %p102 = scmp.eq.s32.totalorder %s11, 1
      %p103 = por %p101, %p102
      %p104 = scmp.ne.s32.totalorder %s96, %s99
      %p105 = scmp.eq.s32.totalorder %s11, 0
      %p106 = por %p104, %p105
      %p107 = scmp.ne.s32.totalorder %s96, %s99
      %p108 = scmp.eq.s32.totalorder %s16, 1
      %p109 = por %p107, %p108
      %p110 = scmp.ne.s32.totalorder %s99, %s100
      %p111 = scmp.eq.s32.totalorder %s16, 0
      %p112 = por %p110, %p111
      %p113 = scmp.ne.s32.totalorder %s99, %s100
      %p114 = scmp.eq.s32.totalorder %s17, 1
      %p115 = por %p113, %p114
      %p117 = scmp.ne.s32.totalorder %s100, %s116
      %p118 = scmp.eq.s32.totalorder %s17, 0
      %p119 = por %p117, %p118
      %s120 = ssub.s32 %s20, %s29
      %p121 = scmp.eq.s32.totalorder %s120, 0
      %s123 = sadd.s32 %s122, 1
      %s124 = scalar_select %p121, %s122, %s123
      %p127 = pneg %p121
      %p128 = scmp.eq.s32.totalorder %s11, 1
      %p129 = por %p127, %p128
      %p130 = scmp.ne.s32.totalorder %s122, %s125
      %p131 = scmp.eq.s32.totalorder %s11, 0
      %p132 = por %p130, %p131
      %p133 = scmp.ne.s32.totalorder %s122, %s125
      %p134 = scmp.eq.s32.totalorder %s16, 1
      %p135 = por %p133, %p134
      %p136 = scmp.ne.s32.totalorder %s125, %s126
      %p137 = scmp.eq.s32.totalorder %s16, 0
      %p138 = por %p136, %p137
      %p139 = scmp.ne.s32.totalorder %s125, %s126
      %p140 = scmp.eq.s32.totalorder %s17, 1
      %p141 = por %p139, %p140
      %p143 = scmp.ne.s32.totalorder %s126, %s142
      %p144 = scmp.eq.s32.totalorder %s17, 0
      %p145 = por %p143, %p144
      %s146 = ssub.s32 %s20, %s29
      %p147 = scmp.eq.s32.totalorder %s146, 0
      %s149 = sadd.s32 %s148, 1
      %s150 = scalar_select %p147, %s148, %s149
      %p153 = pneg %p147
      %p154 = scmp.eq.s32.totalorder %s11, 1
      %p155 = por %p153, %p154
      %p156 = scmp.ne.s32.totalorder %s148, %s151
      %p157 = scmp.eq.s32.totalorder %s11, 0
      %p158 = por %p156, %p157
      %p159 = scmp.ne.s32.totalorder %s148, %s151
      %p160 = scmp.eq.s32.totalorder %s16, 1
      %p161 = por %p159, %p160
      %p162 = scmp.ne.s32.totalorder %s151, %s152
      %p163 = scmp.eq.s32.totalorder %s16, 0
      %p164 = por %p162, %p163
      %p165 = scmp.ne.s32.totalorder %s151, %s152
      %p166 = scmp.eq.s32.totalorder %s17, 1
      %p167 = por %p165, %p166
      %p169 = scmp.ne.s32.totalorder %s152, %s168
      %p170 = scmp.eq.s32.totalorder %s17, 0
      %p171 = por %p169, %p170
      %s172 = ssub.s32 %s18, %s37
      %s173 = ssub.s32 %s19, %s33
      %s174 = sor.u32 %s172, %s173
      %p175 = scmp.eq.s32.totalorder %s174, 0
      %s177 = sadd.s32 %s176, 1
      %s178 = scalar_select %p175, %s176, %s177
      %p181 = pneg %p175
      %p182 = scmp.eq.s32.totalorder %s11, 1
      %p183 = por %p181, %p182
      %p184 = scmp.ne.s32.totalorder %s176, %s179
      %p185 = scmp.eq.s32.totalorder %s11, 0
      %p186 = por %p184, %p185
      %p187 = scmp.ne.s32.totalorder %s176, %s179
      %p188 = scmp.eq.s32.totalorder %s16, 1
      %p189 = por %p187, %p188
      %p190 = scmp.ne.s32.totalorder %s179, %s180
      %p191 = scmp.eq.s32.totalorder %s16, 0
      %p192 = por %p190, %p191
      %p193 = scmp.ne.s32.totalorder %s179, %s180
      %p194 = scmp.eq.s32.totalorder %s17, 1
      %p195 = por %p193, %p194
      %p197 = scmp.ne.s32.totalorder %s180, %s196
      %p198 = scmp.eq.s32.totalorder %s17, 0
      %p199 = por %p197, %p198
      %p200 = scmp.le.s32.totalorder 1, %s11
      %p201 = scmp.lt.s32.totalorder %s11, 3
      %p202 = pnand %p200, %p201
      %p203 = pneg %p202
      // Predicated region
      $region9: #{upblock_forward.68} parent=5 // pred_check
        _
      $region10: #{upblock_forward.68} parent=5 // pred_check_branch
        %205 = sbr.rel (%p202) target = $region12
      $region11: #{upblock_forward.68} parent=5 // pred_region
        %s206 = ssub.s32 %s11, 1
        // Predicated region
        $region13: #{upblock_forward.68} parent=11 // pred_check
          %p207 = pneg %p58
        $region14: #{upblock_forward.68} parent=11 // pred_check_branch
          %209 = sbr.rel (%p207) target = $region16
        $region15: #{upblock_forward.68} parent=11 // pred_region
          %s210 = smul.u32 4, %s21
          %p211 = scmp.lt.s32.totalorder %s210, 3
          %s212 = scalar_select %p211, %s210, 3
          %p213 = scmp.lt.s32.totalorder %s23, 0
          %s214 = scalar_select %p213, %s23, 0
          %s215 = sadd.s32 %s214, %s212
          %s216 = smul.addr %s215, 8
          %s217 = scalar_lea.vmem %s0, %s216
          %s218 = smul.u32 4, %s21
        $region16: #{upblock_forward.68} parent=11 // pred_fallthru
          _
        // Predicated region
        $region17: #{upblock_forward.68} parent=11 // pred_check
          %p219 = pneg %p138
        $region18: #{upblock_forward.68} parent=11 // pred_check_branch
          %221 = sbr.rel (%p219) target = $region20
        $region19: #{upblock_forward.68} parent=11 // pred_region
          %p222 = scmp.lt.s32.totalorder %s23, 0
          %s223 = scalar_select %p222, %s23, 0
          %s224 = scalar_lea.vmem %s3, %s223
        $region20: #{upblock_forward.68} parent=11 // pred_fallthru
          _
        // Predicated region
        $region21: #{upblock_forward.68} parent=11 // pred_check
          %p225 = pneg %p164
        $region22: #{upblock_forward.68} parent=11 // pred_check_branch
          %227 = sbr.rel (%p225) target = $region24
        $region23: #{upblock_forward.68} parent=11 // pred_region
          %p228 = scmp.lt.s32.totalorder %s23, 0
          %s229 = scalar_select %p228, %s23, 0
          %s230 = scalar_lea.vmem %s4, %s229
        $region24: #{upblock_forward.68} parent=11 // pred_fallthru
          _
      $region12: #{upblock_forward.68} parent=5 // pred_fallthru
        _
      %p231 = scmp.lt.s32.totalorder %s11, 2
      // Predicated region
      $region25: #{upblock_forward.68} parent=5 // pred_check
        %p232 = pneg %p231
      $region26: #{upblock_forward.68} parent=5 // pred_check_branch
        %234 = sbr.rel (%p232) target = $region28
      $region27: #{upblock_forward.68} parent=5 // pred_region
        // Predicated region
        $region29: #{upblock_forward.68} parent=27 // pred_check
          %p235 = pneg %p80
        $region30: #{upblock_forward.68} parent=27 // pred_check_branch
          %237 = sbr.rel (%p235) target = $region32
        $region31: #{upblock_forward.68} parent=27 // pred_region
          %s238 = sand.u32 %s70, 1
          %s239 = sand.u32 %s70, 1
          %s240 = smul.addr %s239, 128
          %s241 = scalar_lea.vmem [#allocation3], %s240
          %s242 = smul.u32 16, %s20
          %s243 = smul.u32 2, %s19
          %s244 = smul.addr %s242, 4
          %s245 = sadd.s32 %s243, %s244
          %s246 = smul.addr %s245, 4
          %s247 = scalar_lea.vmem %s1, %s246
          // Predicated region
          $region33: #{upblock_forward.68} parent=31 // pred_check
            _
          $region34: #{upblock_forward.68} parent=31 // pred_check_branch
            %249 = sbr.rel (0) target = $region36
          $region35: #{upblock_forward.68} parent=31 // pred_region
            // Predicated region
            $region37: #{upblock_forward.68} parent=35 // pred_check
              _
            $region38: #{upblock_forward.68} parent=35 // pred_check_branch
              %251 = sbr.rel (0) target = $region40
            $region39: #{upblock_forward.68} parent=35 // pred_region
              // Predicated region
              $region52: #{upblock_forward.68} parent=39 // pred_check
                _
              $region53: #{upblock_forward.68} parent=39 // pred_check_branch
                %297 = sbr.rel (0) target = $region55
              $region54: #{upblock_forward.68} parent=39 // pred_region
                loop: start=0, step=1, limit=1
                $region56: #{upblock_forward.68} parent=54 // loop_pre_header
                  _
                $region57: #{upblock_forward.68} parent=54 // loop_header
                  %s299 = sphi 0, %s303
                  %p300 = scmp.ge.s32.totalorder %s299, 1
                  %s304 = sphi %s247, %s247
                  %s305 = sphi %s241, %s241
                $region58: #{upblock_forward.68} parent=54 // loop_header_branch
                  %302 = sbr.rel (%p300) target = $region62
                $region59: #{upblock_forward.68} parent=54 // loop_body
                  %v306 = vld [vmem:[%s304] sm:$0xff]
                  %307 = vst [vmem:[%s305] sm:$0xff] %v306
                  %v308 = vld [vmem:[%s304 + $0x10] sm:$0xff]
                  %309 = vst [vmem:[%s305 + $0x8] sm:$0xff] %v308
                  %v310 = vld [vmem:[%s304 + $0x20] sm:$0xff]
                  %311 = vst [vmem:[%s305 + $0x10] sm:$0xff] %v310
                  %v312 = vld [vmem:[%s304 + $0x30] sm:$0xff]
                  %313 = vst [vmem:[%s305 + $0x18] sm:$0xff] %v312
                  %v314 = vld [vmem:[%s304 + $0x40] sm:$0xff]
                  %315 = vst [vmem:[%s305 + $0x20] sm:$0xff] %v314
                  %v316 = vld [vmem:[%s304 + $0x50] sm:$0xff]
                  %317 = vst [vmem:[%s305 + $0x28] sm:$0xff] %v316
                  %v318 = vld [vmem:[%s304 + $0x60] sm:$0xff]
                  %319 = vst [vmem:[%s305 + $0x30] sm:$0xff] %v318
                  %v320 = vld [vmem:[%s304 + $0x70] sm:$0xff]
                  %321 = vst [vmem:[%s305 + $0x38] sm:$0xff] %v320
                  %v322 = vld [vmem:[%s304 + $0x80] sm:$0xff]
                  %323 = vst [vmem:[%s305 + $0x40] sm:$0xff] %v322
                  %v324 = vld [vmem:[%s304 + $0x90] sm:$0xff]
                  %325 = vst [vmem:[%s305 + $0x48] sm:$0xff] %v324
                  %v326 = vld [vmem:[%s304 + $0xa0] sm:$0xff]
                  %327 = vst [vmem:[%s305 + $0x50] sm:$0xff] %v326
                  %v328 = vld [vmem:[%s304 + $0xb0] sm:$0xff]
                  %329 = vst [vmem:[%s305 + $0x58] sm:$0xff] %v328
                  %v330 = vld [vmem:[%s304 + $0xc0] sm:$0xff]
                  %331 = vst [vmem:[%s305 + $0x60] sm:$0xff] %v330
                  %v332 = vld [vmem:[%s304 + $0xd0] sm:$0xff]
                  %333 = vst [vmem:[%s305 + $0x68] sm:$0xff] %v332
                  %v334 = vld [vmem:[%s304 + $0xe0] sm:$0xff]
                  %335 = vst [vmem:[%s305 + $0x70] sm:$0xff] %v334
                  %v336 = vld [vmem:[%s304 + $0xf0] sm:$0xff]
                  %337 = vst [vmem:[%s305 + $0x78] sm:$0xff] %v336
                $region60: #{upblock_forward.68} parent=54 // loop_footer
                  %s303 = sadd.s32 1, %s299
                $region61: #{upblock_forward.68} parent=54 // loop_footer_branch
                  %298 = sbr.rel target = $region57
                $region62: #{upblock_forward.68} parent=54 // loop_exit
                  _
              $region55: #{upblock_forward.68} parent=39 // pred_fallthru
                _
              // Predicated region
              $region63: #{upblock_forward.68} parent=39 // pred_check
                _
              $region64: #{upblock_forward.68} parent=39 // pred_check_branch
                %339 = sbr.rel target = $region66
              $region65: #{upblock_forward.68} parent=39 // pred_region
                _
              $region66: #{upblock_forward.68} parent=39 // pred_fallthru
                _
            $region40: #{upblock_forward.68} parent=35 // pred_fallthru
              _
            // Predicated region
            $region41: #{upblock_forward.68} parent=35 // pred_check
              _
            $region42: #{upblock_forward.68} parent=35 // pred_check_branch
              %253 = sbr.rel target = $region44
            $region43: #{upblock_forward.68} parent=35 // pred_region
              %s255 = ssub.s32 256, 1
              loop: start=0, step=1, limit=1
              $region45: #{upblock_forward.68} parent=43 // loop_pre_header
                _
              $region46: #{upblock_forward.68} parent=43 // loop_header
                %s257 = sphi 0, %s261
                %p258 = scmp.ge.s32.totalorder %s257, 1
                %s262 = sphi %s247, %s247
                %s263 = sphi %s241, %s241
              $region47: #{upblock_forward.68} parent=43 // loop_header_branch
                %260 = sbr.rel (%p258) target = $region51
              $region48: #{upblock_forward.68} parent=43 // loop_body
                %v264 = vld [vmem:[%s262] sm:%s255]
                %265 = vst [vmem:[%s263] sm:%s255] %v264
                %v266 = vld [vmem:[%s262 + $0x10] sm:%s255]
                %267 = vst [vmem:[%s263 + $0x8] sm:%s255] %v266
                %v268 = vld [vmem:[%s262 + $0x20] sm:%s255]
                %269 = vst [vmem:[%s263 + $0x10] sm:%s255] %v268
                %v270 = vld [vmem:[%s262 + $0x30] sm:%s255]
                %271 = vst [vmem:[%s263 + $0x18] sm:%s255] %v270
                %v272 = vld [vmem:[%s262 + $0x40] sm:%s255]
                %273 = vst [vmem:[%s263 + $0x20] sm:%s255] %v272
                %v274 = vld [vmem:[%s262 + $0x50] sm:%s255]
                %275 = vst [vmem:[%s263 + $0x28] sm:%s255] %v274
                %v276 = vld [vmem:[%s262 + $0x60] sm:%s255]
                %277 = vst [vmem:[%s263 + $0x30] sm:%s255] %v276
                %v278 = vld [vmem:[%s262 + $0x70] sm:%s255]
                %279 = vst [vmem:[%s263 + $0x38] sm:%s255] %v278
                %v280 = vld [vmem:[%s262 + $0x80] sm:%s255]
                %281 = vst [vmem:[%s263 + $0x40] sm:%s255] %v280
                %v282 = vld [vmem:[%s262 + $0x90] sm:%s255]
                %283 = vst [vmem:[%s263 + $0x48] sm:%s255] %v282
                %v284 = vld [vmem:[%s262 + $0xa0] sm:%s255]
                %285 = vst [vmem:[%s263 + $0x50] sm:%s255] %v284
                %v286 = vld [vmem:[%s262 + $0xb0] sm:%s255]
                %287 = vst [vmem:[%s263 + $0x58] sm:%s255] %v286
                %v288 = vld [vmem:[%s262 + $0xc0] sm:%s255]
                %289 = vst [vmem:[%s263 + $0x60] sm:%s255] %v288
                %v290 = vld [vmem:[%s262 + $0xd0] sm:%s255]
                %291 = vst [vmem:[%s263 + $0x68] sm:%s255] %v290
                %v292 = vld [vmem:[%s262 + $0xe0] sm:%s255]
                %293 = vst [vmem:[%s263 + $0x70] sm:%s255] %v292
                %v294 = vld [vmem:[%s262 + $0xf0] sm:%s255]
                %295 = vst [vmem:[%s263 + $0x78] sm:%s255] %v294
              $region49: #{upblock_forward.68} parent=43 // loop_footer
                %s261 = sadd.s32 1, %s257
              $region50: #{upblock_forward.68} parent=43 // loop_footer_branch
                %256 = sbr.rel target = $region46
              $region51: #{upblock_forward.68} parent=43 // loop_exit
                _
            $region44: #{upblock_forward.68} parent=35 // pred_fallthru
              _
          $region36: #{upblock_forward.68} parent=31 // pred_fallthru
            _
          %340 = vnop
        $region32: #{upblock_forward.68} parent=27 // pred_fallthru
          _
        // Predicated region
        $region67: #{upblock_forward.68} parent=27 // pred_check
          %p341 = pneg %p106
        $region68: #{upblock_forward.68} parent=27 // pred_check_branch
          %343 = sbr.rel (%p341) target = $region70
        $region69: #{upblock_forward.68} parent=27 // pred_region
          %s344 = smul.u32 2, %s19
          %p345 = scmp.lt.s32.totalorder %s344, 3
          %s346 = scalar_select %p345, %s344, 3
          %s347 = scalar_lea.vmem %s2, %s346
          %s348 = smul.u32 2, %s19
        $region70: #{upblock_forward.68} parent=27 // pred_fallthru
          _
      $region28: #{upblock_forward.68} parent=5 // pred_fallthru
        _
      %p349 = scmp.le.s32.totalorder 1, %s11
      %p350 = scmp.lt.s32.totalorder %s11, 3
      %p351 = pnand %p349, %p350
      %p352 = pneg %p351
      // Predicated region
      $region71: #{upblock_forward.68} parent=5 // pred_check
        _
      $region72: #{upblock_forward.68} parent=5 // pred_check_branch
        %354 = sbr.rel (%p351) target = $region74
      $region73: #{upblock_forward.68} parent=5 // pred_region
        %s355 = ssub.s32 %s11, 1
        %s356 = sand.u32 %s73, 1
        %s357 = sand.u32 %s73, 1
        %s358 = smul.addr %s357, 128
        %s359 = scalar_lea.vmem [#allocation3], %s358
        // Predicated region
        $region75: #{upblock_forward.68} parent=73 // pred_check
          %p360 = pneg %p86
        $region76: #{upblock_forward.68} parent=73 // pred_check_branch
          %362 = sbr.rel (%p360) target = $region78
        $region77: #{upblock_forward.68} parent=73 // pred_region
          _
        $region78: #{upblock_forward.68} parent=73 // pred_fallthru
          _
        %s363 = smul.u32 4, %s21
        %p364 = scmp.lt.s32.totalorder %s363, 3
        %s365 = scalar_select %p364, %s363, 3
        %p366 = scmp.lt.s32.totalorder %s23, 0
        %s367 = scalar_select %p366, %s23, 0
        %s368 = sadd.s32 %s367, %s365
        %s369 = smul.addr %s368, 8
        %s370 = scalar_lea.vmem %s0, %s369
        %p371 = pneg %p58
        %p372 = pneg %p55
        %s373 = sand.u32 %s73, 1
        %s374 = sand.u32 %s73, 1
        %s375 = smul.addr %s374, 128
        %s376 = scalar_lea.vmem [#allocation3], %s375
        %p377 = pneg %p86
        %p378 = pneg %p83
        %s379 = smul.u32 2, %s22
        %p380 = scmp.lt.s32.totalorder %s379, 3
        %s381 = scalar_select %p380, %s379, 3
        %s382 = scalar_lea.vmem %s2, %s381
        %p383 = pneg %p112
        %p384 = pneg %p109
        %p385 = scmp.lt.s32.totalorder %s23, 0
        %s386 = scalar_select %p385, %s23, 0
        %s387 = scalar_lea.vmem %s3, %s386
        %p388 = pneg %p138
        %p389 = pneg %p135
        %p390 = scmp.lt.s32.totalorder %s23, 0
        %s391 = scalar_select %p390, %s23, 0
        %s392 = scalar_lea.vmem %s4, %s391
        %p393 = pneg %p164
        %p394 = pneg %p161
        %p395 = pneg %p192
        %p396 = pneg %p189
        %s397 = sand.u32 %s179, 1
        %s398 = sand.u32 %s179, 1
        %s399 = smul.addr %s398, 64
        %s400 = scalar_lea.vmem [#allocation4], %s399
        %s401 = smul.u32 4, %s21
        %p402 = scmp.lt.s32.totalorder %s401, 3
        %s403 = scalar_select %p402, %s401, 3
        %p404 = scmp.lt.s32.totalorder %s23, 0
        %s405 = scalar_select %p404, %s23, 0
        %s406 = sadd.s32 %s405, %s403
        %s407 = smul.addr %s406, 8
        %s408 = scalar_lea.vmem %s0, %s407
        %s409 = smul.u32 4, %s21
        %s410 = smul.u32 16, %s23
        %s411 = smul.u32 2, %s22
        %s412 = smul.u32 2, %s22
        %p413 = scmp.lt.s32.totalorder %s412, 3
        %s414 = scalar_select %p413, %s412, 3
        %s415 = scalar_lea.vmem %s2, %s414
        %s416 = smul.u32 2, %s22
        %p417 = scmp.lt.s32.totalorder %s23, 0
        %s418 = scalar_select %p417, %s23, 0
        %s419 = scalar_lea.vmem %s3, %s418
        %p420 = scmp.lt.s32.totalorder %s23, 0
        %s421 = scalar_select %p420, %s23, 0
        %s422 = scalar_lea.vmem %s4, %s421
        %s423 = smul.u32 4, %s21
        %s424 = smul.u32 2, %s22
        %p425 = scmp.eq.s32.totalorder %s23, 0
        // Predicated region
        $region79: #{upblock_forward.68} parent=73 // pred_check
          %p426 = pneg %p425
        $region80: #{upblock_forward.68} parent=73 // pred_check_branch
          %428 = sbr.rel (%p426) target = $region82
        $region81: #{upblock_forward.68} parent=73 // pred_region
          %429 = vst [vmem:[#allocation2] sm:$0xff] 0.0
          %430 = vst [vmem:[#allocation2 + $0x8] sm:$0xff] 0.0
          %431 = vst [vmem:[#allocation2 + $0x10] sm:$0xff] 0.0
          %432 = vst [vmem:[#allocation2 + $0x18] sm:$0xff] 0.0
          %433 = vst [vmem:[#allocation2 + $0x20] sm:$0xff] 0.0
          %434 = vst [vmem:[#allocation2 + $0x28] sm:$0xff] 0.0
          %435 = vst [vmem:[#allocation2 + $0x30] sm:$0xff] 0.0
          %436 = vst [vmem:[#allocation2 + $0x38] sm:$0xff] 0.0
        $region82: #{upblock_forward.68} parent=73 // pred_fallthru
          _
        %v437 = vld [vmem:[%s408] sm:$0xff]
        %v438 = vld [vmem:[%s408 + $0x8] sm:$0xff]
        %v439 = vld [vmem:[%s408 + $0x10] sm:$0xff]
        %v440 = vld [vmem:[%s408 + $0x18] sm:$0xff]
        %441 = vadd.xlane.f32.xlu0 %v437
        %v442 = vpop.xlane.xlu0 %441
        %443 = vadd.xlane.f32.xlu0 %v438
        %v444 = vpop.xlane.xlu0 %443
        %445 = vadd.xlane.f32.xlu0 %v439
        %v446 = vpop.xlane.xlu0 %445
        %447 = vadd.xlane.f32.xlu0 %v440
        %v448 = vpop.xlane.xlu0 %447
        %v449 = vmul.f32 %v442, 0.015625
        %v450 = vmul.f32 %v444, 0.015625
        %v451 = vmul.f32 %v446, 0.015625
        %v452 = vmul.f32 %v448, 0.015625
        %v453 = vmul.f32 %v437, %v437
        %v454 = vmul.f32 %v438, %v438
        %v455 = vmul.f32 %v439, %v439
        %v456 = vmul.f32 %v440, %v440
        %457 = vadd.xlane.f32.xlu0 %v453
        %v458 = vpop.xlane.xlu0 %457
        %459 = vadd.xlane.f32.xlu0 %v454
        %v460 = vpop.xlane.xlu0 %459
        %461 = vadd.xlane.f32.xlu0 %v455
        %v462 = vpop.xlane.xlu0 %461
        %463 = vadd.xlane.f32.xlu0 %v456
        %v464 = vpop.xlane.xlu0 %463
        %v465 = vmul.f32 %v458, 0.015625
        %v466 = vmul.f32 %v460, 0.015625
        %v467 = vmul.f32 %v462, 0.015625
        %v468 = vmul.f32 %v464, 0.015625
        %v469 = vmul.f32 %v449, %v449
        %v470 = vmul.f32 %v450, %v450
        %v471 = vmul.f32 %v451, %v451
        %v472 = vmul.f32 %v452, %v452
        %v473 = vsub.f32 %v465, %v469
        %v474 = vsub.f32 %v466, %v470
        %v475 = vsub.f32 %v467, %v471
        %v476 = vsub.f32 %v468, %v472
        %v477 = vsub.f32 %v437, %v449
        %v478 = vsub.f32 %v438, %v450
        %v479 = vsub.f32 %v439, %v451
        %v480 = vsub.f32 %v440, %v452
        %v481 = vadd.f32 %v473, 1e-05
        %v482 = vadd.f32 %v474, 1e-05
        %v483 = vadd.f32 %v475, 1e-05
        %v484 = vadd.f32 %v476, 1e-05
        %v485 = vrsqrt.pop %v481
        %v486 = vmul.f32 %v485, %v481
        %v487 = vmul.f32 %v486, %v485
        %v488 = vmul.f32 0.5, %v487
        %v489 = vsub.f32 1.5, %v488
        %v490 = vmul.f32 %v485, %v489
        %vm491 = vweird.f32 %v481
        %vm492 = vweird.f32 %v485
        %vm493 = vmor %vm491, %vm492
        %v494 = vsel %vm493, %v485, %v490
        %v495 = vrsqrt.pop %v482
        %v496 = vmul.f32 %v495, %v482
        %v497 = vmul.f32 %v496, %v495
        %v498 = vmul.f32 0.5, %v497
        %v499 = vsub.f32 1.5, %v498
        %v500 = vmul.f32 %v495, %v499
        %vm501 = vweird.f32 %v482
        %vm502 = vweird.f32 %v495
        %vm503 = vmor %vm501, %vm502
        %v504 = vsel %vm503, %v495, %v500
        %v505 = vrsqrt.pop %v483
        %v506 = vmul.f32 %v505, %v483
        %v507 = vmul.f32 %v506, %v505
        %v508 = vmul.f32 0.5, %v507
        %v509 = vsub.f32 1.5, %v508
        %v510 = vmul.f32 %v505, %v509
        %vm511 = vweird.f32 %v483
        %vm512 = vweird.f32 %v505
        %vm513 = vmor %vm511, %vm512
        %v514 = vsel %vm513, %v505, %v510
        %v515 = vrsqrt.pop %v484
        %v516 = vmul.f32 %v515, %v484
        %v517 = vmul.f32 %v516, %v515
        %v518 = vmul.f32 0.5, %v517
        %v519 = vsub.f32 1.5, %v518
        %v520 = vmul.f32 %v515, %v519
        %vm521 = vweird.f32 %v484
        %vm522 = vweird.f32 %v515
        %vm523 = vmor %vm521, %vm522
        %v524 = vsel %vm523, %v515, %v520
        %v525 = vmul.f32 %v477, %v494
        %v526 = vmul.f32 %v478, %v504
        %v527 = vmul.f32 %v479, %v514
        %v528 = vmul.f32 %v480, %v524
        %v529 = vld [vmem:[%s419] sm:$0x1]
        %v531 = vperm.slane %v529, 0
        %v533 = vmul.f32 %v525, %v531
        %v534 = vmul.f32 %v526, %v531
        %v535 = vmul.f32 %v527, %v531
        %v536 = vmul.f32 %v528, %v531
        %v537 = vld [vmem:[%s422] sm:$0x1]
        %v539 = vperm.slane %v537, 0
        %v541 = vadd.f32 %v533, %v539
        %v542 = vadd.f32 %v534, %v539
        %v543 = vadd.f32 %v535, %v539
        %v544 = vadd.f32 %v536, %v539
        %v545 = vld [vmem:[#allocation2] sm:$0xff]
        %v546 = vld [vmem:[#allocation2 + $0x8] sm:$0xff]
        %v547 = vld [vmem:[#allocation2 + $0x10] sm:$0xff]
        %v548 = vld [vmem:[#allocation2 + $0x18] sm:$0xff]
        %v549 = vld [vmem:[#allocation2 + $0x20] sm:$0xff]
        %v550 = vld [vmem:[#allocation2 + $0x28] sm:$0xff]
        %v551 = vld [vmem:[#allocation2 + $0x30] sm:$0xff]
        %v552 = vld [vmem:[#allocation2 + $0x38] sm:$0xff]
        %v553 = vpack.c.bf16 %v542, %v541
        %v554 = vpack.c.bf16 %v544, %v543
        %v555 = vld [vmem:[%s359] sm:$0xff]
        %v556 = vld [vmem:[%s359 + $0x8] sm:$0xff]
        %v557 = vld [vmem:[%s359 + $0x10] sm:$0xff]
        %v558 = vld [vmem:[%s359 + $0x18] sm:$0xff]
        %v559 = vld [vmem:[%s359 + $0x20] sm:$0xff]
        %v560 = vld [vmem:[%s359 + $0x28] sm:$0xff]
        %v561 = vld [vmem:[%s359 + $0x30] sm:$0xff]
        %v562 = vld [vmem:[%s359 + $0x38] sm:$0xff]
        %v563 = vld [vmem:[%s359 + $0x40] sm:$0xff]
        %v564 = vld [vmem:[%s359 + $0x48] sm:$0xff]
        %v565 = vld [vmem:[%s359 + $0x50] sm:$0xff]
        %v566 = vld [vmem:[%s359 + $0x58] sm:$0xff]
        %v567 = vld [vmem:[%s359 + $0x60] sm:$0xff]
        %v568 = vld [vmem:[%s359 + $0x68] sm:$0xff]
        %v569 = vld [vmem:[%s359 + $0x70] sm:$0xff]
        %v570 = vld [vmem:[%s359 + $0x78] sm:$0xff]
        %v587 = vunpack.c.l.b16 %v555
        %v588 = vunpack.c.h.b16 %v555
        %v589 = vunpack.c.l.b16 %v556
        %v590 = vunpack.c.h.b16 %v556
        %v591 = vunpack.c.l.b16 %v557
        %v592 = vunpack.c.h.b16 %v557
        %v593 = vunpack.c.l.b16 %v558
        %v594 = vunpack.c.h.b16 %v558
        %v595 = vunpack.c.l.b16 %v559
        %v596 = vunpack.c.h.b16 %v559
        %v597 = vunpack.c.l.b16 %v560
        %v598 = vunpack.c.h.b16 %v560
        %v599 = vunpack.c.l.b16 %v561
        %v600 = vunpack.c.h.b16 %v561
        %v601 = vunpack.c.l.b16 %v562
        %v602 = vunpack.c.h.b16 %v562
        %v603 = vunpack.c.l.b16 %v563
        %v604 = vunpack.c.h.b16 %v563
        %v605 = vunpack.c.l.b16 %v564
        %v606 = vunpack.c.h.b16 %v564
        %v607 = vunpack.c.l.b16 %v565
        %v608 = vunpack.c.h.b16 %v565
        %v609 = vunpack.c.l.b16 %v566
        %v610 = vunpack.c.h.b16 %v566
        %v611 = vunpack.c.l.b16 %v567
        %v612 = vunpack.c.h.b16 %v567
        %v613 = vunpack.c.l.b16 %v568
        %v614 = vunpack.c.h.b16 %v568
        %v615 = vunpack.c.l.b16 %v569
        %v616 = vunpack.c.h.b16 %v569
        %v617 = vunpack.c.l.b16 %v570
        %v618 = vunpack.c.h.b16 %v570
        %v619 = vpack.c.b16 %v589, %v587
        %v620 = vpack.c.b16 %v590, %v588
        %v621 = vpack.c.b16 %v593, %v591
        %v622 = vpack.c.b16 %v594, %v592
        %v623 = vpack.c.b16 %v597, %v595
        %v624 = vpack.c.b16 %v598, %v596
        %v625 = vpack.c.b16 %v601, %v599
        %v626 = vpack.c.b16 %v602, %v600
        %v627 = vpack.c.b16 %v605, %v603
        %v628 = vpack.c.b16 %v606, %v604
        %v629 = vpack.c.b16 %v609, %v607
        %v630 = vpack.c.b16 %v610, %v608
        %v631 = vpack.c.b16 %v613, %v611
        %v632 = vpack.c.b16 %v614, %v612
        %v633 = vpack.c.b16 %v617, %v615
        %v634 = vpack.c.b16 %v618, %v616
        %651 = vmatpush.bf16.msra.mxu0 %v633
        %652 = vmatpush.bf16.msra.mxu0 %v631
        %653 = vmatpush.bf16.msra.mxu0 %v629
        %654 = vmatpush.bf16.msra.mxu0 %v627
        %655 = vmatpush.bf16.msra.mxu0 %v625
        %656 = vmatpush.bf16.msra.mxu0 %v623
        %657 = vmatpush.bf16.msra.mxu0 %v621
        %658 = vmatpush.bf16.msra.mxu0 %v619
        %659 = vmatmul.bf16.gmra.mxu0 %v553
        %v660 = vpop.f32.mrf.mxu0
        %v661 = vadd.f32 0.0, %v660
        %v662 = vpop.f32.mrf.mxu0
        %v663 = vadd.f32 0.0, %v662
        %664 = vmatmul.bf16.gmra.mxu0 %v554
        %v665 = vpop.f32.mrf.mxu0
        %v666 = vadd.f32 0.0, %v665
        %v667 = vpop.f32.mrf.mxu0
        %v668 = vadd.f32 0.0, %v667
        %669 = vdwg.mxu0
        %670 = vmatpush.bf16.msra.mxu0 %v634
        %671 = vmatpush.bf16.msra.mxu0 %v632
        %672 = vmatpush.bf16.msra.mxu0 %v630
        %673 = vmatpush.bf16.msra.mxu0 %v628
        %674 = vmatpush.bf16.msra.mxu0 %v626
        %675 = vmatpush.bf16.msra.mxu0 %v624
        %676 = vmatpush.bf16.msra.mxu0 %v622
        %677 = vmatpush.bf16.msra.mxu0 %v620
        %678 = vmatmul.bf16.gmra.mxu0 %v553
        %v679 = vpop.f32.mrf.mxu0
        %v680 = vadd.f32 0.0, %v679
        %v681 = vpop.f32.mrf.mxu0
        %v682 = vadd.f32 0.0, %v681
        %683 = vmatmul.bf16.gmra.mxu0 %v554
        %v684 = vpop.f32.mrf.mxu0
        %v685 = vadd.f32 0.0, %v684
        %v686 = vpop.f32.mrf.mxu0
        %v687 = vadd.f32 0.0, %v686
        %688 = vdwg.mxu0
        %v689 = vadd.f32 %v545, %v661
        %v690 = vadd.f32 %v546, %v680
        %v691 = vadd.f32 %v547, %v663
        %v692 = vadd.f32 %v548, %v682
        %v693 = vadd.f32 %v549, %v666
        %v694 = vadd.f32 %v550, %v685
        %v695 = vadd.f32 %v551, %v668
        %v696 = vadd.f32 %v552, %v687
        %697 = vst [vmem:[#allocation2] sm:$0xff] %v689
        %698 = vst [vmem:[#allocation2 + $0x8] sm:$0xff] %v690
        %699 = vst [vmem:[#allocation2 + $0x10] sm:$0xff] %v691
        %700 = vst [vmem:[#allocation2 + $0x18] sm:$0xff] %v692
        %701 = vst [vmem:[#allocation2 + $0x20] sm:$0xff] %v693
        %702 = vst [vmem:[#allocation2 + $0x28] sm:$0xff] %v694
        %703 = vst [vmem:[#allocation2 + $0x30] sm:$0xff] %v695
        %704 = vst [vmem:[#allocation2 + $0x38] sm:$0xff] %v696
        // Predicated region
        $region83: #{upblock_forward.68} parent=73 // pred_check
          %p705 = pneg %p425
        $region84: #{upblock_forward.68} parent=73 // pred_check_branch
          %707 = sbr.rel (%p705) target = $region86
        $region85: #{upblock_forward.68} parent=73 // pred_region
          %v708 = vld [vmem:[#allocation2] sm:$0xff]
          %v709 = vld [vmem:[#allocation2 + $0x8] sm:$0xff]
          %v710 = vld [vmem:[#allocation2 + $0x10] sm:$0xff]
          %v711 = vld [vmem:[#allocation2 + $0x18] sm:$0xff]
          %v712 = vld [vmem:[#allocation2 + $0x20] sm:$0xff]
          %v713 = vld [vmem:[#allocation2 + $0x28] sm:$0xff]
          %v714 = vld [vmem:[#allocation2 + $0x30] sm:$0xff]
          %v715 = vld [vmem:[#allocation2 + $0x38] sm:$0xff]
          %v716 = vld [vmem:[%s415] sm:$0x3]
          %v718 = vperm.slane %v716, 0
          %v719 = vperm.slane %v716, 1
          %v722 = vadd.f32 %v708, %v718
          %v723 = vadd.f32 %v709, %v719
          %v724 = vadd.f32 %v710, %v718
          %v725 = vadd.f32 %v711, %v719
          %v726 = vadd.f32 %v712, %v718
          %v727 = vadd.f32 %v713, %v719
          %v728 = vadd.f32 %v714, %v718
          %v729 = vadd.f32 %v715, %v719
          %730 = vst [vmem:[%s400] sm:$0xff] %v722
          %731 = vst [vmem:[%s400 + $0x8] sm:$0xff] %v723
          %732 = vst [vmem:[%s400 + $0x10] sm:$0xff] %v724
          %733 = vst [vmem:[%s400 + $0x18] sm:$0xff] %v725
          %734 = vst [vmem:[%s400 + $0x20] sm:$0xff] %v726
          %735 = vst [vmem:[%s400 + $0x28] sm:$0xff] %v727
          %736 = vst [vmem:[%s400 + $0x30] sm:$0xff] %v728
          %737 = vst [vmem:[%s400 + $0x38] sm:$0xff] %v729
        $region86: #{upblock_forward.68} parent=73 // pred_fallthru
          _
        %s738 = sand.u32 %s179, 1
        %s739 = sand.u32 %s179, 1
        %s740 = smul.addr %s739, 64
        %s741 = scalar_lea.vmem [#allocation4], %s740
        // Predicated region
        $region87: #{upblock_forward.68} parent=73 // pred_check
          %p742 = pneg %p189
        $region88: #{upblock_forward.68} parent=73 // pred_check_branch
          %744 = sbr.rel (%p742) target = $region90
        $region89: #{upblock_forward.68} parent=73 // pred_region
          %s745 = smul.u32 4, %s21
          %s746 = smul.u32 2, %s22
          %s747 = smul.addr %s745, 4
          %s748 = sadd.s32 %s746, %s747
          %s749 = smul.addr %s748, 8
          %s750 = scalar_lea.vmem %s5, %s749
          // Predicated region
          $region91: #{upblock_forward.68} parent=89 // pred_check
            _
          $region92: #{upblock_forward.68} parent=89 // pred_check_branch
            %752 = sbr.rel (0) target = $region94
          $region93: #{upblock_forward.68} parent=89 // pred_region
            // Predicated region
            $region95: #{upblock_forward.68} parent=93 // pred_check
              _
            $region96: #{upblock_forward.68} parent=93 // pred_check_branch
              %754 = sbr.rel (0) target = $region98
            $region97: #{upblock_forward.68} parent=93 // pred_region
              loop: start=0, step=1, limit=1
              $region99: #{upblock_forward.68} parent=97 // loop_pre_header
                _
              $region100: #{upblock_forward.68} parent=97 // loop_header
                %s756 = sphi 0, %s760
                %p757 = scmp.ge.s32.totalorder %s756, 1
                %s761 = sphi %s741, %s741
                %s762 = sphi %s750, %s750
              $region101: #{upblock_forward.68} parent=97 // loop_header_branch
                %759 = sbr.rel (%p757) target = $region105
              $region102: #{upblock_forward.68} parent=97 // loop_body
                %v763 = vld [vmem:[%s761] sm:$0xff]
                %764 = vst [vmem:[%s762] sm:$0xff] %v763
                %v765 = vld [vmem:[%s761 + $0x8] sm:$0xff]
                %766 = vst [vmem:[%s762 + $0x8] sm:$0xff] %v765
                %v767 = vld [vmem:[%s761 + $0x10] sm:$0xff]
                %768 = vst [vmem:[%s762 + $0x20] sm:$0xff] %v767
                %v769 = vld [vmem:[%s761 + $0x18] sm:$0xff]
                %770 = vst [vmem:[%s762 + $0x28] sm:$0xff] %v769
                %v771 = vld [vmem:[%s761 + $0x20] sm:$0xff]
                %772 = vst [vmem:[%s762 + $0x40] sm:$0xff] %v771
                %v773 = vld [vmem:[%s761 + $0x28] sm:$0xff]
                %774 = vst [vmem:[%s762 + $0x48] sm:$0xff] %v773
                %v775 = vld [vmem:[%s761 + $0x30] sm:$0xff]
                %776 = vst [vmem:[%s762 + $0x60] sm:$0xff] %v775
                %v777 = vld [vmem:[%s761 + $0x38] sm:$0xff]
                %778 = vst [vmem:[%s762 + $0x68] sm:$0xff] %v777
              $region103: #{upblock_forward.68} parent=97 // loop_footer
                %s760 = sadd.s32 1, %s756
              $region104: #{upblock_forward.68} parent=97 // loop_footer_branch
                %755 = sbr.rel target = $region100
              $region105: #{upblock_forward.68} parent=97 // loop_exit
                _
            $region98: #{upblock_forward.68} parent=93 // pred_fallthru
              _
            // Predicated region
            $region106: #{upblock_forward.68} parent=93 // pred_check
              _
            $region107: #{upblock_forward.68} parent=93 // pred_check_branch
              %780 = sbr.rel target = $region109
            $region108: #{upblock_forward.68} parent=93 // pred_region
              _
            $region109: #{upblock_forward.68} parent=93 // pred_fallthru
              _
          $region94: #{upblock_forward.68} parent=89 // pred_fallthru
            _
          %781 = vnop
        $region90: #{upblock_forward.68} parent=73 // pred_fallthru
          _
      $region74: #{upblock_forward.68} parent=5 // pred_fallthru
        _
      %p782 = scmp.le.s32.totalorder 2, %s11
      // Predicated region
      $region110: #{upblock_forward.68} parent=5 // pred_check
        %p783 = pneg %p782
      $region111: #{upblock_forward.68} parent=5 // pred_check_branch
        %785 = sbr.rel (%p783) target = $region113
      $region112: #{upblock_forward.68} parent=5 // pred_region
        %s786 = ssub.s32 %s11, 2
        // Predicated region
        $region114: #{upblock_forward.68} parent=112 // pred_check
          %p787 = pneg %p195
        $region115: #{upblock_forward.68} parent=112 // pred_check_branch
          %789 = sbr.rel (%p787) target = $region117
        $region116: #{upblock_forward.68} parent=112 // pred_region
          %s790 = sand.u32 %s180, 1
          %s791 = sand.u32 %s180, 1
          %s792 = smul.addr %s791, 64
          %s793 = scalar_lea.vmem [#allocation4], %s792
        $region117: #{upblock_forward.68} parent=112 // pred_fallthru
          _
      $region113: #{upblock_forward.68} parent=5 // pred_fallthru
        _
    $region6: #{upblock_forward.68} parent=1 // loop_footer
      %s15 = sadd.s32 1, %s11
    $region7: #{upblock_forward.68} parent=1 // loop_footer_branch
      %10 = sbr.rel target = $region3
    $region8: #{upblock_forward.68} parent=1 // loop_exit
      _

// kernel: upblock_forward.69
$region0: #{upblock_forward.69}
  #allocation0 [shape = 'u32[]', space=smem, size = 0x4, offset = 0x4, fixed_abs, tag = 'smem constant byte address 0x4 - core index']
  #allocation1 [shape = 'u32[72,128]{1,0:T(1,128)}', space=vmem, size = 0x9000, scoped, tag = 'internal scratch']
  #allocation2 [shape = 'f32[32,128]{1,0:T(8,128)}', space=vmem, size = 0x4000, scoped, tag = 'scratch operand']
  %s0 = inlined_call_operand.vmem [shape: f32[32,256], index: 0, kind: input, shape index: {}]
  %s1 = inlined_call_operand.vmem [shape: bf16[256,128], index: 1, kind: input, shape index: {}]
  %s2 = inlined_call_operand.vmem [shape: f32[1,128], index: 2, kind: input, shape index: {}]
  %s3 = inlined_call_operand.vmem [shape: f32[32,128], index: 3, kind: input, shape index: {}]
  %s4 = inlined_call_operand.vmem [shape: f32[32,128], index: 4, kind: output, shape index: {}]
  %s5 = sld [smem:[#allocation0]]
  $region34: #{upblock_forward.69} parent=0
    _
  %s7 = ssub.s32 1, %s5
  %s8 = scalar_select 0, %s7, %s5
  // Predicated region
  $region2: #{upblock_forward.69} parent=0 // pred_check
    _
  $region3: #{upblock_forward.69} parent=0 // pred_check_branch
    %10 = sbr.rel (0) target = $region5
  $region4: #{upblock_forward.69} parent=0 // pred_region
    _
  $region5: #{upblock_forward.69} parent=0 // pred_fallthru
    _
  // Predicated region
  $region6: #{upblock_forward.69} parent=0 // pred_check
    _
  $region7: #{upblock_forward.69} parent=0 // pred_check_branch
    %12 = sbr.rel (0) target = $region9
  $region8: #{upblock_forward.69} parent=0 // pred_region
    _
  $region9: #{upblock_forward.69} parent=0 // pred_fallthru
    _
  // Predicated region
  $region10: #{upblock_forward.69} parent=0 // pred_check
    _
  $region11: #{upblock_forward.69} parent=0 // pred_check_branch
    %14 = sbr.rel (0) target = $region13
  $region12: #{upblock_forward.69} parent=0 // pred_region
    _
  $region13: #{upblock_forward.69} parent=0 // pred_fallthru
    _
  // Predicated region
  $region14: #{upblock_forward.69} parent=0 // pred_check
    _
  $region15: #{upblock_forward.69} parent=0 // pred_check_branch
    %16 = sbr.rel (0) target = $region17
  $region16: #{upblock_forward.69} parent=0 // pred_region
    _
  $region17: #{upblock_forward.69} parent=0 // pred_fallthru
    _
  %p17 = scmp.eq.s32.totalorder 0, 0
  // Predicated region
  $region18: #{upblock_forward.69} parent=0 // pred_check
    %p18 = pneg %p17
  $region19: #{upblock_forward.69} parent=0 // pred_check_branch
    %20 = sbr.rel (%p18) target = $region21
  $region20: #{upblock_forward.69} parent=0 // pred_region
    %21 = vst [vmem:[#allocation2] sm:$0xff] 0.0
    %22 = vst [vmem:[#allocation2 + $0x8] sm:$0xff] 0.0
    %23 = vst [vmem:[#allocation2 + $0x10] sm:$0xff] 0.0
    %24 = vst [vmem:[#allocation2 + $0x18] sm:$0xff] 0.0
  $region21: #{upblock_forward.69} parent=0 // pred_fallthru
    _
  %v25 = vld [vmem:[%s0] sm:$0xff]
  %v26 = vld [vmem:[%s0 + $0x8] sm:$0xff]
  %v27 = vld [vmem:[%s0 + $0x10] sm:$0xff]
  %v28 = vld [vmem:[%s0 + $0x18] sm:$0xff]
  %v29 = vld [vmem:[%s0 + $0x20] sm:$0xff]
  %v30 = vld [vmem:[%s0 + $0x28] sm:$0xff]
  %v31 = vld [vmem:[%s0 + $0x30] sm:$0xff]
  %v32 = vld [vmem:[%s0 + $0x38] sm:$0xff]
  %v33 = vld [vmem:[#allocation2] sm:$0xff]
  %v34 = vld [vmem:[#allocation2 + $0x8] sm:$0xff]
  %v35 = vld [vmem:[#allocation2 + $0x10] sm:$0xff]
  %v36 = vld [vmem:[#allocation2 + $0x18] sm:$0xff]
  %v37 = vpack.c.bf16 %v27, %v25
  %v38 = vpack.c.bf16 %v28, %v26
  %v39 = vpack.c.bf16 %v31, %v29
  %v40 = vpack.c.bf16 %v32, %v30
  %v41 = vld [vmem:[%s1] sm:$0xf]
  %v42 = vld [vmem:[%s1 + $0x4] sm:$0xf]
  %v43 = vld [vmem:[%s1 + $0x8] sm:$0xf]
  %v44 = vld [vmem:[%s1 + $0xc] sm:$0xf]
  %v45 = vld [vmem:[%s1 + $0x10] sm:$0xf]
  %v46 = vld [vmem:[%s1 + $0x14] sm:$0xf]
  %v47 = vld [vmem:[%s1 + $0x18] sm:$0xf]
  %v48 = vld [vmem:[%s1 + $0x1c] sm:$0xf]
  %v49 = vld [vmem:[%s1 + $0x20] sm:$0xf]
  %v50 = vld [vmem:[%s1 + $0x24] sm:$0xf]
  %v51 = vld [vmem:[%s1 + $0x28] sm:$0xf]
  %v52 = vld [vmem:[%s1 + $0x2c] sm:$0xf]
  %v53 = vld [vmem:[%s1 + $0x30] sm:$0xf]
  %v54 = vld [vmem:[%s1 + $0x34] sm:$0xf]
  %v55 = vld [vmem:[%s1 + $0x38] sm:$0xf]
  %v56 = vld [vmem:[%s1 + $0x3c] sm:$0xf]
  %v57 = vld [vmem:[%s1 + $0x40] sm:$0xf]
  %v58 = vld [vmem:[%s1 + $0x44] sm:$0xf]
  %v59 = vld [vmem:[%s1 + $0x48] sm:$0xf]
  %v60 = vld [vmem:[%s1 + $0x4c] sm:$0xf]
  %v61 = vld [vmem:[%s1 + $0x50] sm:$0xf]
  %v62 = vld [vmem:[%s1 + $0x54] sm:$0xf]
  %v63 = vld [vmem:[%s1 + $0x58] sm:$0xf]
  %v64 = vld [vmem:[%s1 + $0x5c] sm:$0xf]
  %v65 = vld [vmem:[%s1 + $0x60] sm:$0xf]
  %v66 = vld [vmem:[%s1 + $0x64] sm:$0xf]
  %v67 = vld [vmem:[%s1 + $0x68] sm:$0xf]
  %v68 = vld [vmem:[%s1 + $0x6c] sm:$0xf]
  %v69 = vld [vmem:[%s1 + $0x70] sm:$0xf]
  %v70 = vld [vmem:[%s1 + $0x74] sm:$0xf]
  %v71 = vld [vmem:[%s1 + $0x78] sm:$0xf]
  %v72 = vld [vmem:[%s1 + $0x7c] sm:$0xf]
  %v105 = vunpack.c.l.b16 %v41
  %v106 = vunpack.c.l.b16 %v42
  %v107 = vunpack.c.l.b16 %v43
  %v108 = vunpack.c.l.b16 %v44
  %v109 = vunpack.c.l.b16 %v45
  %v110 = vunpack.c.l.b16 %v46
  %v111 = vunpack.c.l.b16 %v47
  %v112 = vunpack.c.l.b16 %v48
  %v113 = vunpack.c.l.b16 %v49
  %v114 = vunpack.c.l.b16 %v50
  %v115 = vunpack.c.l.b16 %v51
  %v116 = vunpack.c.l.b16 %v52
  %v117 = vunpack.c.l.b16 %v53
  %v118 = vunpack.c.l.b16 %v54
  %v119 = vunpack.c.l.b16 %v55
  %v120 = vunpack.c.l.b16 %v56
  %v121 = vunpack.c.l.b16 %v57
  %v122 = vunpack.c.l.b16 %v58
  %v123 = vunpack.c.l.b16 %v59
  %v124 = vunpack.c.l.b16 %v60
  %v125 = vunpack.c.l.b16 %v61
  %v126 = vunpack.c.l.b16 %v62
  %v127 = vunpack.c.l.b16 %v63
  %v128 = vunpack.c.l.b16 %v64
  %v129 = vunpack.c.l.b16 %v65
  %v130 = vunpack.c.l.b16 %v66
  %v131 = vunpack.c.l.b16 %v67
  %v132 = vunpack.c.l.b16 %v68
  %v133 = vunpack.c.l.b16 %v69
  %v134 = vunpack.c.l.b16 %v70
  %v135 = vunpack.c.l.b16 %v71
  %v136 = vunpack.c.l.b16 %v72
  %v137 = vpack.c.b16 %v106, %v105
  %v138 = vpack.c.b16 %v108, %v107
  %v139 = vpack.c.b16 %v110, %v109
  %v140 = vpack.c.b16 %v112, %v111
  %v141 = vpack.c.b16 %v114, %v113
  %v142 = vpack.c.b16 %v116, %v115
  %v143 = vpack.c.b16 %v118, %v117
  %v144 = vpack.c.b16 %v120, %v119
  %v145 = vpack.c.b16 %v122, %v121
  %v146 = vpack.c.b16 %v124, %v123
  %v147 = vpack.c.b16 %v126, %v125
  %v148 = vpack.c.b16 %v128, %v127
  %v149 = vpack.c.b16 %v130, %v129
  %v150 = vpack.c.b16 %v132, %v131
  %v151 = vpack.c.b16 %v134, %v133
  %v152 = vpack.c.b16 %v136, %v135
  %169 = vmatpush.bf16.msra.mxu0 %v144
  %170 = vmatpush.bf16.msra.mxu0 %v143
  %171 = vmatpush.bf16.msra.mxu0 %v142
  %172 = vmatpush.bf16.msra.mxu0 %v141
  %173 = vmatpush.bf16.msra.mxu0 %v140
  %174 = vmatpush.bf16.msra.mxu0 %v139
  %175 = vmatpush.bf16.msra.mxu0 %v138
  %176 = vmatpush.bf16.msra.mxu0 %v137
  %177 = vmatmul.bf16.gmra.mxu0 %v37
  %v178 = vpop.f32.mrf.mxu0
  %v179 = vadd.f32 0.0, %v178
  %v180 = vpop.f32.mrf.mxu0
  %v181 = vadd.f32 0.0, %v180
  %182 = vmatmul.bf16.gmra.mxu0 %v39
  %v183 = vpop.f32.mrf.mxu0
  %v184 = vadd.f32 0.0, %v183
  %v185 = vpop.f32.mrf.mxu0
  %v186 = vadd.f32 0.0, %v185
  %187 = vdwg.mxu0
  %188 = vmatpush.bf16.msra.mxu0 %v152
  %189 = vmatpush.bf16.msra.mxu0 %v151
  %190 = vmatpush.bf16.msra.mxu0 %v150
  %191 = vmatpush.bf16.msra.mxu0 %v149
  %192 = vmatpush.bf16.msra.mxu0 %v148
  %193 = vmatpush.bf16.msra.mxu0 %v147
  %194 = vmatpush.bf16.msra.mxu0 %v146
  %195 = vmatpush.bf16.msra.mxu0 %v145
  %196 = vmatmul.bf16.gmra.mxu0 %v38
  %v197 = vpop.f32.mrf.mxu0
  %v198 = vadd.f32 %v179, %v197
  %v199 = vpop.f32.mrf.mxu0
  %v200 = vadd.f32 %v181, %v199
  %201 = vmatmul.bf16.gmra.mxu0 %v40
  %v202 = vpop.f32.mrf.mxu0
  %v203 = vadd.f32 %v184, %v202
  %v204 = vpop.f32.mrf.mxu0
  %v205 = vadd.f32 %v186, %v204
  %206 = vdwg.mxu0
  %v207 = vadd.f32 %v33, %v198
  %v208 = vadd.f32 %v34, %v200
  %v209 = vadd.f32 %v35, %v203
  %v210 = vadd.f32 %v36, %v205
  %211 = vst [vmem:[#allocation2] sm:$0xff] %v207
  %212 = vst [vmem:[#allocation2 + $0x8] sm:$0xff] %v208
  %213 = vst [vmem:[#allocation2 + $0x10] sm:$0xff] %v209
  %214 = vst [vmem:[#allocation2 + $0x18] sm:$0xff] %v210
  // Predicated region
  $region22: #{upblock_forward.69} parent=0 // pred_check
    %p215 = pneg %p17
  $region23: #{upblock_forward.69} parent=0 // pred_check_branch
    %217 = sbr.rel (%p215) target = $region25
  $region24: #{upblock_forward.69} parent=0 // pred_region
    %v218 = vld [vmem:[#allocation2] sm:$0xff]
    %v219 = vld [vmem:[#allocation2 + $0x8] sm:$0xff]
    %v220 = vld [vmem:[#allocation2 + $0x10] sm:$0xff]
    %v221 = vld [vmem:[#allocation2 + $0x18] sm:$0xff]
    %v222 = vld [vmem:[%s2] sm:$0x1]
    %v224 = vperm.slane %v222, 0
    %v226 = vadd.f32 %v218, %v224
    %v227 = vadd.f32 %v219, %v224
    %v228 = vadd.f32 %v220, %v224
    %v229 = vadd.f32 %v221, %v224
    %v230 = vld [vmem:[%s3] sm:$0xff]
    %v231 = vld [vmem:[%s3 + $0x8] sm:$0xff]
    %v232 = vld [vmem:[%s3 + $0x10] sm:$0xff]
    %v233 = vld [vmem:[%s3 + $0x18] sm:$0xff]
    %v234 = vadd.f32 %v226, %v230
    %v235 = vadd.f32 %v227, %v231
    %v236 = vadd.f32 %v228, %v232
    %v237 = vadd.f32 %v229, %v233
    %238 = vst [vmem:[%s4] sm:$0xff] %v234
    %239 = vst [vmem:[%s4 + $0x8] sm:$0xff] %v235
    %240 = vst [vmem:[%s4 + $0x10] sm:$0xff] %v236
    %241 = vst [vmem:[%s4 + $0x18] sm:$0xff] %v237
  $region25: #{upblock_forward.69} parent=0 // pred_fallthru
    _
  // Predicated region
  $region26: #{upblock_forward.69} parent=0 // pred_check
    _
  $region27: #{upblock_forward.69} parent=0 // pred_check_branch
    %243 = sbr.rel (0) target = $region29
  $region28: #{upblock_forward.69} parent=0 // pred_region
    _
  $region29: #{upblock_forward.69} parent=0 // pred_fallthru
    _
  // Predicated region
  $region30: #{upblock_forward.69} parent=0 // pred_check
    _
  $region31: #{upblock_forward.69} parent=0 // pred_check_branch
    %245 = sbr.rel (0) target = $region33
  $region32: #{upblock_forward.69} parent=0 // pred_region
    _
  $region33: #{upblock_forward.69} parent=0 // pred_fallthru
    _

// kernel: upblock_forward.73
$region0: #{upblock_forward.73}
  #allocation0 [shape = 'u32[]', space=smem, size = 0x4, offset = 0x4, fixed_abs, tag = 'smem constant byte address 0x4 - core index']
  #allocation1 [shape = 'u32[72,128]{1,0:T(1,128)}', space=vmem, size = 0x9000, scoped, tag = 'internal scratch']
  %s0 = inlined_call_operand.vmem [shape: f32[2,18,96], index: 0, kind: input, shape index: {}]
  %s1 = inlined_call_operand.vmem [shape: bf16[3,96,64], index: 1, kind: input, shape index: {}]
  %s2 = inlined_call_operand.vmem [shape: f32[1,64], index: 2, kind: input, shape index: {}]
  %s3 = inlined_call_operand.vmem [shape: f32[2,1,64], index: 3, kind: input, shape index: {}]
  %s4 = inlined_call_operand.vmem [shape: f32[2,16,64], index: 4, kind: output, shape index: {}]
  %s5 = sld [smem:[#allocation0]]
  $region49: #{upblock_forward.73} parent=0
    _
  %s7 = ssub.s32 1, %s5
  %s8 = scalar_select 0, %s7, %s5
  loop: start=0, step=1, limit=4
  $region2: #{upblock_forward.73} parent=0 // loop_pre_header
    _
  $region3: #{upblock_forward.73} parent=0 // loop_header
    %s10 = sphi 0, %s14
    %p11 = scmp.ge.s32.totalorder %s10, 4
    %s20 = sphi 0, %s22
    %s23 = sphi 0, %s20
    %s24 = sphi 0, %s23
    %s40 = sphi 0, %s24
    %s44 = sphi 0, %s44
    %s46 = sphi 0, %s44
    %s47 = sphi 0, %s46
    %s61 = sphi 0, %s47
    %s65 = sphi 0, %s65
    %s67 = sphi 0, %s65
    %s68 = sphi 0, %s67
    %s82 = sphi 0, %s68
    %s88 = sphi 0, %s90
    %s91 = sphi 0, %s88
    %s92 = sphi 0, %s91
    %s108 = sphi 0, %s92
    %s114 = sphi 0, %s116
    %s117 = sphi 0, %s114
    %s118 = sphi 0, %s117
    %s134 = sphi 0, %s118
  $region4: #{upblock_forward.73} parent=0 // loop_header_branch
    %13 = sbr.rel (%p11) target = $region8
  $region5: #{upblock_forward.73} parent=0 // loop_body
    %s15 = ssub.s32 %s10, 1
    %s16 = ssub.s32 %s10, 2
    %s17 = sadd.s32 %s10, 1
    %s18 = ssub.s32 %s10, %s17
    %p19 = scmp.eq.s32.totalorder %s18, 0
    %s21 = sadd.s32 %s20, 1
    %s22 = scalar_select %p19, %s20, %s21
    %p25 = pneg %p19
    %p26 = scmp.eq.s32.totalorder %s10, 1
    %p27 = por %p25, %p26
    %p28 = scmp.ne.s32.totalorder %s20, %s23
    %p29 = scmp.eq.s32.totalorder %s10, 0
    %p30 = por %p28, %p29
    %p31 = scmp.ne.s32.totalorder %s20, %s23
    %p32 = scmp.eq.s32.totalorder %s15, 1
    %p33 = por %p31, %p32
    %p34 = scmp.ne.s32.totalorder %s23, %s24
    %p35 = scmp.eq.s32.totalorder %s15, 0
    %p36 = por %p34, %p35
    %p37 = scmp.ne.s32.totalorder %s23, %s24
    %p38 = scmp.eq.s32.totalorder %s16, 1
    %p39 = por %p37, %p38
    %p41 = scmp.ne.s32.totalorder %s24, %s40
    %p42 = scmp.eq.s32.totalorder %s16, 0
    %p43 = por %p41, %p42
    %s45 = sadd.s32 %s44, 1
    %p48 = scmp.eq.s32.totalorder %s10, 1
    %p49 = scmp.ne.s32.totalorder %s44, %s46
    %p50 = scmp.eq.s32.totalorder %s10, 0
    %p51 = por %p49, %p50
    %p52 = scmp.ne.s32.totalorder %s44, %s46
    %p53 = scmp.eq.s32.totalorder %s15, 1
    %p54 = por %p52, %p53
    %p55 = scmp.ne.s32.totalorder %s46, %s47
    %p56 = scmp.eq.s32.totalorder %s15, 0
    %p57 = por %p55, %p56
    %p58 = scmp.ne.s32.totalorder %s46, %s47
    %p59 = scmp.eq.s32.totalorder %s16, 1
    %p60 = por %p58, %p59
    %p62 = scmp.ne.s32.totalorder %s47, %s61
    %p63 = scmp.eq.s32.totalorder %s16, 0
    %p64 = por %p62, %p63
    %s66 = sadd.s32 %s65, 1
    %p69 = scmp.eq.s32.totalorder %s10, 1
    %p70 = scmp.ne.s32.totalorder %s65, %s67
    %p71 = scmp.eq.s32.totalorder %s10, 0
    %p72 = por %p70, %p71
    %p73 = scmp.ne.s32.totalorder %s65, %s67
    %p74 = scmp.eq.s32.totalorder %s15, 1
    %p75 = por %p73, %p74
    %p76 = scmp.ne.s32.totalorder %s67, %s68
    %p77 = scmp.eq.s32.totalorder %s15, 0
    %p78 = por %p76, %p77
    %p79 = scmp.ne.s32.totalorder %s67, %s68
    %p80 = scmp.eq.s32.totalorder %s16, 1
    %p81 = por %p79, %p80
    %p83 = scmp.ne.s32.totalorder %s68, %s82
    %p84 = scmp.eq.s32.totalorder %s16, 0
    %p85 = por %p83, %p84
    %s86 = ssub.s32 %s10, %s17
    %p87 = scmp.eq.s32.totalorder %s86, 0
    %s89 = sadd.s32 %s88, 1
    %s90 = scalar_select %p87, %s88, %s89
    %p93 = pneg %p87
    %p94 = scmp.eq.s32.totalorder %s10, 1
    %p95 = por %p93, %p94
    %p96 = scmp.ne.s32.totalorder %s88, %s91
    %p97 = scmp.eq.s32.totalorder %s10, 0
    %p98 = por %p96, %p97
    %p99 = scmp.ne.s32.totalorder %s88, %s91
    %p100 = scmp.eq.s32.totalorder %s15, 1
    %p101 = por %p99, %p100
    %p102 = scmp.ne.s32.totalorder %s91, %s92
    %p103 = scmp.eq.s32.totalorder %s15, 0
    %p104 = por %p102, %p103
    %p105 = scmp.ne.s32.totalorder %s91, %s92
    %p106 = scmp.eq.s32.totalorder %s16, 1
    %p107 = por %p105, %p106
    %p109 = scmp.ne.s32.totalorder %s92, %s108
    %p110 = scmp.eq.s32.totalorder %s16, 0
    %p111 = por %p109, %p110
    %s112 = ssub.s32 %s10, %s17
    %p113 = scmp.eq.s32.totalorder %s112, 0
    %s115 = sadd.s32 %s114, 1
    %s116 = scalar_select %p113, %s114, %s115
    %p119 = pneg %p113
    %p120 = scmp.eq.s32.totalorder %s10, 1
    %p121 = por %p119, %p120
    %p122 = scmp.ne.s32.totalorder %s114, %s117
    %p123 = scmp.eq.s32.totalorder %s10, 0
    %p124 = por %p122, %p123
    %p125 = scmp.ne.s32.totalorder %s114, %s117
    %p126 = scmp.eq.s32.totalorder %s15, 1
    %p127 = por %p125, %p126
    %p128 = scmp.ne.s32.totalorder %s117, %s118
    %p129 = scmp.eq.s32.totalorder %s15, 0
    %p130 = por %p128, %p129
    %p131 = scmp.ne.s32.totalorder %s117, %s118
    %p132 = scmp.eq.s32.totalorder %s16, 1
    %p133 = por %p131, %p132
    %p135 = scmp.ne.s32.totalorder %s118, %s134
    %p136 = scmp.eq.s32.totalorder %s16, 0
    %p137 = por %p135, %p136
    %p138 = scmp.le.s32.totalorder 1, %s10
    %p139 = scmp.lt.s32.totalorder %s10, 3
    %p140 = pnand %p138, %p139
    %p141 = pneg %p140
    // Predicated region
    $region9: #{upblock_forward.73} parent=5 // pred_check
      _
    $region10: #{upblock_forward.73} parent=5 // pred_check_branch
      %143 = sbr.rel (%p140) target = $region12
    $region11: #{upblock_forward.73} parent=5 // pred_region
      %s144 = ssub.s32 %s10, 1
      // Predicated region
      $region13: #{upblock_forward.73} parent=11 // pred_check
        %p145 = pneg %p57
      $region14: #{upblock_forward.73} parent=11 // pred_check_branch
        %147 = sbr.rel (%p145) target = $region16
      $region15: #{upblock_forward.73} parent=11 // pred_region
        _
      $region16: #{upblock_forward.73} parent=11 // pred_fallthru
        _
      // Predicated region
      $region17: #{upblock_forward.73} parent=11 // pred_check
        %p148 = pneg %p78
      $region18: #{upblock_forward.73} parent=11 // pred_check_branch
        %150 = sbr.rel (%p148) target = $region20
      $region19: #{upblock_forward.73} parent=11 // pred_region
        _
      $region20: #{upblock_forward.73} parent=11 // pred_fallthru
        _
    $region12: #{upblock_forward.73} parent=5 // pred_fallthru
      _
    %p151 = scmp.lt.s32.totalorder %s10, 2
    // Predicated region
    $region21: #{upblock_forward.73} parent=5 // pred_check
      %p152 = pneg %p151
    $region22: #{upblock_forward.73} parent=5 // pred_check_branch
      %154 = sbr.rel (%p152) target = $region24
    $region23: #{upblock_forward.73} parent=5 // pred_region
      // Predicated region
      $region25: #{upblock_forward.73} parent=23 // pred_check
        %p155 = pneg %p30
      $region26: #{upblock_forward.73} parent=23 // pred_check_branch
        %157 = sbr.rel (%p155) target = $region28
      $region27: #{upblock_forward.73} parent=23 // pred_region
        %p158 = scmp.lt.s32.totalorder %s10, 1
        %s159 = scalar_select %p158, %s10, 1
        %s160 = smul.addr %s159, 3
        %s161 = smul.addr %s160, 8
        %s162 = scalar_lea.vmem %s0, %s161
      $region28: #{upblock_forward.73} parent=23 // pred_fallthru
        _
      // Predicated region
      $region29: #{upblock_forward.73} parent=23 // pred_check
        %p163 = pneg %p98
      $region30: #{upblock_forward.73} parent=23 // pred_check_branch
        %165 = sbr.rel (%p163) target = $region32
      $region31: #{upblock_forward.73} parent=23 // pred_region
        %p166 = scmp.lt.s32.totalorder %s10, 1
        %s167 = scalar_select %p166, %s10, 1
        %s168 = scalar_lea.vmem %s3, %s167
      $region32: #{upblock_forward.73} parent=23 // pred_fallthru
        _
    $region24: #{upblock_forward.73} parent=5 // pred_fallthru
      _
    %p169 = scmp.le.s32.totalorder 1, %s10
    %p170 = scmp.lt.s32.totalorder %s10, 3
    %p171 = pnand %p169, %p170
    %p172 = pneg %p171
    // Predicated region
    $region33: #{upblock_forward.73} parent=5 // pred_check
      _
    $region34: #{upblock_forward.73} parent=5 // pred_check_branch
      %174 = sbr.rel (%p171) target = $region36
    $region35: #{upblock_forward.73} parent=5 // pred_region
      %s175 = ssub.s32 %s10, 1
      %p176 = scmp.lt.s32.totalorder %s15, 1
      %s177 = scalar_select %p176, %s15, 1
      %s178 = smul.addr %s177, 3
      %s179 = smul.addr %s178, 8
      %s180 = scalar_lea.vmem %s0, %s179
      %p181 = pneg %p36
      %p182 = pneg %p33
      %p183 = pneg %p57
      %p184 = pneg %p54
      %p185 = pneg %p78
      %p186 = pneg %p75
      %p187 = scmp.lt.s32.totalorder %s15, 1
      %s188 = scalar_select %p187, %s15, 1
      %s189 = scalar_lea.vmem %s3, %s188
      %p190 = pneg %p104
      %p191 = pneg %p101
      %p192 = pneg %p130
      %p193 = pneg %p127
      %p194 = scmp.lt.s32.totalorder %s15, 1
      %s195 = scalar_select %p194, %s15, 1
      %s196 = smul.addr %s195, 2
      %s197 = smul.addr %s196, 8
      %s198 = scalar_lea.vmem %s4, %s197
      %p199 = scmp.lt.s32.totalorder %s15, 1
      %s200 = scalar_select %p199, %s15, 1
      %s201 = smul.addr %s200, 3
      %s202 = smul.addr %s201, 8
      %s203 = scalar_lea.vmem %s0, %s202
      %p204 = scmp.lt.s32.totalorder %s15, 1
      %s205 = scalar_select %p204, %s15, 1
      %s206 = scalar_lea.vmem %s3, %s205
      %p207 = scmp.lt.s32.totalorder %s15, 1
      %s208 = scalar_select %p207, %s15, 1
      %s209 = smul.addr %s208, 2
      %s210 = smul.addr %s209, 8
      %s211 = scalar_lea.vmem %s4, %s210
      %v213 = vld [vmem:[%s1] sm:$0xf]
      %v214 = vld [vmem:[%s1 + $0x4] sm:$0xf]
      %v215 = vld [vmem:[%s1 + $0x8] sm:$0xf]
      %v216 = vld [vmem:[%s1 + $0xc] sm:$0xf]
      %v217 = vld [vmem:[%s1 + $0x10] sm:$0xf]
      %v218 = vld [vmem:[%s1 + $0x14] sm:$0xf]
      %v219 = vld [vmem:[%s1 + $0x18] sm:$0xf]
      %v220 = vld [vmem:[%s1 + $0x1c] sm:$0xf]
      %v221 = vld [vmem:[%s1 + $0x20] sm:$0xf]
      %v222 = vld [vmem:[%s1 + $0x24] sm:$0xf]
      %v223 = vld [vmem:[%s1 + $0x28] sm:$0xf]
      %v224 = vld [vmem:[%s1 + $0x2c] sm:$0xf]
      %v225 = vld [vmem:[%s1 + $0x30] sm:$0xf]
      %v226 = vld [vmem:[%s1 + $0x34] sm:$0xf]
      %v227 = vld [vmem:[%s1 + $0x38] sm:$0xf]
      %v228 = vld [vmem:[%s1 + $0x3c] sm:$0xf]
      %v229 = vld [vmem:[%s1 + $0x40] sm:$0xf]
      %v230 = vld [vmem:[%s1 + $0x44] sm:$0xf]
      %v231 = vld [vmem:[%s1 + $0x48] sm:$0xf]
      %v232 = vld [vmem:[%s1 + $0x4c] sm:$0xf]
      %v233 = vld [vmem:[%s1 + $0x50] sm:$0xf]
      %v234 = vld [vmem:[%s1 + $0x54] sm:$0xf]
      %v235 = vld [vmem:[%s1 + $0x58] sm:$0xf]
      %v236 = vld [vmem:[%s1 + $0x5c] sm:$0xf]
      %v237 = vld [vmem:[%s1 + $0x60] sm:$0xf]
      %v238 = vld [vmem:[%s1 + $0x64] sm:$0xf]
      %v239 = vld [vmem:[%s1 + $0x68] sm:$0xf]
      %v240 = vld [vmem:[%s1 + $0x6c] sm:$0xf]
      %v241 = vld [vmem:[%s1 + $0x70] sm:$0xf]
      %v242 = vld [vmem:[%s1 + $0x74] sm:$0xf]
      %v243 = vld [vmem:[%s1 + $0x78] sm:$0xf]
      %v244 = vld [vmem:[%s1 + $0x7c] sm:$0xf]
      %v245 = vld [vmem:[%s1 + $0x80] sm:$0xf]
      %v246 = vld [vmem:[%s1 + $0x84] sm:$0xf]
      %v247 = vld [vmem:[%s1 + $0x88] sm:$0xf]
      %v248 = vld [vmem:[%s1 + $0x8c] sm:$0xf]
      %v249 = vld [vmem:[%s203] sm:$0xff]
      %v250 = vld [vmem:[%s203 + $0x8] sm:$0xff]
      %v251 = vpack.c.bf16 %v250, %v249
      %v252 = vld [vmem:[%s203 + $0x1] sm:$0xff]
      %v253 = vld [vmem:[%s203 + $0x9] sm:$0xff]
      %v254 = vpack.c.bf16 %v253, %v252
      %v255 = vld [vmem:[%s203 + $0x2] sm:$0xff]
      %v256 = vld [vmem:[%s203 + $0xa] sm:$0xff]
      %v257 = vpack.c.bf16 %v256, %v255
      %v270 = vunpack.c.l.b16 %v225
      %v271 = vunpack.c.l.b16 %v226
      %v272 = vunpack.c.l.b16 %v227
      %v273 = vunpack.c.l.b16 %v228
      %v274 = vunpack.c.l.b16 %v229
      %v275 = vunpack.c.l.b16 %v230
      %v276 = vunpack.c.l.b16 %v231
      %v277 = vunpack.c.l.b16 %v232
      %v278 = vunpack.c.l.b16 %v233
      %v279 = vunpack.c.l.b16 %v234
      %v280 = vunpack.c.l.b16 %v235
      %v281 = vunpack.c.l.b16 %v236
      %v282 = vpack.c.b16 %v271, %v270
      %v283 = vpack.c.b16 %v273, %v272
      %v284 = vpack.c.b16 %v275, %v274
      %v285 = vpack.c.b16 %v277, %v276
      %v286 = vpack.c.b16 %v279, %v278
      %v287 = vpack.c.b16 %v281, %v280
      %vm294 = vcmask 785408
      %v296 = vsel %vm294, %v254, 0
      %298 = vmatpush.bf16.msra.mxu0 0
      %299 = vmatpush.bf16.msra.mxu0 0
      %300 = vmatpush.bf16.msra.mxu0 %v287
      %301 = vmatpush.bf16.msra.mxu0 %v286
      %302 = vmatpush.bf16.msra.mxu0 %v285
      %303 = vmatpush.bf16.msra.mxu0 %v284
      %304 = vmatpush.bf16.msra.mxu0 %v283
      %305 = vmatpush.bf16.msra.mxu0 %v282
      %306 = vmatmul.bf16.gmra.mxu0 %v296
      %v307 = vpop.f32.mrf.mxu0
      %v308 = vadd.f32 0.0, %v307
      %v309 = vpop.f32.mrf.mxu0
      %v310 = vadd.f32 0.0, %v309
      %311 = vdwg.mxu0
      %v324 = vunpack.c.l.b16 %v213
      %v325 = vunpack.c.l.b16 %v214
      %v326 = vunpack.c.l.b16 %v215
      %v327 = vunpack.c.l.b16 %v216
      %v328 = vunpack.c.l.b16 %v217
      %v329 = vunpack.c.l.b16 %v218
      %v330 = vunpack.c.l.b16 %v219
      %v331 = vunpack.c.l.b16 %v220
      %v332 = vunpack.c.l.b16 %v221
      %v333 = vunpack.c.l.b16 %v222
      %v334 = vunpack.c.l.b16 %v223
      %v335 = vunpack.c.l.b16 %v224
      %v336 = vpack.c.b16 %v325, %v324
      %v337 = vpack.c.b16 %v327, %v326
      %v338 = vpack.c.b16 %v329, %v328
      %v339 = vpack.c.b16 %v331, %v330
      %v340 = vpack.c.b16 %v333, %v332
      %v341 = vpack.c.b16 %v335, %v334
      %v349 = vsel %vm294, %v251, 0
      %351 = vmatpush.bf16.msra.mxu0 0
      %352 = vmatpush.bf16.msra.mxu0 0
      %353 = vmatpush.bf16.msra.mxu0 %v341
      %354 = vmatpush.bf16.msra.mxu0 %v340
      %355 = vmatpush.bf16.msra.mxu0 %v339
      %356 = vmatpush.bf16.msra.mxu0 %v338
      %357 = vmatpush.bf16.msra.mxu0 %v337
      %358 = vmatpush.bf16.msra.mxu0 %v336
      %359 = vmatmul.bf16.gmra.mxu0 %v349
      %v360 = vpop.f32.mrf.mxu0
      %v361 = vadd.f32 %v308, %v360
      %v362 = vpop.f32.mrf.mxu0
      %v363 = vadd.f32 %v310, %v362
      %364 = vdwg.mxu0
      %v377 = vunpack.c.l.b16 %v237
      %v378 = vunpack.c.l.b16 %v238
      %v379 = vunpack.c.l.b16 %v239
      %v380 = vunpack.c.l.b16 %v240
      %v381 = vunpack.c.l.b16 %v241
      %v382 = vunpack.c.l.b16 %v242
      %v383 = vunpack.c.l.b16 %v243
      %v384 = vunpack.c.l.b16 %v244
      %v385 = vunpack.c.l.b16 %v245
      %v386 = vunpack.c.l.b16 %v246
      %v387 = vunpack.c.l.b16 %v247
      %v388 = vunpack.c.l.b16 %v248
      %v389 = vpack.c.b16 %v378, %v377
      %v390 = vpack.c.b16 %v380, %v379
      %v391 = vpack.c.b16 %v382, %v381
      %v392 = vpack.c.b16 %v384, %v383
      %v393 = vpack.c.b16 %v386, %v385
      %v394 = vpack.c.b16 %v388, %v387
      %v402 = vsel %vm294, %v257, 0
      %404 = vmatpush.bf16.msra.mxu0 0
      %405 = vmatpush.bf16.msra.mxu0 0
      %406 = vmatpush.bf16.msra.mxu0 %v394
      %407 = vmatpush.bf16.msra.mxu0 %v393
      %408 = vmatpush.bf16.msra.mxu0 %v392
      %409 = vmatpush.bf16.msra.mxu0 %v391
      %410 = vmatpush.bf16.msra.mxu0 %v390
      %411 = vmatpush.bf16.msra.mxu0 %v389
      %412 = vmatmul.bf16.gmra.mxu0 %v402
      %v413 = vpop.f32.mrf.mxu0
      %v414 = vadd.f32 0.0, %v413
      %v415 = vpop.f32.mrf.mxu0
      %v416 = vadd.f32 0.0, %v415
      %417 = vdwg.mxu0
      %v418 = vadd.f32 %v361, %v414
      %v419 = vadd.f32 %v363, %v416
      %v420 = vld [vmem:[%s2] sm:$0x1]
      %v422 = vperm.slane %v420, 0
      %v424 = vadd.f32 %v418, %v422
      %v425 = vadd.f32 %v419, %v422
      %v426 = vld [vmem:[%s206] sm:$0x1]
      %v428 = vperm.slane %v426, 0
      %v430 = vadd.f32 %v424, %v428
      %v431 = vadd.f32 %v425, %v428
      %vm432 = vcmask 523264
      %433 = vst.msk [vmem:[%s211] sm:$0xff] %vm432, %v430
      %434 = vst.msk [vmem:[%s211 + $0x8] sm:$0xff] %vm432, %v431
      %p435 = scmp.lt.s32.totalorder %s15, 1
      %s436 = scalar_select %p435, %s15, 1
      %s437 = smul.addr %s436, 2
      %s438 = smul.addr %s437, 8
      %s439 = scalar_lea.vmem %s4, %s438
      // Predicated region
      $region37: #{upblock_forward.73} parent=35 // pred_check
        %p440 = pneg %p127
      $region38: #{upblock_forward.73} parent=35 // pred_check_branch
        %442 = sbr.rel (%p440) target = $region40
      $region39: #{upblock_forward.73} parent=35 // pred_region
        _
      $region40: #{upblock_forward.73} parent=35 // pred_fallthru
        _
    $region36: #{upblock_forward.73} parent=5 // pred_fallthru
      _
    %p443 = scmp.le.s32.totalorder 2, %s10
    // Predicated region
    $region41: #{upblock_forward.73} parent=5 // pred_check
      %p444 = pneg %p443
    $region42: #{upblock_forward.73} parent=5 // pred_check_branch
      %446 = sbr.rel (%p444) target = $region44
    $region43: #{upblock_forward.73} parent=5 // pred_region
      %s447 = ssub.s32 %s10, 2
      // Predicated region
      $region45: #{upblock_forward.73} parent=43 // pred_check
        %p448 = pneg %p133
      $region46: #{upblock_forward.73} parent=43 // pred_check_branch
        %450 = sbr.rel (%p448) target = $region48
      $region47: #{upblock_forward.73} parent=43 // pred_region
        %p451 = scmp.lt.s32.totalorder %s16, 1
        %s452 = scalar_select %p451, %s16, 1
        %s453 = smul.addr %s452, 2
        %s454 = smul.addr %s453, 8
        %s455 = scalar_lea.vmem %s4, %s454
      $region48: #{upblock_forward.73} parent=43 // pred_fallthru
        _
    $region44: #{upblock_forward.73} parent=5 // pred_fallthru
      _
  $region6: #{upblock_forward.73} parent=0 // loop_footer
    %s14 = sadd.s32 1, %s10
  $region7: #{upblock_forward.73} parent=0 // loop_footer_branch
    %9 = sbr.rel target = $region3
  $region8: #{upblock_forward.73} parent=0 // loop_exit
    _

// kernel: upblock_forward.72
$region0: #{upblock_forward.72}
  #allocation0 [shape = 'u32[]', space=smem, size = 0x4, offset = 0x4, fixed_abs, tag = 'smem constant byte address 0x4 - core index']
  #allocation1 [shape = 'u32[72,128]{1,0:T(1,128)}', space=vmem, size = 0x9000, scoped, tag = 'internal scratch']
  %s0 = inlined_call_operand.vmem [shape: f32[2,16,96], index: 0, kind: input, shape index: {}]
  %s1 = inlined_call_operand.vmem [shape: f32[96,32], index: 1, kind: input, shape index: {}]
  %s2 = inlined_call_operand.vmem [shape: f32[32,96], index: 2, kind: input, shape index: {}]
  %s3 = inlined_call_operand.vmem [shape: f32[1,1,96], index: 3, kind: input, shape index: {}]
  %s4 = inlined_call_operand.vmem [shape: f32[1,1,96], index: 4, kind: input, shape index: {}]
  %s5 = inlined_call_operand.vmem [shape: f32[2,16,96], index: 5, kind: output, shape index: {}]
  %s6 = sld [smem:[#allocation0]]
  $region53: #{upblock_forward.72} parent=0
    _
  %s8 = ssub.s32 1, %s6
  %s9 = scalar_select 0, %s8, %s6
  loop: start=0, step=1, limit=4
  $region2: #{upblock_forward.72} parent=0 // loop_pre_header
    _
  $region3: #{upblock_forward.72} parent=0 // loop_header
    %s11 = sphi 0, %s15
    %p12 = scmp.ge.s32.totalorder %s11, 4
    %s21 = sphi 0, %s23
    %s24 = sphi 0, %s21
    %s25 = sphi 0, %s24
    %s41 = sphi 0, %s25
    %s45 = sphi 0, %s45
    %s47 = sphi 0, %s45
    %s48 = sphi 0, %s47
    %s62 = sphi 0, %s48
    %s66 = sphi 0, %s66
    %s68 = sphi 0, %s66
    %s69 = sphi 0, %s68
    %s83 = sphi 0, %s69
    %s87 = sphi 0, %s87
    %s89 = sphi 0, %s87
    %s90 = sphi 0, %s89
    %s104 = sphi 0, %s90
    %s108 = sphi 0, %s108
    %s110 = sphi 0, %s108
    %s111 = sphi 0, %s110
    %s125 = sphi 0, %s111
    %s131 = sphi 0, %s133
    %s134 = sphi 0, %s131
    %s135 = sphi 0, %s134
    %s151 = sphi 0, %s135
  $region4: #{upblock_forward.72} parent=0 // loop_header_branch
    %14 = sbr.rel (%p12) target = $region8
  $region5: #{upblock_forward.72} parent=0 // loop_body
    %s16 = ssub.s32 %s11, 1
    %s17 = ssub.s32 %s11, 2
    %s18 = sadd.s32 %s11, 1
    %s19 = ssub.s32 %s11, %s18
    %p20 = scmp.eq.s32.totalorder %s19, 0
    %s22 = sadd.s32 %s21, 1
    %s23 = scalar_select %p20, %s21, %s22
    %p26 = pneg %p20
    %p27 = scmp.eq.s32.totalorder %s11, 1
    %p28 = por %p26, %p27
    %p29 = scmp.ne.s32.totalorder %s21, %s24
    %p30 = scmp.eq.s32.totalorder %s11, 0
    %p31 = por %p29, %p30
    %p32 = scmp.ne.s32.totalorder %s21, %s24
    %p33 = scmp.eq.s32.totalorder %s16, 1
    %p34 = por %p32, %p33
    %p35 = scmp.ne.s32.totalorder %s24, %s25
    %p36 = scmp.eq.s32.totalorder %s16, 0
    %p37 = por %p35, %p36
    %p38 = scmp.ne.s32.totalorder %s24, %s25
    %p39 = scmp.eq.s32.totalorder %s17, 1
    %p40 = por %p38, %p39
    %p42 = scmp.ne.s32.totalorder %s25, %s41
    %p43 = scmp.eq.s32.totalorder %s17, 0
    %p44 = por %p42, %p43
    %s46 = sadd.s32 %s45, 1
    %p49 = scmp.eq.s32.totalorder %s11, 1
    %p50 = scmp.ne.s32.totalorder %s45, %s47
    %p51 = scmp.eq.s32.totalorder %s11, 0
    %p52 = por %p50, %p51
    %p53 = scmp.ne.s32.totalorder %s45, %s47
    %p54 = scmp.eq.s32.totalorder %s16, 1
    %p55 = por %p53, %p54
    %p56 = scmp.ne.s32.totalorder %s47, %s48
    %p57 = scmp.eq.s32.totalorder %s16, 0
    %p58 = por %p56, %p57
    %p59 = scmp.ne.s32.totalorder %s47, %s48
    %p60 = scmp.eq.s32.totalorder %s17, 1
    %p61 = por %p59, %p60
    %p63 = scmp.ne.s32.totalorder %s48, %s62
    %p64 = scmp.eq.s32.totalorder %s17, 0
    %p65 = por %p63, %p64
    %s67 = sadd.s32 %s66, 1
    %p70 = scmp.eq.s32.totalorder %s11, 1
    %p71 = scmp.ne.s32.totalorder %s66, %s68
    %p72 = scmp.eq.s32.totalorder %s11, 0
    %p73 = por %p71, %p72
    %p74 = scmp.ne.s32.totalorder %s66, %s68
    %p75 = scmp.eq.s32.totalorder %s16, 1
    %p76 = por %p74, %p75
    %p77 = scmp.ne.s32.totalorder %s68, %s69
    %p78 = scmp.eq.s32.totalorder %s16, 0
    %p79 = por %p77, %p78
    %p80 = scmp.ne.s32.totalorder %s68, %s69
    %p81 = scmp.eq.s32.totalorder %s17, 1
    %p82 = por %p80, %p81
    %p84 = scmp.ne.s32.totalorder %s69, %s83
    %p85 = scmp.eq.s32.totalorder %s17, 0
    %p86 = por %p84, %p85
    %s88 = sadd.s32 %s87, 1
    %p91 = scmp.eq.s32.totalorder %s11, 1
    %p92 = scmp.ne.s32.totalorder %s87, %s89
    %p93 = scmp.eq.s32.totalorder %s11, 0
    %p94 = por %p92, %p93
    %p95 = scmp.ne.s32.totalorder %s87, %s89
    %p96 = scmp.eq.s32.totalorder %s16, 1
    %p97 = por %p95, %p96
    %p98 = scmp.ne.s32.totalorder %s89, %s90
    %p99 = scmp.eq.s32.totalorder %s16, 0
    %p100 = por %p98, %p99
    %p101 = scmp.ne.s32.totalorder %s89, %s90
    %p102 = scmp.eq.s32.totalorder %s17, 1
    %p103 = por %p101, %p102
    %p105 = scmp.ne.s32.totalorder %s90, %s104
    %p106 = scmp.eq.s32.totalorder %s17, 0
    %p107 = por %p105, %p106
    %s109 = sadd.s32 %s108, 1
    %p112 = scmp.eq.s32.totalorder %s11, 1
    %p113 = scmp.ne.s32.totalorder %s108, %s110
    %p114 = scmp.eq.s32.totalorder %s11, 0
    %p115 = por %p113, %p114
    %p116 = scmp.ne.s32.totalorder %s108, %s110
    %p117 = scmp.eq.s32.totalorder %s16, 1
    %p118 = por %p116, %p117
    %p119 = scmp.ne.s32.totalorder %s110, %s111
    %p120 = scmp.eq.s32.totalorder %s16, 0
    %p121 = por %p119, %p120
    %p122 = scmp.ne.s32.totalorder %s110, %s111
    %p123 = scmp.eq.s32.totalorder %s17, 1
    %p124 = por %p122, %p123
    %p126 = scmp.ne.s32.totalorder %s111, %s125
    %p127 = scmp.eq.s32.totalorder %s17, 0
    %p128 = por %p126, %p127
    %s129 = ssub.s32 %s11, %s18
    %p130 = scmp.eq.s32.totalorder %s129, 0
    %s132 = sadd.s32 %s131, 1
    %s133 = scalar_select %p130, %s131, %s132
    %p136 = pneg %p130
    %p137 = scmp.eq.s32.totalorder %s11, 1
    %p138 = por %p136, %p137
    %p139 = scmp.ne.s32.totalorder %s131, %s134
    %p140 = scmp.eq.s32.totalorder %s11, 0
    %p141 = por %p139, %p140
    %p142 = scmp.ne.s32.totalorder %s131, %s134
    %p143 = scmp.eq.s32.totalorder %s16, 1
    %p144 = por %p142, %p143
    %p145 = scmp.ne.s32.totalorder %s134, %s135
    %p146 = scmp.eq.s32.totalorder %s16, 0
    %p147 = por %p145, %p146
    %p148 = scmp.ne.s32.totalorder %s134, %s135
    %p149 = scmp.eq.s32.totalorder %s17, 1
    %p150 = por %p148, %p149
    %p152 = scmp.ne.s32.totalorder %s135, %s151
    %p153 = scmp.eq.s32.totalorder %s17, 0
    %p154 = por %p152, %p153
    %p155 = scmp.le.s32.totalorder 1, %s11
    %p156 = scmp.lt.s32.totalorder %s11, 3
    %p157 = pnand %p155, %p156
    %p158 = pneg %p157
    // Predicated region
    $region9: #{upblock_forward.72} parent=5 // pred_check
      _
    $region10: #{upblock_forward.72} parent=5 // pred_check_branch
      %160 = sbr.rel (%p157) target = $region12
    $region11: #{upblock_forward.72} parent=5 // pred_region
      %s161 = ssub.s32 %s11, 1
      // Predicated region
      $region13: #{upblock_forward.72} parent=11 // pred_check
        %p162 = pneg %p58
      $region14: #{upblock_forward.72} parent=11 // pred_check_branch
        %164 = sbr.rel (%p162) target = $region16
      $region15: #{upblock_forward.72} parent=11 // pred_region
        _
      $region16: #{upblock_forward.72} parent=11 // pred_fallthru
        _
      // Predicated region
      $region17: #{upblock_forward.72} parent=11 // pred_check
        %p165 = pneg %p79
      $region18: #{upblock_forward.72} parent=11 // pred_check_branch
        %167 = sbr.rel (%p165) target = $region20
      $region19: #{upblock_forward.72} parent=11 // pred_region
        _
      $region20: #{upblock_forward.72} parent=11 // pred_fallthru
        _
      // Predicated region
      $region21: #{upblock_forward.72} parent=11 // pred_check
        %p168 = pneg %p100
      $region22: #{upblock_forward.72} parent=11 // pred_check_branch
        %170 = sbr.rel (%p168) target = $region24
      $region23: #{upblock_forward.72} parent=11 // pred_region
        _
      $region24: #{upblock_forward.72} parent=11 // pred_fallthru
        _
      // Predicated region
      $region25: #{upblock_forward.72} parent=11 // pred_check
        %p171 = pneg %p121
      $region26: #{upblock_forward.72} parent=11 // pred_check_branch
        %173 = sbr.rel (%p171) target = $region28
      $region27: #{upblock_forward.72} parent=11 // pred_region
        _
      $region28: #{upblock_forward.72} parent=11 // pred_fallthru
        _
    $region12: #{upblock_forward.72} parent=5 // pred_fallthru
      _
    %p174 = scmp.lt.s32.totalorder %s11, 2
    // Predicated region
    $region29: #{upblock_forward.72} parent=5 // pred_check
      %p175 = pneg %p174
    $region30: #{upblock_forward.72} parent=5 // pred_check_branch
      %177 = sbr.rel (%p175) target = $region32
    $region31: #{upblock_forward.72} parent=5 // pred_region
      // Predicated region
      $region33: #{upblock_forward.72} parent=31 // pred_check
        %p178 = pneg %p31
      $region34: #{upblock_forward.72} parent=31 // pred_check_branch
        %180 = sbr.rel (%p178) target = $region36
      $region35: #{upblock_forward.72} parent=31 // pred_region
        %p181 = scmp.lt.s32.totalorder %s11, 1
        %s182 = scalar_select %p181, %s11, 1
        %s183 = smul.addr %s182, 2
        %s184 = smul.addr %s183, 8
        %s185 = scalar_lea.vmem %s0, %s184
      $region36: #{upblock_forward.72} parent=31 // pred_fallthru
        _
    $region32: #{upblock_forward.72} parent=5 // pred_fallthru
      _
    %p186 = scmp.le.s32.totalorder 1, %s11
    %p187 = scmp.lt.s32.totalorder %s11, 3
    %p188 = pnand %p186, %p187
    %p189 = pneg %p188
    // Predicated region
    $region37: #{upblock_forward.72} parent=5 // pred_check
      _
    $region38: #{upblock_forward.72} parent=5 // pred_check_branch
      %191 = sbr.rel (%p188) target = $region40
    $region39: #{upblock_forward.72} parent=5 // pred_region
      %s192 = ssub.s32 %s11, 1
      %p193 = scmp.lt.s32.totalorder %s16, 1
      %s194 = scalar_select %p193, %s16, 1
      %s195 = smul.addr %s194, 2
      %s196 = smul.addr %s195, 8
      %s197 = scalar_lea.vmem %s0, %s196
      %p198 = pneg %p37
      %p199 = pneg %p34
      %p200 = pneg %p58
      %p201 = pneg %p55
      %p202 = pneg %p79
      %p203 = pneg %p76
      %p204 = pneg %p100
      %p205 = pneg %p97
      %p206 = pneg %p121
      %p207 = pneg %p118
      %p208 = pneg %p147
      %p209 = pneg %p144
      %p210 = scmp.lt.s32.totalorder %s16, 1
      %s211 = scalar_select %p210, %s16, 1
      %s212 = smul.addr %s211, 2
      %s213 = smul.addr %s212, 8
      %s214 = scalar_lea.vmem %s5, %s213
      %p215 = scmp.lt.s32.totalorder %s16, 1
      %s216 = scalar_select %p215, %s16, 1
      %s217 = smul.addr %s216, 2
      %s218 = smul.addr %s217, 8
      %s219 = scalar_lea.vmem %s0, %s218
      %p220 = scmp.lt.s32.totalorder %s16, 1
      %s221 = scalar_select %p220, %s16, 1
      %s222 = smul.addr %s221, 2
      %s223 = smul.addr %s222, 8
      %s224 = scalar_lea.vmem %s5, %s223
      %v225 = vld [vmem:[%s219] sm:$0xff]
      %v226 = vld [vmem:[%s219 + $0x8] sm:$0xff]
      %v227 = vld [vmem:[%s1] sm:$0xff]
      %v228 = vld [vmem:[%s1 + $0x8] sm:$0xff]
      %v229 = vld [vmem:[%s1 + $0x10] sm:$0xff]
      %v230 = vld [vmem:[%s1 + $0x18] sm:$0xff]
      %v231 = vld [vmem:[%s1 + $0x20] sm:$0xff]
      %v232 = vld [vmem:[%s1 + $0x28] sm:$0xff]
      %v233 = vld [vmem:[%s1 + $0x30] sm:$0xff]
      %v234 = vld [vmem:[%s1 + $0x38] sm:$0xff]
      %v235 = vld [vmem:[%s1 + $0x40] sm:$0xff]
      %v236 = vld [vmem:[%s1 + $0x48] sm:$0xff]
      %v237 = vld [vmem:[%s1 + $0x50] sm:$0xff]
      %v238 = vld [vmem:[%s1 + $0x58] sm:$0xff]
      %v239 = vld [vmem:[%s2] sm:$0xff]
      %v240 = vld [vmem:[%s2 + $0x8] sm:$0xff]
      %v241 = vld [vmem:[%s2 + $0x10] sm:$0xff]
      %v242 = vld [vmem:[%s2 + $0x18] sm:$0xff]
      %vm243 = vcmask 785408
      %v244 = vsel %vm243, %v225, 0.0
      %v245 = vsel %vm243, %v226, 0.0
      %v246 = vadd.f32 %v244, %v245
      %v247 = vrot.slane %v246, 4
      %v248 = vadd.f32 %v246, %v247
      %v249 = vrot.slane %v248, 2
      %v250 = vadd.f32 %v248, %v249
      %v251 = vrot.slane %v250, 1
      %v252 = vadd.f32 %v250, %v251
      %v253 = vmul.f32 %v225, %v225
      %v254 = vmul.f32 %v226, %v226
      %v255 = vsel %vm243, %v253, 0.0
      %v256 = vsel %vm243, %v254, 0.0
      %v257 = vadd.f32 %v255, %v256
      %v258 = vrot.slane %v257, 4
      %v259 = vadd.f32 %v257, %v258
      %v260 = vrot.slane %v259, 2
      %v261 = vadd.f32 %v259, %v260
      %v262 = vrot.slane %v261, 1
      %v263 = vadd.f32 %v261, %v262
      %v265 = vsel %vm243, %v252, 0
      %267 = vmatpush.msra.mxu0 0.0
      %268 = vmatpush.msra.mxu0 0.0
      %269 = vmatpush.msra.mxu0 0.0
      %270 = vmatpush.msra.mxu0 0.0
      %271 = vmatpush.msra.mxu0 %v238
      %272 = vmatpush.msra.mxu0 %v237
      %273 = vmatpush.msra.mxu0 %v236
      %274 = vmatpush.msra.mxu0 %v235
      %275 = vmatpush.msra.mxu0 %v234
      %276 = vmatpush.msra.mxu0 %v233
      %277 = vmatpush.msra.mxu0 %v232
      %278 = vmatpush.msra.mxu0 %v231
      %279 = vmatpush.msra.mxu0 %v230
      %280 = vmatpush.msra.mxu0 %v229
      %281 = vmatpush.msra.mxu0 %v228
      %282 = vmatpush.msra.mxu0 %v227
      %283 = vmatmul.f32.gmra.mxu0 %v265
      %v284 = vpop.f32.mrf.mxu0
      %v285 = vadd.f32 0.0, %v284
      %286 = vdwg.mxu0
      %v288 = vsel %vm243, %v263, 0
      %290 = vmatpush.msra.mxu0 0.0
      %291 = vmatpush.msra.mxu0 0.0
      %292 = vmatpush.msra.mxu0 0.0
      %293 = vmatpush.msra.mxu0 0.0
      %294 = vmatpush.msra.mxu0 %v238
      %295 = vmatpush.msra.mxu0 %v237
      %296 = vmatpush.msra.mxu0 %v236
      %297 = vmatpush.msra.mxu0 %v235
      %298 = vmatpush.msra.mxu0 %v234
      %299 = vmatpush.msra.mxu0 %v233
      %300 = vmatpush.msra.mxu0 %v232
      %301 = vmatpush.msra.mxu0 %v231
      %302 = vmatpush.msra.mxu0 %v230
      %303 = vmatpush.msra.mxu0 %v229
      %304 = vmatpush.msra.mxu0 %v228
      %305 = vmatpush.msra.mxu0 %v227
      %306 = vmatmul.f32.gmra.mxu0 %v288
      %v307 = vpop.f32.mrf.mxu0
      %v308 = vadd.f32 0.0, %v307
      %309 = vdwg.mxu0
      %v310 = vmul.f32 %v285, 0.020833334
      %v311 = vmul.f32 %v308, 0.020833334
      %v312 = vmul.f32 %v310, %v310
      %v313 = vsub.f32 %v311, %v312
      %v314 = vadd.f32 %v313, 1e-05
      %v315 = vrsqrt.pop %v314
      %v316 = vmul.f32 %v315, %v314
      %v317 = vmul.f32 %v316, %v315
      %v318 = vmul.f32 0.5, %v317
      %v319 = vsub.f32 1.5, %v318
      %v320 = vmul.f32 %v315, %v319
      %vm321 = vweird.f32 %v314
      %vm322 = vweird.f32 %v315
      %vm323 = vmor %vm321, %vm322
      %v324 = vsel %vm323, %v315, %v320
      %vm325 = vcmask 261120
      %v327 = vsel %vm325, %v310, 0
      %329 = vmatpush.msra.mxu0 0.0
      %330 = vmatpush.msra.mxu0 0.0
      %331 = vmatpush.msra.mxu0 0.0
      %332 = vmatpush.msra.mxu0 0.0
      %333 = vmatpush.msra.mxu0 0.0
      %334 = vmatpush.msra.mxu0 0.0
      %335 = vmatpush.msra.mxu0 0.0
      %336 = vmatpush.msra.mxu0 0.0
      %337 = vmatpush.msra.mxu0 0.0
      %338 = vmatpush.msra.mxu0 0.0
      %339 = vmatpush.msra.mxu0 0.0
      %340 = vmatpush.msra.mxu0 0.0
      %341 = vmatpush.msra.mxu0 %v242
      %342 = vmatpush.msra.mxu0 %v241
      %343 = vmatpush.msra.mxu0 %v240
      %344 = vmatpush.msra.mxu0 %v239
      %345 = vmatmul.f32.gmra.mxu0 %v327
      %v346 = vpop.f32.mrf.mxu0
      %v347 = vadd.f32 0.0, %v346
      %348 = vdwg.mxu0
      %v350 = vsel %vm325, %v324, 0
      %352 = vmatpush.msra.mxu0 0.0
      %353 = vmatpush.msra.mxu0 0.0
      %354 = vmatpush.msra.mxu0 0.0
      %355 = vmatpush.msra.mxu0 0.0
      %356 = vmatpush.msra.mxu0 0.0
      %357 = vmatpush.msra.mxu0 0.0
      %358 = vmatpush.msra.mxu0 0.0
      %359 = vmatpush.msra.mxu0 0.0
      %360 = vmatpush.msra.mxu0 0.0
      %361 = vmatpush.msra.mxu0 0.0
      %362 = vmatpush.msra.mxu0 0.0
      %363 = vmatpush.msra.mxu0 0.0
      %364 = vmatpush.msra.mxu0 %v242
      %365 = vmatpush.msra.mxu0 %v241
      %366 = vmatpush.msra.mxu0 %v240
      %367 = vmatpush.msra.mxu0 %v239
      %368 = vmatmul.f32.gmra.mxu0 %v350
      %v369 = vpop.f32.mrf.mxu0
      %v370 = vadd.f32 0.0, %v369
      %371 = vdwg.mxu0
      %v372 = vperm.slane %v347, 0
      %v373 = vsub.f32 %v225, %v372
      %v374 = vsub.f32 %v226, %v372
      %v375 = vperm.slane %v370, 0
      %v376 = vmul.f32 %v373, %v375
      %v377 = vmul.f32 %v374, %v375
      %v378 = vld [vmem:[%s3] sm:$0x1]
      %v380 = vperm.slane %v378, 0
      %v382 = vmul.f32 %v376, %v380
      %v383 = vmul.f32 %v377, %v380
      %v384 = vld [vmem:[%s4] sm:$0x1]
      %v386 = vperm.slane %v384, 0
      %v388 = vadd.f32 %v382, %v386
      %v389 = vadd.f32 %v383, %v386
      %v390 = vxor.u32 %v388, 2147483648
      %v391 = vxor.u32 %v389, 2147483648
      %v392 = vmul.f32 %v390, 1.442695
      %v393 = vpow.pop %v392
      %v394 = vmul.f32 %v391, 1.442695
      %v395 = vpow.pop %v394
      %v396 = vadd.f32 %v393, 1.0
      %v397 = vadd.f32 %v395, 1.0
      %v398 = vrcp.pop %v396
      %v399 = vmul.f32 %v396, %v398
      %v400 = vsub.f32 1.0, %v399
      %v401 = vmul.f32 %v398, %v400
      %v402 = vadd.f32 %v398, %v401
      %vm403 = vweird.f32 %v396
      %vm404 = vweird.f32 %v398
      %vm405 = vmor %vm403, %vm404
      %v406 = vsel %vm405, %v398, %v402
      %v407 = vand.u32 2147483647, %v396
      %vm408 = vcmp.eq.f32.partialorder %v407, 8.507059e+37
      %v409 = vand.u32 %v396, 2147483648
      %v410 = vor.u32 1.1754944e-38, %v409
      %v411 = vsel %vm408, %v410, %v406
      %v412 = vmul.f32 1.0, %v411
      %v413 = vrcp.pop %v397
      %v414 = vmul.f32 %v397, %v413
      %v415 = vsub.f32 1.0, %v414
      %v416 = vmul.f32 %v413, %v415
      %v417 = vadd.f32 %v413, %v416
      %vm418 = vweird.f32 %v397
      %vm419 = vweird.f32 %v413
      %vm420 = vmor %vm418, %vm419
      %v421 = vsel %vm420, %v413, %v417
      %v422 = vand.u32 2147483647, %v397
      %vm423 = vcmp.eq.f32.partialorder %v422, 8.507059e+37
      %v424 = vand.u32 %v397, 2147483648
      %v425 = vor.u32 1.1754944e-38, %v424
      %v426 = vsel %vm423, %v425, %v421
      %v427 = vmul.f32 1.0, %v426
      %v428 = vmul.f32 %v388, %v412
      %v429 = vmul.f32 %v389, %v427
      %430 = vst.msk [vmem:[%s224] sm:$0xff] %vm243, %v428
      %431 = vst.msk [vmem:[%s224 + $0x8] sm:$0xff] %vm243, %v429
      %p432 = scmp.lt.s32.totalorder %s16, 1
      %s433 = scalar_select %p432, %s16, 1
      %s434 = smul.addr %s433, 2
      %s435 = smul.addr %s434, 8
      %s436 = scalar_lea.vmem %s5, %s435
      // Predicated region
      $region41: #{upblock_forward.72} parent=39 // pred_check
        %p437 = pneg %p144
      $region42: #{upblock_forward.72} parent=39 // pred_check_branch
        %439 = sbr.rel (%p437) target = $region44
      $region43: #{upblock_forward.72} parent=39 // pred_region
        _
      $region44: #{upblock_forward.72} parent=39 // pred_fallthru
        _
    $region40: #{upblock_forward.72} parent=5 // pred_fallthru
      _
    %p440 = scmp.le.s32.totalorder 2, %s11
    // Predicated region
    $region45: #{upblock_forward.72} parent=5 // pred_check
      %p441 = pneg %p440
    $region46: #{upblock_forward.72} parent=5 // pred_check_branch
      %443 = sbr.rel (%p441) target = $region48
    $region47: #{upblock_forward.72} parent=5 // pred_region
      %s444 = ssub.s32 %s11, 2
      // Predicated region
      $region49: #{upblock_forward.72} parent=47 // pred_check
        %p445 = pneg %p150
      $region50: #{upblock_forward.72} parent=47 // pred_check_branch
        %447 = sbr.rel (%p445) target = $region52
      $region51: #{upblock_forward.72} parent=47 // pred_region
        %p448 = scmp.lt.s32.totalorder %s17, 1
        %s449 = scalar_select %p448, %s17, 1
        %s450 = smul.addr %s449, 2
        %s451 = smul.addr %s450, 8
        %s452 = scalar_lea.vmem %s5, %s451
      $region52: #{upblock_forward.72} parent=47 // pred_fallthru
        _
    $region48: #{upblock_forward.72} parent=5 // pred_fallthru
      _
  $region6: #{upblock_forward.72} parent=0 // loop_footer
    %s15 = sadd.s32 1, %s11
  $region7: #{upblock_forward.72} parent=0 // loop_footer_branch
    %10 = sbr.rel target = $region3
  $region8: #{upblock_forward.72} parent=0 // loop_exit
    _

// kernel: upblock_forward.107
$region0: #{upblock_forward.107}
  #allocation0 [shape = 'u32[]', space=smem, size = 0x4, offset = 0x4, fixed_abs, tag = 'smem constant byte address 0x4 - core index']
  #allocation1 [shape = 'u32[72,128]{1,0:T(1,128)}', space=vmem, size = 0x9000, scoped, tag = 'internal scratch']
  %s0 = inlined_call_operand.vmem [shape: f32[2,18,64], index: 0, kind: input, shape index: {}]
  %s1 = inlined_call_operand.vmem [shape: bf16[3,64,64], index: 1, kind: input, shape index: {}]
  %s2 = inlined_call_operand.vmem [shape: f32[1,64], index: 2, kind: input, shape index: {}]
  %s3 = inlined_call_operand.hbm [shape: f32[2,16,64], index: 3, kind: output, shape index: {}]
  %s4 = sld [smem:[#allocation0]]
  $region45: #{upblock_forward.107} parent=0
    _
  %s6 = ssub.s32 1, %s4
  %s7 = scalar_select 0, %s6, %s4
  $region1: #{upblock_forward.107} parent=0
    #allocation2 [shape = 'u8[16384]{0}', space=vmem, size = 0x4000, scoped, tag = 'output window, operand 0']
    #allocation3 [shape = 's32[2]{0}', space=sflag, size = 0x8, scoped, tag = 'scoped memory for upblock_forward.107']
    %8 = vsyncpa [#allocation3], 0
    %s9 = scalar_lea.sflag [#allocation3], 1
    %10 = vsyncpa %s9, 0
    loop: start=0, step=1, limit=4
    $region2: #{upblock_forward.107} parent=1 // loop_pre_header
      _
    $region3: #{upblock_forward.107} parent=1 // loop_header
      %s12 = sphi 0, %s16
      %p13 = scmp.ge.s32.totalorder %s12, 4
      %s22 = sphi 0, %s24
      %s25 = sphi 0, %s22
      %s26 = sphi 0, %s25
      %s42 = sphi 0, %s26
      %s46 = sphi 0, %s46
      %s48 = sphi 0, %s46
      %s49 = sphi 0, %s48
      %s63 = sphi 0, %s49
      %s67 = sphi 0, %s67
      %s69 = sphi 0, %s67
      %s70 = sphi 0, %s69
      %s84 = sphi 0, %s70
      %s90 = sphi 0, %s92
      %s93 = sphi 0, %s90
      %s94 = sphi 0, %s93
      %s110 = sphi 0, %s94
    $region4: #{upblock_forward.107} parent=1 // loop_header_branch
      %15 = sbr.rel (%p13) target = $region8
    $region5: #{upblock_forward.107} parent=1 // loop_body
      %s17 = ssub.s32 %s12, 1
      %s18 = ssub.s32 %s12, 2
      %s19 = sadd.s32 %s12, 1
      %s20 = ssub.s32 %s12, %s19
      %p21 = scmp.eq.s32.totalorder %s20, 0
      %s23 = sadd.s32 %s22, 1
      %s24 = scalar_select %p21, %s22, %s23
      %p27 = pneg %p21
      %p28 = scmp.eq.s32.totalorder %s12, 1
      %p29 = por %p27, %p28
      %p30 = scmp.ne.s32.totalorder %s22, %s25
      %p31 = scmp.eq.s32.totalorder %s12, 0
      %p32 = por %p30, %p31
      %p33 = scmp.ne.s32.totalorder %s22, %s25
      %p34 = scmp.eq.s32.totalorder %s17, 1
      %p35 = por %p33, %p34
      %p36 = scmp.ne.s32.totalorder %s25, %s26
      %p37 = scmp.eq.s32.totalorder %s17, 0
      %p38 = por %p36, %p37
      %p39 = scmp.ne.s32.totalorder %s25, %s26
      %p40 = scmp.eq.s32.totalorder %s18, 1
      %p41 = por %p39, %p40
      %p43 = scmp.ne.s32.totalorder %s26, %s42
      %p44 = scmp.eq.s32.totalorder %s18, 0
      %p45 = por %p43, %p44
      %s47 = sadd.s32 %s46, 1
      %p50 = scmp.eq.s32.totalorder %s12, 1
      %p51 = scmp.ne.s32.totalorder %s46, %s48
      %p52 = scmp.eq.s32.totalorder %s12, 0
      %p53 = por %p51, %p52
      %p54 = scmp.ne.s32.totalorder %s46, %s48
      %p55 = scmp.eq.s32.totalorder %s17, 1
      %p56 = por %p54, %p55
      %p57 = scmp.ne.s32.totalorder %s48, %s49
      %p58 = scmp.eq.s32.totalorder %s17, 0
      %p59 = por %p57, %p58
      %p60 = scmp.ne.s32.totalorder %s48, %s49
      %p61 = scmp.eq.s32.totalorder %s18, 1
      %p62 = por %p60, %p61
      %p64 = scmp.ne.s32.totalorder %s49, %s63
      %p65 = scmp.eq.s32.totalorder %s18, 0
      %p66 = por %p64, %p65
      %s68 = sadd.s32 %s67, 1
      %p71 = scmp.eq.s32.totalorder %s12, 1
      %p72 = scmp.ne.s32.totalorder %s67, %s69
      %p73 = scmp.eq.s32.totalorder %s12, 0
      %p74 = por %p72, %p73
      %p75 = scmp.ne.s32.totalorder %s67, %s69
      %p76 = scmp.eq.s32.totalorder %s17, 1
      %p77 = por %p75, %p76
      %p78 = scmp.ne.s32.totalorder %s69, %s70
      %p79 = scmp.eq.s32.totalorder %s17, 0
      %p80 = por %p78, %p79
      %p81 = scmp.ne.s32.totalorder %s69, %s70
      %p82 = scmp.eq.s32.totalorder %s18, 1
      %p83 = por %p81, %p82
      %p85 = scmp.ne.s32.totalorder %s70, %s84
      %p86 = scmp.eq.s32.totalorder %s18, 0
      %p87 = por %p85, %p86
      %s88 = ssub.s32 %s12, %s19
      %p89 = scmp.eq.s32.totalorder %s88, 0
      %s91 = sadd.s32 %s90, 1
      %s92 = scalar_select %p89, %s90, %s91
      %p95 = pneg %p89
      %p96 = scmp.eq.s32.totalorder %s12, 1
      %p97 = por %p95, %p96
      %p98 = scmp.ne.s32.totalorder %s90, %s93
      %p99 = scmp.eq.s32.totalorder %s12, 0
      %p100 = por %p98, %p99
      %p101 = scmp.ne.s32.totalorder %s90, %s93
      %p102 = scmp.eq.s32.totalorder %s17, 1
      %p103 = por %p101, %p102
      %p104 = scmp.ne.s32.totalorder %s93, %s94
      %p105 = scmp.eq.s32.totalorder %s17, 0
      %p106 = por %p104, %p105
      %p107 = scmp.ne.s32.totalorder %s93, %s94
      %p108 = scmp.eq.s32.totalorder %s18, 1
      %p109 = por %p107, %p108
      %p111 = scmp.ne.s32.totalorder %s94, %s110
      %p112 = scmp.eq.s32.totalorder %s18, 0
      %p113 = por %p111, %p112
      %p114 = scmp.le.s32.totalorder 1, %s12
      %p115 = scmp.lt.s32.totalorder %s12, 3
      %p116 = pnand %p114, %p115
      %p117 = pneg %p116
      // Predicated region
      $region9: #{upblock_forward.107} parent=5 // pred_check
        _
      $region10: #{upblock_forward.107} parent=5 // pred_check_branch
        %119 = sbr.rel (%p116) target = $region12
      $region11: #{upblock_forward.107} parent=5 // pred_region
        %s120 = ssub.s32 %s12, 1
        // Predicated region
        $region13: #{upblock_forward.107} parent=11 // pred_check
          %p121 = pneg %p59
        $region14: #{upblock_forward.107} parent=11 // pred_check_branch
          %123 = sbr.rel (%p121) target = $region16
        $region15: #{upblock_forward.107} parent=11 // pred_region
          _
        $region16: #{upblock_forward.107} parent=11 // pred_fallthru
          _
        // Predicated region
        $region17: #{upblock_forward.107} parent=11 // pred_check
          %p124 = pneg %p80
        $region18: #{upblock_forward.107} parent=11 // pred_check_branch
          %126 = sbr.rel (%p124) target = $region20
        $region19: #{upblock_forward.107} parent=11 // pred_region
          _
        $region20: #{upblock_forward.107} parent=11 // pred_fallthru
          _
      $region12: #{upblock_forward.107} parent=5 // pred_fallthru
        _
      %p127 = scmp.lt.s32.totalorder %s12, 2
      // Predicated region
      $region21: #{upblock_forward.107} parent=5 // pred_check
        %p128 = pneg %p127
      $region22: #{upblock_forward.107} parent=5 // pred_check_branch
        %130 = sbr.rel (%p128) target = $region24
      $region23: #{upblock_forward.107} parent=5 // pred_region
        // Predicated region
        $region25: #{upblock_forward.107} parent=23 // pred_check
          %p131 = pneg %p32
        $region26: #{upblock_forward.107} parent=23 // pred_check_branch
          %133 = sbr.rel (%p131) target = $region28
        $region27: #{upblock_forward.107} parent=23 // pred_region
          %p134 = scmp.lt.s32.totalorder %s12, 1
          %s135 = scalar_select %p134, %s12, 1
          %s136 = smul.addr %s135, 3
          %s137 = smul.addr %s136, 8
          %s138 = scalar_lea.vmem %s0, %s137
        $region28: #{upblock_forward.107} parent=23 // pred_fallthru
          _
      $region24: #{upblock_forward.107} parent=5 // pred_fallthru
        _
      %p139 = scmp.le.s32.totalorder 1, %s12
      %p140 = scmp.lt.s32.totalorder %s12, 3
      %p141 = pnand %p139, %p140
      %p142 = pneg %p141
      // Predicated region
      $region29: #{upblock_forward.107} parent=5 // pred_check
        _
      $region30: #{upblock_forward.107} parent=5 // pred_check_branch
        %144 = sbr.rel (%p141) target = $region32
      $region31: #{upblock_forward.107} parent=5 // pred_region
        %s145 = ssub.s32 %s12, 1
        %p146 = scmp.lt.s32.totalorder %s17, 1
        %s147 = scalar_select %p146, %s17, 1
        %s148 = smul.addr %s147, 3
        %s149 = smul.addr %s148, 8
        %s150 = scalar_lea.vmem %s0, %s149
        %p151 = pneg %p38
        %p152 = pneg %p35
        %p153 = pneg %p59
        %p154 = pneg %p56
        %p155 = pneg %p80
        %p156 = pneg %p77
        %p157 = pneg %p106
        %p158 = pneg %p103
        %s159 = sand.u32 %s93, 1
        %s160 = scalar_lea.sflag [#allocation3], %s159
        %s161 = sand.u32 %s93, 1
        %s162 = smul.addr %s161, 16
        %s163 = scalar_lea.vmem [#allocation2], %s162
        %p164 = scmp.lt.s32.totalorder %s17, 1
        %s165 = scalar_select %p164, %s17, 1
        %s166 = smul.addr %s165, 3
        %s167 = smul.addr %s166, 8
        %s168 = scalar_lea.vmem %s0, %s167
        %v170 = vld [vmem:[%s1] sm:$0xf]
        %v171 = vld [vmem:[%s1 + $0x4] sm:$0xf]
        %v172 = vld [vmem:[%s1 + $0x8] sm:$0xf]
        %v173 = vld [vmem:[%s1 + $0xc] sm:$0xf]
        %v174 = vld [vmem:[%s1 + $0x10] sm:$0xf]
        %v175 = vld [vmem:[%s1 + $0x14] sm:$0xf]
        %v176 = vld [vmem:[%s1 + $0x18] sm:$0xf]
        %v177 = vld [vmem:[%s1 + $0x1c] sm:$0xf]
        %v178 = vld [vmem:[%s1 + $0x20] sm:$0xf]
        %v179 = vld [vmem:[%s1 + $0x24] sm:$0xf]
        %v180 = vld [vmem:[%s1 + $0x28] sm:$0xf]
        %v181 = vld [vmem:[%s1 + $0x2c] sm:$0xf]
        %v182 = vld [vmem:[%s1 + $0x30] sm:$0xf]
        %v183 = vld [vmem:[%s1 + $0x34] sm:$0xf]
        %v184 = vld [vmem:[%s1 + $0x38] sm:$0xf]
        %v185 = vld [vmem:[%s1 + $0x3c] sm:$0xf]
        %v186 = vld [vmem:[%s1 + $0x40] sm:$0xf]
        %v187 = vld [vmem:[%s1 + $0x44] sm:$0xf]
        %v188 = vld [vmem:[%s1 + $0x48] sm:$0xf]
        %v189 = vld [vmem:[%s1 + $0x4c] sm:$0xf]
        %v190 = vld [vmem:[%s1 + $0x50] sm:$0xf]
        %v191 = vld [vmem:[%s1 + $0x54] sm:$0xf]
        %v192 = vld [vmem:[%s1 + $0x58] sm:$0xf]
        %v193 = vld [vmem:[%s1 + $0x5c] sm:$0xf]
        %v194 = vld [vmem:[%s168] sm:$0xff]
        %v195 = vld [vmem:[%s168 + $0x8] sm:$0xff]
        %v196 = vpack.c.bf16 %v195, %v194
        %v197 = vld [vmem:[%s168 + $0x1] sm:$0xff]
        %v198 = vld [vmem:[%s168 + $0x9] sm:$0xff]
        %v199 = vpack.c.bf16 %v198, %v197
        %v200 = vld [vmem:[%s168 + $0x2] sm:$0xff]
        %v201 = vld [vmem:[%s168 + $0xa] sm:$0xff]
        %v202 = vpack.c.bf16 %v201, %v200
        %v211 = vunpack.c.l.b16 %v178
        %v212 = vunpack.c.l.b16 %v179
        %v213 = vunpack.c.l.b16 %v180
        %v214 = vunpack.c.l.b16 %v181
        %v215 = vunpack.c.l.b16 %v182
        %v216 = vunpack.c.l.b16 %v183
        %v217 = vunpack.c.l.b16 %v184
        %v218 = vunpack.c.l.b16 %v185
        %v219 = vpack.c.b16 %v212, %v211
        %v220 = vpack.c.b16 %v214, %v213
        %v221 = vpack.c.b16 %v216, %v215
        %v222 = vpack.c.b16 %v218, %v217
        %vm227 = vcmask 523264
        %v229 = vsel %vm227, %v199, 0
        %231 = vmatpush.bf16.msra.mxu0 0
        %232 = vmatpush.bf16.msra.mxu0 0
        %233 = vmatpush.bf16.msra.mxu0 0
        %234 = vmatpush.bf16.msra.mxu0 0
        %235 = vmatpush.bf16.msra.mxu0 %v222
        %236 = vmatpush.bf16.msra.mxu0 %v221
        %237 = vmatpush.bf16.msra.mxu0 %v220
        %238 = vmatpush.bf16.msra.mxu0 %v219
        %239 = vmatmul.bf16.gmra.mxu0 %v229
        %v240 = vpop.f32.mrf.mxu0
        %v241 = vadd.f32 0.0, %v240
        %v242 = vpop.f32.mrf.mxu0
        %v243 = vadd.f32 0.0, %v242
        %244 = vdwg.mxu0
        %v253 = vunpack.c.l.b16 %v170
        %v254 = vunpack.c.l.b16 %v171
        %v255 = vunpack.c.l.b16 %v172
        %v256 = vunpack.c.l.b16 %v173
        %v257 = vunpack.c.l.b16 %v174
        %v258 = vunpack.c.l.b16 %v175
        %v259 = vunpack.c.l.b16 %v176
        %v260 = vunpack.c.l.b16 %v177
        %v261 = vpack.c.b16 %v254, %v253
        %v262 = vpack.c.b16 %v256, %v255
        %v263 = vpack.c.b16 %v258, %v257
        %v264 = vpack.c.b16 %v260, %v259
        %v270 = vsel %vm227, %v196, 0
        %272 = vmatpush.bf16.msra.mxu0 0
        %273 = vmatpush.bf16.msra.mxu0 0
        %274 = vmatpush.bf16.msra.mxu0 0
        %275 = vmatpush.bf16.msra.mxu0 0
        %276 = vmatpush.bf16.msra.mxu0 %v264
        %277 = vmatpush.bf16.msra.mxu0 %v263
        %278 = vmatpush.bf16.msra.mxu0 %v262
        %279 = vmatpush.bf16.msra.mxu0 %v261
        %280 = vmatmul.bf16.gmra.mxu0 %v270
        %v281 = vpop.f32.mrf.mxu0
        %v282 = vadd.f32 %v241, %v281
        %v283 = vpop.f32.mrf.mxu0
        %v284 = vadd.f32 %v243, %v283
        %285 = vdwg.mxu0
        %v294 = vunpack.c.l.b16 %v186
        %v295 = vunpack.c.l.b16 %v187
        %v296 = vunpack.c.l.b16 %v188
        %v297 = vunpack.c.l.b16 %v189
        %v298 = vunpack.c.l.b16 %v190
        %v299 = vunpack.c.l.b16 %v191
        %v300 = vunpack.c.l.b16 %v192
        %v301 = vunpack.c.l.b16 %v193
        %v302 = vpack.c.b16 %v295, %v294
        %v303 = vpack.c.b16 %v297, %v296
        %v304 = vpack.c.b16 %v299, %v298
        %v305 = vpack.c.b16 %v301, %v300
        %v311 = vsel %vm227, %v202, 0
        %313 = vmatpush.bf16.msra.mxu0 0
        %314 = vmatpush.bf16.msra.mxu0 0
        %315 = vmatpush.bf16.msra.mxu0 0
        %316 = vmatpush.bf16.msra.mxu0 0
        %317 = vmatpush.bf16.msra.mxu0 %v305
        %318 = vmatpush.bf16.msra.mxu0 %v304
        %319 = vmatpush.bf16.msra.mxu0 %v303
        %320 = vmatpush.bf16.msra.mxu0 %v302
        %321 = vmatmul.bf16.gmra.mxu0 %v311
        %v322 = vpop.f32.mrf.mxu0
        %v323 = vadd.f32 0.0, %v322
        %v324 = vpop.f32.mrf.mxu0
        %v325 = vadd.f32 0.0, %v324
        %326 = vdwg.mxu0
        %v327 = vadd.f32 %v282, %v323
        %v328 = vadd.f32 %v284, %v325
        %v329 = vld [vmem:[%s2] sm:$0x1]
        %v331 = vperm.slane %v329, 0
        %v333 = vadd.f32 %v327, %v331
        %v334 = vadd.f32 %v328, %v331
        %335 = vst.msk [vmem:[%s163] sm:$0xff] %vm227, %v333
        %336 = vst.msk [vmem:[%s163 + $0x8] sm:$0xff] %vm227, %v334
        %s337 = sand.u32 %s93, 1
        %s338 = scalar_lea.sflag [#allocation3], %s337
        %s339 = sand.u32 %s93, 1
        %s340 = smul.addr %s339, 16
        %s341 = scalar_lea.vmem [#allocation2], %s340
        // Predicated region
        $region33: #{upblock_forward.107} parent=31 // pred_check
          %p342 = pneg %p103
        $region34: #{upblock_forward.107} parent=31 // pred_check_branch
          %344 = sbr.rel (%p342) target = $region36
        $region35: #{upblock_forward.107} parent=31 // pred_region
          %346 = vsyncadd %s338, 0
          %s347 = smul.addr %s17, 2
          %s348 = smul.addr %s347, 8
          %s349 = scalar_lea.hbm %s3, %s348
          %s350 = sshll.u32 %s341, 4
          %s351 = int_to_ptr.vmem [resolvable:$true] %s350
          %s352 = sshll.u32 %s349, 4
          %s353 = int_to_ptr.hbm [resolvable:$true] %s352
          %358 = dma.vmem_to_hbm [thread:$0]  %s351, 256, %s353, %s338, 128, 128, 8
        $region36: #{upblock_forward.107} parent=31 // pred_fallthru
          _
      $region32: #{upblock_forward.107} parent=5 // pred_fallthru
        _
      %p359 = scmp.le.s32.totalorder 2, %s12
      // Predicated region
      $region37: #{upblock_forward.107} parent=5 // pred_check
        %p360 = pneg %p359
      $region38: #{upblock_forward.107} parent=5 // pred_check_branch
        %362 = sbr.rel (%p360) target = $region40
      $region39: #{upblock_forward.107} parent=5 // pred_region
        %s363 = ssub.s32 %s12, 2
        // Predicated region
        $region41: #{upblock_forward.107} parent=39 // pred_check
          %p364 = pneg %p109
        $region42: #{upblock_forward.107} parent=39 // pred_check_branch
          %366 = sbr.rel (%p364) target = $region44
        $region43: #{upblock_forward.107} parent=39 // pred_region
          %s367 = sand.u32 %s94, 1
          %s368 = scalar_lea.sflag [#allocation3], %s367
          %s369 = sand.u32 %s94, 1
          %s370 = smul.addr %s369, 16
          %s371 = scalar_lea.vmem [#allocation2], %s370
          %373 = dma.done %s368, 256
        $region44: #{upblock_forward.107} parent=39 // pred_fallthru
          _
      $region40: #{upblock_forward.107} parent=5 // pred_fallthru
        _
    $region6: #{upblock_forward.107} parent=1 // loop_footer
      %s16 = sadd.s32 1, %s12
    $region7: #{upblock_forward.107} parent=1 // loop_footer_branch
      %11 = sbr.rel target = $region3
    $region8: #{upblock_forward.107} parent=1 // loop_exit
      _
    %374 = vsyncpa [#allocation3], 1
    %s375 = scalar_lea.sflag [#allocation3], 1
    %376 = vsyncpa %s375, 1

</llo_original>
